<compile_context>
chip_gen: v7x
topology: tpu7x:2x2x1
jax: 0.10.0
libtpu: 0.0.40
codegen_flags: <defaults>
</compile_context>

<pallas_src>
import collections
import functools

import jax
import jax.numpy as jnp
from jax.experimental import pallas as pl
from jax.experimental.pallas import tpu as pltpu

COUT_LANES = 128                      # pad conv output channels to a full vreg lane width
VMEM_LIMIT = 32 * 1024 * 1024         # safe on v5e/v6e/v7x; per-block usage here is ~1 MB


def _round_up(x, m):
    return ((x + m - 1) // m) * m


Geom = collections.namedtuple("Geom", ["H", "W", "Hp", "Wp", "Rout", "Rpad", "lead", "shift_rows"])


def make_geom(H, W):
    Hp, Wp = H + 2, W + 2
    Rout = H * Wp                      # conv output rows per image (incl. 2 garbage cols/row)
    lead = (-(Wp + 1)) % 16            # makes the chained store offset a multiple of 16 (bf16 tile)
    Rpad = _round_up(lead + Hp * Wp + 2, 16)   # +2: over-read of the (dy=2,dx=2) slice
    return Geom(H, W, Hp, Wp, Rout, Rpad, lead, lead + Wp + 1)


# ----------------------------- Pallas kernels ------------------------------ #

def _conv_accumulate(x_ref, w_ref, *, rout, wp, lead):
    """Sum of 9 shifted matmuls on the flattened padded image (bf16 in, f32 acc)."""
    coutp = w_ref.shape[-1]
    acc = jnp.zeros((rout, coutp), jnp.float32)
    for dy in range(3):
        for dx in range(3):
            off = lead + dy * wp + dx
            patch = x_ref[0, off:off + rout, :]            # (rout, Cin) bf16, static slice
            acc = acc + jnp.dot(patch, w_ref[dy * 3 + dx],
                                preferred_element_type=jnp.float32)
    return acc


def _conv_stats_kernel(x_ref, w_ref, mask_ref, z_ref, sum_ref, ssq_ref, *, rout, wp, lead):
    """Conv (no bias) + fused masked BN partial statistics.  z stored bf16, lane-dense."""
    acc = _conv_accumulate(x_ref, w_ref, rout=rout, wp=wp, lead=lead)
    m = mask_ref[...]                                       # (rout, 1) f32 in {0,1}
    zm = acc * m
    sum_ref[0] = jnp.sum(zm, axis=0, keepdims=True)
    ssq_ref[0] = jnp.sum(zm * acc, axis=0, keepdims=True)   # m * acc^2
    z_ref[0] = acc.astype(z_ref.dtype)


def _conv_bias_relu_kernel(x_ref, w_ref, b_ref, mask_ref, o_ref, *,
                           rout, wp, lead, chain, shift_rows):
    """Conv + bias + ReLU (no-BN path).  chain=True writes next block's padded bf16 input."""
    acc = _conv_accumulate(x_ref, w_ref, rout=rout, wp=wp, lead=lead)
    y = jnp.maximum(acc + b_ref[...], 0.0)
    if chain:
        y = y * mask_ref[...]                               # zero the wrap (halo) columns
        o_ref[0] = jnp.zeros(o_ref.shape[1:], o_ref.dtype)  # zero halo rows / tail
        o_ref[0, shift_rows:shift_rows + rout, :] = y.astype(o_ref.dtype)
    else:
        o_ref[0] = y.astype(o_ref.dtype)


def _affine_relu_kernel(z_ref, scale_ref, shift_ref, mask_ref, o_ref, *,
                        rout, chain, shift_rows):
    """BN (precomputed scale/shift) + ReLU epilogue; f32 math, bf16/ f32 store."""
    y = z_ref[0].astype(jnp.float32) * scale_ref[...] + shift_ref[...]
    y = jnp.maximum(y, 0.0)
    if chain:
        y = y * mask_ref[...]
        o_ref[0] = jnp.zeros(o_ref.shape[1:], o_ref.dtype)
        o_ref[0, shift_rows:shift_rows + rout, :] = y.astype(o_ref.dtype)
    else:
        o_ref[0] = y.astype(o_ref.dtype)


# --------------------------- pallas_call wrappers --------------------------- #

def _compiler_params():
    return pltpu.CompilerParams(dimension_semantics=("parallel",),
                                vmem_limit_bytes=VMEM_LIMIT)


def conv_stats(xin, wk, mask, g, coutp):
    N, rpad, cinp = xin.shape
    kernel = functools.partial(_conv_stats_kernel, rout=g.Rout, wp=g.Wp, lead=g.lead)
    return pl.pallas_call(
        kernel,
        grid=(N,),
        in_specs=[
            pl.BlockSpec((1, rpad, cinp), lambda n: (n, 0, 0)),
            pl.BlockSpec((9, cinp, coutp), lambda n: (0, 0, 0)),
            pl.BlockSpec((g.Rout, 1), lambda n: (0, 0)),
        ],
        out_specs=(
            pl.BlockSpec((1, g.Rout, coutp), lambda n: (n, 0, 0)),
            pl.BlockSpec((1, 1, coutp), lambda n: (n, 0, 0)),
            pl.BlockSpec((1, 1, coutp), lambda n: (n, 0, 0)),
        ),
        out_shape=(
            jax.ShapeDtypeStruct((N, g.Rout, coutp), jnp.bfloat16),
            jax.ShapeDtypeStruct((N, 1, coutp), jnp.float32),
            jax.ShapeDtypeStruct((N, 1, coutp), jnp.float32),
        ),
        compiler_params=_compiler_params(),
    )(xin, wk, mask)


def conv_bias_relu(xin, wk, bias, mask, g, chain):
    N, rpad, cinp = xin.shape
    coutp = wk.shape[-1]
    kernel = functools.partial(_conv_bias_relu_kernel, rout=g.Rout, wp=g.Wp,
                               lead=g.lead, chain=chain, shift_rows=g.shift_rows)
    if chain:
        out_shape = jax.ShapeDtypeStruct((N, g.Rpad, coutp), jnp.bfloat16)
        out_spec = pl.BlockSpec((1, g.Rpad, coutp), lambda n: (n, 0, 0))
    else:
        out_shape = jax.ShapeDtypeStruct((N, g.Rout, coutp), jnp.float32)
        out_spec = pl.BlockSpec((1, g.Rout, coutp), lambda n: (n, 0, 0))
    return pl.pallas_call(
        kernel,
        grid=(N,),
        in_specs=[
            pl.BlockSpec((1, rpad, cinp), lambda n: (n, 0, 0)),
            pl.BlockSpec((9, cinp, coutp), lambda n: (0, 0, 0)),
            pl.BlockSpec((1, coutp), lambda n: (0, 0)),
            pl.BlockSpec((g.Rout, 1), lambda n: (0, 0)),
        ],
        out_specs=out_spec,
        out_shape=out_shape,
        compiler_params=_compiler_params(),
    )(xin, wk, bias, mask)


def affine_relu(z, scale, shift, mask, g, chain):
    N, rout, coutp = z.shape
    kernel = functools.partial(_affine_relu_kernel, rout=rout, chain=chain,
                               shift_rows=g.shift_rows)
    if chain:
        out_shape = jax.ShapeDtypeStruct((N, g.Rpad, coutp), jnp.bfloat16)
        out_spec = pl.BlockSpec((1, g.Rpad, coutp), lambda n: (n, 0, 0))
    else:
        out_shape = jax.ShapeDtypeStruct((N, rout, coutp), jnp.float32)
        out_spec = pl.BlockSpec((1, rout, coutp), lambda n: (n, 0, 0))
    return pl.pallas_call(
        kernel,
        grid=(N,),
        in_specs=[
            pl.BlockSpec((1, rout, coutp), lambda n: (n, 0, 0)),
            pl.BlockSpec((1, coutp), lambda n: (0, 0)),
            pl.BlockSpec((1, coutp), lambda n: (0, 0)),
            pl.BlockSpec((g.Rout, 1), lambda n: (0, 0)),
        ],
        out_specs=out_spec,
        out_shape=out_shape,
        compiler_params=_compiler_params(),
    )(z, scale, shift, mask)


# ------------------------------ JAX glue code ------------------------------ #

def make_col_mask(g):
    # 1.0 for real output columns, 0.0 for the 2 wrap-around columns of each flattened row.
    col = jnp.arange(g.Rout, dtype=jnp.int32) % g.Wp
    return (col < g.W).astype(jnp.float32).reshape(g.Rout, 1)


def pack_weights(w, cin_pad, cout_pad):
    # PyTorch OIHW -> (9, cin_pad, cout_pad) bf16, zero-padded (zero rows/cols are inert).
    cout, cin, kh, kw = w.shape
    wk = jnp.transpose(w, (2, 3, 1, 0)).reshape(kh * kw, cin, cout)
    wk = jnp.pad(wk, ((0, 0), (0, cin_pad - cin), (0, cout_pad - cout)))
    return wk.astype(jnp.bfloat16)


def bn_scale_shift(sums, ssqs, gamma, beta, count, cout, coutp, eps=1e-5):
    # Finalize mean/var from the in-kernel partial sums; only the real channels are used.
    s = jnp.sum(sums[:, 0, :cout], axis=0)
    ss = jnp.sum(ssqs[:, 0, :cout], axis=0)
    mean = s / count
    var = jnp.maximum(ss / count - mean * mean, 0.0)       # biased variance (BN train mode)
    scale = gamma * jax.lax.rsqrt(var + eps)
    shift = beta - mean * scale
    pad = coutp - cout
    scale = jnp.pad(scale, (0, pad)).reshape(1, coutp).astype(jnp.float32)
    shift = jnp.pad(shift, (0, pad)).reshape(1, coutp).astype(jnp.float32)
    return scale, shift


def unet_conv2_forward(x_nchw, params, is_batchnorm=True, eps=1e-5):
    N, _, H, W = x_nchw.shape
    g = make_geom(H, W)
    mask = make_col_mask(g)

    # NCHW -> NHWC -> spatial pad -> flatten rows -> row pad -> bf16 (first block's input).
    x = jnp.transpose(x_nchw, (0, 2, 3, 1))
    xp = jnp.pad(x, ((0, 0), (1, 1), (1, 1), (0, 0)))
    xin = jnp.pad(xp.reshape(N, g.Hp * g.Wp, x.shape[-1]),
                  ((0, 0), (g.lead, g.Rpad - g.lead - g.Hp * g.Wp), (0, 0)))
    xin = xin.astype(jnp.bfloat16)

    nblk = len(params)
    y_plain = None
    final_cout = final_coutp = None
    for i, p in enumerate(params):
        cout = p["w"].shape[0]
        cinp = xin.shape[-1]                     # physical (padded) input channels
        coutp = _round_up(cout, COUT_LANES)
        wk = pack_weights(p["w"], cinp, coutp)
        last = (i == nblk - 1)
        if is_batchnorm:
            # conv bias is mathematically cancelled by the BN mean subtraction -> skip it.
            z, s, ss = conv_stats(xin, wk, mask, g, coutp)
            scale, shift = bn_scale_shift(s, ss, p["gamma"], p["beta"],
                                          N * H * W, cout, coutp, eps)
            if last:
                y_plain = affine_relu(z, scale, shift, mask, g, chain=False)
            else:
                xin = affine_relu(z, scale, shift, mask, g, chain=True)
        else:
            bpad = jnp.pad(p["b"], (0, coutp - cout)).reshape(1, coutp).astype(jnp.float32)
            if last:
                y_plain = conv_bias_relu(xin, wk, bpad, mask, g, chain=False)
            else:
                xin = conv_bias_relu(xin, wk, bpad, mask, g, chain=True)
        final_cout, final_coutp = cout, coutp

    # Drop wrap columns / padded channels, back to NCHW (small XLA slice + transpose).
    out = y_plain.reshape(N, H, g.Wp, final_coutp)[:, :, :W, :final_cout]
    return jnp.transpose(out, (0, 3, 1, 2))


def init_unet_conv2_params(key, in_size, out_size, n=2, ks=3, is_batchnorm=True):
    params = []
    cin = in_size
    for _ in range(n):
        key, kw, kb, kg = jax.random.split(key, 4)
        fan_in = cin * ks * ks
        std = (2.0 / fan_in) ** 0.5                    # kaiming_normal_(a=0, mode='fan_in')
        w = std * jax.random.normal(kw, (out_size, cin, ks, ks), jnp.float32)
        bound = 1.0 / (fan_in ** 0.5)                  # PyTorch default Conv2d bias init
        b = jax.random.uniform(kb, (out_size,), jnp.float32, -bound, bound)
        p = {"w": w, "b": b}
        if is_batchnorm:
            p["gamma"] = 1.0 + 0.02 * jax.random.normal(kg, (out_size,), jnp.float32)
            p["beta"] = jnp.zeros((out_size,), jnp.float32)
        params.append(p)
        cin = out_size
    return params


# ------------------------------ pure-JAX reference -------------------------- #

def unet_conv2_reference(x, params, is_batchnorm=True, eps=1e-5):
    for p in params:
        z = jax.lax.conv_general_dilated(
            x, p["w"], window_strides=(1, 1), padding=((1, 1), (1, 1)),
            dimension_numbers=("NCHW", "OIHW", "NCHW"),
        ) + p["b"][None, :, None, None]
        if is_batchnorm:
            mean = jnp.mean(z, axis=(0, 2, 3), keepdims=True)
            var = jnp.mean((z - mean) ** 2, axis=(0, 2, 3), keepdims=True)
            z = (z - mean) / jnp.sqrt(var + eps) * p["gamma"][None, :, None, None] \
                + p["beta"][None, :, None, None]
        x = jnp.maximum(z, 0.0)
    return x


if __name__ == "__main__":
    key = jax.random.PRNGKey(0)
    key, kx = jax.random.split(key)

    # unetConv2(in_size=4, out_size=8, is_batchnorm=True, n=2, ks=3, stride=1, padding=1)
    in_size, out_size = 4, 8
    x = jax.random.normal(kx, (2, in_size, 16, 16), jnp.float32)   # NCHW input
    params = init_unet_conv2_params(key, in_size, out_size, n=2, ks=3, is_batchnorm=True)

    # bf16 MXU operands vs. f32 reference -> loosened tolerance.
    fwd_bn = jax.jit(functools.partial(unet_conv2_forward, is_batchnorm=True))
    out = jax.block_until_ready(fwd_bn(x, params))
    ref = unet_conv2_reference(x, params, is_batchnorm=True)
    assert out.shape == (2, out_size, 16, 16), out.shape
    assert jnp.allclose(out, ref, rtol=5e-2, atol=5e-2), float(jnp.max(jnp.abs(out - ref)))

    fwd_nobn = jax.jit(functools.partial(unet_conv2_forward, is_batchnorm=False))
    out2 = jax.block_until_ready(fwd_nobn(x, params))
    ref2 = unet_conv2_reference(x, params, is_batchnorm=False)
    assert out2.shape == (2, out_size, 16, 16), out2.shape
    assert jnp.allclose(out2, ref2, rtol=5e-2, atol=5e-2), float(jnp.max(jnp.abs(out2 - ref2)))

    print("KERNEL_OK")
</pallas_src>

<mosaic_0001>
module attributes {stable_mosaic.version = 11 : i64} {
  func.func @_conv_stats_kernel(%arg0: i32, %arg1: memref<1x352x4xbf16, #tpu.memory_space<vmem>>, %arg2: memref<9x4x128xbf16, #tpu.memory_space<vmem>>, %arg3: memref<288x1xf32, #tpu.memory_space<vmem>>, %arg4: memref<1x288x128xbf16, #tpu.memory_space<vmem>>, %arg5: memref<1x1x128xf32, #tpu.memory_space<vmem>>, %arg6: memref<1x1x128xf32, #tpu.memory_space<vmem>>) attributes {dimension_semantics = [#tpu.dimension_semantics<parallel>], iteration_bounds = array<i64: 2>, scalar_prefetch = 0 : i64, scratch_operands = 0 : i64, tpu.core_type = #tpu.core_type<tc>, window_params = [{transform_indices = @transform_0, window_bounds = array<i64: 1, 352, 4>}, {pipeline_mode = #tpu.pipeline_mode<synchronous>, transform_indices = @transform_1, window_bounds = array<i64: 9, 4, 128>}, {pipeline_mode = #tpu.pipeline_mode<synchronous>, transform_indices = @transform_2, window_bounds = array<i64: 288, 1>}, {transform_indices = @transform_3, window_bounds = array<i64: 1, 288, 128>}, {transform_indices = @transform_4, window_bounds = array<i64: 1, 1, 128>}, {transform_indices = @transform_5, window_bounds = array<i64: 1, 1, 128>}]} {
    %cst = arith.constant 0.000000e+00 : f32
    %0 = vector.broadcast %cst : f32 to vector<288x128xf32>
    %c0 = arith.constant 0 : index
    %c13 = arith.constant 13 : index
    %c0_0 = arith.constant 0 : index
    %1 = vector.load %arg1[%c0, %c13, %c0_0] : memref<1x352x4xbf16, #tpu.memory_space<vmem>>, vector<1x288x4xbf16>
    %2 = vector.shape_cast %1 : vector<1x288x4xbf16> to vector<288x4xbf16>
    %c0_1 = arith.constant 0 : index
    %c0_2 = arith.constant 0 : index
    %c0_3 = arith.constant 0 : index
    %3 = vector.load %arg2[%c0_1, %c0_2, %c0_3] : memref<9x4x128xbf16, #tpu.memory_space<vmem>>, vector<1x4x128xbf16>
    %4 = vector.shape_cast %3 : vector<1x4x128xbf16> to vector<4x128xbf16>
    %cst_4 = arith.constant dense<0.000000e+00> : vector<288x128xf32>
    %5 = tpu.matmul %2, %4, %cst_4 {dimension_numbers = #tpu.dot_dimension_numbers<[1], [0], [0], [1], [0, 0, 1, 1], [], []>} : vector<288x4xbf16>, vector<4x128xbf16>, vector<288x128xf32> -> vector<288x128xf32>
    %6 = arith.addf %0, %5 : vector<288x128xf32>
    %c0_5 = arith.constant 0 : index
    %c14 = arith.constant 14 : index
    %c0_6 = arith.constant 0 : index
    %7 = vector.load %arg1[%c0_5, %c14, %c0_6] : memref<1x352x4xbf16, #tpu.memory_space<vmem>>, vector<1x288x4xbf16>
    %8 = vector.shape_cast %7 : vector<1x288x4xbf16> to vector<288x4xbf16>
    %c1 = arith.constant 1 : index
    %c0_7 = arith.constant 0 : index
    %c0_8 = arith.constant 0 : index
    %9 = vector.load %arg2[%c1, %c0_7, %c0_8] : memref<9x4x128xbf16, #tpu.memory_space<vmem>>, vector<1x4x128xbf16>
    %10 = vector.shape_cast %9 : vector<1x4x128xbf16> to vector<4x128xbf16>
    %cst_9 = arith.constant dense<0.000000e+00> : vector<288x128xf32>
    %11 = tpu.matmul %8, %10, %cst_9 {dimension_numbers = #tpu.dot_dimension_numbers<[1], [0], [0], [1], [0, 0, 1, 1], [], []>} : vector<288x4xbf16>, vector<4x128xbf16>, vector<288x128xf32> -> vector<288x128xf32>
    %12 = arith.addf %6, %11 : vector<288x128xf32>
    %c0_10 = arith.constant 0 : index
    %c15 = arith.constant 15 : index
    %c0_11 = arith.constant 0 : index
    %13 = vector.load %arg1[%c0_10, %c15, %c0_11] : memref<1x352x4xbf16, #tpu.memory_space<vmem>>, vector<1x288x4xbf16>
    %14 = vector.shape_cast %13 : vector<1x288x4xbf16> to vector<288x4xbf16>
    %c2 = arith.constant 2 : index
    %c0_12 = arith.constant 0 : index
    %c0_13 = arith.constant 0 : index
    %15 = vector.load %arg2[%c2, %c0_12, %c0_13] : memref<9x4x128xbf16, #tpu.memory_space<vmem>>, vector<1x4x128xbf16>
    %16 = vector.shape_cast %15 : vector<1x4x128xbf16> to vector<4x128xbf16>
    %cst_14 = arith.constant dense<0.000000e+00> : vector<288x128xf32>
    %17 = tpu.matmul %14, %16, %cst_14 {dimension_numbers = #tpu.dot_dimension_numbers<[1], [0], [0], [1], [0, 0, 1, 1], [], []>} : vector<288x4xbf16>, vector<4x128xbf16>, vector<288x128xf32> -> vector<288x128xf32>
    %18 = arith.addf %12, %17 : vector<288x128xf32>
    %c0_15 = arith.constant 0 : index
    %c31 = arith.constant 31 : index
    %c0_16 = arith.constant 0 : index
    %19 = vector.load %arg1[%c0_15, %c31, %c0_16] : memref<1x352x4xbf16, #tpu.memory_space<vmem>>, vector<1x288x4xbf16>
    %20 = vector.shape_cast %19 : vector<1x288x4xbf16> to vector<288x4xbf16>
    %c3 = arith.constant 3 : index
    %c0_17 = arith.constant 0 : index
    %c0_18 = arith.constant 0 : index
    %21 = vector.load %arg2[%c3, %c0_17, %c0_18] : memref<9x4x128xbf16, #tpu.memory_space<vmem>>, vector<1x4x128xbf16>
    %22 = vector.shape_cast %21 : vector<1x4x128xbf16> to vector<4x128xbf16>
    %cst_19 = arith.constant dense<0.000000e+00> : vector<288x128xf32>
    %23 = tpu.matmul %20, %22, %cst_19 {dimension_numbers = #tpu.dot_dimension_numbers<[1], [0], [0], [1], [0, 0, 1, 1], [], []>} : vector<288x4xbf16>, vector<4x128xbf16>, vector<288x128xf32> -> vector<288x128xf32>
    %24 = arith.addf %18, %23 : vector<288x128xf32>
    %c0_20 = arith.constant 0 : index
    %c32 = arith.constant 32 : index
    %c0_21 = arith.constant 0 : index
    %25 = vector.load %arg1[%c0_20, %c32, %c0_21] : memref<1x352x4xbf16, #tpu.memory_space<vmem>>, vector<1x288x4xbf16>
    %26 = vector.shape_cast %25 : vector<1x288x4xbf16> to vector<288x4xbf16>
    %c4 = arith.constant 4 : index
    %c0_22 = arith.constant 0 : index
    %c0_23 = arith.constant 0 : index
    %27 = vector.load %arg2[%c4, %c0_22, %c0_23] : memref<9x4x128xbf16, #tpu.memory_space<vmem>>, vector<1x4x128xbf16>
    %28 = vector.shape_cast %27 : vector<1x4x128xbf16> to vector<4x128xbf16>
    %cst_24 = arith.constant dense<0.000000e+00> : vector<288x128xf32>
    %29 = tpu.matmul %26, %28, %cst_24 {dimension_numbers = #tpu.dot_dimension_numbers<[1], [0], [0], [1], [0, 0, 1, 1], [], []>} : vector<288x4xbf16>, vector<4x128xbf16>, vector<288x128xf32> -> vector<288x128xf32>
    %30 = arith.addf %24, %29 : vector<288x128xf32>
    %c0_25 = arith.constant 0 : index
    %c33 = arith.constant 33 : index
    %c0_26 = arith.constant 0 : index
    %31 = vector.load %arg1[%c0_25, %c33, %c0_26] : memref<1x352x4xbf16, #tpu.memory_space<vmem>>, vector<1x288x4xbf16>
    %32 = vector.shape_cast %31 : vector<1x288x4xbf16> to vector<288x4xbf16>
    %c5 = arith.constant 5 : index
    %c0_27 = arith.constant 0 : index
    %c0_28 = arith.constant 0 : index
    %33 = vector.load %arg2[%c5, %c0_27, %c0_28] : memref<9x4x128xbf16, #tpu.memory_space<vmem>>, vector<1x4x128xbf16>
    %34 = vector.shape_cast %33 : vector<1x4x128xbf16> to vector<4x128xbf16>
    %cst_29 = arith.constant dense<0.000000e+00> : vector<288x128xf32>
    %35 = tpu.matmul %32, %34, %cst_29 {dimension_numbers = #tpu.dot_dimension_numbers<[1], [0], [0], [1], [0, 0, 1, 1], [], []>} : vector<288x4xbf16>, vector<4x128xbf16>, vector<288x128xf32> -> vector<288x128xf32>
    %36 = arith.addf %30, %35 : vector<288x128xf32>
    %c0_30 = arith.constant 0 : index
    %c49 = arith.constant 49 : index
    %c0_31 = arith.constant 0 : index
    %37 = vector.load %arg1[%c0_30, %c49, %c0_31] : memref<1x352x4xbf16, #tpu.memory_space<vmem>>, vector<1x288x4xbf16>
    %38 = vector.shape_cast %37 : vector<1x288x4xbf16> to vector<288x4xbf16>
    %c6 = arith.constant 6 : index
    %c0_32 = arith.constant 0 : index
    %c0_33 = arith.constant 0 : index
    %39 = vector.load %arg2[%c6, %c0_32, %c0_33] : memref<9x4x128xbf16, #tpu.memory_space<vmem>>, vector<1x4x128xbf16>
    %40 = vector.shape_cast %39 : vector<1x4x128xbf16> to vector<4x128xbf16>
    %cst_34 = arith.constant dense<0.000000e+00> : vector<288x128xf32>
    %41 = tpu.matmul %38, %40, %cst_34 {dimension_numbers = #tpu.dot_dimension_numbers<[1], [0], [0], [1], [0, 0, 1, 1], [], []>} : vector<288x4xbf16>, vector<4x128xbf16>, vector<288x128xf32> -> vector<288x128xf32>
    %42 = arith.addf %36, %41 : vector<288x128xf32>
    %c0_35 = arith.constant 0 : index
    %c50 = arith.constant 50 : index
    %c0_36 = arith.constant 0 : index
    %43 = vector.load %arg1[%c0_35, %c50, %c0_36] : memref<1x352x4xbf16, #tpu.memory_space<vmem>>, vector<1x288x4xbf16>
    %44 = vector.shape_cast %43 : vector<1x288x4xbf16> to vector<288x4xbf16>
    %c7 = arith.constant 7 : index
    %c0_37 = arith.constant 0 : index
    %c0_38 = arith.constant 0 : index
    %45 = vector.load %arg2[%c7, %c0_37, %c0_38] : memref<9x4x128xbf16, #tpu.memory_space<vmem>>, vector<1x4x128xbf16>
    %46 = vector.shape_cast %45 : vector<1x4x128xbf16> to vector<4x128xbf16>
    %cst_39 = arith.constant dense<0.000000e+00> : vector<288x128xf32>
    %47 = tpu.matmul %44, %46, %cst_39 {dimension_numbers = #tpu.dot_dimension_numbers<[1], [0], [0], [1], [0, 0, 1, 1], [], []>} : vector<288x4xbf16>, vector<4x128xbf16>, vector<288x128xf32> -> vector<288x128xf32>
    %48 = arith.addf %42, %47 : vector<288x128xf32>
    %c0_40 = arith.constant 0 : index
    %c51 = arith.constant 51 : index
    %c0_41 = arith.constant 0 : index
    %49 = vector.load %arg1[%c0_40, %c51, %c0_41] : memref<1x352x4xbf16, #tpu.memory_space<vmem>>, vector<1x288x4xbf16>
    %50 = vector.shape_cast %49 : vector<1x288x4xbf16> to vector<288x4xbf16>
    %c8 = arith.constant 8 : index
    %c0_42 = arith.constant 0 : index
    %c0_43 = arith.constant 0 : index
    %51 = vector.load %arg2[%c8, %c0_42, %c0_43] : memref<9x4x128xbf16, #tpu.memory_space<vmem>>, vector<1x4x128xbf16>
    %52 = vector.shape_cast %51 : vector<1x4x128xbf16> to vector<4x128xbf16>
    %cst_44 = arith.constant dense<0.000000e+00> : vector<288x128xf32>
    %53 = tpu.matmul %50, %52, %cst_44 {dimension_numbers = #tpu.dot_dimension_numbers<[1], [0], [0], [1], [0, 0, 1, 1], [], []>} : vector<288x4xbf16>, vector<4x128xbf16>, vector<288x128xf32> -> vector<288x128xf32>
    %54 = arith.addf %48, %53 : vector<288x128xf32>
    %c0_45 = arith.constant 0 : index
    %c0_46 = arith.constant 0 : index
    %55 = vector.load %arg3[%c0_45, %c0_46] : memref<288x1xf32, #tpu.memory_space<vmem>>, vector<288x1xf32>
    %56 = vector.broadcast %55 : vector<288x1xf32> to vector<288x128xf32>
    %57 = arith.mulf %54, %56 : vector<288x128xf32>
    %cst_47 = arith.constant dense<0.000000e+00> : vector<128xf32>
    %58 = vector.multi_reduction <add>, %57, %cst_47 [0] : vector<288x128xf32> to vector<128xf32>
    %59 = vector.shape_cast %58 : vector<128xf32> to vector<1x128xf32>
    %c0_48 = arith.constant 0 : index
    %c0_49 = arith.constant 0 : index
    %c0_50 = arith.constant 0 : index
    %60 = vector.load %arg5[%c0_48, %c0_49, %c0_50] : memref<1x1x128xf32, #tpu.memory_space<vmem>>, vector<1x1x128xf32>
    %61 = vector.shape_cast %60 : vector<1x1x128xf32> to vector<1x128xf32>
    %62 = vector.shape_cast %59 : vector<1x128xf32> to vector<1x1x128xf32>
    tpu.vector_store %arg5[%c0_48, %c0_49, %c0_50], %62 {strides = array<i32>} : memref<1x1x128xf32, #tpu.memory_space<vmem>>, vector<1x1x128xf32>,
    %63 = arith.mulf %57, %54 : vector<288x128xf32>
    %cst_51 = arith.constant dense<0.000000e+00> : vector<128xf32>
    %64 = vector.multi_reduction <add>, %63, %cst_51 [0] : vector<288x128xf32> to vector<128xf32>
    %65 = vector.shape_cast %64 : vector<128xf32> to vector<1x128xf32>
    %c0_52 = arith.constant 0 : index
    %c0_53 = arith.constant 0 : index
    %c0_54 = arith.constant 0 : index
    %66 = vector.load %arg6[%c0_52, %c0_53, %c0_54] : memref<1x1x128xf32, #tpu.memory_space<vmem>>, vector<1x1x128xf32>
    %67 = vector.shape_cast %66 : vector<1x1x128xf32> to vector<1x128xf32>
    %68 = vector.shape_cast %65 : vector<1x128xf32> to vector<1x1x128xf32>
    tpu.vector_store %arg6[%c0_52, %c0_53, %c0_54], %68 {strides = array<i32>} : memref<1x1x128xf32, #tpu.memory_space<vmem>>, vector<1x1x128xf32>,
    %69 = arith.truncf %54 : vector<288x128xf32> to vector<288x128xbf16>
    %c0_55 = arith.constant 0 : index
    %c0_56 = arith.constant 0 : index
    %c0_57 = arith.constant 0 : index
    %70 = vector.load %arg4[%c0_55, %c0_56, %c0_57] : memref<1x288x128xbf16, #tpu.memory_space<vmem>>, vector<1x288x128xbf16>
    %71 = vector.shape_cast %70 : vector<1x288x128xbf16> to vector<288x128xbf16>
    %72 = vector.shape_cast %69 : vector<288x128xbf16> to vector<1x288x128xbf16>
    tpu.vector_store %arg4[%c0_55, %c0_56, %c0_57], %72 {strides = array<i32>} : memref<1x288x128xbf16, #tpu.memory_space<vmem>>, vector<1x288x128xbf16>,
    return
  }
  func.func @transform_0(%arg0: i32) -> (i32, i32, i32) {
    %c0_i32 = arith.constant 0 : i32
    %c0_i32_0 = arith.constant 0 : i32
    %c0_i32_1 = arith.constant 0 : i32
    return %arg0, %c0_i32, %c0_i32_0 : i32, i32, i32
  }
  func.func @transform_1(%arg0: i32) -> (i32, i32, i32) {
    %c0_i32 = arith.constant 0 : i32
    %c0_i32_0 = arith.constant 0 : i32
    %c0_i32_1 = arith.constant 0 : i32
    %c0_i32_2 = arith.constant 0 : i32
    return %c0_i32, %c0_i32_0, %c0_i32_1 : i32, i32, i32
  }
  func.func @transform_2(%arg0: i32) -> (i32, i32) {
    %c0_i32 = arith.constant 0 : i32
    %c0_i32_0 = arith.constant 0 : i32
    %c0_i32_1 = arith.constant 0 : i32
    return %c0_i32, %c0_i32_0 : i32, i32
  }
  func.func @transform_3(%arg0: i32) -> (i32, i32, i32) {
    %c0_i32 = arith.constant 0 : i32
    %c0_i32_0 = arith.constant 0 : i32
    %c0_i32_1 = arith.constant 0 : i32
    return %arg0, %c0_i32, %c0_i32_0 : i32, i32, i32
  }
  func.func @transform_4(%arg0: i32) -> (i32, i32, i32) {
    %c0_i32 = arith.constant 0 : i32
    %c0_i32_0 = arith.constant 0 : i32
    %c0_i32_1 = arith.constant 0 : i32
    return %arg0, %c0_i32, %c0_i32_0 : i32, i32, i32
  }
  func.func @transform_5(%arg0: i32) -> (i32, i32, i32) {
    %c0_i32 = arith.constant 0 : i32
    %c0_i32_0 = arith.constant 0 : i32
    %c0_i32_1 = arith.constant 0 : i32
    return %arg0, %c0_i32, %c0_i32_0 : i32, i32, i32
  }
}

module attributes {stable_mosaic.version = 11 : i64} {
  func.func @_affine_relu_kernel(%arg0: i32, %arg1: memref<1x288x128xbf16, #tpu.memory_space<vmem>>, %arg2: memref<1x128xf32, #tpu.memory_space<vmem>>, %arg3: memref<1x128xf32, #tpu.memory_space<vmem>>, %arg4: memref<288x1xf32, #tpu.memory_space<vmem>>, %arg5: memref<1x352x128xbf16, #tpu.memory_space<vmem>>) attributes {dimension_semantics = [#tpu.dimension_semantics<parallel>], iteration_bounds = array<i64: 2>, scalar_prefetch = 0 : i64, scratch_operands = 0 : i64, tpu.core_type = #tpu.core_type<tc>, window_params = [{transform_indices = @transform_0, window_bounds = array<i64: 1, 288, 128>}, {pipeline_mode = #tpu.pipeline_mode<synchronous>, transform_indices = @transform_1, window_bounds = array<i64: 1, 128>}, {pipeline_mode = #tpu.pipeline_mode<synchronous>, transform_indices = @transform_2, window_bounds = array<i64: 1, 128>}, {pipeline_mode = #tpu.pipeline_mode<synchronous>, transform_indices = @transform_3, window_bounds = array<i64: 288, 1>}, {transform_indices = @transform_4, window_bounds = array<i64: 1, 352, 128>}]} {
    %c0 = arith.constant 0 : index
    %c0_0 = arith.constant 0 : index
    %c0_1 = arith.constant 0 : index
    %0 = vector.load %arg1[%c0, %c0_0, %c0_1] : memref<1x288x128xbf16, #tpu.memory_space<vmem>>, vector<1x288x128xbf16>
    %1 = vector.shape_cast %0 : vector<1x288x128xbf16> to vector<288x128xbf16>
    %2 = arith.extf %1 : vector<288x128xbf16> to vector<288x128xf32>
    %c0_2 = arith.constant 0 : index
    %c0_3 = arith.constant 0 : index
    %3 = vector.load %arg2[%c0_2, %c0_3] : memref<1x128xf32, #tpu.memory_space<vmem>>, vector<1x128xf32>
    %4 = vector.broadcast %3 : vector<1x128xf32> to vector<288x128xf32>
    %5 = arith.mulf %2, %4 : vector<288x128xf32>
    %c0_4 = arith.constant 0 : index
    %c0_5 = arith.constant 0 : index
    %6 = vector.load %arg3[%c0_4, %c0_5] : memref<1x128xf32, #tpu.memory_space<vmem>>, vector<1x128xf32>
    %7 = vector.broadcast %6 : vector<1x128xf32> to vector<288x128xf32>
    %8 = arith.addf %5, %7 : vector<288x128xf32>
    %cst = arith.constant 0.000000e+00 : f32
    %9 = vector.broadcast %cst : f32 to vector<288x128xf32>
    %10 = arith.maximumf %8, %9 : vector<288x128xf32>
    %c0_6 = arith.constant 0 : index
    %c0_7 = arith.constant 0 : index
    %11 = vector.load %arg4[%c0_6, %c0_7] : memref<288x1xf32, #tpu.memory_space<vmem>>, vector<288x1xf32>
    %12 = vector.broadcast %11 : vector<288x1xf32> to vector<288x128xf32>
    %13 = arith.mulf %10, %12 : vector<288x128xf32>
    %cst_8 = arith.constant 0.000000e+00 : bf16
    %14 = vector.broadcast %cst_8 : bf16 to vector<352x128xbf16>
    %c0_9 = arith.constant 0 : index
    %c0_10 = arith.constant 0 : index
    %c0_11 = arith.constant 0 : index
    %15 = vector.load %arg5[%c0_9, %c0_10, %c0_11] : memref<1x352x128xbf16, #tpu.memory_space<vmem>>, vector<1x352x128xbf16>
    %16 = vector.shape_cast %15 : vector<1x352x128xbf16> to vector<352x128xbf16>
    %17 = vector.shape_cast %14 : vector<352x128xbf16> to vector<1x352x128xbf16>
    tpu.vector_store %arg5[%c0_9, %c0_10, %c0_11], %17 {strides = array<i32>} : memref<1x352x128xbf16, #tpu.memory_space<vmem>>, vector<1x352x128xbf16>,
    %18 = arith.truncf %13 : vector<288x128xf32> to vector<288x128xbf16>
    %c0_12 = arith.constant 0 : index
    %c32 = arith.constant 32 : index
    %c0_13 = arith.constant 0 : index
    %19 = vector.load %arg5[%c0_12, %c32, %c0_13] : memref<1x352x128xbf16, #tpu.memory_space<vmem>>, vector<1x288x128xbf16>
    %20 = vector.shape_cast %19 : vector<1x288x128xbf16> to vector<288x128xbf16>
    %21 = vector.shape_cast %18 : vector<288x128xbf16> to vector<1x288x128xbf16>
    tpu.vector_store %arg5[%c0_12, %c32, %c0_13], %21 {strides = array<i32>} : memref<1x352x128xbf16, #tpu.memory_space<vmem>>, vector<1x288x128xbf16>,
    return
  }
  func.func @transform_0(%arg0: i32) -> (i32, i32, i32) {
    %c0_i32 = arith.constant 0 : i32
    %c0_i32_0 = arith.constant 0 : i32
    %c0_i32_1 = arith.constant 0 : i32
    return %arg0, %c0_i32, %c0_i32_0 : i32, i32, i32
  }
  func.func @transform_1(%arg0: i32) -> (i32, i32) {
    %c0_i32 = arith.constant 0 : i32
    %c0_i32_0 = arith.constant 0 : i32
    %c0_i32_1 = arith.constant 0 : i32
    return %c0_i32, %c0_i32_0 : i32, i32
  }
  func.func @transform_2(%arg0: i32) -> (i32, i32) {
    %c0_i32 = arith.constant 0 : i32
    %c0_i32_0 = arith.constant 0 : i32
    %c0_i32_1 = arith.constant 0 : i32
    return %c0_i32, %c0_i32_0 : i32, i32
  }
  func.func @transform_3(%arg0: i32) -> (i32, i32) {
    %c0_i32 = arith.constant 0 : i32
    %c0_i32_0 = arith.constant 0 : i32
    %c0_i32_1 = arith.constant 0 : i32
    return %c0_i32, %c0_i32_0 : i32, i32
  }
  func.func @transform_4(%arg0: i32) -> (i32, i32, i32) {
    %c0_i32 = arith.constant 0 : i32
    %c0_i32_0 = arith.constant 0 : i32
    %c0_i32_1 = arith.constant 0 : i32
    return %arg0, %c0_i32, %c0_i32_0 : i32, i32, i32
  }
}

module attributes {stable_mosaic.version = 11 : i64} {
  func.func @_conv_stats_kernel(%arg0: i32, %arg1: memref<1x352x128xbf16, #tpu.memory_space<vmem>>, %arg2: memref<9x128x128xbf16, #tpu.memory_space<vmem>>, %arg3: memref<288x1xf32, #tpu.memory_space<vmem>>, %arg4: memref<1x288x128xbf16, #tpu.memory_space<vmem>>, %arg5: memref<1x1x128xf32, #tpu.memory_space<vmem>>, %arg6: memref<1x1x128xf32, #tpu.memory_space<vmem>>) attributes {dimension_semantics = [#tpu.dimension_semantics<parallel>], iteration_bounds = array<i64: 2>, scalar_prefetch = 0 : i64, scratch_operands = 0 : i64, tpu.core_type = #tpu.core_type<tc>, window_params = [{transform_indices = @transform_0, window_bounds = array<i64: 1, 352, 128>}, {pipeline_mode = #tpu.pipeline_mode<synchronous>, transform_indices = @transform_1, window_bounds = array<i64: 9, 128, 128>}, {pipeline_mode = #tpu.pipeline_mode<synchronous>, transform_indices = @transform_2, window_bounds = array<i64: 288, 1>}, {transform_indices = @transform_3, window_bounds = array<i64: 1, 288, 128>}, {transform_indices = @transform_4, window_bounds = array<i64: 1, 1, 128>}, {transform_indices = @transform_5, window_bounds = array<i64: 1, 1, 128>}]} {
    %cst = arith.constant 0.000000e+00 : f32
    %0 = vector.broadcast %cst : f32 to vector<288x128xf32>
    %c0 = arith.constant 0 : index
    %c13 = arith.constant 13 : index
    %c0_0 = arith.constant 0 : index
    %1 = vector.load %arg1[%c0, %c13, %c0_0] : memref<1x352x128xbf16, #tpu.memory_space<vmem>>, vector<1x288x128xbf16>
    %2 = vector.shape_cast %1 : vector<1x288x128xbf16> to vector<288x128xbf16>
    %c0_1 = arith.constant 0 : index
    %c0_2 = arith.constant 0 : index
    %c0_3 = arith.constant 0 : index
    %3 = vector.load %arg2[%c0_1, %c0_2, %c0_3] : memref<9x128x128xbf16, #tpu.memory_space<vmem>>, vector<1x128x128xbf16>
    %4 = vector.shape_cast %3 : vector<1x128x128xbf16> to vector<128x128xbf16>
    %cst_4 = arith.constant dense<0.000000e+00> : vector<288x128xf32>
    %5 = tpu.matmul %2, %4, %cst_4 {dimension_numbers = #tpu.dot_dimension_numbers<[1], [0], [0], [1], [0, 0, 1, 1], [], []>} : vector<288x128xbf16>, vector<128x128xbf16>, vector<288x128xf32> -> vector<288x128xf32>
    %6 = arith.addf %0, %5 : vector<288x128xf32>
    %c0_5 = arith.constant 0 : index
    %c14 = arith.constant 14 : index
    %c0_6 = arith.constant 0 : index
    %7 = vector.load %arg1[%c0_5, %c14, %c0_6] : memref<1x352x128xbf16, #tpu.memory_space<vmem>>, vector<1x288x128xbf16>
    %8 = vector.shape_cast %7 : vector<1x288x128xbf16> to vector<288x128xbf16>
    %c1 = arith.constant 1 : index
    %c0_7 = arith.constant 0 : index
    %c0_8 = arith.constant 0 : index
    %9 = vector.load %arg2[%c1, %c0_7, %c0_8] : memref<9x128x128xbf16, #tpu.memory_space<vmem>>, vector<1x128x128xbf16>
    %10 = vector.shape_cast %9 : vector<1x128x128xbf16> to vector<128x128xbf16>
    %cst_9 = arith.constant dense<0.000000e+00> : vector<288x128xf32>
    %11 = tpu.matmul %8, %10, %cst_9 {dimension_numbers = #tpu.dot_dimension_numbers<[1], [0], [0], [1], [0, 0, 1, 1], [], []>} : vector<288x128xbf16>, vector<128x128xbf16>, vector<288x128xf32> -> vector<288x128xf32>
    %12 = arith.addf %6, %11 : vector<288x128xf32>
    %c0_10 = arith.constant 0 : index
    %c15 = arith.constant 15 : index
    %c0_11 = arith.constant 0 : index
    %13 = vector.load %arg1[%c0_10, %c15, %c0_11] : memref<1x352x128xbf16, #tpu.memory_space<vmem>>, vector<1x288x128xbf16>
    %14 = vector.shape_cast %13 : vector<1x288x128xbf16> to vector<288x128xbf16>
    %c2 = arith.constant 2 : index
    %c0_12 = arith.constant 0 : index
    %c0_13 = arith.constant 0 : index
    %15 = vector.load %arg2[%c2, %c0_12, %c0_13] : memref<9x128x128xbf16, #tpu.memory_space<vmem>>, vector<1x128x128xbf16>
    %16 = vector.shape_cast %15 : vector<1x128x128xbf16> to vector<128x128xbf16>
    %cst_14 = arith.constant dense<0.000000e+00> : vector<288x128xf32>
    %17 = tpu.matmul %14, %16, %cst_14 {dimension_numbers = #tpu.dot_dimension_numbers<[1], [0], [0], [1], [0, 0, 1, 1], [], []>} : vector<288x128xbf16>, vector<128x128xbf16>, vector<288x128xf32> -> vector<288x128xf32>
    %18 = arith.addf %12, %17 : vector<288x128xf32>
    %c0_15 = arith.constant 0 : index
    %c31 = arith.constant 31 : index
    %c0_16 = arith.constant 0 : index
    %19 = vector.load %arg1[%c0_15, %c31, %c0_16] : memref<1x352x128xbf16, #tpu.memory_space<vmem>>, vector<1x288x128xbf16>
    %20 = vector.shape_cast %19 : vector<1x288x128xbf16> to vector<288x128xbf16>
    %c3 = arith.constant 3 : index
    %c0_17 = arith.constant 0 : index
    %c0_18 = arith.constant 0 : index
    %21 = vector.load %arg2[%c3, %c0_17, %c0_18] : memref<9x128x128xbf16, #tpu.memory_space<vmem>>, vector<1x128x128xbf16>
    %22 = vector.shape_cast %21 : vector<1x128x128xbf16> to vector<128x128xbf16>
    %cst_19 = arith.constant dense<0.000000e+00> : vector<288x128xf32>
    %23 = tpu.matmul %20, %22, %cst_19 {dimension_numbers = #tpu.dot_dimension_numbers<[1], [0], [0], [1], [0, 0, 1, 1], [], []>} : vector<288x128xbf16>, vector<128x128xbf16>, vector<288x128xf32> -> vector<288x128xf32>
    %24 = arith.addf %18, %23 : vector<288x128xf32>
    %c0_20 = arith.constant 0 : index
    %c32 = arith.constant 32 : index
    %c0_21 = arith.constant 0 : index
    %25 = vector.load %arg1[%c0_20, %c32, %c0_21] : memref<1x352x128xbf16, #tpu.memory_space<vmem>>, vector<1x288x128xbf16>
    %26 = vector.shape_cast %25 : vector<1x288x128xbf16> to vector<288x128xbf16>
    %c4 = arith.constant 4 : index
    %c0_22 = arith.constant 0 : index
    %c0_23 = arith.constant 0 : index
    %27 = vector.load %arg2[%c4, %c0_22, %c0_23] : memref<9x128x128xbf16, #tpu.memory_space<vmem>>, vector<1x128x128xbf16>
    %28 = vector.shape_cast %27 : vector<1x128x128xbf16> to vector<128x128xbf16>
    %cst_24 = arith.constant dense<0.000000e+00> : vector<288x128xf32>
    %29 = tpu.matmul %26, %28, %cst_24 {dimension_numbers = #tpu.dot_dimension_numbers<[1], [0], [0], [1], [0, 0, 1, 1], [], []>} : vector<288x128xbf16>, vector<128x128xbf16>, vector<288x128xf32> -> vector<288x128xf32>
    %30 = arith.addf %24, %29 : vector<288x128xf32>
    %c0_25 = arith.constant 0 : index
    %c33 = arith.constant 33 : index
    %c0_26 = arith.constant 0 : index
    %31 = vector.load %arg1[%c0_25, %c33, %c0_26] : memref<1x352x128xbf16, #tpu.memory_space<vmem>>, vector<1x288x128xbf16>
    %32 = vector.shape_cast %31 : vector<1x288x128xbf16> to vector<288x128xbf16>
    %c5 = arith.constant 5 : index
    %c0_27 = arith.constant 0 : index
    %c0_28 = arith.constant 0 : index
    %33 = vector.load %arg2[%c5, %c0_27, %c0_28] : memref<9x128x128xbf16, #tpu.memory_space<vmem>>, vector<1x128x128xbf16>
    %34 = vector.shape_cast %33 : vector<1x128x128xbf16> to vector<128x128xbf16>
    %cst_29 = arith.constant dense<0.000000e+00> : vector<288x128xf32>
    %35 = tpu.matmul %32, %34, %cst_29 {dimension_numbers = #tpu.dot_dimension_numbers<[1], [0], [0], [1], [0, 0, 1, 1], [], []>} : vector<288x128xbf16>, vector<128x128xbf16>, vector<288x128xf32> -> vector<288x128xf32>
    %36 = arith.addf %30, %35 : vector<288x128xf32>
    %c0_30 = arith.constant 0 : index
    %c49 = arith.constant 49 : index
    %c0_31 = arith.constant 0 : index
    %37 = vector.load %arg1[%c0_30, %c49, %c0_31] : memref<1x352x128xbf16, #tpu.memory_space<vmem>>, vector<1x288x128xbf16>
    %38 = vector.shape_cast %37 : vector<1x288x128xbf16> to vector<288x128xbf16>
    %c6 = arith.constant 6 : index
    %c0_32 = arith.constant 0 : index
    %c0_33 = arith.constant 0 : index
    %39 = vector.load %arg2[%c6, %c0_32, %c0_33] : memref<9x128x128xbf16, #tpu.memory_space<vmem>>, vector<1x128x128xbf16>
    %40 = vector.shape_cast %39 : vector<1x128x128xbf16> to vector<128x128xbf16>
    %cst_34 = arith.constant dense<0.000000e+00> : vector<288x128xf32>
    %41 = tpu.matmul %38, %40, %cst_34 {dimension_numbers = #tpu.dot_dimension_numbers<[1], [0], [0], [1], [0, 0, 1, 1], [], []>} : vector<288x128xbf16>, vector<128x128xbf16>, vector<288x128xf32> -> vector<288x128xf32>
    %42 = arith.addf %36, %41 : vector<288x128xf32>
    %c0_35 = arith.constant 0 : index
    %c50 = arith.constant 50 : index
    %c0_36 = arith.constant 0 : index
    %43 = vector.load %arg1[%c0_35, %c50, %c0_36] : memref<1x352x128xbf16, #tpu.memory_space<vmem>>, vector<1x288x128xbf16>
    %44 = vector.shape_cast %43 : vector<1x288x128xbf16> to vector<288x128xbf16>
    %c7 = arith.constant 7 : index
    %c0_37 = arith.constant 0 : index
    %c0_38 = arith.constant 0 : index
    %45 = vector.load %arg2[%c7, %c0_37, %c0_38] : memref<9x128x128xbf16, #tpu.memory_space<vmem>>, vector<1x128x128xbf16>
    %46 = vector.shape_cast %45 : vector<1x128x128xbf16> to vector<128x128xbf16>
    %cst_39 = arith.constant dense<0.000000e+00> : vector<288x128xf32>
    %47 = tpu.matmul %44, %46, %cst_39 {dimension_numbers = #tpu.dot_dimension_numbers<[1], [0], [0], [1], [0, 0, 1, 1], [], []>} : vector<288x128xbf16>, vector<128x128xbf16>, vector<288x128xf32> -> vector<288x128xf32>
    %48 = arith.addf %42, %47 : vector<288x128xf32>
    %c0_40 = arith.constant 0 : index
    %c51 = arith.constant 51 : index
    %c0_41 = arith.constant 0 : index
    %49 = vector.load %arg1[%c0_40, %c51, %c0_41] : memref<1x352x128xbf16, #tpu.memory_space<vmem>>, vector<1x288x128xbf16>
    %50 = vector.shape_cast %49 : vector<1x288x128xbf16> to vector<288x128xbf16>
    %c8 = arith.constant 8 : index
    %c0_42 = arith.constant 0 : index
    %c0_43 = arith.constant 0 : index
    %51 = vector.load %arg2[%c8, %c0_42, %c0_43] : memref<9x128x128xbf16, #tpu.memory_space<vmem>>, vector<1x128x128xbf16>
    %52 = vector.shape_cast %51 : vector<1x128x128xbf16> to vector<128x128xbf16>
    %cst_44 = arith.constant dense<0.000000e+00> : vector<288x128xf32>
    %53 = tpu.matmul %50, %52, %cst_44 {dimension_numbers = #tpu.dot_dimension_numbers<[1], [0], [0], [1], [0, 0, 1, 1], [], []>} : vector<288x128xbf16>, vector<128x128xbf16>, vector<288x128xf32> -> vector<288x128xf32>
    %54 = arith.addf %48, %53 : vector<288x128xf32>
    %c0_45 = arith.constant 0 : index
    %c0_46 = arith.constant 0 : index
    %55 = vector.load %arg3[%c0_45, %c0_46] : memref<288x1xf32, #tpu.memory_space<vmem>>, vector<288x1xf32>
    %56 = vector.broadcast %55 : vector<288x1xf32> to vector<288x128xf32>
    %57 = arith.mulf %54, %56 : vector<288x128xf32>
    %cst_47 = arith.constant dense<0.000000e+00> : vector<128xf32>
    %58 = vector.multi_reduction <add>, %57, %cst_47 [0] : vector<288x128xf32> to vector<128xf32>
    %59 = vector.shape_cast %58 : vector<128xf32> to vector<1x128xf32>
    %c0_48 = arith.constant 0 : index
    %c0_49 = arith.constant 0 : index
    %c0_50 = arith.constant 0 : index
    %60 = vector.load %arg5[%c0_48, %c0_49, %c0_50] : memref<1x1x128xf32, #tpu.memory_space<vmem>>, vector<1x1x128xf32>
    %61 = vector.shape_cast %60 : vector<1x1x128xf32> to vector<1x128xf32>
    %62 = vector.shape_cast %59 : vector<1x128xf32> to vector<1x1x128xf32>
    tpu.vector_store %arg5[%c0_48, %c0_49, %c0_50], %62 {strides = array<i32>} : memref<1x1x128xf32, #tpu.memory_space<vmem>>, vector<1x1x128xf32>,
    %63 = arith.mulf %57, %54 : vector<288x128xf32>
    %cst_51 = arith.constant dense<0.000000e+00> : vector<128xf32>
    %64 = vector.multi_reduction <add>, %63, %cst_51 [0] : vector<288x128xf32> to vector<128xf32>
    %65 = vector.shape_cast %64 : vector<128xf32> to vector<1x128xf32>
    %c0_52 = arith.constant 0 : index
    %c0_53 = arith.constant 0 : index
    %c0_54 = arith.constant 0 : index
    %66 = vector.load %arg6[%c0_52, %c0_53, %c0_54] : memref<1x1x128xf32, #tpu.memory_space<vmem>>, vector<1x1x128xf32>
    %67 = vector.shape_cast %66 : vector<1x1x128xf32> to vector<1x128xf32>
    %68 = vector.shape_cast %65 : vector<1x128xf32> to vector<1x1x128xf32>
    tpu.vector_store %arg6[%c0_52, %c0_53, %c0_54], %68 {strides = array<i32>} : memref<1x1x128xf32, #tpu.memory_space<vmem>>, vector<1x1x128xf32>,
    %69 = arith.truncf %54 : vector<288x128xf32> to vector<288x128xbf16>
    %c0_55 = arith.constant 0 : index
    %c0_56 = arith.constant 0 : index
    %c0_57 = arith.constant 0 : index
    %70 = vector.load %arg4[%c0_55, %c0_56, %c0_57] : memref<1x288x128xbf16, #tpu.memory_space<vmem>>, vector<1x288x128xbf16>
    %71 = vector.shape_cast %70 : vector<1x288x128xbf16> to vector<288x128xbf16>
    %72 = vector.shape_cast %69 : vector<288x128xbf16> to vector<1x288x128xbf16>
    tpu.vector_store %arg4[%c0_55, %c0_56, %c0_57], %72 {strides = array<i32>} : memref<1x288x128xbf16, #tpu.memory_space<vmem>>, vector<1x288x128xbf16>,
    return
  }
  func.func @transform_0(%arg0: i32) -> (i32, i32, i32) {
    %c0_i32 = arith.constant 0 : i32
    %c0_i32_0 = arith.constant 0 : i32
    %c0_i32_1 = arith.constant 0 : i32
    return %arg0, %c0_i32, %c0_i32_0 : i32, i32, i32
  }
  func.func @transform_1(%arg0: i32) -> (i32, i32, i32) {
    %c0_i32 = arith.constant 0 : i32
    %c0_i32_0 = arith.constant 0 : i32
    %c0_i32_1 = arith.constant 0 : i32
    %c0_i32_2 = arith.constant 0 : i32
    return %c0_i32, %c0_i32_0, %c0_i32_1 : i32, i32, i32
  }
  func.func @transform_2(%arg0: i32) -> (i32, i32) {
    %c0_i32 = arith.constant 0 : i32
    %c0_i32_0 = arith.constant 0 : i32
    %c0_i32_1 = arith.constant 0 : i32
    return %c0_i32, %c0_i32_0 : i32, i32
  }
  func.func @transform_3(%arg0: i32) -> (i32, i32, i32) {
    %c0_i32 = arith.constant 0 : i32
    %c0_i32_0 = arith.constant 0 : i32
    %c0_i32_1 = arith.constant 0 : i32
    return %arg0, %c0_i32, %c0_i32_0 : i32, i32, i32
  }
  func.func @transform_4(%arg0: i32) -> (i32, i32, i32) {
    %c0_i32 = arith.constant 0 : i32
    %c0_i32_0 = arith.constant 0 : i32
    %c0_i32_1 = arith.constant 0 : i32
    return %arg0, %c0_i32, %c0_i32_0 : i32, i32, i32
  }
  func.func @transform_5(%arg0: i32) -> (i32, i32, i32) {
    %c0_i32 = arith.constant 0 : i32
    %c0_i32_0 = arith.constant 0 : i32
    %c0_i32_1 = arith.constant 0 : i32
    return %arg0, %c0_i32, %c0_i32_0 : i32, i32, i32
  }
}

module attributes {stable_mosaic.version = 11 : i64} {
  func.func @_affine_relu_kernel(%arg0: i32, %arg1: memref<1x288x128xbf16, #tpu.memory_space<vmem>>, %arg2: memref<1x128xf32, #tpu.memory_space<vmem>>, %arg3: memref<1x128xf32, #tpu.memory_space<vmem>>, %arg4: memref<288x1xf32, #tpu.memory_space<vmem>>, %arg5: memref<1x288x128xf32, #tpu.memory_space<vmem>>) attributes {dimension_semantics = [#tpu.dimension_semantics<parallel>], iteration_bounds = array<i64: 2>, scalar_prefetch = 0 : i64, scratch_operands = 0 : i64, tpu.core_type = #tpu.core_type<tc>, window_params = [{transform_indices = @transform_0, window_bounds = array<i64: 1, 288, 128>}, {pipeline_mode = #tpu.pipeline_mode<synchronous>, transform_indices = @transform_1, window_bounds = array<i64: 1, 128>}, {pipeline_mode = #tpu.pipeline_mode<synchronous>, transform_indices = @transform_2, window_bounds = array<i64: 1, 128>}, {pipeline_mode = #tpu.pipeline_mode<synchronous>, transform_indices = @transform_3, window_bounds = array<i64: 288, 1>}, {transform_indices = @transform_4, window_bounds = array<i64: 1, 288, 128>}]} {
    %c0 = arith.constant 0 : index
    %c0_0 = arith.constant 0 : index
    %c0_1 = arith.constant 0 : index
    %0 = vector.load %arg1[%c0, %c0_0, %c0_1] : memref<1x288x128xbf16, #tpu.memory_space<vmem>>, vector<1x288x128xbf16>
    %1 = vector.shape_cast %0 : vector<1x288x128xbf16> to vector<288x128xbf16>
    %2 = arith.extf %1 : vector<288x128xbf16> to vector<288x128xf32>
    %c0_2 = arith.constant 0 : index
    %c0_3 = arith.constant 0 : index
    %3 = vector.load %arg2[%c0_2, %c0_3] : memref<1x128xf32, #tpu.memory_space<vmem>>, vector<1x128xf32>
    %4 = vector.broadcast %3 : vector<1x128xf32> to vector<288x128xf32>
    %5 = arith.mulf %2, %4 : vector<288x128xf32>
    %c0_4 = arith.constant 0 : index
    %c0_5 = arith.constant 0 : index
    %6 = vector.load %arg3[%c0_4, %c0_5] : memref<1x128xf32, #tpu.memory_space<vmem>>, vector<1x128xf32>
    %7 = vector.broadcast %6 : vector<1x128xf32> to vector<288x128xf32>
    %8 = arith.addf %5, %7 : vector<288x128xf32>
    %cst = arith.constant 0.000000e+00 : f32
    %9 = vector.broadcast %cst : f32 to vector<288x128xf32>
    %10 = arith.maximumf %8, %9 : vector<288x128xf32>
    %c0_6 = arith.constant 0 : index
    %c0_7 = arith.constant 0 : index
    %c0_8 = arith.constant 0 : index
    %11 = vector.load %arg5[%c0_6, %c0_7, %c0_8] : memref<1x288x128xf32, #tpu.memory_space<vmem>>, vector<1x288x128xf32>
    %12 = vector.shape_cast %11 : vector<1x288x128xf32> to vector<288x128xf32>
    %13 = vector.shape_cast %10 : vector<288x128xf32> to vector<1x288x128xf32>
    tpu.vector_store %arg5[%c0_6, %c0_7, %c0_8], %13 {strides = array<i32>} : memref<1x288x128xf32, #tpu.memory_space<vmem>>, vector<1x288x128xf32>,
    return
  }
  func.func @transform_0(%arg0: i32) -> (i32, i32, i32) {
    %c0_i32 = arith.constant 0 : i32
    %c0_i32_0 = arith.constant 0 : i32
    %c0_i32_1 = arith.constant 0 : i32
    return %arg0, %c0_i32, %c0_i32_0 : i32, i32, i32
  }
  func.func @transform_1(%arg0: i32) -> (i32, i32) {
    %c0_i32 = arith.constant 0 : i32
    %c0_i32_0 = arith.constant 0 : i32
    %c0_i32_1 = arith.constant 0 : i32
    return %c0_i32, %c0_i32_0 : i32, i32
  }
  func.func @transform_2(%arg0: i32) -> (i32, i32) {
    %c0_i32 = arith.constant 0 : i32
    %c0_i32_0 = arith.constant 0 : i32
    %c0_i32_1 = arith.constant 0 : i32
    return %c0_i32, %c0_i32_0 : i32, i32
  }
  func.func @transform_3(%arg0: i32) -> (i32, i32) {
    %c0_i32 = arith.constant 0 : i32
    %c0_i32_0 = arith.constant 0 : i32
    %c0_i32_1 = arith.constant 0 : i32
    return %c0_i32, %c0_i32_0 : i32, i32
  }
  func.func @transform_4(%arg0: i32) -> (i32, i32, i32) {
    %c0_i32 = arith.constant 0 : i32
    %c0_i32_0 = arith.constant 0 : i32
    %c0_i32_1 = arith.constant 0 : i32
    return %arg0, %c0_i32, %c0_i32_0 : i32, i32, i32
  }
}

</mosaic_0001>

<llo_original>
// kernel: unet_conv2_forward.7
$region0: #{unet_conv2_forward.7}
  #allocation0 [shape = 'u32[]', space=smem, size = 0x4, offset = 0x4, fixed_abs, tag = 'smem constant byte address 0x4 - core index']
  #allocation1 [shape = 'u32[144,128]{1,0:T(1,128)}', space=vmem, size = 0x12000, scoped, tag = 'internal scratch']
  %s0 = inlined_call_operand.vmem [shape: bf16[2,288,128], index: 0, kind: input, shape index: {}]
  %s1 = inlined_call_operand.vmem [shape: f32[1,128], index: 1, kind: input, shape index: {}]
  %s2 = inlined_call_operand.vmem [shape: f32[1,128], index: 2, kind: input, shape index: {}]
  %s3 = inlined_call_operand.vmem [shape: f32[288,1], index: 3, kind: input, shape index: {}]
  %s4 = inlined_call_operand.vmem [shape: f32[2,288,128], index: 4, kind: output, shape index: {}]
  %s5 = sld [smem:[#allocation0]]
  $region49: #{unet_conv2_forward.7} parent=0
    _
  %s7 = ssub.s32 1, %s5
  %s8 = scalar_select 0, %s7, %s5
  loop: start=0, step=1, limit=4
  $region2: #{unet_conv2_forward.7} parent=0 // loop_pre_header
    _
  $region3: #{unet_conv2_forward.7} parent=0 // loop_header
    %s10 = sphi 0, %s14
    %p11 = scmp.ge.s32.totalorder %s10, 4
    %s20 = sphi 0, %s22
    %s23 = sphi 0, %s20
    %s24 = sphi 0, %s23
    %s40 = sphi 0, %s24
    %s44 = sphi 0, %s44
    %s46 = sphi 0, %s44
    %s47 = sphi 0, %s46
    %s61 = sphi 0, %s47
    %s65 = sphi 0, %s65
    %s67 = sphi 0, %s65
    %s68 = sphi 0, %s67
    %s82 = sphi 0, %s68
    %s86 = sphi 0, %s86
    %s88 = sphi 0, %s86
    %s89 = sphi 0, %s88
    %s103 = sphi 0, %s89
    %s109 = sphi 0, %s111
    %s112 = sphi 0, %s109
    %s113 = sphi 0, %s112
    %s129 = sphi 0, %s113
  $region4: #{unet_conv2_forward.7} parent=0 // loop_header_branch
    %13 = sbr.rel (%p11) target = $region8
  $region5: #{unet_conv2_forward.7} parent=0 // loop_body
    %s15 = ssub.s32 %s10, 1
    %s16 = ssub.s32 %s10, 2
    %s17 = sadd.s32 %s10, 1
    %s18 = ssub.s32 %s10, %s17
    %p19 = scmp.eq.s32.totalorder %s18, 0
    %s21 = sadd.s32 %s20, 1
    %s22 = scalar_select %p19, %s20, %s21
    %p25 = pneg %p19
    %p26 = scmp.eq.s32.totalorder %s10, 1
    %p27 = por %p25, %p26
    %p28 = scmp.ne.s32.totalorder %s20, %s23
    %p29 = scmp.eq.s32.totalorder %s10, 0
    %p30 = por %p28, %p29
    %p31 = scmp.ne.s32.totalorder %s20, %s23
    %p32 = scmp.eq.s32.totalorder %s15, 1
    %p33 = por %p31, %p32
    %p34 = scmp.ne.s32.totalorder %s23, %s24
    %p35 = scmp.eq.s32.totalorder %s15, 0
    %p36 = por %p34, %p35
    %p37 = scmp.ne.s32.totalorder %s23, %s24
    %p38 = scmp.eq.s32.totalorder %s16, 1
    %p39 = por %p37, %p38
    %p41 = scmp.ne.s32.totalorder %s24, %s40
    %p42 = scmp.eq.s32.totalorder %s16, 0
    %p43 = por %p41, %p42
    %s45 = sadd.s32 %s44, 1
    %p48 = scmp.eq.s32.totalorder %s10, 1
    %p49 = scmp.ne.s32.totalorder %s44, %s46
    %p50 = scmp.eq.s32.totalorder %s10, 0
    %p51 = por %p49, %p50
    %p52 = scmp.ne.s32.totalorder %s44, %s46
    %p53 = scmp.eq.s32.totalorder %s15, 1
    %p54 = por %p52, %p53
    %p55 = scmp.ne.s32.totalorder %s46, %s47
    %p56 = scmp.eq.s32.totalorder %s15, 0
    %p57 = por %p55, %p56
    %p58 = scmp.ne.s32.totalorder %s46, %s47
    %p59 = scmp.eq.s32.totalorder %s16, 1
    %p60 = por %p58, %p59
    %p62 = scmp.ne.s32.totalorder %s47, %s61
    %p63 = scmp.eq.s32.totalorder %s16, 0
    %p64 = por %p62, %p63
    %s66 = sadd.s32 %s65, 1
    %p69 = scmp.eq.s32.totalorder %s10, 1
    %p70 = scmp.ne.s32.totalorder %s65, %s67
    %p71 = scmp.eq.s32.totalorder %s10, 0
    %p72 = por %p70, %p71
    %p73 = scmp.ne.s32.totalorder %s65, %s67
    %p74 = scmp.eq.s32.totalorder %s15, 1
    %p75 = por %p73, %p74
    %p76 = scmp.ne.s32.totalorder %s67, %s68
    %p77 = scmp.eq.s32.totalorder %s15, 0
    %p78 = por %p76, %p77
    %p79 = scmp.ne.s32.totalorder %s67, %s68
    %p80 = scmp.eq.s32.totalorder %s16, 1
    %p81 = por %p79, %p80
    %p83 = scmp.ne.s32.totalorder %s68, %s82
    %p84 = scmp.eq.s32.totalorder %s16, 0
    %p85 = por %p83, %p84
    %s87 = sadd.s32 %s86, 1
    %p90 = scmp.eq.s32.totalorder %s10, 1
    %p91 = scmp.ne.s32.totalorder %s86, %s88
    %p92 = scmp.eq.s32.totalorder %s10, 0
    %p93 = por %p91, %p92
    %p94 = scmp.ne.s32.totalorder %s86, %s88
    %p95 = scmp.eq.s32.totalorder %s15, 1
    %p96 = por %p94, %p95
    %p97 = scmp.ne.s32.totalorder %s88, %s89
    %p98 = scmp.eq.s32.totalorder %s15, 0
    %p99 = por %p97, %p98
    %p100 = scmp.ne.s32.totalorder %s88, %s89
    %p101 = scmp.eq.s32.totalorder %s16, 1
    %p102 = por %p100, %p101
    %p104 = scmp.ne.s32.totalorder %s89, %s103
    %p105 = scmp.eq.s32.totalorder %s16, 0
    %p106 = por %p104, %p105
    %s107 = ssub.s32 %s10, %s17
    %p108 = scmp.eq.s32.totalorder %s107, 0
    %s110 = sadd.s32 %s109, 1
    %s111 = scalar_select %p108, %s109, %s110
    %p114 = pneg %p108
    %p115 = scmp.eq.s32.totalorder %s10, 1
    %p116 = por %p114, %p115
    %p117 = scmp.ne.s32.totalorder %s109, %s112
    %p118 = scmp.eq.s32.totalorder %s10, 0
    %p119 = por %p117, %p118
    %p120 = scmp.ne.s32.totalorder %s109, %s112
    %p121 = scmp.eq.s32.totalorder %s15, 1
    %p122 = por %p120, %p121
    %p123 = scmp.ne.s32.totalorder %s112, %s113
    %p124 = scmp.eq.s32.totalorder %s15, 0
    %p125 = por %p123, %p124
    %p126 = scmp.ne.s32.totalorder %s112, %s113
    %p127 = scmp.eq.s32.totalorder %s16, 1
    %p128 = por %p126, %p127
    %p130 = scmp.ne.s32.totalorder %s113, %s129
    %p131 = scmp.eq.s32.totalorder %s16, 0
    %p132 = por %p130, %p131
    %p133 = scmp.le.s32.totalorder 1, %s10
    %p134 = scmp.lt.s32.totalorder %s10, 3
    %p135 = pnand %p133, %p134
    %p136 = pneg %p135
    // Predicated region
    $region9: #{unet_conv2_forward.7} parent=5 // pred_check
      _
    $region10: #{unet_conv2_forward.7} parent=5 // pred_check_branch
      %138 = sbr.rel (%p135) target = $region12
    $region11: #{unet_conv2_forward.7} parent=5 // pred_region
      %s139 = ssub.s32 %s10, 1
      // Predicated region
      $region13: #{unet_conv2_forward.7} parent=11 // pred_check
        %p140 = pneg %p57
      $region14: #{unet_conv2_forward.7} parent=11 // pred_check_branch
        %142 = sbr.rel (%p140) target = $region16
      $region15: #{unet_conv2_forward.7} parent=11 // pred_region
        _
      $region16: #{unet_conv2_forward.7} parent=11 // pred_fallthru
        _
      // Predicated region
      $region17: #{unet_conv2_forward.7} parent=11 // pred_check
        %p143 = pneg %p78
      $region18: #{unet_conv2_forward.7} parent=11 // pred_check_branch
        %145 = sbr.rel (%p143) target = $region20
      $region19: #{unet_conv2_forward.7} parent=11 // pred_region
        _
      $region20: #{unet_conv2_forward.7} parent=11 // pred_fallthru
        _
      // Predicated region
      $region21: #{unet_conv2_forward.7} parent=11 // pred_check
        %p146 = pneg %p99
      $region22: #{unet_conv2_forward.7} parent=11 // pred_check_branch
        %148 = sbr.rel (%p146) target = $region24
      $region23: #{unet_conv2_forward.7} parent=11 // pred_region
        _
      $region24: #{unet_conv2_forward.7} parent=11 // pred_fallthru
        _
    $region12: #{unet_conv2_forward.7} parent=5 // pred_fallthru
      _
    %p149 = scmp.lt.s32.totalorder %s10, 2
    // Predicated region
    $region25: #{unet_conv2_forward.7} parent=5 // pred_check
      %p150 = pneg %p149
    $region26: #{unet_conv2_forward.7} parent=5 // pred_check_branch
      %152 = sbr.rel (%p150) target = $region28
    $region27: #{unet_conv2_forward.7} parent=5 // pred_region
      // Predicated region
      $region29: #{unet_conv2_forward.7} parent=27 // pred_check
        %p153 = pneg %p30
      $region30: #{unet_conv2_forward.7} parent=27 // pred_check_branch
        %155 = sbr.rel (%p153) target = $region32
      $region31: #{unet_conv2_forward.7} parent=27 // pred_region
        %p156 = scmp.lt.s32.totalorder %s10, 1
        %s157 = scalar_select %p156, %s10, 1
        %s158 = smul.addr %s157, 36
        %s159 = smul.addr %s158, 4
        %s160 = scalar_lea.vmem %s0, %s159
      $region32: #{unet_conv2_forward.7} parent=27 // pred_fallthru
        _
    $region28: #{unet_conv2_forward.7} parent=5 // pred_fallthru
      _
    %p161 = scmp.le.s32.totalorder 1, %s10
    %p162 = scmp.lt.s32.totalorder %s10, 3
    %p163 = pnand %p161, %p162
    %p164 = pneg %p163
    // Predicated region
    $region33: #{unet_conv2_forward.7} parent=5 // pred_check
      _
    $region34: #{unet_conv2_forward.7} parent=5 // pred_check_branch
      %166 = sbr.rel (%p163) target = $region36
    $region35: #{unet_conv2_forward.7} parent=5 // pred_region
      %s167 = ssub.s32 %s10, 1
      %p168 = scmp.lt.s32.totalorder %s15, 1
      %s169 = scalar_select %p168, %s15, 1
      %s170 = smul.addr %s169, 36
      %s171 = smul.addr %s170, 4
      %s172 = scalar_lea.vmem %s0, %s171
      %p173 = pneg %p36
      %p174 = pneg %p33
      %p175 = pneg %p57
      %p176 = pneg %p54
      %p177 = pneg %p78
      %p178 = pneg %p75
      %p179 = pneg %p99
      %p180 = pneg %p96
      %p181 = pneg %p125
      %p182 = pneg %p122
      %p183 = scmp.lt.s32.totalorder %s15, 1
      %s184 = scalar_select %p183, %s15, 1
      %s185 = smul.addr %s184, 36
      %s186 = smul.addr %s185, 8
      %s187 = scalar_lea.vmem %s4, %s186
      %p188 = scmp.lt.s32.totalorder %s15, 1
      %s189 = scalar_select %p188, %s15, 1
      %s190 = smul.addr %s189, 36
      %s191 = smul.addr %s190, 4
      %s192 = scalar_lea.vmem %s0, %s191
      %p193 = scmp.lt.s32.totalorder %s15, 1
      %s194 = scalar_select %p193, %s15, 1
      %s195 = smul.addr %s194, 36
      %s196 = smul.addr %s195, 8
      %s197 = scalar_lea.vmem %s4, %s196
      %v198 = vld [vmem:[%s192] sm:$0xf]
      %v199 = vld [vmem:[%s192 + $0x4] sm:$0xf]
      %v200 = vld [vmem:[%s192 + $0x8] sm:$0xf]
      %v201 = vld [vmem:[%s192 + $0xc] sm:$0xf]
      %v202 = vld [vmem:[%s192 + $0x10] sm:$0xf]
      %v203 = vld [vmem:[%s192 + $0x14] sm:$0xf]
      %v204 = vld [vmem:[%s192 + $0x18] sm:$0xf]
      %v205 = vld [vmem:[%s192 + $0x1c] sm:$0xf]
      %v206 = vld [vmem:[%s192 + $0x20] sm:$0xf]
      %v207 = vld [vmem:[%s192 + $0x24] sm:$0xf]
      %v208 = vld [vmem:[%s192 + $0x28] sm:$0xf]
      %v209 = vld [vmem:[%s192 + $0x2c] sm:$0xf]
      %v210 = vld [vmem:[%s192 + $0x30] sm:$0xf]
      %v211 = vld [vmem:[%s192 + $0x34] sm:$0xf]
      %v212 = vld [vmem:[%s192 + $0x38] sm:$0xf]
      %v213 = vld [vmem:[%s192 + $0x3c] sm:$0xf]
      %v214 = vld [vmem:[%s192 + $0x40] sm:$0xf]
      %v215 = vld [vmem:[%s192 + $0x44] sm:$0xf]
      %v216 = vld [vmem:[%s192 + $0x48] sm:$0xf]
      %v217 = vld [vmem:[%s192 + $0x4c] sm:$0xf]
      %v218 = vld [vmem:[%s192 + $0x50] sm:$0xf]
      %v219 = vld [vmem:[%s192 + $0x54] sm:$0xf]
      %v220 = vld [vmem:[%s192 + $0x58] sm:$0xf]
      %v221 = vld [vmem:[%s192 + $0x5c] sm:$0xf]
      %v222 = vld [vmem:[%s192 + $0x60] sm:$0xf]
      %v223 = vld [vmem:[%s192 + $0x64] sm:$0xf]
      %v224 = vld [vmem:[%s192 + $0x68] sm:$0xf]
      %v225 = vld [vmem:[%s192 + $0x6c] sm:$0xf]
      %v226 = vld [vmem:[%s192 + $0x70] sm:$0xf]
      %v227 = vld [vmem:[%s192 + $0x74] sm:$0xf]
      %v228 = vld [vmem:[%s192 + $0x78] sm:$0xf]
      %v229 = vld [vmem:[%s192 + $0x7c] sm:$0xf]
      %v230 = vld [vmem:[%s192 + $0x80] sm:$0xf]
      %v231 = vld [vmem:[%s192 + $0x84] sm:$0xf]
      %v232 = vld [vmem:[%s192 + $0x88] sm:$0xf]
      %v233 = vld [vmem:[%s192 + $0x8c] sm:$0xf]
      %v234 = vunpack.c.l.bf16 %v198
      %v235 = vunpack.c.l.bf16 %v199
      %v236 = vunpack.c.l.bf16 %v200
      %v237 = vunpack.c.l.bf16 %v201
      %v238 = vunpack.c.l.bf16 %v202
      %v239 = vunpack.c.l.bf16 %v203
      %v240 = vunpack.c.l.bf16 %v204
      %v241 = vunpack.c.l.bf16 %v205
      %v242 = vunpack.c.l.bf16 %v206
      %v243 = vunpack.c.l.bf16 %v207
      %v244 = vunpack.c.l.bf16 %v208
      %v245 = vunpack.c.l.bf16 %v209
      %v246 = vunpack.c.l.bf16 %v210
      %v247 = vunpack.c.l.bf16 %v211
      %v248 = vunpack.c.l.bf16 %v212
      %v249 = vunpack.c.l.bf16 %v213
      %v250 = vunpack.c.l.bf16 %v214
      %v251 = vunpack.c.l.bf16 %v215
      %v252 = vunpack.c.l.bf16 %v216
      %v253 = vunpack.c.l.bf16 %v217
      %v254 = vunpack.c.l.bf16 %v218
      %v255 = vunpack.c.l.bf16 %v219
      %v256 = vunpack.c.l.bf16 %v220
      %v257 = vunpack.c.l.bf16 %v221
      %v258 = vunpack.c.l.bf16 %v222
      %v259 = vunpack.c.l.bf16 %v223
      %v260 = vunpack.c.l.bf16 %v224
      %v261 = vunpack.c.l.bf16 %v225
      %v262 = vunpack.c.l.bf16 %v226
      %v263 = vunpack.c.l.bf16 %v227
      %v264 = vunpack.c.l.bf16 %v228
      %v265 = vunpack.c.l.bf16 %v229
      %v266 = vunpack.c.l.bf16 %v230
      %v267 = vunpack.c.l.bf16 %v231
      %v268 = vunpack.c.l.bf16 %v232
      %v269 = vunpack.c.l.bf16 %v233
      %v270 = vld [vmem:[%s1] sm:$0x1]
      %v272 = vlaneseq
      %v273 = vshrl.u32 %v272, 7
      %v274 = vsub.s32 0, %v273
      %v275 = vrot.slane %v270, %v274
      %v277 = vmul.f32 %v234, %v275
      %v278 = vmul.f32 %v235, %v275
      %v279 = vmul.f32 %v236, %v275
      %v280 = vmul.f32 %v237, %v275
      %v281 = vmul.f32 %v238, %v275
      %v282 = vmul.f32 %v239, %v275
      %v283 = vmul.f32 %v240, %v275
      %v284 = vmul.f32 %v241, %v275
      %v285 = vmul.f32 %v242, %v275
      %v286 = vmul.f32 %v243, %v275
      %v287 = vmul.f32 %v244, %v275
      %v288 = vmul.f32 %v245, %v275
      %v289 = vmul.f32 %v246, %v275
      %v290 = vmul.f32 %v247, %v275
      %v291 = vmul.f32 %v248, %v275
      %v292 = vmul.f32 %v249, %v275
      %v293 = vmul.f32 %v250, %v275
      %v294 = vmul.f32 %v251, %v275
      %v295 = vmul.f32 %v252, %v275
      %v296 = vmul.f32 %v253, %v275
      %v297 = vmul.f32 %v254, %v275
      %v298 = vmul.f32 %v255, %v275
      %v299 = vmul.f32 %v256, %v275
      %v300 = vmul.f32 %v257, %v275
      %v301 = vmul.f32 %v258, %v275
      %v302 = vmul.f32 %v259, %v275
      %v303 = vmul.f32 %v260, %v275
      %v304 = vmul.f32 %v261, %v275
      %v305 = vmul.f32 %v262, %v275
      %v306 = vmul.f32 %v263, %v275
      %v307 = vmul.f32 %v264, %v275
      %v308 = vmul.f32 %v265, %v275
      %v309 = vmul.f32 %v266, %v275
      %v310 = vmul.f32 %v267, %v275
      %v311 = vmul.f32 %v268, %v275
      %v312 = vmul.f32 %v269, %v275
      %v313 = vld [vmem:[%s2] sm:$0x1]
      %v315 = vlaneseq
      %v316 = vshrl.u32 %v315, 7
      %v317 = vsub.s32 0, %v316
      %v318 = vrot.slane %v313, %v317
      %v320 = vadd.f32 %v277, %v318
      %v321 = vadd.f32 %v278, %v318
      %v322 = vadd.f32 %v279, %v318
      %v323 = vadd.f32 %v280, %v318
      %v324 = vadd.f32 %v281, %v318
      %v325 = vadd.f32 %v282, %v318
      %v326 = vadd.f32 %v283, %v318
      %v327 = vadd.f32 %v284, %v318
      %v328 = vadd.f32 %v285, %v318
      %v329 = vadd.f32 %v286, %v318
      %v330 = vadd.f32 %v287, %v318
      %v331 = vadd.f32 %v288, %v318
      %v332 = vadd.f32 %v289, %v318
      %v333 = vadd.f32 %v290, %v318
      %v334 = vadd.f32 %v291, %v318
      %v335 = vadd.f32 %v292, %v318
      %v336 = vadd.f32 %v293, %v318
      %v337 = vadd.f32 %v294, %v318
      %v338 = vadd.f32 %v295, %v318
      %v339 = vadd.f32 %v296, %v318
      %v340 = vadd.f32 %v297, %v318
      %v341 = vadd.f32 %v298, %v318
      %v342 = vadd.f32 %v299, %v318
      %v343 = vadd.f32 %v300, %v318
      %v344 = vadd.f32 %v301, %v318
      %v345 = vadd.f32 %v302, %v318
      %v346 = vadd.f32 %v303, %v318
      %v347 = vadd.f32 %v304, %v318
      %v348 = vadd.f32 %v305, %v318
      %v349 = vadd.f32 %v306, %v318
      %v350 = vadd.f32 %v307, %v318
      %v351 = vadd.f32 %v308, %v318
      %v352 = vadd.f32 %v309, %v318
      %v353 = vadd.f32 %v310, %v318
      %v354 = vadd.f32 %v311, %v318
      %v355 = vadd.f32 %v312, %v318
      %v356 = vmax.f32 %v320, 0.0
      %v357 = vmax.f32 %v321, 0.0
      %v358 = vmax.f32 %v322, 0.0
      %v359 = vmax.f32 %v323, 0.0
      %v360 = vmax.f32 %v324, 0.0
      %v361 = vmax.f32 %v325, 0.0
      %v362 = vmax.f32 %v326, 0.0
      %v363 = vmax.f32 %v327, 0.0
      %v364 = vmax.f32 %v328, 0.0
      %v365 = vmax.f32 %v329, 0.0
      %v366 = vmax.f32 %v330, 0.0
      %v367 = vmax.f32 %v331, 0.0
      %v368 = vmax.f32 %v332, 0.0
      %v369 = vmax.f32 %v333, 0.0
      %v370 = vmax.f32 %v334, 0.0
      %v371 = vmax.f32 %v335, 0.0
      %v372 = vmax.f32 %v336, 0.0
      %v373 = vmax.f32 %v337, 0.0
      %v374 = vmax.f32 %v338, 0.0
      %v375 = vmax.f32 %v339, 0.0
      %v376 = vmax.f32 %v340, 0.0
      %v377 = vmax.f32 %v341, 0.0
      %v378 = vmax.f32 %v342, 0.0
      %v379 = vmax.f32 %v343, 0.0
      %v380 = vmax.f32 %v344, 0.0
      %v381 = vmax.f32 %v345, 0.0
      %v382 = vmax.f32 %v346, 0.0
      %v383 = vmax.f32 %v347, 0.0
      %v384 = vmax.f32 %v348, 0.0
      %v385 = vmax.f32 %v349, 0.0
      %v386 = vmax.f32 %v350, 0.0
      %v387 = vmax.f32 %v351, 0.0
      %v388 = vmax.f32 %v352, 0.0
      %v389 = vmax.f32 %v353, 0.0
      %v390 = vmax.f32 %v354, 0.0
      %v391 = vmax.f32 %v355, 0.0
      %392 = vst [vmem:[%s197] sm:$0xff] %v356
      %393 = vst [vmem:[%s197 + $0x8] sm:$0xff] %v357
      %394 = vst [vmem:[%s197 + $0x10] sm:$0xff] %v358
      %395 = vst [vmem:[%s197 + $0x18] sm:$0xff] %v359
      %396 = vst [vmem:[%s197 + $0x20] sm:$0xff] %v360
      %397 = vst [vmem:[%s197 + $0x28] sm:$0xff] %v361
      %398 = vst [vmem:[%s197 + $0x30] sm:$0xff] %v362
      %399 = vst [vmem:[%s197 + $0x38] sm:$0xff] %v363
      %400 = vst [vmem:[%s197 + $0x40] sm:$0xff] %v364
      %401 = vst [vmem:[%s197 + $0x48] sm:$0xff] %v365
      %402 = vst [vmem:[%s197 + $0x50] sm:$0xff] %v366
      %403 = vst [vmem:[%s197 + $0x58] sm:$0xff] %v367
      %404 = vst [vmem:[%s197 + $0x60] sm:$0xff] %v368
      %405 = vst [vmem:[%s197 + $0x68] sm:$0xff] %v369
      %406 = vst [vmem:[%s197 + $0x70] sm:$0xff] %v370
      %407 = vst [vmem:[%s197 + $0x78] sm:$0xff] %v371
      %408 = vst [vmem:[%s197 + $0x80] sm:$0xff] %v372
      %409 = vst [vmem:[%s197 + $0x88] sm:$0xff] %v373
      %410 = vst [vmem:[%s197 + $0x90] sm:$0xff] %v374
      %411 = vst [vmem:[%s197 + $0x98] sm:$0xff] %v375
      %412 = vst [vmem:[%s197 + $0xa0] sm:$0xff] %v376
      %413 = vst [vmem:[%s197 + $0xa8] sm:$0xff] %v377
      %414 = vst [vmem:[%s197 + $0xb0] sm:$0xff] %v378
      %415 = vst [vmem:[%s197 + $0xb8] sm:$0xff] %v379
      %416 = vst [vmem:[%s197 + $0xc0] sm:$0xff] %v380
      %417 = vst [vmem:[%s197 + $0xc8] sm:$0xff] %v381
      %418 = vst [vmem:[%s197 + $0xd0] sm:$0xff] %v382
      %419 = vst [vmem:[%s197 + $0xd8] sm:$0xff] %v383
      %420 = vst [vmem:[%s197 + $0xe0] sm:$0xff] %v384
      %421 = vst [vmem:[%s197 + $0xe8] sm:$0xff] %v385
      %422 = vst [vmem:[%s197 + $0xf0] sm:$0xff] %v386
      %423 = vst [vmem:[%s197 + $0xf8] sm:$0xff] %v387
      %424 = vst [vmem:[%s197 + $0x100] sm:$0xff] %v388
      %425 = vst [vmem:[%s197 + $0x108] sm:$0xff] %v389
      %426 = vst [vmem:[%s197 + $0x110] sm:$0xff] %v390
      %427 = vst [vmem:[%s197 + $0x118] sm:$0xff] %v391
      %p428 = scmp.lt.s32.totalorder %s15, 1
      %s429 = scalar_select %p428, %s15, 1
      %s430 = smul.addr %s429, 36
      %s431 = smul.addr %s430, 8
      %s432 = scalar_lea.vmem %s4, %s431
      // Predicated region
      $region37: #{unet_conv2_forward.7} parent=35 // pred_check
        %p433 = pneg %p122
      $region38: #{unet_conv2_forward.7} parent=35 // pred_check_branch
        %435 = sbr.rel (%p433) target = $region40
      $region39: #{unet_conv2_forward.7} parent=35 // pred_region
        _
      $region40: #{unet_conv2_forward.7} parent=35 // pred_fallthru
        _
    $region36: #{unet_conv2_forward.7} parent=5 // pred_fallthru
      _
    %p436 = scmp.le.s32.totalorder 2, %s10
    // Predicated region
    $region41: #{unet_conv2_forward.7} parent=5 // pred_check
      %p437 = pneg %p436
    $region42: #{unet_conv2_forward.7} parent=5 // pred_check_branch
      %439 = sbr.rel (%p437) target = $region44
    $region43: #{unet_conv2_forward.7} parent=5 // pred_region
      %s440 = ssub.s32 %s10, 2
      // Predicated region
      $region45: #{unet_conv2_forward.7} parent=43 // pred_check
        %p441 = pneg %p128
      $region46: #{unet_conv2_forward.7} parent=43 // pred_check_branch
        %443 = sbr.rel (%p441) target = $region48
      $region47: #{unet_conv2_forward.7} parent=43 // pred_region
        %p444 = scmp.lt.s32.totalorder %s16, 1
        %s445 = scalar_select %p444, %s16, 1
        %s446 = smul.addr %s445, 36
        %s447 = smul.addr %s446, 8
        %s448 = scalar_lea.vmem %s4, %s447
      $region48: #{unet_conv2_forward.7} parent=43 // pred_fallthru
        _
    $region44: #{unet_conv2_forward.7} parent=5 // pred_fallthru
      _
  $region6: #{unet_conv2_forward.7} parent=0 // loop_footer
    %s14 = sadd.s32 1, %s10
  $region7: #{unet_conv2_forward.7} parent=0 // loop_footer_branch
    %9 = sbr.rel target = $region3
  $region8: #{unet_conv2_forward.7} parent=0 // loop_exit
    _

// kernel: unet_conv2_forward.5
$region0: #{unet_conv2_forward.5}
  #allocation0 [shape = 'u32[]', space=smem, size = 0x4, offset = 0x4, fixed_abs, tag = 'smem constant byte address 0x4 - core index']
  #allocation1 [shape = 'u32[144,128]{1,0:T(1,128)}', space=vmem, size = 0x12000, scoped, tag = 'internal scratch']
  %s0 = inlined_call_operand.vmem [shape: bf16[2,288,128], index: 0, kind: input, shape index: {}]
  %s1 = inlined_call_operand.vmem [shape: f32[1,128], index: 1, kind: input, shape index: {}]
  %s2 = inlined_call_operand.vmem [shape: f32[1,128], index: 2, kind: input, shape index: {}]
  %s3 = inlined_call_operand.vmem [shape: f32[288,1], index: 3, kind: input, shape index: {}]
  %s4 = inlined_call_operand.vmem [shape: bf16[2,352,128], index: 4, kind: output, shape index: {}]
  %s5 = sld [smem:[#allocation0]]
  $region49: #{unet_conv2_forward.5} parent=0
    _
  %s7 = ssub.s32 1, %s5
  %s8 = scalar_select 0, %s7, %s5
  loop: start=0, step=1, limit=4
  $region2: #{unet_conv2_forward.5} parent=0 // loop_pre_header
    _
  $region3: #{unet_conv2_forward.5} parent=0 // loop_header
    %s10 = sphi 0, %s14
    %p11 = scmp.ge.s32.totalorder %s10, 4
    %s20 = sphi 0, %s22
    %s23 = sphi 0, %s20
    %s24 = sphi 0, %s23
    %s40 = sphi 0, %s24
    %s44 = sphi 0, %s44
    %s46 = sphi 0, %s44
    %s47 = sphi 0, %s46
    %s61 = sphi 0, %s47
    %s65 = sphi 0, %s65
    %s67 = sphi 0, %s65
    %s68 = sphi 0, %s67
    %s82 = sphi 0, %s68
    %s86 = sphi 0, %s86
    %s88 = sphi 0, %s86
    %s89 = sphi 0, %s88
    %s103 = sphi 0, %s89
    %s109 = sphi 0, %s111
    %s112 = sphi 0, %s109
    %s113 = sphi 0, %s112
    %s129 = sphi 0, %s113
  $region4: #{unet_conv2_forward.5} parent=0 // loop_header_branch
    %13 = sbr.rel (%p11) target = $region8
  $region5: #{unet_conv2_forward.5} parent=0 // loop_body
    %s15 = ssub.s32 %s10, 1
    %s16 = ssub.s32 %s10, 2
    %s17 = sadd.s32 %s10, 1
    %s18 = ssub.s32 %s10, %s17
    %p19 = scmp.eq.s32.totalorder %s18, 0
    %s21 = sadd.s32 %s20, 1
    %s22 = scalar_select %p19, %s20, %s21
    %p25 = pneg %p19
    %p26 = scmp.eq.s32.totalorder %s10, 1
    %p27 = por %p25, %p26
    %p28 = scmp.ne.s32.totalorder %s20, %s23
    %p29 = scmp.eq.s32.totalorder %s10, 0
    %p30 = por %p28, %p29
    %p31 = scmp.ne.s32.totalorder %s20, %s23
    %p32 = scmp.eq.s32.totalorder %s15, 1
    %p33 = por %p31, %p32
    %p34 = scmp.ne.s32.totalorder %s23, %s24
    %p35 = scmp.eq.s32.totalorder %s15, 0
    %p36 = por %p34, %p35
    %p37 = scmp.ne.s32.totalorder %s23, %s24
    %p38 = scmp.eq.s32.totalorder %s16, 1
    %p39 = por %p37, %p38
    %p41 = scmp.ne.s32.totalorder %s24, %s40
    %p42 = scmp.eq.s32.totalorder %s16, 0
    %p43 = por %p41, %p42
    %s45 = sadd.s32 %s44, 1
    %p48 = scmp.eq.s32.totalorder %s10, 1
    %p49 = scmp.ne.s32.totalorder %s44, %s46
    %p50 = scmp.eq.s32.totalorder %s10, 0
    %p51 = por %p49, %p50
    %p52 = scmp.ne.s32.totalorder %s44, %s46
    %p53 = scmp.eq.s32.totalorder %s15, 1
    %p54 = por %p52, %p53
    %p55 = scmp.ne.s32.totalorder %s46, %s47
    %p56 = scmp.eq.s32.totalorder %s15, 0
    %p57 = por %p55, %p56
    %p58 = scmp.ne.s32.totalorder %s46, %s47
    %p59 = scmp.eq.s32.totalorder %s16, 1
    %p60 = por %p58, %p59
    %p62 = scmp.ne.s32.totalorder %s47, %s61
    %p63 = scmp.eq.s32.totalorder %s16, 0
    %p64 = por %p62, %p63
    %s66 = sadd.s32 %s65, 1
    %p69 = scmp.eq.s32.totalorder %s10, 1
    %p70 = scmp.ne.s32.totalorder %s65, %s67
    %p71 = scmp.eq.s32.totalorder %s10, 0
    %p72 = por %p70, %p71
    %p73 = scmp.ne.s32.totalorder %s65, %s67
    %p74 = scmp.eq.s32.totalorder %s15, 1
    %p75 = por %p73, %p74
    %p76 = scmp.ne.s32.totalorder %s67, %s68
    %p77 = scmp.eq.s32.totalorder %s15, 0
    %p78 = por %p76, %p77
    %p79 = scmp.ne.s32.totalorder %s67, %s68
    %p80 = scmp.eq.s32.totalorder %s16, 1
    %p81 = por %p79, %p80
    %p83 = scmp.ne.s32.totalorder %s68, %s82
    %p84 = scmp.eq.s32.totalorder %s16, 0
    %p85 = por %p83, %p84
    %s87 = sadd.s32 %s86, 1
    %p90 = scmp.eq.s32.totalorder %s10, 1
    %p91 = scmp.ne.s32.totalorder %s86, %s88
    %p92 = scmp.eq.s32.totalorder %s10, 0
    %p93 = por %p91, %p92
    %p94 = scmp.ne.s32.totalorder %s86, %s88
    %p95 = scmp.eq.s32.totalorder %s15, 1
    %p96 = por %p94, %p95
    %p97 = scmp.ne.s32.totalorder %s88, %s89
    %p98 = scmp.eq.s32.totalorder %s15, 0
    %p99 = por %p97, %p98
    %p100 = scmp.ne.s32.totalorder %s88, %s89
    %p101 = scmp.eq.s32.totalorder %s16, 1
    %p102 = por %p100, %p101
    %p104 = scmp.ne.s32.totalorder %s89, %s103
    %p105 = scmp.eq.s32.totalorder %s16, 0
    %p106 = por %p104, %p105
    %s107 = ssub.s32 %s10, %s17
    %p108 = scmp.eq.s32.totalorder %s107, 0
    %s110 = sadd.s32 %s109, 1
    %s111 = scalar_select %p108, %s109, %s110
    %p114 = pneg %p108
    %p115 = scmp.eq.s32.totalorder %s10, 1
    %p116 = por %p114, %p115
    %p117 = scmp.ne.s32.totalorder %s109, %s112
    %p118 = scmp.eq.s32.totalorder %s10, 0
    %p119 = por %p117, %p118
    %p120 = scmp.ne.s32.totalorder %s109, %s112
    %p121 = scmp.eq.s32.totalorder %s15, 1
    %p122 = por %p120, %p121
    %p123 = scmp.ne.s32.totalorder %s112, %s113
    %p124 = scmp.eq.s32.totalorder %s15, 0
    %p125 = por %p123, %p124
    %p126 = scmp.ne.s32.totalorder %s112, %s113
    %p127 = scmp.eq.s32.totalorder %s16, 1
    %p128 = por %p126, %p127
    %p130 = scmp.ne.s32.totalorder %s113, %s129
    %p131 = scmp.eq.s32.totalorder %s16, 0
    %p132 = por %p130, %p131
    %p133 = scmp.le.s32.totalorder 1, %s10
    %p134 = scmp.lt.s32.totalorder %s10, 3
    %p135 = pnand %p133, %p134
    %p136 = pneg %p135
    // Predicated region
    $region9: #{unet_conv2_forward.5} parent=5 // pred_check
      _
    $region10: #{unet_conv2_forward.5} parent=5 // pred_check_branch
      %138 = sbr.rel (%p135) target = $region12
    $region11: #{unet_conv2_forward.5} parent=5 // pred_region
      %s139 = ssub.s32 %s10, 1
      // Predicated region
      $region13: #{unet_conv2_forward.5} parent=11 // pred_check
        %p140 = pneg %p57
      $region14: #{unet_conv2_forward.5} parent=11 // pred_check_branch
        %142 = sbr.rel (%p140) target = $region16
      $region15: #{unet_conv2_forward.5} parent=11 // pred_region
        _
      $region16: #{unet_conv2_forward.5} parent=11 // pred_fallthru
        _
      // Predicated region
      $region17: #{unet_conv2_forward.5} parent=11 // pred_check
        %p143 = pneg %p78
      $region18: #{unet_conv2_forward.5} parent=11 // pred_check_branch
        %145 = sbr.rel (%p143) target = $region20
      $region19: #{unet_conv2_forward.5} parent=11 // pred_region
        _
      $region20: #{unet_conv2_forward.5} parent=11 // pred_fallthru
        _
      // Predicated region
      $region21: #{unet_conv2_forward.5} parent=11 // pred_check
        %p146 = pneg %p99
      $region22: #{unet_conv2_forward.5} parent=11 // pred_check_branch
        %148 = sbr.rel (%p146) target = $region24
      $region23: #{unet_conv2_forward.5} parent=11 // pred_region
        _
      $region24: #{unet_conv2_forward.5} parent=11 // pred_fallthru
        _
    $region12: #{unet_conv2_forward.5} parent=5 // pred_fallthru
      _
    %p149 = scmp.lt.s32.totalorder %s10, 2
    // Predicated region
    $region25: #{unet_conv2_forward.5} parent=5 // pred_check
      %p150 = pneg %p149
    $region26: #{unet_conv2_forward.5} parent=5 // pred_check_branch
      %152 = sbr.rel (%p150) target = $region28
    $region27: #{unet_conv2_forward.5} parent=5 // pred_region
      // Predicated region
      $region29: #{unet_conv2_forward.5} parent=27 // pred_check
        %p153 = pneg %p30
      $region30: #{unet_conv2_forward.5} parent=27 // pred_check_branch
        %155 = sbr.rel (%p153) target = $region32
      $region31: #{unet_conv2_forward.5} parent=27 // pred_region
        %p156 = scmp.lt.s32.totalorder %s10, 1
        %s157 = scalar_select %p156, %s10, 1
        %s158 = smul.addr %s157, 36
        %s159 = smul.addr %s158, 4
        %s160 = scalar_lea.vmem %s0, %s159
      $region32: #{unet_conv2_forward.5} parent=27 // pred_fallthru
        _
    $region28: #{unet_conv2_forward.5} parent=5 // pred_fallthru
      _
    %p161 = scmp.le.s32.totalorder 1, %s10
    %p162 = scmp.lt.s32.totalorder %s10, 3
    %p163 = pnand %p161, %p162
    %p164 = pneg %p163
    // Predicated region
    $region33: #{unet_conv2_forward.5} parent=5 // pred_check
      _
    $region34: #{unet_conv2_forward.5} parent=5 // pred_check_branch
      %166 = sbr.rel (%p163) target = $region36
    $region35: #{unet_conv2_forward.5} parent=5 // pred_region
      %s167 = ssub.s32 %s10, 1
      %p168 = scmp.lt.s32.totalorder %s15, 1
      %s169 = scalar_select %p168, %s15, 1
      %s170 = smul.addr %s169, 36
      %s171 = smul.addr %s170, 4
      %s172 = scalar_lea.vmem %s0, %s171
      %p173 = pneg %p36
      %p174 = pneg %p33
      %p175 = pneg %p57
      %p176 = pneg %p54
      %p177 = pneg %p78
      %p178 = pneg %p75
      %p179 = pneg %p99
      %p180 = pneg %p96
      %p181 = pneg %p125
      %p182 = pneg %p122
      %p183 = scmp.lt.s32.totalorder %s15, 1
      %s184 = scalar_select %p183, %s15, 1
      %s185 = smul.addr %s184, 44
      %s186 = smul.addr %s185, 4
      %s187 = scalar_lea.vmem %s4, %s186
      %p188 = scmp.lt.s32.totalorder %s15, 1
      %s189 = scalar_select %p188, %s15, 1
      %s190 = smul.addr %s189, 36
      %s191 = smul.addr %s190, 4
      %s192 = scalar_lea.vmem %s0, %s191
      %p193 = scmp.lt.s32.totalorder %s15, 1
      %s194 = scalar_select %p193, %s15, 1
      %s195 = smul.addr %s194, 44
      %s196 = smul.addr %s195, 4
      %s197 = scalar_lea.vmem %s4, %s196
      %v199 = vld [vmem:[%s192] sm:$0xf]
      %v200 = vld [vmem:[%s192 + $0x4] sm:$0xf]
      %v201 = vld [vmem:[%s192 + $0x8] sm:$0xf]
      %v202 = vld [vmem:[%s192 + $0xc] sm:$0xf]
      %v203 = vld [vmem:[%s192 + $0x10] sm:$0xf]
      %v204 = vld [vmem:[%s192 + $0x14] sm:$0xf]
      %v205 = vld [vmem:[%s192 + $0x18] sm:$0xf]
      %v206 = vld [vmem:[%s192 + $0x1c] sm:$0xf]
      %v207 = vld [vmem:[%s192 + $0x20] sm:$0xf]
      %v208 = vld [vmem:[%s192 + $0x24] sm:$0xf]
      %v209 = vld [vmem:[%s192 + $0x28] sm:$0xf]
      %v210 = vld [vmem:[%s192 + $0x2c] sm:$0xf]
      %v211 = vld [vmem:[%s192 + $0x30] sm:$0xf]
      %v212 = vld [vmem:[%s192 + $0x34] sm:$0xf]
      %v213 = vld [vmem:[%s192 + $0x38] sm:$0xf]
      %v214 = vld [vmem:[%s192 + $0x3c] sm:$0xf]
      %v215 = vld [vmem:[%s192 + $0x40] sm:$0xf]
      %v216 = vld [vmem:[%s192 + $0x44] sm:$0xf]
      %v217 = vld [vmem:[%s192 + $0x48] sm:$0xf]
      %v218 = vld [vmem:[%s192 + $0x4c] sm:$0xf]
      %v219 = vld [vmem:[%s192 + $0x50] sm:$0xf]
      %v220 = vld [vmem:[%s192 + $0x54] sm:$0xf]
      %v221 = vld [vmem:[%s192 + $0x58] sm:$0xf]
      %v222 = vld [vmem:[%s192 + $0x5c] sm:$0xf]
      %v223 = vld [vmem:[%s192 + $0x60] sm:$0xf]
      %v224 = vld [vmem:[%s192 + $0x64] sm:$0xf]
      %v225 = vld [vmem:[%s192 + $0x68] sm:$0xf]
      %v226 = vld [vmem:[%s192 + $0x6c] sm:$0xf]
      %v227 = vld [vmem:[%s192 + $0x70] sm:$0xf]
      %v228 = vld [vmem:[%s192 + $0x74] sm:$0xf]
      %v229 = vld [vmem:[%s192 + $0x78] sm:$0xf]
      %v230 = vld [vmem:[%s192 + $0x7c] sm:$0xf]
      %v231 = vld [vmem:[%s192 + $0x80] sm:$0xf]
      %v232 = vld [vmem:[%s192 + $0x84] sm:$0xf]
      %v233 = vld [vmem:[%s192 + $0x88] sm:$0xf]
      %v234 = vld [vmem:[%s192 + $0x8c] sm:$0xf]
      %v235 = vunpack.c.l.bf16 %v199
      %v236 = vunpack.c.l.bf16 %v200
      %v237 = vunpack.c.l.bf16 %v201
      %v238 = vunpack.c.l.bf16 %v202
      %v239 = vunpack.c.l.bf16 %v203
      %v240 = vunpack.c.l.bf16 %v204
      %v241 = vunpack.c.l.bf16 %v205
      %v242 = vunpack.c.l.bf16 %v206
      %v243 = vunpack.c.l.bf16 %v207
      %v244 = vunpack.c.l.bf16 %v208
      %v245 = vunpack.c.l.bf16 %v209
      %v246 = vunpack.c.l.bf16 %v210
      %v247 = vunpack.c.l.bf16 %v211
      %v248 = vunpack.c.l.bf16 %v212
      %v249 = vunpack.c.l.bf16 %v213
      %v250 = vunpack.c.l.bf16 %v214
      %v251 = vunpack.c.l.bf16 %v215
      %v252 = vunpack.c.l.bf16 %v216
      %v253 = vunpack.c.l.bf16 %v217
      %v254 = vunpack.c.l.bf16 %v218
      %v255 = vunpack.c.l.bf16 %v219
      %v256 = vunpack.c.l.bf16 %v220
      %v257 = vunpack.c.l.bf16 %v221
      %v258 = vunpack.c.l.bf16 %v222
      %v259 = vunpack.c.l.bf16 %v223
      %v260 = vunpack.c.l.bf16 %v224
      %v261 = vunpack.c.l.bf16 %v225
      %v262 = vunpack.c.l.bf16 %v226
      %v263 = vunpack.c.l.bf16 %v227
      %v264 = vunpack.c.l.bf16 %v228
      %v265 = vunpack.c.l.bf16 %v229
      %v266 = vunpack.c.l.bf16 %v230
      %v267 = vunpack.c.l.bf16 %v231
      %v268 = vunpack.c.l.bf16 %v232
      %v269 = vunpack.c.l.bf16 %v233
      %v270 = vunpack.c.l.bf16 %v234
      %v271 = vld [vmem:[%s1] sm:$0x1]
      %v273 = vlaneseq
      %v274 = vshrl.u32 %v273, 7
      %v275 = vsub.s32 0, %v274
      %v276 = vrot.slane %v271, %v275
      %v278 = vmul.f32 %v235, %v276
      %v279 = vmul.f32 %v236, %v276
      %v280 = vmul.f32 %v237, %v276
      %v281 = vmul.f32 %v238, %v276
      %v282 = vmul.f32 %v239, %v276
      %v283 = vmul.f32 %v240, %v276
      %v284 = vmul.f32 %v241, %v276
      %v285 = vmul.f32 %v242, %v276
      %v286 = vmul.f32 %v243, %v276
      %v287 = vmul.f32 %v244, %v276
      %v288 = vmul.f32 %v245, %v276
      %v289 = vmul.f32 %v246, %v276
      %v290 = vmul.f32 %v247, %v276
      %v291 = vmul.f32 %v248, %v276
      %v292 = vmul.f32 %v249, %v276
      %v293 = vmul.f32 %v250, %v276
      %v294 = vmul.f32 %v251, %v276
      %v295 = vmul.f32 %v252, %v276
      %v296 = vmul.f32 %v253, %v276
      %v297 = vmul.f32 %v254, %v276
      %v298 = vmul.f32 %v255, %v276
      %v299 = vmul.f32 %v256, %v276
      %v300 = vmul.f32 %v257, %v276
      %v301 = vmul.f32 %v258, %v276
      %v302 = vmul.f32 %v259, %v276
      %v303 = vmul.f32 %v260, %v276
      %v304 = vmul.f32 %v261, %v276
      %v305 = vmul.f32 %v262, %v276
      %v306 = vmul.f32 %v263, %v276
      %v307 = vmul.f32 %v264, %v276
      %v308 = vmul.f32 %v265, %v276
      %v309 = vmul.f32 %v266, %v276
      %v310 = vmul.f32 %v267, %v276
      %v311 = vmul.f32 %v268, %v276
      %v312 = vmul.f32 %v269, %v276
      %v313 = vmul.f32 %v270, %v276
      %v314 = vld [vmem:[%s2] sm:$0x1]
      %v316 = vlaneseq
      %v317 = vshrl.u32 %v316, 7
      %v318 = vsub.s32 0, %v317
      %v319 = vrot.slane %v314, %v318
      %v321 = vadd.f32 %v278, %v319
      %v322 = vadd.f32 %v279, %v319
      %v323 = vadd.f32 %v280, %v319
      %v324 = vadd.f32 %v281, %v319
      %v325 = vadd.f32 %v282, %v319
      %v326 = vadd.f32 %v283, %v319
      %v327 = vadd.f32 %v284, %v319
      %v328 = vadd.f32 %v285, %v319
      %v329 = vadd.f32 %v286, %v319
      %v330 = vadd.f32 %v287, %v319
      %v331 = vadd.f32 %v288, %v319
      %v332 = vadd.f32 %v289, %v319
      %v333 = vadd.f32 %v290, %v319
      %v334 = vadd.f32 %v291, %v319
      %v335 = vadd.f32 %v292, %v319
      %v336 = vadd.f32 %v293, %v319
      %v337 = vadd.f32 %v294, %v319
      %v338 = vadd.f32 %v295, %v319
      %v339 = vadd.f32 %v296, %v319
      %v340 = vadd.f32 %v297, %v319
      %v341 = vadd.f32 %v298, %v319
      %v342 = vadd.f32 %v299, %v319
      %v343 = vadd.f32 %v300, %v319
      %v344 = vadd.f32 %v301, %v319
      %v345 = vadd.f32 %v302, %v319
      %v346 = vadd.f32 %v303, %v319
      %v347 = vadd.f32 %v304, %v319
      %v348 = vadd.f32 %v305, %v319
      %v349 = vadd.f32 %v306, %v319
      %v350 = vadd.f32 %v307, %v319
      %v351 = vadd.f32 %v308, %v319
      %v352 = vadd.f32 %v309, %v319
      %v353 = vadd.f32 %v310, %v319
      %v354 = vadd.f32 %v311, %v319
      %v355 = vadd.f32 %v312, %v319
      %v356 = vadd.f32 %v313, %v319
      %v357 = vmax.f32 %v321, 0.0
      %v358 = vmax.f32 %v322, 0.0
      %v359 = vmax.f32 %v323, 0.0
      %v360 = vmax.f32 %v324, 0.0
      %v361 = vmax.f32 %v325, 0.0
      %v362 = vmax.f32 %v326, 0.0
      %v363 = vmax.f32 %v327, 0.0
      %v364 = vmax.f32 %v328, 0.0
      %v365 = vmax.f32 %v329, 0.0
      %v366 = vmax.f32 %v330, 0.0
      %v367 = vmax.f32 %v331, 0.0
      %v368 = vmax.f32 %v332, 0.0
      %v369 = vmax.f32 %v333, 0.0
      %v370 = vmax.f32 %v334, 0.0
      %v371 = vmax.f32 %v335, 0.0
      %v372 = vmax.f32 %v336, 0.0
      %v373 = vmax.f32 %v337, 0.0
      %v374 = vmax.f32 %v338, 0.0
      %v375 = vmax.f32 %v339, 0.0
      %v376 = vmax.f32 %v340, 0.0
      %v377 = vmax.f32 %v341, 0.0
      %v378 = vmax.f32 %v342, 0.0
      %v379 = vmax.f32 %v343, 0.0
      %v380 = vmax.f32 %v344, 0.0
      %v381 = vmax.f32 %v345, 0.0
      %v382 = vmax.f32 %v346, 0.0
      %v383 = vmax.f32 %v347, 0.0
      %v384 = vmax.f32 %v348, 0.0
      %v385 = vmax.f32 %v349, 0.0
      %v386 = vmax.f32 %v350, 0.0
      %v387 = vmax.f32 %v351, 0.0
      %v388 = vmax.f32 %v352, 0.0
      %v389 = vmax.f32 %v353, 0.0
      %v390 = vmax.f32 %v354, 0.0
      %v391 = vmax.f32 %v355, 0.0
      %v392 = vmax.f32 %v356, 0.0
      %v393 = vld [vmem:[%s3] sm:$0xff]
      %v394 = vld [vmem:[%s3 + $0x8] sm:$0xff]
      %v395 = vld [vmem:[%s3 + $0x10] sm:$0xff]
      %v396 = vld [vmem:[%s3 + $0x18] sm:$0xff]
      %v397 = vld [vmem:[%s3 + $0x20] sm:$0xff]
      %v398 = vld [vmem:[%s3 + $0x28] sm:$0xff]
      %v399 = vld [vmem:[%s3 + $0x30] sm:$0xff]
      %v400 = vld [vmem:[%s3 + $0x38] sm:$0xff]
      %v401 = vld [vmem:[%s3 + $0x40] sm:$0xff]
      %v402 = vld [vmem:[%s3 + $0x48] sm:$0xff]
      %v403 = vld [vmem:[%s3 + $0x50] sm:$0xff]
      %v404 = vld [vmem:[%s3 + $0x58] sm:$0xff]
      %v405 = vld [vmem:[%s3 + $0x60] sm:$0xff]
      %v406 = vld [vmem:[%s3 + $0x68] sm:$0xff]
      %v407 = vld [vmem:[%s3 + $0x70] sm:$0xff]
      %v408 = vld [vmem:[%s3 + $0x78] sm:$0xff]
      %v409 = vld [vmem:[%s3 + $0x80] sm:$0xff]
      %v410 = vld [vmem:[%s3 + $0x88] sm:$0xff]
      %v411 = vld [vmem:[%s3 + $0x90] sm:$0xff]
      %v412 = vld [vmem:[%s3 + $0x98] sm:$0xff]
      %v413 = vld [vmem:[%s3 + $0xa0] sm:$0xff]
      %v414 = vld [vmem:[%s3 + $0xa8] sm:$0xff]
      %v415 = vld [vmem:[%s3 + $0xb0] sm:$0xff]
      %v416 = vld [vmem:[%s3 + $0xb8] sm:$0xff]
      %v417 = vld [vmem:[%s3 + $0xc0] sm:$0xff]
      %v418 = vld [vmem:[%s3 + $0xc8] sm:$0xff]
      %v419 = vld [vmem:[%s3 + $0xd0] sm:$0xff]
      %v420 = vld [vmem:[%s3 + $0xd8] sm:$0xff]
      %v421 = vld [vmem:[%s3 + $0xe0] sm:$0xff]
      %v422 = vld [vmem:[%s3 + $0xe8] sm:$0xff]
      %v423 = vld [vmem:[%s3 + $0xf0] sm:$0xff]
      %v424 = vld [vmem:[%s3 + $0xf8] sm:$0xff]
      %v425 = vld [vmem:[%s3 + $0x100] sm:$0xff]
      %v426 = vld [vmem:[%s3 + $0x108] sm:$0xff]
      %v427 = vld [vmem:[%s3 + $0x110] sm:$0xff]
      %v428 = vld [vmem:[%s3 + $0x118] sm:$0xff]
      %430 = vset.pattern.permute.xlu0 0
      %431 = vperm.xlu0 %430, %v393
      %v432 = vpop.permute.xlu0 %431
      %435 = vset.pattern.permute.xlu0 0
      %436 = vperm.xlu0 %435, %v394
      %v437 = vpop.permute.xlu0 %436
      %440 = vset.pattern.permute.xlu0 0
      %441 = vperm.xlu0 %440, %v395
      %v442 = vpop.permute.xlu0 %441
      %445 = vset.pattern.permute.xlu0 0
      %446 = vperm.xlu0 %445, %v396
      %v447 = vpop.permute.xlu0 %446
      %450 = vset.pattern.permute.xlu0 0
      %451 = vperm.xlu0 %450, %v397
      %v452 = vpop.permute.xlu0 %451
      %455 = vset.pattern.permute.xlu0 0
      %456 = vperm.xlu0 %455, %v398
      %v457 = vpop.permute.xlu0 %456
      %460 = vset.pattern.permute.xlu0 0
      %461 = vperm.xlu0 %460, %v399
      %v462 = vpop.permute.xlu0 %461
      %465 = vset.pattern.permute.xlu0 0
      %466 = vperm.xlu0 %465, %v400
      %v467 = vpop.permute.xlu0 %466
      %470 = vset.pattern.permute.xlu0 0
      %471 = vperm.xlu0 %470, %v401
      %v472 = vpop.permute.xlu0 %471
      %475 = vset.pattern.permute.xlu0 0
      %476 = vperm.xlu0 %475, %v402
      %v477 = vpop.permute.xlu0 %476
      %480 = vset.pattern.permute.xlu0 0
      %481 = vperm.xlu0 %480, %v403
      %v482 = vpop.permute.xlu0 %481
      %485 = vset.pattern.permute.xlu0 0
      %486 = vperm.xlu0 %485, %v404
      %v487 = vpop.permute.xlu0 %486
      %490 = vset.pattern.permute.xlu0 0
      %491 = vperm.xlu0 %490, %v405
      %v492 = vpop.permute.xlu0 %491
      %495 = vset.pattern.permute.xlu0 0
      %496 = vperm.xlu0 %495, %v406
      %v497 = vpop.permute.xlu0 %496
      %500 = vset.pattern.permute.xlu0 0
      %501 = vperm.xlu0 %500, %v407
      %v502 = vpop.permute.xlu0 %501
      %505 = vset.pattern.permute.xlu0 0
      %506 = vperm.xlu0 %505, %v408
      %v507 = vpop.permute.xlu0 %506
      %510 = vset.pattern.permute.xlu0 0
      %511 = vperm.xlu0 %510, %v409
      %v512 = vpop.permute.xlu0 %511
      %515 = vset.pattern.permute.xlu0 0
      %516 = vperm.xlu0 %515, %v410
      %v517 = vpop.permute.xlu0 %516
      %520 = vset.pattern.permute.xlu0 0
      %521 = vperm.xlu0 %520, %v411
      %v522 = vpop.permute.xlu0 %521
      %525 = vset.pattern.permute.xlu0 0
      %526 = vperm.xlu0 %525, %v412
      %v527 = vpop.permute.xlu0 %526
      %530 = vset.pattern.permute.xlu0 0
      %531 = vperm.xlu0 %530, %v413
      %v532 = vpop.permute.xlu0 %531
      %535 = vset.pattern.permute.xlu0 0
      %536 = vperm.xlu0 %535, %v414
      %v537 = vpop.permute.xlu0 %536
      %540 = vset.pattern.permute.xlu0 0
      %541 = vperm.xlu0 %540, %v415
      %v542 = vpop.permute.xlu0 %541
      %545 = vset.pattern.permute.xlu0 0
      %546 = vperm.xlu0 %545, %v416
      %v547 = vpop.permute.xlu0 %546
      %550 = vset.pattern.permute.xlu0 0
      %551 = vperm.xlu0 %550, %v417
      %v552 = vpop.permute.xlu0 %551
      %555 = vset.pattern.permute.xlu0 0
      %556 = vperm.xlu0 %555, %v418
      %v557 = vpop.permute.xlu0 %556
      %560 = vset.pattern.permute.xlu0 0
      %561 = vperm.xlu0 %560, %v419
      %v562 = vpop.permute.xlu0 %561
      %565 = vset.pattern.permute.xlu0 0
      %566 = vperm.xlu0 %565, %v420
      %v567 = vpop.permute.xlu0 %566
      %570 = vset.pattern.permute.xlu0 0
      %571 = vperm.xlu0 %570, %v421
      %v572 = vpop.permute.xlu0 %571
      %575 = vset.pattern.permute.xlu0 0
      %576 = vperm.xlu0 %575, %v422
      %v577 = vpop.permute.xlu0 %576
      %580 = vset.pattern.permute.xlu0 0
      %581 = vperm.xlu0 %580, %v423
      %v582 = vpop.permute.xlu0 %581
      %585 = vset.pattern.permute.xlu0 0
      %586 = vperm.xlu0 %585, %v424
      %v587 = vpop.permute.xlu0 %586
      %590 = vset.pattern.permute.xlu0 0
      %591 = vperm.xlu0 %590, %v425
      %v592 = vpop.permute.xlu0 %591
      %595 = vset.pattern.permute.xlu0 0
      %596 = vperm.xlu0 %595, %v426
      %v597 = vpop.permute.xlu0 %596
      %600 = vset.pattern.permute.xlu0 0
      %601 = vperm.xlu0 %600, %v427
      %v602 = vpop.permute.xlu0 %601
      %605 = vset.pattern.permute.xlu0 0
      %606 = vperm.xlu0 %605, %v428
      %v607 = vpop.permute.xlu0 %606
      %v609 = vmul.f32 %v357, %v432
      %v610 = vmul.f32 %v358, %v437
      %v611 = vmul.f32 %v359, %v442
      %v612 = vmul.f32 %v360, %v447
      %v613 = vmul.f32 %v361, %v452
      %v614 = vmul.f32 %v362, %v457
      %v615 = vmul.f32 %v363, %v462
      %v616 = vmul.f32 %v364, %v467
      %v617 = vmul.f32 %v365, %v472
      %v618 = vmul.f32 %v366, %v477
      %v619 = vmul.f32 %v367, %v482
      %v620 = vmul.f32 %v368, %v487
      %v621 = vmul.f32 %v369, %v492
      %v622 = vmul.f32 %v370, %v497
      %v623 = vmul.f32 %v371, %v502
      %v624 = vmul.f32 %v372, %v507
      %v625 = vmul.f32 %v373, %v512
      %v626 = vmul.f32 %v374, %v517
      %v627 = vmul.f32 %v375, %v522
      %v628 = vmul.f32 %v376, %v527
      %v629 = vmul.f32 %v377, %v532
      %v630 = vmul.f32 %v378, %v537
      %v631 = vmul.f32 %v379, %v542
      %v632 = vmul.f32 %v380, %v547
      %v633 = vmul.f32 %v381, %v552
      %v634 = vmul.f32 %v382, %v557
      %v635 = vmul.f32 %v383, %v562
      %v636 = vmul.f32 %v384, %v567
      %v637 = vmul.f32 %v385, %v572
      %v638 = vmul.f32 %v386, %v577
      %v639 = vmul.f32 %v387, %v582
      %v640 = vmul.f32 %v388, %v587
      %v641 = vmul.f32 %v389, %v592
      %v642 = vmul.f32 %v390, %v597
      %v643 = vmul.f32 %v391, %v602
      %v644 = vmul.f32 %v392, %v607
      %645 = vst [vmem:[%s197] sm:$0xf] 0
      %646 = vst [vmem:[%s197 + $0x4] sm:$0xf] 0
      %647 = vst [vmem:[%s197 + $0x8] sm:$0xf] 0
      %648 = vst [vmem:[%s197 + $0xc] sm:$0xf] 0
      %649 = vst [vmem:[%s197 + $0x10] sm:$0xf] 0
      %650 = vst [vmem:[%s197 + $0x14] sm:$0xf] 0
      %651 = vst [vmem:[%s197 + $0x18] sm:$0xf] 0
      %652 = vst [vmem:[%s197 + $0x1c] sm:$0xf] 0
      %653 = vst [vmem:[%s197 + $0x20] sm:$0xf] 0
      %654 = vst [vmem:[%s197 + $0x24] sm:$0xf] 0
      %655 = vst [vmem:[%s197 + $0x28] sm:$0xf] 0
      %656 = vst [vmem:[%s197 + $0x2c] sm:$0xf] 0
      %657 = vst [vmem:[%s197 + $0x30] sm:$0xf] 0
      %658 = vst [vmem:[%s197 + $0x34] sm:$0xf] 0
      %659 = vst [vmem:[%s197 + $0x38] sm:$0xf] 0
      %660 = vst [vmem:[%s197 + $0x3c] sm:$0xf] 0
      %661 = vst [vmem:[%s197 + $0x40] sm:$0xf] 0
      %662 = vst [vmem:[%s197 + $0x44] sm:$0xf] 0
      %663 = vst [vmem:[%s197 + $0x48] sm:$0xf] 0
      %664 = vst [vmem:[%s197 + $0x4c] sm:$0xf] 0
      %665 = vst [vmem:[%s197 + $0x50] sm:$0xf] 0
      %666 = vst [vmem:[%s197 + $0x54] sm:$0xf] 0
      %667 = vst [vmem:[%s197 + $0x58] sm:$0xf] 0
      %668 = vst [vmem:[%s197 + $0x5c] sm:$0xf] 0
      %669 = vst [vmem:[%s197 + $0x60] sm:$0xf] 0
      %670 = vst [vmem:[%s197 + $0x64] sm:$0xf] 0
      %671 = vst [vmem:[%s197 + $0x68] sm:$0xf] 0
      %672 = vst [vmem:[%s197 + $0x6c] sm:$0xf] 0
      %673 = vst [vmem:[%s197 + $0x70] sm:$0xf] 0
      %674 = vst [vmem:[%s197 + $0x74] sm:$0xf] 0
      %675 = vst [vmem:[%s197 + $0x78] sm:$0xf] 0
      %676 = vst [vmem:[%s197 + $0x7c] sm:$0xf] 0
      %677 = vst [vmem:[%s197 + $0x80] sm:$0xf] 0
      %678 = vst [vmem:[%s197 + $0x84] sm:$0xf] 0
      %679 = vst [vmem:[%s197 + $0x88] sm:$0xf] 0
      %680 = vst [vmem:[%s197 + $0x8c] sm:$0xf] 0
      %681 = vst [vmem:[%s197 + $0x90] sm:$0xf] 0
      %682 = vst [vmem:[%s197 + $0x94] sm:$0xf] 0
      %683 = vst [vmem:[%s197 + $0x98] sm:$0xf] 0
      %684 = vst [vmem:[%s197 + $0x9c] sm:$0xf] 0
      %685 = vst [vmem:[%s197 + $0xa0] sm:$0xf] 0
      %686 = vst [vmem:[%s197 + $0xa4] sm:$0xf] 0
      %687 = vst [vmem:[%s197 + $0xa8] sm:$0xf] 0
      %688 = vst [vmem:[%s197 + $0xac] sm:$0xf] 0
      %v689 = vpack.c.bf16 %v610, %v609
      %v690 = vpack.c.bf16 %v612, %v611
      %v691 = vpack.c.bf16 %v614, %v613
      %v692 = vpack.c.bf16 %v616, %v615
      %v693 = vpack.c.bf16 %v618, %v617
      %v694 = vpack.c.bf16 %v620, %v619
      %v695 = vpack.c.bf16 %v622, %v621
      %v696 = vpack.c.bf16 %v624, %v623
      %v697 = vpack.c.bf16 %v626, %v625
      %v698 = vpack.c.bf16 %v628, %v627
      %v699 = vpack.c.bf16 %v630, %v629
      %v700 = vpack.c.bf16 %v632, %v631
      %v701 = vpack.c.bf16 %v634, %v633
      %v702 = vpack.c.bf16 %v636, %v635
      %v703 = vpack.c.bf16 %v638, %v637
      %v704 = vpack.c.bf16 %v640, %v639
      %v705 = vpack.c.bf16 %v642, %v641
      %v706 = vpack.c.bf16 %v644, %v643
      %v725 = vunpack.c.l.b16 %v689
      %v726 = vunpack.c.h.b16 %v689
      %v727 = vunpack.c.l.b16 %v690
      %v728 = vunpack.c.h.b16 %v690
      %v729 = vunpack.c.l.b16 %v691
      %v730 = vunpack.c.h.b16 %v691
      %v731 = vunpack.c.l.b16 %v692
      %v732 = vunpack.c.h.b16 %v692
      %v733 = vunpack.c.l.b16 %v693
      %v734 = vunpack.c.h.b16 %v693
      %v735 = vunpack.c.l.b16 %v694
      %v736 = vunpack.c.h.b16 %v694
      %v737 = vunpack.c.l.b16 %v695
      %v738 = vunpack.c.h.b16 %v695
      %v739 = vunpack.c.l.b16 %v696
      %v740 = vunpack.c.h.b16 %v696
      %v741 = vunpack.c.l.b16 %v697
      %v742 = vunpack.c.h.b16 %v697
      %v743 = vunpack.c.l.b16 %v698
      %v744 = vunpack.c.h.b16 %v698
      %v745 = vunpack.c.l.b16 %v699
      %v746 = vunpack.c.h.b16 %v699
      %v747 = vunpack.c.l.b16 %v700
      %v748 = vunpack.c.h.b16 %v700
      %v749 = vunpack.c.l.b16 %v701
      %v750 = vunpack.c.h.b16 %v701
      %v751 = vunpack.c.l.b16 %v702
      %v752 = vunpack.c.h.b16 %v702
      %v753 = vunpack.c.l.b16 %v703
      %v754 = vunpack.c.h.b16 %v703
      %v755 = vunpack.c.l.b16 %v704
      %v756 = vunpack.c.h.b16 %v704
      %v757 = vunpack.c.l.b16 %v705
      %v758 = vunpack.c.h.b16 %v705
      %v759 = vunpack.c.l.b16 %v706
      %v760 = vunpack.c.h.b16 %v706
      %v761 = vpack.c.b16 %v725, %v725
      %v762 = vpack.c.b16 %v726, %v726
      %v763 = vpack.c.b16 %v727, %v727
      %v764 = vpack.c.b16 %v728, %v728
      %v765 = vpack.c.b16 %v729, %v729
      %v766 = vpack.c.b16 %v730, %v730
      %v767 = vpack.c.b16 %v731, %v731
      %v768 = vpack.c.b16 %v732, %v732
      %v769 = vpack.c.b16 %v733, %v733
      %v770 = vpack.c.b16 %v734, %v734
      %v771 = vpack.c.b16 %v735, %v735
      %v772 = vpack.c.b16 %v736, %v736
      %v773 = vpack.c.b16 %v737, %v737
      %v774 = vpack.c.b16 %v738, %v738
      %v775 = vpack.c.b16 %v739, %v739
      %v776 = vpack.c.b16 %v740, %v740
      %v777 = vpack.c.b16 %v741, %v741
      %v778 = vpack.c.b16 %v742, %v742
      %v779 = vpack.c.b16 %v743, %v743
      %v780 = vpack.c.b16 %v744, %v744
      %v781 = vpack.c.b16 %v745, %v745
      %v782 = vpack.c.b16 %v746, %v746
      %v783 = vpack.c.b16 %v747, %v747
      %v784 = vpack.c.b16 %v748, %v748
      %v785 = vpack.c.b16 %v749, %v749
      %v786 = vpack.c.b16 %v750, %v750
      %v787 = vpack.c.b16 %v751, %v751
      %v788 = vpack.c.b16 %v752, %v752
      %v789 = vpack.c.b16 %v753, %v753
      %v790 = vpack.c.b16 %v754, %v754
      %v791 = vpack.c.b16 %v755, %v755
      %v792 = vpack.c.b16 %v756, %v756
      %v793 = vpack.c.b16 %v757, %v757
      %v794 = vpack.c.b16 %v758, %v758
      %v795 = vpack.c.b16 %v759, %v759
      %v796 = vpack.c.b16 %v760, %v760
      %833 = vst [vmem:[%s197 + $0x10] sm:$0xf] %v761
      %834 = vst [vmem:[%s197 + $0x14] sm:$0xf] %v762
      %835 = vst [vmem:[%s197 + $0x18] sm:$0xf] %v763
      %836 = vst [vmem:[%s197 + $0x1c] sm:$0xf] %v764
      %837 = vst [vmem:[%s197 + $0x20] sm:$0xf] %v765
      %838 = vst [vmem:[%s197 + $0x24] sm:$0xf] %v766
      %839 = vst [vmem:[%s197 + $0x28] sm:$0xf] %v767
      %840 = vst [vmem:[%s197 + $0x2c] sm:$0xf] %v768
      %841 = vst [vmem:[%s197 + $0x30] sm:$0xf] %v769
      %842 = vst [vmem:[%s197 + $0x34] sm:$0xf] %v770
      %843 = vst [vmem:[%s197 + $0x38] sm:$0xf] %v771
      %844 = vst [vmem:[%s197 + $0x3c] sm:$0xf] %v772
      %845 = vst [vmem:[%s197 + $0x40] sm:$0xf] %v773
      %846 = vst [vmem:[%s197 + $0x44] sm:$0xf] %v774
      %847 = vst [vmem:[%s197 + $0x48] sm:$0xf] %v775
      %848 = vst [vmem:[%s197 + $0x4c] sm:$0xf] %v776
      %849 = vst [vmem:[%s197 + $0x50] sm:$0xf] %v777
      %850 = vst [vmem:[%s197 + $0x54] sm:$0xf] %v778
      %851 = vst [vmem:[%s197 + $0x58] sm:$0xf] %v779
      %852 = vst [vmem:[%s197 + $0x5c] sm:$0xf] %v780
      %853 = vst [vmem:[%s197 + $0x60] sm:$0xf] %v781
      %854 = vst [vmem:[%s197 + $0x64] sm:$0xf] %v782
      %855 = vst [vmem:[%s197 + $0x68] sm:$0xf] %v783
      %856 = vst [vmem:[%s197 + $0x6c] sm:$0xf] %v784
      %857 = vst [vmem:[%s197 + $0x70] sm:$0xf] %v785
      %858 = vst [vmem:[%s197 + $0x74] sm:$0xf] %v786
      %859 = vst [vmem:[%s197 + $0x78] sm:$0xf] %v787
      %860 = vst [vmem:[%s197 + $0x7c] sm:$0xf] %v788
      %861 = vst [vmem:[%s197 + $0x80] sm:$0xf] %v789
      %862 = vst [vmem:[%s197 + $0x84] sm:$0xf] %v790
      %863 = vst [vmem:[%s197 + $0x88] sm:$0xf] %v791
      %864 = vst [vmem:[%s197 + $0x8c] sm:$0xf] %v792
      %865 = vst [vmem:[%s197 + $0x90] sm:$0xf] %v793
      %866 = vst [vmem:[%s197 + $0x94] sm:$0xf] %v794
      %867 = vst [vmem:[%s197 + $0x98] sm:$0xf] %v795
      %868 = vst [vmem:[%s197 + $0x9c] sm:$0xf] %v796
      %p869 = scmp.lt.s32.totalorder %s15, 1
      %s870 = scalar_select %p869, %s15, 1
      %s871 = smul.addr %s870, 44
      %s872 = smul.addr %s871, 4
      %s873 = scalar_lea.vmem %s4, %s872
      // Predicated region
      $region37: #{unet_conv2_forward.5} parent=35 // pred_check
        %p874 = pneg %p122
      $region38: #{unet_conv2_forward.5} parent=35 // pred_check_branch
        %876 = sbr.rel (%p874) target = $region40
      $region39: #{unet_conv2_forward.5} parent=35 // pred_region
        _
      $region40: #{unet_conv2_forward.5} parent=35 // pred_fallthru
        _
    $region36: #{unet_conv2_forward.5} parent=5 // pred_fallthru
      _
    %p877 = scmp.le.s32.totalorder 2, %s10
    // Predicated region
    $region41: #{unet_conv2_forward.5} parent=5 // pred_check
      %p878 = pneg %p877
    $region42: #{unet_conv2_forward.5} parent=5 // pred_check_branch
      %880 = sbr.rel (%p878) target = $region44
    $region43: #{unet_conv2_forward.5} parent=5 // pred_region
      %s881 = ssub.s32 %s10, 2
      // Predicated region
      $region45: #{unet_conv2_forward.5} parent=43 // pred_check
        %p882 = pneg %p128
      $region46: #{unet_conv2_forward.5} parent=43 // pred_check_branch
        %884 = sbr.rel (%p882) target = $region48
      $region47: #{unet_conv2_forward.5} parent=43 // pred_region
        %p885 = scmp.lt.s32.totalorder %s16, 1
        %s886 = scalar_select %p885, %s16, 1
        %s887 = smul.addr %s886, 44
        %s888 = smul.addr %s887, 4
        %s889 = scalar_lea.vmem %s4, %s888
      $region48: #{unet_conv2_forward.5} parent=43 // pred_fallthru
        _
    $region44: #{unet_conv2_forward.5} parent=5 // pred_fallthru
      _
  $region6: #{unet_conv2_forward.5} parent=0 // loop_footer
    %s14 = sadd.s32 1, %s10
  $region7: #{unet_conv2_forward.5} parent=0 // loop_footer_branch
    %9 = sbr.rel target = $region3
  $region8: #{unet_conv2_forward.5} parent=0 // loop_exit
    _

// kernel: unet_conv2_forward.4
$region0: #{unet_conv2_forward.4}
  #allocation0 [shape = 'u32[]', space=smem, size = 0x4, offset = 0x4, fixed_abs, tag = 'smem constant byte address 0x4 - core index']
  #allocation1 [shape = 'u32[144,128]{1,0:T(1,128)}', space=vmem, size = 0x12000, scoped, tag = 'internal scratch']
  %s0 = inlined_call_operand.vmem [shape: bf16[2,352,4], index: 0, kind: input, shape index: {}]
  %s1 = inlined_call_operand.vmem [shape: bf16[9,4,128], index: 1, kind: input, shape index: {}]
  %s2 = inlined_call_operand.vmem [shape: f32[288,1], index: 2, kind: input, shape index: {}]
  %s3 = inlined_call_operand.vmem [shape: bf16[2,288,128], index: 3, kind: output, shape index: {0}]
  %s4 = inlined_call_operand.vmem [shape: f32[2,1,128], index: 4, kind: output, shape index: {1}]
  %s5 = inlined_call_operand.vmem [shape: f32[2,1,128], index: 5, kind: output, shape index: {2}]
  %6 = xla_tuple %s3, %s4, %s5
  %s7 = sld [smem:[#allocation0]]
  $region61: #{unet_conv2_forward.4} parent=0
    _
  %s9 = ssub.s32 1, %s7
  %s10 = scalar_select 0, %s9, %s7
  loop: start=0, step=1, limit=4
  $region2: #{unet_conv2_forward.4} parent=0 // loop_pre_header
    _
  $region3: #{unet_conv2_forward.4} parent=0 // loop_header
    %s12 = sphi 0, %s16
    %p13 = scmp.ge.s32.totalorder %s12, 4
    %s22 = sphi 0, %s24
    %s25 = sphi 0, %s22
    %s26 = sphi 0, %s25
    %s42 = sphi 0, %s26
    %s46 = sphi 0, %s46
    %s48 = sphi 0, %s46
    %s49 = sphi 0, %s48
    %s63 = sphi 0, %s49
    %s67 = sphi 0, %s67
    %s69 = sphi 0, %s67
    %s70 = sphi 0, %s69
    %s84 = sphi 0, %s70
    %s90 = sphi 0, %s92
    %s93 = sphi 0, %s90
    %s94 = sphi 0, %s93
    %s110 = sphi 0, %s94
    %s116 = sphi 0, %s118
    %s119 = sphi 0, %s116
    %s120 = sphi 0, %s119
    %s136 = sphi 0, %s120
    %s142 = sphi 0, %s144
    %s145 = sphi 0, %s142
    %s146 = sphi 0, %s145
    %s162 = sphi 0, %s146
  $region4: #{unet_conv2_forward.4} parent=0 // loop_header_branch
    %15 = sbr.rel (%p13) target = $region8
  $region5: #{unet_conv2_forward.4} parent=0 // loop_body
    %s17 = ssub.s32 %s12, 1
    %s18 = ssub.s32 %s12, 2
    %s19 = sadd.s32 %s12, 1
    %s20 = ssub.s32 %s12, %s19
    %p21 = scmp.eq.s32.totalorder %s20, 0
    %s23 = sadd.s32 %s22, 1
    %s24 = scalar_select %p21, %s22, %s23
    %p27 = pneg %p21
    %p28 = scmp.eq.s32.totalorder %s12, 1
    %p29 = por %p27, %p28
    %p30 = scmp.ne.s32.totalorder %s22, %s25
    %p31 = scmp.eq.s32.totalorder %s12, 0
    %p32 = por %p30, %p31
    %p33 = scmp.ne.s32.totalorder %s22, %s25
    %p34 = scmp.eq.s32.totalorder %s17, 1
    %p35 = por %p33, %p34
    %p36 = scmp.ne.s32.totalorder %s25, %s26
    %p37 = scmp.eq.s32.totalorder %s17, 0
    %p38 = por %p36, %p37
    %p39 = scmp.ne.s32.totalorder %s25, %s26
    %p40 = scmp.eq.s32.totalorder %s18, 1
    %p41 = por %p39, %p40
    %p43 = scmp.ne.s32.totalorder %s26, %s42
    %p44 = scmp.eq.s32.totalorder %s18, 0
    %p45 = por %p43, %p44
    %s47 = sadd.s32 %s46, 1
    %p50 = scmp.eq.s32.totalorder %s12, 1
    %p51 = scmp.ne.s32.totalorder %s46, %s48
    %p52 = scmp.eq.s32.totalorder %s12, 0
    %p53 = por %p51, %p52
    %p54 = scmp.ne.s32.totalorder %s46, %s48
    %p55 = scmp.eq.s32.totalorder %s17, 1
    %p56 = por %p54, %p55
    %p57 = scmp.ne.s32.totalorder %s48, %s49
    %p58 = scmp.eq.s32.totalorder %s17, 0
    %p59 = por %p57, %p58
    %p60 = scmp.ne.s32.totalorder %s48, %s49
    %p61 = scmp.eq.s32.totalorder %s18, 1
    %p62 = por %p60, %p61
    %p64 = scmp.ne.s32.totalorder %s49, %s63
    %p65 = scmp.eq.s32.totalorder %s18, 0
    %p66 = por %p64, %p65
    %s68 = sadd.s32 %s67, 1
    %p71 = scmp.eq.s32.totalorder %s12, 1
    %p72 = scmp.ne.s32.totalorder %s67, %s69
    %p73 = scmp.eq.s32.totalorder %s12, 0
    %p74 = por %p72, %p73
    %p75 = scmp.ne.s32.totalorder %s67, %s69
    %p76 = scmp.eq.s32.totalorder %s17, 1
    %p77 = por %p75, %p76
    %p78 = scmp.ne.s32.totalorder %s69, %s70
    %p79 = scmp.eq.s32.totalorder %s17, 0
    %p80 = por %p78, %p79
    %p81 = scmp.ne.s32.totalorder %s69, %s70
    %p82 = scmp.eq.s32.totalorder %s18, 1
    %p83 = por %p81, %p82
    %p85 = scmp.ne.s32.totalorder %s70, %s84
    %p86 = scmp.eq.s32.totalorder %s18, 0
    %p87 = por %p85, %p86
    %s88 = ssub.s32 %s12, %s19
    %p89 = scmp.eq.s32.totalorder %s88, 0
    %s91 = sadd.s32 %s90, 1
    %s92 = scalar_select %p89, %s90, %s91
    %p95 = pneg %p89
    %p96 = scmp.eq.s32.totalorder %s12, 1
    %p97 = por %p95, %p96
    %p98 = scmp.ne.s32.totalorder %s90, %s93
    %p99 = scmp.eq.s32.totalorder %s12, 0
    %p100 = por %p98, %p99
    %p101 = scmp.ne.s32.totalorder %s90, %s93
    %p102 = scmp.eq.s32.totalorder %s17, 1
    %p103 = por %p101, %p102
    %p104 = scmp.ne.s32.totalorder %s93, %s94
    %p105 = scmp.eq.s32.totalorder %s17, 0
    %p106 = por %p104, %p105
    %p107 = scmp.ne.s32.totalorder %s93, %s94
    %p108 = scmp.eq.s32.totalorder %s18, 1
    %p109 = por %p107, %p108
    %p111 = scmp.ne.s32.totalorder %s94, %s110
    %p112 = scmp.eq.s32.totalorder %s18, 0
    %p113 = por %p111, %p112
    %s114 = ssub.s32 %s12, %s19
    %p115 = scmp.eq.s32.totalorder %s114, 0
    %s117 = sadd.s32 %s116, 1
    %s118 = scalar_select %p115, %s116, %s117
    %p121 = pneg %p115
    %p122 = scmp.eq.s32.totalorder %s12, 1
    %p123 = por %p121, %p122
    %p124 = scmp.ne.s32.totalorder %s116, %s119
    %p125 = scmp.eq.s32.totalorder %s12, 0
    %p126 = por %p124, %p125
    %p127 = scmp.ne.s32.totalorder %s116, %s119
    %p128 = scmp.eq.s32.totalorder %s17, 1
    %p129 = por %p127, %p128
    %p130 = scmp.ne.s32.totalorder %s119, %s120
    %p131 = scmp.eq.s32.totalorder %s17, 0
    %p132 = por %p130, %p131
    %p133 = scmp.ne.s32.totalorder %s119, %s120
    %p134 = scmp.eq.s32.totalorder %s18, 1
    %p135 = por %p133, %p134
    %p137 = scmp.ne.s32.totalorder %s120, %s136
    %p138 = scmp.eq.s32.totalorder %s18, 0
    %p139 = por %p137, %p138
    %s140 = ssub.s32 %s12, %s19
    %p141 = scmp.eq.s32.totalorder %s140, 0
    %s143 = sadd.s32 %s142, 1
    %s144 = scalar_select %p141, %s142, %s143
    %p147 = pneg %p141
    %p148 = scmp.eq.s32.totalorder %s12, 1
    %p149 = por %p147, %p148
    %p150 = scmp.ne.s32.totalorder %s142, %s145
    %p151 = scmp.eq.s32.totalorder %s12, 0
    %p152 = por %p150, %p151
    %p153 = scmp.ne.s32.totalorder %s142, %s145
    %p154 = scmp.eq.s32.totalorder %s17, 1
    %p155 = por %p153, %p154
    %p156 = scmp.ne.s32.totalorder %s145, %s146
    %p157 = scmp.eq.s32.totalorder %s17, 0
    %p158 = por %p156, %p157
    %p159 = scmp.ne.s32.totalorder %s145, %s146
    %p160 = scmp.eq.s32.totalorder %s18, 1
    %p161 = por %p159, %p160
    %p163 = scmp.ne.s32.totalorder %s146, %s162
    %p164 = scmp.eq.s32.totalorder %s18, 0
    %p165 = por %p163, %p164
    %p166 = scmp.le.s32.totalorder 1, %s12
    %p167 = scmp.lt.s32.totalorder %s12, 3
    %p168 = pnand %p166, %p167
    %p169 = pneg %p168
    // Predicated region
    $region9: #{unet_conv2_forward.4} parent=5 // pred_check
      _
    $region10: #{unet_conv2_forward.4} parent=5 // pred_check_branch
      %171 = sbr.rel (%p168) target = $region12
    $region11: #{unet_conv2_forward.4} parent=5 // pred_region
      %s172 = ssub.s32 %s12, 1
      // Predicated region
      $region13: #{unet_conv2_forward.4} parent=11 // pred_check
        %p173 = pneg %p59
      $region14: #{unet_conv2_forward.4} parent=11 // pred_check_branch
        %175 = sbr.rel (%p173) target = $region16
      $region15: #{unet_conv2_forward.4} parent=11 // pred_region
        _
      $region16: #{unet_conv2_forward.4} parent=11 // pred_fallthru
        _
      // Predicated region
      $region17: #{unet_conv2_forward.4} parent=11 // pred_check
        %p176 = pneg %p80
      $region18: #{unet_conv2_forward.4} parent=11 // pred_check_branch
        %178 = sbr.rel (%p176) target = $region20
      $region19: #{unet_conv2_forward.4} parent=11 // pred_region
        _
      $region20: #{unet_conv2_forward.4} parent=11 // pred_fallthru
        _
    $region12: #{unet_conv2_forward.4} parent=5 // pred_fallthru
      _
    %p179 = scmp.lt.s32.totalorder %s12, 2
    // Predicated region
    $region21: #{unet_conv2_forward.4} parent=5 // pred_check
      %p180 = pneg %p179
    $region22: #{unet_conv2_forward.4} parent=5 // pred_check_branch
      %182 = sbr.rel (%p180) target = $region24
    $region23: #{unet_conv2_forward.4} parent=5 // pred_region
      // Predicated region
      $region25: #{unet_conv2_forward.4} parent=23 // pred_check
        %p183 = pneg %p32
      $region26: #{unet_conv2_forward.4} parent=23 // pred_check_branch
        %185 = sbr.rel (%p183) target = $region28
      $region27: #{unet_conv2_forward.4} parent=23 // pred_region
        %p186 = scmp.lt.s32.totalorder %s12, 1
        %s187 = scalar_select %p186, %s12, 1
        %s188 = smul.addr %s187, 44
        %s189 = smul.addr %s188, 4
        %s190 = scalar_lea.vmem %s0, %s189
      $region28: #{unet_conv2_forward.4} parent=23 // pred_fallthru
        _
    $region24: #{unet_conv2_forward.4} parent=5 // pred_fallthru
      _
    %p191 = scmp.le.s32.totalorder 1, %s12
    %p192 = scmp.lt.s32.totalorder %s12, 3
    %p193 = pnand %p191, %p192
    %p194 = pneg %p193
    // Predicated region
    $region29: #{unet_conv2_forward.4} parent=5 // pred_check
      _
    $region30: #{unet_conv2_forward.4} parent=5 // pred_check_branch
      %196 = sbr.rel (%p193) target = $region32
    $region31: #{unet_conv2_forward.4} parent=5 // pred_region
      %s197 = ssub.s32 %s12, 1
      %p198 = scmp.lt.s32.totalorder %s17, 1
      %s199 = scalar_select %p198, %s17, 1
      %s200 = smul.addr %s199, 44
      %s201 = smul.addr %s200, 4
      %s202 = scalar_lea.vmem %s0, %s201
      %p203 = pneg %p38
      %p204 = pneg %p35
      %p205 = pneg %p59
      %p206 = pneg %p56
      %p207 = pneg %p80
      %p208 = pneg %p77
      %p209 = pneg %p106
      %p210 = pneg %p103
      %p211 = scmp.lt.s32.totalorder %s17, 1
      %s212 = scalar_select %p211, %s17, 1
      %s213 = smul.addr %s212, 36
      %s214 = smul.addr %s213, 4
      %s215 = scalar_lea.vmem %s3, %s214
      %p216 = pneg %p132
      %p217 = pneg %p129
      %p218 = scmp.lt.s32.totalorder %s17, 1
      %s219 = scalar_select %p218, %s17, 1
      %s220 = scalar_lea.vmem %s4, %s219
      %p221 = pneg %p158
      %p222 = pneg %p155
      %p223 = scmp.lt.s32.totalorder %s17, 1
      %s224 = scalar_select %p223, %s17, 1
      %s225 = scalar_lea.vmem %s5, %s224
      %p226 = scmp.lt.s32.totalorder %s17, 1
      %s227 = scalar_select %p226, %s17, 1
      %s228 = smul.addr %s227, 44
      %s229 = smul.addr %s228, 4
      %s230 = scalar_lea.vmem %s0, %s229
      %p231 = scmp.lt.s32.totalorder %s17, 1
      %s232 = scalar_select %p231, %s17, 1
      %s233 = smul.addr %s232, 36
      %s234 = smul.addr %s233, 4
      %s235 = scalar_lea.vmem %s3, %s234
      %p236 = scmp.lt.s32.totalorder %s17, 1
      %s237 = scalar_select %p236, %s17, 1
      %s238 = scalar_lea.vmem %s4, %s237
      %p239 = scmp.lt.s32.totalorder %s17, 1
      %s240 = scalar_select %p239, %s17, 1
      %s241 = scalar_lea.vmem %s5, %s240
      %v243 = vld [vmem:[%s230 + $0x4] sm:$0xc]
      %v244 = vld [vmem:[%s230 + $0x8] sm:$0xf]
      %v245 = vld [vmem:[%s230 + $0xc] sm:$0xf]
      %v246 = vld [vmem:[%s230 + $0x10] sm:$0xf]
      %v247 = vld [vmem:[%s230 + $0x14] sm:$0xf]
      %v248 = vld [vmem:[%s230 + $0x18] sm:$0xf]
      %v249 = vld [vmem:[%s230 + $0x1c] sm:$0xf]
      %v250 = vld [vmem:[%s230 + $0x20] sm:$0xf]
      %v251 = vld [vmem:[%s230 + $0x24] sm:$0xf]
      %v252 = vld [vmem:[%s230 + $0x28] sm:$0xf]
      %v253 = vld [vmem:[%s230 + $0x2c] sm:$0xf]
      %v254 = vld [vmem:[%s230 + $0x30] sm:$0xf]
      %v255 = vld [vmem:[%s230 + $0x34] sm:$0xf]
      %v256 = vld [vmem:[%s230 + $0x38] sm:$0xf]
      %v257 = vld [vmem:[%s230 + $0x3c] sm:$0xf]
      %v258 = vld [vmem:[%s230 + $0x40] sm:$0xf]
      %v259 = vld [vmem:[%s230 + $0x44] sm:$0xf]
      %v260 = vld [vmem:[%s230 + $0x48] sm:$0xf]
      %v261 = vld [vmem:[%s230 + $0x4c] sm:$0xf]
      %v262 = vld [vmem:[%s230 + $0x50] sm:$0xf]
      %v263 = vld [vmem:[%s230 + $0x54] sm:$0xf]
      %v264 = vld [vmem:[%s230 + $0x58] sm:$0xf]
      %v265 = vld [vmem:[%s230 + $0x5c] sm:$0xf]
      %v266 = vld [vmem:[%s230 + $0x60] sm:$0xf]
      %v267 = vld [vmem:[%s230 + $0x64] sm:$0xf]
      %v268 = vld [vmem:[%s230 + $0x68] sm:$0xf]
      %v269 = vld [vmem:[%s230 + $0x6c] sm:$0xf]
      %v270 = vld [vmem:[%s230 + $0x70] sm:$0xf]
      %v271 = vld [vmem:[%s230 + $0x74] sm:$0xf]
      %v272 = vld [vmem:[%s230 + $0x78] sm:$0xf]
      %v273 = vld [vmem:[%s230 + $0x7c] sm:$0xf]
      %v274 = vld [vmem:[%s230 + $0x80] sm:$0xf]
      %v275 = vld [vmem:[%s230 + $0x84] sm:$0xf]
      %v276 = vld [vmem:[%s230 + $0x88] sm:$0xf]
      %v277 = vld [vmem:[%s230 + $0x8c] sm:$0xf]
      %v278 = vld [vmem:[%s230 + $0x90] sm:$0xf]
      %v279 = vld [vmem:[%s230 + $0x94] sm:$0x7]
      %v280 = vld [vmem:[%s1] sm:$0x3]
      %v281 = vld [vmem:[%s230 + $0x4] sm:$0x8]
      %s282 = scalar_lea.vmem %s1, 2
      %v283 = vld [vmem:[%s282] sm:$0x3]
      %v321 = vunpack.c.l.b16 %v281
      %v322 = vunpack.c.l.b16 %v244
      %v323 = vunpack.c.l.b16 %v245
      %v324 = vunpack.c.l.b16 %v246
      %v325 = vunpack.c.l.b16 %v247
      %v326 = vunpack.c.l.b16 %v248
      %v327 = vunpack.c.l.b16 %v249
      %v328 = vunpack.c.l.b16 %v250
      %v329 = vunpack.c.l.b16 %v251
      %v330 = vunpack.c.l.b16 %v252
      %v331 = vunpack.c.l.b16 %v253
      %v332 = vunpack.c.l.b16 %v254
      %v333 = vunpack.c.l.b16 %v255
      %v334 = vunpack.c.l.b16 %v256
      %v335 = vunpack.c.l.b16 %v257
      %v336 = vunpack.c.l.b16 %v258
      %v337 = vunpack.c.l.b16 %v259
      %v338 = vunpack.c.l.b16 %v260
      %v339 = vunpack.c.l.b16 %v261
      %v340 = vunpack.c.l.b16 %v262
      %v341 = vunpack.c.l.b16 %v263
      %v342 = vunpack.c.l.b16 %v264
      %v343 = vunpack.c.l.b16 %v265
      %v344 = vunpack.c.l.b16 %v266
      %v345 = vunpack.c.l.b16 %v267
      %v346 = vunpack.c.l.b16 %v268
      %v347 = vunpack.c.l.b16 %v269
      %v348 = vunpack.c.l.b16 %v270
      %v349 = vunpack.c.l.b16 %v271
      %v350 = vunpack.c.l.b16 %v272
      %v351 = vunpack.c.l.b16 %v273
      %v352 = vunpack.c.l.b16 %v274
      %v353 = vunpack.c.l.b16 %v275
      %v354 = vunpack.c.l.b16 %v276
      %v355 = vunpack.c.l.b16 %v277
      %v356 = vunpack.c.l.b16 %v278
      %v357 = vunpack.c.l.b16 %v279
      %v358 = vpack.c.b16 %v322, %v321
      %v359 = vpack.c.b16 %v324, %v323
      %v360 = vpack.c.b16 %v326, %v325
      %v361 = vpack.c.b16 %v328, %v327
      %v362 = vpack.c.b16 %v330, %v329
      %v363 = vpack.c.b16 %v332, %v331
      %v364 = vpack.c.b16 %v334, %v333
      %v365 = vpack.c.b16 %v336, %v335
      %v366 = vpack.c.b16 %v338, %v337
      %v367 = vpack.c.b16 %v340, %v339
      %v368 = vpack.c.b16 %v342, %v341
      %v369 = vpack.c.b16 %v344, %v343
      %v370 = vpack.c.b16 %v346, %v345
      %v371 = vpack.c.b16 %v348, %v347
      %v372 = vpack.c.b16 %v350, %v349
      %v373 = vpack.c.b16 %v352, %v351
      %v374 = vpack.c.b16 %v354, %v353
      %v375 = vpack.c.b16 %v356, %v355
      %v376 = vpack.c.b16 %v357, %v357
      %vm377 = vcmask 1044480
      %v378 = vrot.slane %v358, 3
      %v379 = vrot.slane %v359, 3
      %v380 = vsel %vm377, %v378, %v379
      %v381 = vrot.slane %v360, 3
      %v382 = vsel %vm377, %v379, %v381
      %v383 = vrot.slane %v361, 3
      %v384 = vsel %vm377, %v381, %v383
      %v385 = vrot.slane %v362, 3
      %v386 = vsel %vm377, %v383, %v385
      %v387 = vrot.slane %v363, 3
      %v388 = vsel %vm377, %v385, %v387
      %v389 = vrot.slane %v364, 3
      %v390 = vsel %vm377, %v387, %v389
      %v391 = vrot.slane %v365, 3
      %v392 = vsel %vm377, %v389, %v391
      %v393 = vrot.slane %v366, 3
      %v394 = vsel %vm377, %v391, %v393
      %v395 = vrot.slane %v367, 3
      %v396 = vsel %vm377, %v393, %v395
      %v397 = vrot.slane %v368, 3
      %v398 = vsel %vm377, %v395, %v397
      %v399 = vrot.slane %v369, 3
      %v400 = vsel %vm377, %v397, %v399
      %v401 = vrot.slane %v370, 3
      %v402 = vsel %vm377, %v399, %v401
      %v403 = vrot.slane %v371, 3
      %v404 = vsel %vm377, %v401, %v403
      %v405 = vrot.slane %v372, 3
      %v406 = vsel %vm377, %v403, %v405
      %v407 = vrot.slane %v373, 3
      %v408 = vsel %vm377, %v405, %v407
      %v409 = vrot.slane %v374, 3
      %v410 = vsel %vm377, %v407, %v409
      %v411 = vrot.slane %v375, 3
      %v412 = vsel %vm377, %v409, %v411
      %v413 = vrot.slane %v376, 3
      %v414 = vsel %vm377, %v411, %v413
      %vm415 = vcmask 31744
      %v417 = vsel %vm415, %v380, 0
      %v420 = vsel %vm415, %v382, 0
      %v423 = vsel %vm415, %v384, 0
      %v426 = vsel %vm415, %v386, 0
      %v429 = vsel %vm415, %v388, 0
      %v432 = vsel %vm415, %v390, 0
      %v435 = vsel %vm415, %v392, 0
      %v438 = vsel %vm415, %v394, 0
      %v441 = vsel %vm415, %v396, 0
      %v444 = vsel %vm415, %v398, 0
      %v447 = vsel %vm415, %v400, 0
      %v450 = vsel %vm415, %v402, 0
      %v453 = vsel %vm415, %v404, 0
      %v456 = vsel %vm415, %v406, 0
      %v459 = vsel %vm415, %v408, 0
      %v462 = vsel %vm415, %v410, 0
      %v465 = vsel %vm415, %v412, 0
      %v468 = vsel %vm415, %v414, 0
      %vm470 = vcmask 1041408
      %v472 = vsel %vm470, %v283, 0
      %474 = vmatprep.subr.bf16.mxu0 0
      %475 = vmatpush1.bf16.msra.mxu0 %v472
      %476 = vmatprep.subr.bf16.mxu0 0
      %477 = vmatpush1.bf16.msra.mxu0 0
      %478 = vmatprep.subr.bf16.mxu0 0
      %479 = vmatpush1.bf16.msra.mxu0 0
      %480 = vmatprep.subr.bf16.mxu0 0
      %481 = vmatpush1.bf16.msra.mxu0 0
      %482 = vmatprep.subr.bf16.mxu0 0
      %483 = vmatpush1.bf16.msra.mxu0 0
      %484 = vmatprep.subr.bf16.mxu0 0
      %485 = vmatpush1.bf16.msra.mxu0 0
      %486 = vmatprep.subr.bf16.mxu0 0
      %487 = vmatpush1.bf16.msra.mxu0 0
      %488 = vmatprep.subr.bf16.mxu0 0
      %489 = vmatpush1.bf16.msra.mxu0 0
      %490 = vmatprep.subr.bf16.mxu0 0
      %491 = vmatpush1.bf16.msra.mxu0 0
      %492 = vmatprep.subr.bf16.mxu0 0
      %493 = vmatpush1.bf16.msra.mxu0 0
      %494 = vmatprep.subr.bf16.mxu0 0
      %495 = vmatpush1.bf16.msra.mxu0 0
      %496 = vmatprep.subr.bf16.mxu0 0
      %497 = vmatpush1.bf16.msra.mxu0 0
      %498 = vmatprep.subr.bf16.mxu0 0
      %499 = vmatpush1.bf16.msra.mxu0 0
      %500 = vmatprep.subr.bf16.mxu0 0
      %501 = vmatpush1.bf16.msra.mxu0 0
      %502 = vmatprep.subr.bf16.mxu0 0
      %503 = vmatpush1.bf16.msra.mxu0 0
      %504 = vmatprep.subr.bf16.mxu0 0
      %505 = vmatpush1.bf16.msra.mxu0 0
      %506 = vmatprep.mubr.bf16.mxu0 0
      %507 = vmatmul.mubr.bf16.gmra.mrb[0].mxu0 %v417
      %v508 = vpop.f32.mrb[0].mxu0
      %v509 = vadd.f32 0.0, %v508
      %v510 = vpop.f32.mrb[0].mxu0
      %v511 = vpop.f32.mrb[0].mxu0
      %v512 = vadd.f32 0.0, %v511
      %v513 = vpop.f32.mrb[0].mxu0
      %514 = vmatprep.mubr.bf16.mxu0 0
      %515 = vmatmul.mubr.bf16.gmra.mrb[0].mxu0 %v420
      %v516 = vpop.f32.mrb[0].mxu0
      %v517 = vadd.f32 0.0, %v516
      %v518 = vpop.f32.mrb[0].mxu0
      %v519 = vpop.f32.mrb[0].mxu0
      %v520 = vadd.f32 0.0, %v519
      %v521 = vpop.f32.mrb[0].mxu0
      %522 = vmatprep.mubr.bf16.mxu0 0
      %523 = vmatmul.mubr.bf16.gmra.mrb[0].mxu0 %v423
      %v524 = vpop.f32.mrb[0].mxu0
      %v525 = vadd.f32 0.0, %v524
      %v526 = vpop.f32.mrb[0].mxu0
      %v527 = vpop.f32.mrb[0].mxu0
      %v528 = vadd.f32 0.0, %v527
      %v529 = vpop.f32.mrb[0].mxu0
      %530 = vmatprep.mubr.bf16.mxu0 0
      %531 = vmatmul.mubr.bf16.gmra.mrb[0].mxu0 %v426
      %v532 = vpop.f32.mrb[0].mxu0
      %v533 = vadd.f32 0.0, %v532
      %v534 = vpop.f32.mrb[0].mxu0
      %v535 = vpop.f32.mrb[0].mxu0
      %v536 = vadd.f32 0.0, %v535
      %v537 = vpop.f32.mrb[0].mxu0
      %538 = vmatprep.mubr.bf16.mxu0 0
      %539 = vmatmul.mubr.bf16.gmra.mrb[0].mxu0 %v429
      %v540 = vpop.f32.mrb[0].mxu0
      %v541 = vadd.f32 0.0, %v540
      %v542 = vpop.f32.mrb[0].mxu0
      %v543 = vpop.f32.mrb[0].mxu0
      %v544 = vadd.f32 0.0, %v543
      %v545 = vpop.f32.mrb[0].mxu0
      %546 = vmatprep.mubr.bf16.mxu0 0
      %547 = vmatmul.mubr.bf16.gmra.mrb[0].mxu0 %v432
      %v548 = vpop.f32.mrb[0].mxu0
      %v549 = vadd.f32 0.0, %v548
      %v550 = vpop.f32.mrb[0].mxu0
      %v551 = vpop.f32.mrb[0].mxu0
      %v552 = vadd.f32 0.0, %v551
      %v553 = vpop.f32.mrb[0].mxu0
      %554 = vmatprep.mubr.bf16.mxu0 0
      %555 = vmatmul.mubr.bf16.gmra.mrb[0].mxu0 %v435
      %v556 = vpop.f32.mrb[0].mxu0
      %v557 = vadd.f32 0.0, %v556
      %v558 = vpop.f32.mrb[0].mxu0
      %v559 = vpop.f32.mrb[0].mxu0
      %v560 = vadd.f32 0.0, %v559
      %v561 = vpop.f32.mrb[0].mxu0
      %562 = vmatprep.mubr.bf16.mxu0 0
      %563 = vmatmul.mubr.bf16.gmra.mrb[0].mxu0 %v438
      %v564 = vpop.f32.mrb[0].mxu0
      %v565 = vadd.f32 0.0, %v564
      %v566 = vpop.f32.mrb[0].mxu0
      %v567 = vpop.f32.mrb[0].mxu0
      %v568 = vadd.f32 0.0, %v567
      %v569 = vpop.f32.mrb[0].mxu0
      %570 = vmatprep.mubr.bf16.mxu0 0
      %571 = vmatmul.mubr.bf16.gmra.mrb[0].mxu0 %v441
      %v572 = vpop.f32.mrb[0].mxu0
      %v573 = vadd.f32 0.0, %v572
      %v574 = vpop.f32.mrb[0].mxu0
      %v575 = vpop.f32.mrb[0].mxu0
      %v576 = vadd.f32 0.0, %v575
      %v577 = vpop.f32.mrb[0].mxu0
      %578 = vmatprep.mubr.bf16.mxu0 0
      %579 = vmatmul.mubr.bf16.gmra.mrb[0].mxu0 %v444
      %v580 = vpop.f32.mrb[0].mxu0
      %v581 = vadd.f32 0.0, %v580
      %v582 = vpop.f32.mrb[0].mxu0
      %v583 = vpop.f32.mrb[0].mxu0
      %v584 = vadd.f32 0.0, %v583
      %v585 = vpop.f32.mrb[0].mxu0
      %586 = vmatprep.mubr.bf16.mxu0 0
      %587 = vmatmul.mubr.bf16.gmra.mrb[0].mxu0 %v447
      %v588 = vpop.f32.mrb[0].mxu0
      %v589 = vadd.f32 0.0, %v588
      %v590 = vpop.f32.mrb[0].mxu0
      %v591 = vpop.f32.mrb[0].mxu0
      %v592 = vadd.f32 0.0, %v591
      %v593 = vpop.f32.mrb[0].mxu0
      %594 = vmatprep.mubr.bf16.mxu0 0
      %595 = vmatmul.mubr.bf16.gmra.mrb[0].mxu0 %v450
      %v596 = vpop.f32.mrb[0].mxu0
      %v597 = vadd.f32 0.0, %v596
      %v598 = vpop.f32.mrb[0].mxu0
      %v599 = vpop.f32.mrb[0].mxu0
      %v600 = vadd.f32 0.0, %v599
      %v601 = vpop.f32.mrb[0].mxu0
      %602 = vmatprep.mubr.bf16.mxu0 0
      %603 = vmatmul.mubr.bf16.gmra.mrb[0].mxu0 %v453
      %v604 = vpop.f32.mrb[0].mxu0
      %v605 = vadd.f32 0.0, %v604
      %v606 = vpop.f32.mrb[0].mxu0
      %v607 = vpop.f32.mrb[0].mxu0
      %v608 = vadd.f32 0.0, %v607
      %v609 = vpop.f32.mrb[0].mxu0
      %610 = vmatprep.mubr.bf16.mxu0 0
      %611 = vmatmul.mubr.bf16.gmra.mrb[0].mxu0 %v456
      %v612 = vpop.f32.mrb[0].mxu0
      %v613 = vadd.f32 0.0, %v612
      %v614 = vpop.f32.mrb[0].mxu0
      %v615 = vpop.f32.mrb[0].mxu0
      %v616 = vadd.f32 0.0, %v615
      %v617 = vpop.f32.mrb[0].mxu0
      %618 = vmatprep.mubr.bf16.mxu0 0
      %619 = vmatmul.mubr.bf16.gmra.mrb[0].mxu0 %v459
      %v620 = vpop.f32.mrb[0].mxu0
      %v621 = vadd.f32 0.0, %v620
      %v622 = vpop.f32.mrb[0].mxu0
      %v623 = vpop.f32.mrb[0].mxu0
      %v624 = vadd.f32 0.0, %v623
      %v625 = vpop.f32.mrb[0].mxu0
      %626 = vmatprep.mubr.bf16.mxu0 0
      %627 = vmatmul.mubr.bf16.gmra.mrb[0].mxu0 %v462
      %v628 = vpop.f32.mrb[0].mxu0
      %v629 = vadd.f32 0.0, %v628
      %v630 = vpop.f32.mrb[0].mxu0
      %v631 = vpop.f32.mrb[0].mxu0
      %v632 = vadd.f32 0.0, %v631
      %v633 = vpop.f32.mrb[0].mxu0
      %634 = vmatprep.mubr.bf16.mxu0 0
      %635 = vmatmul.mubr.bf16.gmra.mrb[0].mxu0 %v465
      %v636 = vpop.f32.mrb[0].mxu0
      %v637 = vadd.f32 0.0, %v636
      %v638 = vpop.f32.mrb[0].mxu0
      %v639 = vpop.f32.mrb[0].mxu0
      %v640 = vadd.f32 0.0, %v639
      %v641 = vpop.f32.mrb[0].mxu0
      %642 = vmatprep.mubr.bf16.mxu0 0
      %643 = vmatmul.mubr.bf16.gmra.mrb[0].mxu0 %v468
      %v644 = vpop.f32.mrb[0].mxu0
      %v645 = vadd.f32 0.0, %v644
      %v646 = vpop.f32.mrb[0].mxu0
      %v647 = vpop.f32.mrb[0].mxu0
      %v648 = vadd.f32 0.0, %v647
      %v649 = vpop.f32.mrb[0].mxu0
      %650 = vdwg.mxu0
      %v652 = vunpack.c.l.b16 %v243
      %v653 = vpack.c.b16 %v322, %v652
      %vm654 = vsmask.f32 5376
      %v656 = vshrl.u32 %v653, 16
      %v658 = vrot.slane %v656, 2
      %v659 = vshll.u32 %v653, 16
      %v661 = vrot.slane %v659, 3
      %v662 = vor.u32 %v658, %v661
      %v664 = vshrl.u32 %v359, 16
      %v666 = vrot.slane %v664, 2
      %v667 = vshll.u32 %v359, 16
      %v669 = vrot.slane %v667, 3
      %v670 = vor.u32 %v666, %v669
      %v671 = vsel %vm654, %v662, %v670
      %v673 = vshrl.u32 %v360, 16
      %v675 = vrot.slane %v673, 2
      %v676 = vshll.u32 %v360, 16
      %v678 = vrot.slane %v676, 3
      %v679 = vor.u32 %v675, %v678
      %v680 = vsel %vm654, %v670, %v679
      %v682 = vshrl.u32 %v361, 16
      %v684 = vrot.slane %v682, 2
      %v685 = vshll.u32 %v361, 16
      %v687 = vrot.slane %v685, 3
      %v688 = vor.u32 %v684, %v687
      %v689 = vsel %vm654, %v679, %v688
      %v691 = vshrl.u32 %v362, 16
      %v693 = vrot.slane %v691, 2
      %v694 = vshll.u32 %v362, 16
      %v696 = vrot.slane %v694, 3
      %v697 = vor.u32 %v693, %v696
      %v698 = vsel %vm654, %v688, %v697
      %v700 = vshrl.u32 %v363, 16
      %v702 = vrot.slane %v700, 2
      %v703 = vshll.u32 %v363, 16
      %v705 = vrot.slane %v703, 3
      %v706 = vor.u32 %v702, %v705
      %v707 = vsel %vm654, %v697, %v706
      %v709 = vshrl.u32 %v364, 16
      %v711 = vrot.slane %v709, 2
      %v712 = vshll.u32 %v364, 16
      %v714 = vrot.slane %v712, 3
      %v715 = vor.u32 %v711, %v714
      %v716 = vsel %vm654, %v706, %v715
      %v718 = vshrl.u32 %v365, 16
      %v720 = vrot.slane %v718, 2
      %v721 = vshll.u32 %v365, 16
      %v723 = vrot.slane %v721, 3
      %v724 = vor.u32 %v720, %v723
      %v725 = vsel %vm654, %v715, %v724
      %v727 = vshrl.u32 %v366, 16
      %v729 = vrot.slane %v727, 2
      %v730 = vshll.u32 %v366, 16
      %v732 = vrot.slane %v730, 3
      %v733 = vor.u32 %v729, %v732
      %v734 = vsel %vm654, %v724, %v733
      %v736 = vshrl.u32 %v367, 16
      %v738 = vrot.slane %v736, 2
      %v739 = vshll.u32 %v367, 16
      %v741 = vrot.slane %v739, 3
      %v742 = vor.u32 %v738, %v741
      %v743 = vsel %vm654, %v733, %v742
      %v745 = vshrl.u32 %v368, 16
      %v747 = vrot.slane %v745, 2
      %v748 = vshll.u32 %v368, 16
      %v750 = vrot.slane %v748, 3
      %v751 = vor.u32 %v747, %v750
      %v752 = vsel %vm654, %v742, %v751
      %v754 = vshrl.u32 %v369, 16
      %v756 = vrot.slane %v754, 2
      %v757 = vshll.u32 %v369, 16
      %v759 = vrot.slane %v757, 3
      %v760 = vor.u32 %v756, %v759
      %v761 = vsel %vm654, %v751, %v760
      %v763 = vshrl.u32 %v370, 16
      %v765 = vrot.slane %v763, 2
      %v766 = vshll.u32 %v370, 16
      %v768 = vrot.slane %v766, 3
      %v769 = vor.u32 %v765, %v768
      %v770 = vsel %vm654, %v760, %v769
      %v772 = vshrl.u32 %v371, 16
      %v774 = vrot.slane %v772, 2
      %v775 = vshll.u32 %v371, 16
      %v777 = vrot.slane %v775, 3
      %v778 = vor.u32 %v774, %v777
      %v779 = vsel %vm654, %v769, %v778
      %v781 = vshrl.u32 %v372, 16
      %v783 = vrot.slane %v781, 2
      %v784 = vshll.u32 %v372, 16
      %v786 = vrot.slane %v784, 3
      %v787 = vor.u32 %v783, %v786
      %v788 = vsel %vm654, %v778, %v787
      %v790 = vshrl.u32 %v373, 16
      %v792 = vrot.slane %v790, 2
      %v793 = vshll.u32 %v373, 16
      %v795 = vrot.slane %v793, 3
      %v796 = vor.u32 %v792, %v795
      %v797 = vsel %vm654, %v787, %v796
      %v799 = vshrl.u32 %v374, 16
      %v801 = vrot.slane %v799, 2
      %v802 = vshll.u32 %v374, 16
      %v804 = vrot.slane %v802, 3
      %v805 = vor.u32 %v801, %v804
      %v806 = vsel %vm654, %v796, %v805
      %v808 = vshrl.u32 %v375, 16
      %v810 = vrot.slane %v808, 2
      %v811 = vshll.u32 %v375, 16
      %v813 = vrot.slane %v811, 3
      %v814 = vor.u32 %v810, %v813
      %v815 = vsel %vm654, %v805, %v814
      %v817 = vshrl.u32 %v376, 16
      %v819 = vrot.slane %v817, 2
      %v820 = vshll.u32 %v376, 16
      %v822 = vrot.slane %v820, 3
      %v823 = vor.u32 %v819, %v822
      %v824 = vsel %vm654, %v814, %v823
      %v826 = vsel %vm415, %v671, 0
      %v829 = vsel %vm415, %v680, 0
      %v832 = vsel %vm415, %v689, 0
      %v835 = vsel %vm415, %v698, 0
      %v838 = vsel %vm415, %v707, 0
      %v841 = vsel %vm415, %v716, 0
      %v844 = vsel %vm415, %v725, 0
      %v847 = vsel %vm415, %v734, 0
      %v850 = vsel %vm415, %v743, 0
      %v853 = vsel %vm415, %v752, 0
      %v856 = vsel %vm415, %v761, 0
      %v859 = vsel %vm415, %v770, 0
      %v862 = vsel %vm415, %v779, 0
      %v865 = vsel %vm415, %v788, 0
      %v868 = vsel %vm415, %v797, 0
      %v871 = vsel %vm415, %v806, 0
      %v874 = vsel %vm415, %v815, 0
      %v877 = vsel %vm415, %v824, 0
      %v880 = vsel %vm470, %v280, 0
      %882 = vmatprep.subr.bf16.mxu0 0
      %883 = vmatpush1.bf16.msra.mxu0 %v880
      %884 = vmatprep.subr.bf16.mxu0 0
      %885 = vmatpush1.bf16.msra.mxu0 0
      %886 = vmatprep.subr.bf16.mxu0 0
      %887 = vmatpush1.bf16.msra.mxu0 0
      %888 = vmatprep.subr.bf16.mxu0 0
      %889 = vmatpush1.bf16.msra.mxu0 0
      %890 = vmatprep.subr.bf16.mxu0 0
      %891 = vmatpush1.bf16.msra.mxu0 0
      %892 = vmatprep.subr.bf16.mxu0 0
      %893 = vmatpush1.bf16.msra.mxu0 0
      %894 = vmatprep.subr.bf16.mxu0 0
      %895 = vmatpush1.bf16.msra.mxu0 0
      %896 = vmatprep.subr.bf16.mxu0 0
      %897 = vmatpush1.bf16.msra.mxu0 0
      %898 = vmatprep.subr.bf16.mxu0 0
      %899 = vmatpush1.bf16.msra.mxu0 0
      %900 = vmatprep.subr.bf16.mxu0 0
      %901 = vmatpush1.bf16.msra.mxu0 0
      %902 = vmatprep.subr.bf16.mxu0 0
      %903 = vmatpush1.bf16.msra.mxu0 0
      %904 = vmatprep.subr.bf16.mxu0 0
      %905 = vmatpush1.bf16.msra.mxu0 0
      %906 = vmatprep.subr.bf16.mxu0 0
      %907 = vmatpush1.bf16.msra.mxu0 0
      %908 = vmatprep.subr.bf16.mxu0 0
      %909 = vmatpush1.bf16.msra.mxu0 0
      %910 = vmatprep.subr.bf16.mxu0 0
      %911 = vmatpush1.bf16.msra.mxu0 0
      %912 = vmatprep.subr.bf16.mxu0 0
      %913 = vmatpush1.bf16.msra.mxu0 0
      %914 = vmatprep.mubr.bf16.mxu0 0
      %915 = vmatmul.mubr.bf16.gmra.mrb[0].mxu0 %v826
      %v916 = vpop.f32.mrb[0].mxu0
      %v917 = vadd.f32 %v509, %v916
      %v918 = vpop.f32.mrb[0].mxu0
      %v919 = vpop.f32.mrb[0].mxu0
      %v920 = vadd.f32 %v512, %v919
      %v921 = vpop.f32.mrb[0].mxu0
      %922 = vmatprep.mubr.bf16.mxu0 0
      %923 = vmatmul.mubr.bf16.gmra.mrb[0].mxu0 %v829
      %v924 = vpop.f32.mrb[0].mxu0
      %v925 = vadd.f32 %v517, %v924
      %v926 = vpop.f32.mrb[0].mxu0
      %v927 = vpop.f32.mrb[0].mxu0
      %v928 = vadd.f32 %v520, %v927
      %v929 = vpop.f32.mrb[0].mxu0
      %930 = vmatprep.mubr.bf16.mxu0 0
      %931 = vmatmul.mubr.bf16.gmra.mrb[0].mxu0 %v832
      %v932 = vpop.f32.mrb[0].mxu0
      %v933 = vadd.f32 %v525, %v932
      %v934 = vpop.f32.mrb[0].mxu0
      %v935 = vpop.f32.mrb[0].mxu0
      %v936 = vadd.f32 %v528, %v935
      %v937 = vpop.f32.mrb[0].mxu0
      %938 = vmatprep.mubr.bf16.mxu0 0
      %939 = vmatmul.mubr.bf16.gmra.mrb[0].mxu0 %v835
      %v940 = vpop.f32.mrb[0].mxu0
      %v941 = vadd.f32 %v533, %v940
      %v942 = vpop.f32.mrb[0].mxu0
      %v943 = vpop.f32.mrb[0].mxu0
      %v944 = vadd.f32 %v536, %v943
      %v945 = vpop.f32.mrb[0].mxu0
      %946 = vmatprep.mubr.bf16.mxu0 0
      %947 = vmatmul.mubr.bf16.gmra.mrb[0].mxu0 %v838
      %v948 = vpop.f32.mrb[0].mxu0
      %v949 = vadd.f32 %v541, %v948
      %v950 = vpop.f32.mrb[0].mxu0
      %v951 = vpop.f32.mrb[0].mxu0
      %v952 = vadd.f32 %v544, %v951
      %v953 = vpop.f32.mrb[0].mxu0
      %954 = vmatprep.mubr.bf16.mxu0 0
      %955 = vmatmul.mubr.bf16.gmra.mrb[0].mxu0 %v841
      %v956 = vpop.f32.mrb[0].mxu0
      %v957 = vadd.f32 %v549, %v956
      %v958 = vpop.f32.mrb[0].mxu0
      %v959 = vpop.f32.mrb[0].mxu0
      %v960 = vadd.f32 %v552, %v959
      %v961 = vpop.f32.mrb[0].mxu0
      %962 = vmatprep.mubr.bf16.mxu0 0
      %963 = vmatmul.mubr.bf16.gmra.mrb[0].mxu0 %v844
      %v964 = vpop.f32.mrb[0].mxu0
      %v965 = vadd.f32 %v557, %v964
      %v966 = vpop.f32.mrb[0].mxu0
      %v967 = vpop.f32.mrb[0].mxu0
      %v968 = vadd.f32 %v560, %v967
      %v969 = vpop.f32.mrb[0].mxu0
      %970 = vmatprep.mubr.bf16.mxu0 0
      %971 = vmatmul.mubr.bf16.gmra.mrb[0].mxu0 %v847
      %v972 = vpop.f32.mrb[0].mxu0
      %v973 = vadd.f32 %v565, %v972
      %v974 = vpop.f32.mrb[0].mxu0
      %v975 = vpop.f32.mrb[0].mxu0
      %v976 = vadd.f32 %v568, %v975
      %v977 = vpop.f32.mrb[0].mxu0
      %978 = vmatprep.mubr.bf16.mxu0 0
      %979 = vmatmul.mubr.bf16.gmra.mrb[0].mxu0 %v850
      %v980 = vpop.f32.mrb[0].mxu0
      %v981 = vadd.f32 %v573, %v980
      %v982 = vpop.f32.mrb[0].mxu0
      %v983 = vpop.f32.mrb[0].mxu0
      %v984 = vadd.f32 %v576, %v983
      %v985 = vpop.f32.mrb[0].mxu0
      %986 = vmatprep.mubr.bf16.mxu0 0
      %987 = vmatmul.mubr.bf16.gmra.mrb[0].mxu0 %v853
      %v988 = vpop.f32.mrb[0].mxu0
      %v989 = vadd.f32 %v581, %v988
      %v990 = vpop.f32.mrb[0].mxu0
      %v991 = vpop.f32.mrb[0].mxu0
      %v992 = vadd.f32 %v584, %v991
      %v993 = vpop.f32.mrb[0].mxu0
      %994 = vmatprep.mubr.bf16.mxu0 0
      %995 = vmatmul.mubr.bf16.gmra.mrb[0].mxu0 %v856
      %v996 = vpop.f32.mrb[0].mxu0
      %v997 = vadd.f32 %v589, %v996
      %v998 = vpop.f32.mrb[0].mxu0
      %v999 = vpop.f32.mrb[0].mxu0
      %v1000 = vadd.f32 %v592, %v999
      %v1001 = vpop.f32.mrb[0].mxu0
      %1002 = vmatprep.mubr.bf16.mxu0 0
      %1003 = vmatmul.mubr.bf16.gmra.mrb[0].mxu0 %v859
      %v1004 = vpop.f32.mrb[0].mxu0
      %v1005 = vadd.f32 %v597, %v1004
      %v1006 = vpop.f32.mrb[0].mxu0
      %v1007 = vpop.f32.mrb[0].mxu0
      %v1008 = vadd.f32 %v600, %v1007
      %v1009 = vpop.f32.mrb[0].mxu0
      %1010 = vmatprep.mubr.bf16.mxu0 0
      %1011 = vmatmul.mubr.bf16.gmra.mrb[0].mxu0 %v862
      %v1012 = vpop.f32.mrb[0].mxu0
      %v1013 = vadd.f32 %v605, %v1012
      %v1014 = vpop.f32.mrb[0].mxu0
      %v1015 = vpop.f32.mrb[0].mxu0
      %v1016 = vadd.f32 %v608, %v1015
      %v1017 = vpop.f32.mrb[0].mxu0
      %1018 = vmatprep.mubr.bf16.mxu0 0
      %1019 = vmatmul.mubr.bf16.gmra.mrb[0].mxu0 %v865
      %v1020 = vpop.f32.mrb[0].mxu0
      %v1021 = vadd.f32 %v613, %v1020
      %v1022 = vpop.f32.mrb[0].mxu0
      %v1023 = vpop.f32.mrb[0].mxu0
      %v1024 = vadd.f32 %v616, %v1023
      %v1025 = vpop.f32.mrb[0].mxu0
      %1026 = vmatprep.mubr.bf16.mxu0 0
      %1027 = vmatmul.mubr.bf16.gmra.mrb[0].mxu0 %v868
      %v1028 = vpop.f32.mrb[0].mxu0
      %v1029 = vadd.f32 %v621, %v1028
      %v1030 = vpop.f32.mrb[0].mxu0
      %v1031 = vpop.f32.mrb[0].mxu0
      %v1032 = vadd.f32 %v624, %v1031
      %v1033 = vpop.f32.mrb[0].mxu0
      %1034 = vmatprep.mubr.bf16.mxu0 0
      %1035 = vmatmul.mubr.bf16.gmra.mrb[0].mxu0 %v871
      %v1036 = vpop.f32.mrb[0].mxu0
      %v1037 = vadd.f32 %v629, %v1036
      %v1038 = vpop.f32.mrb[0].mxu0
      %v1039 = vpop.f32.mrb[0].mxu0
      %v1040 = vadd.f32 %v632, %v1039
      %v1041 = vpop.f32.mrb[0].mxu0
      %1042 = vmatprep.mubr.bf16.mxu0 0
      %1043 = vmatmul.mubr.bf16.gmra.mrb[0].mxu0 %v874
      %v1044 = vpop.f32.mrb[0].mxu0
      %v1045 = vadd.f32 %v637, %v1044
      %v1046 = vpop.f32.mrb[0].mxu0
      %v1047 = vpop.f32.mrb[0].mxu0
      %v1048 = vadd.f32 %v640, %v1047
      %v1049 = vpop.f32.mrb[0].mxu0
      %1050 = vmatprep.mubr.bf16.mxu0 0
      %1051 = vmatmul.mubr.bf16.gmra.mrb[0].mxu0 %v877
      %v1052 = vpop.f32.mrb[0].mxu0
      %v1053 = vadd.f32 %v645, %v1052
      %v1054 = vpop.f32.mrb[0].mxu0
      %v1055 = vpop.f32.mrb[0].mxu0
      %v1056 = vadd.f32 %v648, %v1055
      %v1057 = vpop.f32.mrb[0].mxu0
      %1058 = vdwg.mxu0
      %v1059 = vld [vmem:[%s230 + $0x94] sm:$0xf]
      %s1060 = scalar_lea.vmem %s1, 4
      %v1061 = vld [vmem:[%s1060] sm:$0x3]
      %v1063 = vunpack.c.l.b16 %v1059
      %v1064 = vpack.c.b16 %v1063, %v1063
      %vm1065 = vsmask.f32 4352
      %v1067 = vshrl.u32 %v358, 16
      %v1069 = vrot.slane %v1067, 3
      %v1070 = vshll.u32 %v358, 16
      %v1072 = vrot.slane %v1070, 4
      %v1073 = vor.u32 %v1069, %v1072
      %v1074 = vrot.slane %v664, 3
      %v1075 = vrot.slane %v667, 4
      %v1076 = vor.u32 %v1074, %v1075
      %v1077 = vsel %vm1065, %v1073, %v1076
      %v1078 = vrot.slane %v673, 3
      %v1079 = vrot.slane %v676, 4
      %v1080 = vor.u32 %v1078, %v1079
      %v1081 = vsel %vm1065, %v1076, %v1080
      %v1082 = vrot.slane %v682, 3
      %v1083 = vrot.slane %v685, 4
      %v1084 = vor.u32 %v1082, %v1083
      %v1085 = vsel %vm1065, %v1080, %v1084
      %v1086 = vrot.slane %v691, 3
      %v1087 = vrot.slane %v694, 4
      %v1088 = vor.u32 %v1086, %v1087
      %v1089 = vsel %vm1065, %v1084, %v1088
      %v1090 = vrot.slane %v700, 3
      %v1091 = vrot.slane %v703, 4
      %v1092 = vor.u32 %v1090, %v1091
      %v1093 = vsel %vm1065, %v1088, %v1092
      %v1094 = vrot.slane %v709, 3
      %v1095 = vrot.slane %v712, 4
      %v1096 = vor.u32 %v1094, %v1095
      %v1097 = vsel %vm1065, %v1092, %v1096
      %v1098 = vrot.slane %v718, 3
      %v1099 = vrot.slane %v721, 4
      %v1100 = vor.u32 %v1098, %v1099
      %v1101 = vsel %vm1065, %v1096, %v1100
      %v1102 = vrot.slane %v727, 3
      %v1103 = vrot.slane %v730, 4
      %v1104 = vor.u32 %v1102, %v1103
      %v1105 = vsel %vm1065, %v1100, %v1104
      %v1106 = vrot.slane %v736, 3
      %v1107 = vrot.slane %v739, 4
      %v1108 = vor.u32 %v1106, %v1107
      %v1109 = vsel %vm1065, %v1104, %v1108
      %v1110 = vrot.slane %v745, 3
      %v1111 = vrot.slane %v748, 4
      %v1112 = vor.u32 %v1110, %v1111
      %v1113 = vsel %vm1065, %v1108, %v1112
      %v1114 = vrot.slane %v754, 3
      %v1115 = vrot.slane %v757, 4
      %v1116 = vor.u32 %v1114, %v1115
      %v1117 = vsel %vm1065, %v1112, %v1116
      %v1118 = vrot.slane %v763, 3
      %v1119 = vrot.slane %v766, 4
      %v1120 = vor.u32 %v1118, %v1119
      %v1121 = vsel %vm1065, %v1116, %v1120
      %v1122 = vrot.slane %v772, 3
      %v1123 = vrot.slane %v775, 4
      %v1124 = vor.u32 %v1122, %v1123
      %v1125 = vsel %vm1065, %v1120, %v1124
      %v1126 = vrot.slane %v781, 3
      %v1127 = vrot.slane %v784, 4
      %v1128 = vor.u32 %v1126, %v1127
      %v1129 = vsel %vm1065, %v1124, %v1128
      %v1130 = vrot.slane %v790, 3
      %v1131 = vrot.slane %v793, 4
      %v1132 = vor.u32 %v1130, %v1131
      %v1133 = vsel %vm1065, %v1128, %v1132
      %v1134 = vrot.slane %v799, 3
      %v1135 = vrot.slane %v802, 4
      %v1136 = vor.u32 %v1134, %v1135
      %v1137 = vsel %vm1065, %v1132, %v1136
      %v1138 = vrot.slane %v808, 3
      %v1139 = vrot.slane %v811, 4
      %v1140 = vor.u32 %v1138, %v1139
      %v1141 = vsel %vm1065, %v1136, %v1140
      %v1143 = vshrl.u32 %v1064, 16
      %v1145 = vrot.slane %v1143, 3
      %v1146 = vshll.u32 %v1064, 16
      %v1148 = vrot.slane %v1146, 4
      %v1149 = vor.u32 %v1145, %v1148
      %v1150 = vsel %vm1065, %v1140, %v1149
      %v1152 = vsel %vm415, %v1077, 0
      %v1155 = vsel %vm415, %v1081, 0
      %v1158 = vsel %vm415, %v1085, 0
      %v1161 = vsel %vm415, %v1089, 0
      %v1164 = vsel %vm415, %v1093, 0
      %v1167 = vsel %vm415, %v1097, 0
      %v1170 = vsel %vm415, %v1101, 0
      %v1173 = vsel %vm415, %v1105, 0
      %v1176 = vsel %vm415, %v1109, 0
      %v1179 = vsel %vm415, %v1113, 0
      %v1182 = vsel %vm415, %v1117, 0
      %v1185 = vsel %vm415, %v1121, 0
      %v1188 = vsel %vm415, %v1125, 0
      %v1191 = vsel %vm415, %v1129, 0
      %v1194 = vsel %vm415, %v1133, 0
      %v1197 = vsel %vm415, %v1137, 0
      %v1200 = vsel %vm415, %v1141, 0
      %v1203 = vsel %vm415, %v1150, 0
      %v1206 = vsel %vm470, %v1061, 0
      %1208 = vmatprep.subr.bf16.mxu0 0
      %1209 = vmatpush1.bf16.msra.mxu0 %v1206
      %1210 = vmatprep.subr.bf16.mxu0 0
      %1211 = vmatpush1.bf16.msra.mxu0 0
      %1212 = vmatprep.subr.bf16.mxu0 0
      %1213 = vmatpush1.bf16.msra.mxu0 0
      %1214 = vmatprep.subr.bf16.mxu0 0
      %1215 = vmatpush1.bf16.msra.mxu0 0
      %1216 = vmatprep.subr.bf16.mxu0 0
      %1217 = vmatpush1.bf16.msra.mxu0 0
      %1218 = vmatprep.subr.bf16.mxu0 0
      %1219 = vmatpush1.bf16.msra.mxu0 0
      %1220 = vmatprep.subr.bf16.mxu0 0
      %1221 = vmatpush1.bf16.msra.mxu0 0
      %1222 = vmatprep.subr.bf16.mxu0 0
      %1223 = vmatpush1.bf16.msra.mxu0 0
      %1224 = vmatprep.subr.bf16.mxu0 0
      %1225 = vmatpush1.bf16.msra.mxu0 0
      %1226 = vmatprep.subr.bf16.mxu0 0
      %1227 = vmatpush1.bf16.msra.mxu0 0
      %1228 = vmatprep.subr.bf16.mxu0 0
      %1229 = vmatpush1.bf16.msra.mxu0 0
      %1230 = vmatprep.subr.bf16.mxu0 0
      %1231 = vmatpush1.bf16.msra.mxu0 0
      %1232 = vmatprep.subr.bf16.mxu0 0
      %1233 = vmatpush1.bf16.msra.mxu0 0
      %1234 = vmatprep.subr.bf16.mxu0 0
      %1235 = vmatpush1.bf16.msra.mxu0 0
      %1236 = vmatprep.subr.bf16.mxu0 0
      %1237 = vmatpush1.bf16.msra.mxu0 0
      %1238 = vmatprep.subr.bf16.mxu0 0
      %1239 = vmatpush1.bf16.msra.mxu0 0
      %1240 = vmatprep.mubr.bf16.mxu0 0
      %1241 = vmatmul.mubr.bf16.gmra.mrb[0].mxu0 %v1152
      %v1242 = vpop.f32.mrb[0].mxu0
      %v1243 = vadd.f32 0.0, %v1242
      %v1244 = vpop.f32.mrb[0].mxu0
      %v1245 = vpop.f32.mrb[0].mxu0
      %v1246 = vadd.f32 0.0, %v1245
      %v1247 = vpop.f32.mrb[0].mxu0
      %1248 = vmatprep.mubr.bf16.mxu0 0
      %1249 = vmatmul.mubr.bf16.gmra.mrb[0].mxu0 %v1155
      %v1250 = vpop.f32.mrb[0].mxu0
      %v1251 = vadd.f32 0.0, %v1250
      %v1252 = vpop.f32.mrb[0].mxu0
      %v1253 = vpop.f32.mrb[0].mxu0
      %v1254 = vadd.f32 0.0, %v1253
      %v1255 = vpop.f32.mrb[0].mxu0
      %1256 = vmatprep.mubr.bf16.mxu0 0
      %1257 = vmatmul.mubr.bf16.gmra.mrb[0].mxu0 %v1158
      %v1258 = vpop.f32.mrb[0].mxu0
      %v1259 = vadd.f32 0.0, %v1258
      %v1260 = vpop.f32.mrb[0].mxu0
      %v1261 = vpop.f32.mrb[0].mxu0
      %v1262 = vadd.f32 0.0, %v1261
      %v1263 = vpop.f32.mrb[0].mxu0
      %1264 = vmatprep.mubr.bf16.mxu0 0
      %1265 = vmatmul.mubr.bf16.gmra.mrb[0].mxu0 %v1161
      %v1266 = vpop.f32.mrb[0].mxu0
      %v1267 = vadd.f32 0.0, %v1266
      %v1268 = vpop.f32.mrb[0].mxu0
      %v1269 = vpop.f32.mrb[0].mxu0
      %v1270 = vadd.f32 0.0, %v1269
      %v1271 = vpop.f32.mrb[0].mxu0
      %1272 = vmatprep.mubr.bf16.mxu0 0
      %1273 = vmatmul.mubr.bf16.gmra.mrb[0].mxu0 %v1164
      %v1274 = vpop.f32.mrb[0].mxu0
      %v1275 = vadd.f32 0.0, %v1274
      %v1276 = vpop.f32.mrb[0].mxu0
      %v1277 = vpop.f32.mrb[0].mxu0
      %v1278 = vadd.f32 0.0, %v1277
      %v1279 = vpop.f32.mrb[0].mxu0
      %1280 = vmatprep.mubr.bf16.mxu0 0
      %1281 = vmatmul.mubr.bf16.gmra.mrb[0].mxu0 %v1167
      %v1282 = vpop.f32.mrb[0].mxu0
      %v1283 = vadd.f32 0.0, %v1282
      %v1284 = vpop.f32.mrb[0].mxu0
      %v1285 = vpop.f32.mrb[0].mxu0
      %v1286 = vadd.f32 0.0, %v1285
      %v1287 = vpop.f32.mrb[0].mxu0
      %1288 = vmatprep.mubr.bf16.mxu0 0
      %1289 = vmatmul.mubr.bf16.gmra.mrb[0].mxu0 %v1170
      %v1290 = vpop.f32.mrb[0].mxu0
      %v1291 = vadd.f32 0.0, %v1290
      %v1292 = vpop.f32.mrb[0].mxu0
      %v1293 = vpop.f32.mrb[0].mxu0
      %v1294 = vadd.f32 0.0, %v1293
      %v1295 = vpop.f32.mrb[0].mxu0
      %1296 = vmatprep.mubr.bf16.mxu0 0
      %1297 = vmatmul.mubr.bf16.gmra.mrb[0].mxu0 %v1173
      %v1298 = vpop.f32.mrb[0].mxu0
      %v1299 = vadd.f32 0.0, %v1298
      %v1300 = vpop.f32.mrb[0].mxu0
      %v1301 = vpop.f32.mrb[0].mxu0
      %v1302 = vadd.f32 0.0, %v1301
      %v1303 = vpop.f32.mrb[0].mxu0
      %1304 = vmatprep.mubr.bf16.mxu0 0
      %1305 = vmatmul.mubr.bf16.gmra.mrb[0].mxu0 %v1176
      %v1306 = vpop.f32.mrb[0].mxu0
      %v1307 = vadd.f32 0.0, %v1306
      %v1308 = vpop.f32.mrb[0].mxu0
      %v1309 = vpop.f32.mrb[0].mxu0
      %v1310 = vadd.f32 0.0, %v1309
      %v1311 = vpop.f32.mrb[0].mxu0
      %1312 = vmatprep.mubr.bf16.mxu0 0
      %1313 = vmatmul.mubr.bf16.gmra.mrb[0].mxu0 %v1179
      %v1314 = vpop.f32.mrb[0].mxu0
      %v1315 = vadd.f32 0.0, %v1314
      %v1316 = vpop.f32.mrb[0].mxu0
      %v1317 = vpop.f32.mrb[0].mxu0
      %v1318 = vadd.f32 0.0, %v1317
      %v1319 = vpop.f32.mrb[0].mxu0
      %1320 = vmatprep.mubr.bf16.mxu0 0
      %1321 = vmatmul.mubr.bf16.gmra.mrb[0].mxu0 %v1182
      %v1322 = vpop.f32.mrb[0].mxu0
      %v1323 = vadd.f32 0.0, %v1322
      %v1324 = vpop.f32.mrb[0].mxu0
      %v1325 = vpop.f32.mrb[0].mxu0
      %v1326 = vadd.f32 0.0, %v1325
      %v1327 = vpop.f32.mrb[0].mxu0
      %1328 = vmatprep.mubr.bf16.mxu0 0
      %1329 = vmatmul.mubr.bf16.gmra.mrb[0].mxu0 %v1185
      %v1330 = vpop.f32.mrb[0].mxu0
      %v1331 = vadd.f32 0.0, %v1330
      %v1332 = vpop.f32.mrb[0].mxu0
      %v1333 = vpop.f32.mrb[0].mxu0
      %v1334 = vadd.f32 0.0, %v1333
      %v1335 = vpop.f32.mrb[0].mxu0
      %1336 = vmatprep.mubr.bf16.mxu0 0
      %1337 = vmatmul.mubr.bf16.gmra.mrb[0].mxu0 %v1188
      %v1338 = vpop.f32.mrb[0].mxu0
      %v1339 = vadd.f32 0.0, %v1338
      %v1340 = vpop.f32.mrb[0].mxu0
      %v1341 = vpop.f32.mrb[0].mxu0
      %v1342 = vadd.f32 0.0, %v1341
      %v1343 = vpop.f32.mrb[0].mxu0
      %1344 = vmatprep.mubr.bf16.mxu0 0
      %1345 = vmatmul.mubr.bf16.gmra.mrb[0].mxu0 %v1191
      %v1346 = vpop.f32.mrb[0].mxu0
      %v1347 = vadd.f32 0.0, %v1346
      %v1348 = vpop.f32.mrb[0].mxu0
      %v1349 = vpop.f32.mrb[0].mxu0
      %v1350 = vadd.f32 0.0, %v1349
      %v1351 = vpop.f32.mrb[0].mxu0
      %1352 = vmatprep.mubr.bf16.mxu0 0
      %1353 = vmatmul.mubr.bf16.gmra.mrb[0].mxu0 %v1194
      %v1354 = vpop.f32.mrb[0].mxu0
      %v1355 = vadd.f32 0.0, %v1354
      %v1356 = vpop.f32.mrb[0].mxu0
      %v1357 = vpop.f32.mrb[0].mxu0
      %v1358 = vadd.f32 0.0, %v1357
      %v1359 = vpop.f32.mrb[0].mxu0
      %1360 = vmatprep.mubr.bf16.mxu0 0
      %1361 = vmatmul.mubr.bf16.gmra.mrb[0].mxu0 %v1197
      %v1362 = vpop.f32.mrb[0].mxu0
      %v1363 = vadd.f32 0.0, %v1362
      %v1364 = vpop.f32.mrb[0].mxu0
      %v1365 = vpop.f32.mrb[0].mxu0
      %v1366 = vadd.f32 0.0, %v1365
      %v1367 = vpop.f32.mrb[0].mxu0
      %1368 = vmatprep.mubr.bf16.mxu0 0
      %1369 = vmatmul.mubr.bf16.gmra.mrb[0].mxu0 %v1200
      %v1370 = vpop.f32.mrb[0].mxu0
      %v1371 = vadd.f32 0.0, %v1370
      %v1372 = vpop.f32.mrb[0].mxu0
      %v1373 = vpop.f32.mrb[0].mxu0
      %v1374 = vadd.f32 0.0, %v1373
      %v1375 = vpop.f32.mrb[0].mxu0
      %1376 = vmatprep.mubr.bf16.mxu0 0
      %1377 = vmatmul.mubr.bf16.gmra.mrb[0].mxu0 %v1203
      %v1378 = vpop.f32.mrb[0].mxu0
      %v1379 = vadd.f32 0.0, %v1378
      %v1380 = vpop.f32.mrb[0].mxu0
      %v1381 = vpop.f32.mrb[0].mxu0
      %v1382 = vadd.f32 0.0, %v1381
      %v1383 = vpop.f32.mrb[0].mxu0
      %1384 = vdwg.mxu0
      %v1385 = vadd.f32 %v917, %v1243
      %v1386 = vadd.f32 %v920, %v1246
      %v1387 = vadd.f32 %v925, %v1251
      %v1388 = vadd.f32 %v928, %v1254
      %v1389 = vadd.f32 %v933, %v1259
      %v1390 = vadd.f32 %v936, %v1262
      %v1391 = vadd.f32 %v941, %v1267
      %v1392 = vadd.f32 %v944, %v1270
      %v1393 = vadd.f32 %v949, %v1275
      %v1394 = vadd.f32 %v952, %v1278
      %v1395 = vadd.f32 %v957, %v1283
      %v1396 = vadd.f32 %v960, %v1286
      %v1397 = vadd.f32 %v965, %v1291
      %v1398 = vadd.f32 %v968, %v1294
      %v1399 = vadd.f32 %v973, %v1299
      %v1400 = vadd.f32 %v976, %v1302
      %v1401 = vadd.f32 %v981, %v1307
      %v1402 = vadd.f32 %v984, %v1310
      %v1403 = vadd.f32 %v989, %v1315
      %v1404 = vadd.f32 %v992, %v1318
      %v1405 = vadd.f32 %v997, %v1323
      %v1406 = vadd.f32 %v1000, %v1326
      %v1407 = vadd.f32 %v1005, %v1331
      %v1408 = vadd.f32 %v1008, %v1334
      %v1409 = vadd.f32 %v1013, %v1339
      %v1410 = vadd.f32 %v1016, %v1342
      %v1411 = vadd.f32 %v1021, %v1347
      %v1412 = vadd.f32 %v1024, %v1350
      %v1413 = vadd.f32 %v1029, %v1355
      %v1414 = vadd.f32 %v1032, %v1358
      %v1415 = vadd.f32 %v1037, %v1363
      %v1416 = vadd.f32 %v1040, %v1366
      %v1417 = vadd.f32 %v1045, %v1371
      %v1418 = vadd.f32 %v1048, %v1374
      %v1419 = vadd.f32 %v1053, %v1379
      %v1420 = vadd.f32 %v1056, %v1382
      %v1421 = vld [vmem:[%s230 + $0xc] sm:$0x8]
      %v1422 = vld [vmem:[%s230 + $0x10] sm:$0xf]
      %v1423 = vld [vmem:[%s230 + $0x14] sm:$0xf]
      %v1424 = vld [vmem:[%s230 + $0x18] sm:$0xf]
      %v1425 = vld [vmem:[%s230 + $0x1c] sm:$0xf]
      %v1426 = vld [vmem:[%s230 + $0x20] sm:$0xf]
      %v1427 = vld [vmem:[%s230 + $0x24] sm:$0xf]
      %v1428 = vld [vmem:[%s230 + $0x28] sm:$0xf]
      %v1429 = vld [vmem:[%s230 + $0x2c] sm:$0xf]
      %v1430 = vld [vmem:[%s230 + $0x30] sm:$0xf]
      %v1431 = vld [vmem:[%s230 + $0x34] sm:$0xf]
      %v1432 = vld [vmem:[%s230 + $0x38] sm:$0xf]
      %v1433 = vld [vmem:[%s230 + $0x3c] sm:$0xf]
      %v1434 = vld [vmem:[%s230 + $0x40] sm:$0xf]
      %v1435 = vld [vmem:[%s230 + $0x44] sm:$0xf]
      %v1436 = vld [vmem:[%s230 + $0x48] sm:$0xf]
      %v1437 = vld [vmem:[%s230 + $0x4c] sm:$0xf]
      %v1438 = vld [vmem:[%s230 + $0x50] sm:$0xf]
      %v1439 = vld [vmem:[%s230 + $0x54] sm:$0xf]
      %v1440 = vld [vmem:[%s230 + $0x58] sm:$0xf]
      %v1441 = vld [vmem:[%s230 + $0x5c] sm:$0xf]
      %v1442 = vld [vmem:[%s230 + $0x60] sm:$0xf]
      %v1443 = vld [vmem:[%s230 + $0x64] sm:$0xf]
      %v1444 = vld [vmem:[%s230 + $0x68] sm:$0xf]
      %v1445 = vld [vmem:[%s230 + $0x6c] sm:$0xf]
      %v1446 = vld [vmem:[%s230 + $0x70] sm:$0xf]
      %v1447 = vld [vmem:[%s230 + $0x74] sm:$0xf]
      %v1448 = vld [vmem:[%s230 + $0x78] sm:$0xf]
      %v1449 = vld [vmem:[%s230 + $0x7c] sm:$0xf]
      %v1450 = vld [vmem:[%s230 + $0x80] sm:$0xf]
      %v1451 = vld [vmem:[%s230 + $0x84] sm:$0xf]
      %v1452 = vld [vmem:[%s230 + $0x88] sm:$0xf]
      %v1453 = vld [vmem:[%s230 + $0x8c] sm:$0xf]
      %v1454 = vld [vmem:[%s230 + $0x90] sm:$0xf]
      %v1455 = vld [vmem:[%s230 + $0x94] sm:$0xf]
      %v1456 = vld [vmem:[%s230 + $0x98] sm:$0xf]
      %v1457 = vld [vmem:[%s230 + $0x9c] sm:$0xf]
      %s1458 = scalar_lea.vmem %s1, 6
      %v1459 = vld [vmem:[%s1458] sm:$0x3]
      %v1497 = vunpack.c.l.b16 %v1421
      %v1498 = vunpack.c.l.b16 %v1422
      %v1499 = vunpack.c.l.b16 %v1423
      %v1500 = vunpack.c.l.b16 %v1424
      %v1501 = vunpack.c.l.b16 %v1425
      %v1502 = vunpack.c.l.b16 %v1426
      %v1503 = vunpack.c.l.b16 %v1427
      %v1504 = vunpack.c.l.b16 %v1428
      %v1505 = vunpack.c.l.b16 %v1429
      %v1506 = vunpack.c.l.b16 %v1430
      %v1507 = vunpack.c.l.b16 %v1431
      %v1508 = vunpack.c.l.b16 %v1432
      %v1509 = vunpack.c.l.b16 %v1433
      %v1510 = vunpack.c.l.b16 %v1434
      %v1511 = vunpack.c.l.b16 %v1435
      %v1512 = vunpack.c.l.b16 %v1436
      %v1513 = vunpack.c.l.b16 %v1437
      %v1514 = vunpack.c.l.b16 %v1438
      %v1515 = vunpack.c.l.b16 %v1439
      %v1516 = vunpack.c.l.b16 %v1440
      %v1517 = vunpack.c.l.b16 %v1441
      %v1518 = vunpack.c.l.b16 %v1442
      %v1519 = vunpack.c.l.b16 %v1443
      %v1520 = vunpack.c.l.b16 %v1444
      %v1521 = vunpack.c.l.b16 %v1445
      %v1522 = vunpack.c.l.b16 %v1446
      %v1523 = vunpack.c.l.b16 %v1447
      %v1524 = vunpack.c.l.b16 %v1448
      %v1525 = vunpack.c.l.b16 %v1449
      %v1526 = vunpack.c.l.b16 %v1450
      %v1527 = vunpack.c.l.b16 %v1451
      %v1528 = vunpack.c.l.b16 %v1452
      %v1529 = vunpack.c.l.b16 %v1453
      %v1530 = vunpack.c.l.b16 %v1454
      %v1531 = vunpack.c.l.b16 %v1455
      %v1532 = vunpack.c.l.b16 %v1456
      %v1533 = vunpack.c.l.b16 %v1457
      %v1534 = vpack.c.b16 %v1498, %v1497
      %v1535 = vpack.c.b16 %v1500, %v1499
      %v1536 = vpack.c.b16 %v1502, %v1501
      %v1537 = vpack.c.b16 %v1504, %v1503
      %v1538 = vpack.c.b16 %v1506, %v1505
      %v1539 = vpack.c.b16 %v1508, %v1507
      %v1540 = vpack.c.b16 %v1510, %v1509
      %v1541 = vpack.c.b16 %v1512, %v1511
      %v1542 = vpack.c.b16 %v1514, %v1513
      %v1543 = vpack.c.b16 %v1516, %v1515
      %v1544 = vpack.c.b16 %v1518, %v1517
      %v1545 = vpack.c.b16 %v1520, %v1519
      %v1546 = vpack.c.b16 %v1522, %v1521
      %v1547 = vpack.c.b16 %v1524, %v1523
      %v1548 = vpack.c.b16 %v1526, %v1525
      %v1549 = vpack.c.b16 %v1528, %v1527
      %v1550 = vpack.c.b16 %v1530, %v1529
      %v1551 = vpack.c.b16 %v1532, %v1531
      %v1552 = vpack.c.b16 %v1533, %v1533
      %v1554 = vshrl.u32 %v1534, 16
      %v1556 = vrot.slane %v1554, 3
      %v1557 = vshll.u32 %v1534, 16
      %v1559 = vrot.slane %v1557, 4
      %v1560 = vor.u32 %v1556, %v1559
      %v1562 = vshrl.u32 %v1535, 16
      %v1564 = vrot.slane %v1562, 3
      %v1565 = vshll.u32 %v1535, 16
      %v1567 = vrot.slane %v1565, 4
      %v1568 = vor.u32 %v1564, %v1567
      %v1569 = vsel %vm1065, %v1560, %v1568
      %v1571 = vshrl.u32 %v1536, 16
      %v1573 = vrot.slane %v1571, 3
      %v1574 = vshll.u32 %v1536, 16
      %v1576 = vrot.slane %v1574, 4
      %v1577 = vor.u32 %v1573, %v1576
      %v1578 = vsel %vm1065, %v1568, %v1577
      %v1580 = vshrl.u32 %v1537, 16
      %v1582 = vrot.slane %v1580, 3
      %v1583 = vshll.u32 %v1537, 16
      %v1585 = vrot.slane %v1583, 4
      %v1586 = vor.u32 %v1582, %v1585
      %v1587 = vsel %vm1065, %v1577, %v1586
      %v1589 = vshrl.u32 %v1538, 16
      %v1591 = vrot.slane %v1589, 3
      %v1592 = vshll.u32 %v1538, 16
      %v1594 = vrot.slane %v1592, 4
      %v1595 = vor.u32 %v1591, %v1594
      %v1596 = vsel %vm1065, %v1586, %v1595
      %v1598 = vshrl.u32 %v1539, 16
      %v1600 = vrot.slane %v1598, 3
      %v1601 = vshll.u32 %v1539, 16
      %v1603 = vrot.slane %v1601, 4
      %v1604 = vor.u32 %v1600, %v1603
      %v1605 = vsel %vm1065, %v1595, %v1604
      %v1607 = vshrl.u32 %v1540, 16
      %v1609 = vrot.slane %v1607, 3
      %v1610 = vshll.u32 %v1540, 16
      %v1612 = vrot.slane %v1610, 4
      %v1613 = vor.u32 %v1609, %v1612
      %v1614 = vsel %vm1065, %v1604, %v1613
      %v1616 = vshrl.u32 %v1541, 16
      %v1618 = vrot.slane %v1616, 3
      %v1619 = vshll.u32 %v1541, 16
      %v1621 = vrot.slane %v1619, 4
      %v1622 = vor.u32 %v1618, %v1621
      %v1623 = vsel %vm1065, %v1613, %v1622
      %v1625 = vshrl.u32 %v1542, 16
      %v1627 = vrot.slane %v1625, 3
      %v1628 = vshll.u32 %v1542, 16
      %v1630 = vrot.slane %v1628, 4
      %v1631 = vor.u32 %v1627, %v1630
      %v1632 = vsel %vm1065, %v1622, %v1631
      %v1634 = vshrl.u32 %v1543, 16
      %v1636 = vrot.slane %v1634, 3
      %v1637 = vshll.u32 %v1543, 16
      %v1639 = vrot.slane %v1637, 4
      %v1640 = vor.u32 %v1636, %v1639
      %v1641 = vsel %vm1065, %v1631, %v1640
      %v1643 = vshrl.u32 %v1544, 16
      %v1645 = vrot.slane %v1643, 3
      %v1646 = vshll.u32 %v1544, 16
      %v1648 = vrot.slane %v1646, 4
      %v1649 = vor.u32 %v1645, %v1648
      %v1650 = vsel %vm1065, %v1640, %v1649
      %v1652 = vshrl.u32 %v1545, 16
      %v1654 = vrot.slane %v1652, 3
      %v1655 = vshll.u32 %v1545, 16
      %v1657 = vrot.slane %v1655, 4
      %v1658 = vor.u32 %v1654, %v1657
      %v1659 = vsel %vm1065, %v1649, %v1658
      %v1661 = vshrl.u32 %v1546, 16
      %v1663 = vrot.slane %v1661, 3
      %v1664 = vshll.u32 %v1546, 16
      %v1666 = vrot.slane %v1664, 4
      %v1667 = vor.u32 %v1663, %v1666
      %v1668 = vsel %vm1065, %v1658, %v1667
      %v1670 = vshrl.u32 %v1547, 16
      %v1672 = vrot.slane %v1670, 3
      %v1673 = vshll.u32 %v1547, 16
      %v1675 = vrot.slane %v1673, 4
      %v1676 = vor.u32 %v1672, %v1675
      %v1677 = vsel %vm1065, %v1667, %v1676
      %v1679 = vshrl.u32 %v1548, 16
      %v1681 = vrot.slane %v1679, 3
      %v1682 = vshll.u32 %v1548, 16
      %v1684 = vrot.slane %v1682, 4
      %v1685 = vor.u32 %v1681, %v1684
      %v1686 = vsel %vm1065, %v1676, %v1685
      %v1688 = vshrl.u32 %v1549, 16
      %v1690 = vrot.slane %v1688, 3
      %v1691 = vshll.u32 %v1549, 16
      %v1693 = vrot.slane %v1691, 4
      %v1694 = vor.u32 %v1690, %v1693
      %v1695 = vsel %vm1065, %v1685, %v1694
      %v1697 = vshrl.u32 %v1550, 16
      %v1699 = vrot.slane %v1697, 3
      %v1700 = vshll.u32 %v1550, 16
      %v1702 = vrot.slane %v1700, 4
      %v1703 = vor.u32 %v1699, %v1702
      %v1704 = vsel %vm1065, %v1694, %v1703
      %v1706 = vshrl.u32 %v1551, 16
      %v1708 = vrot.slane %v1706, 3
      %v1709 = vshll.u32 %v1551, 16
      %v1711 = vrot.slane %v1709, 4
      %v1712 = vor.u32 %v1708, %v1711
      %v1713 = vsel %vm1065, %v1703, %v1712
      %v1715 = vshrl.u32 %v1552, 16
      %v1717 = vrot.slane %v1715, 3
      %v1718 = vshll.u32 %v1552, 16
      %v1720 = vrot.slane %v1718, 4
      %v1721 = vor.u32 %v1717, %v1720
      %v1722 = vsel %vm1065, %v1712, %v1721
      %v1724 = vsel %vm415, %v1569, 0
      %v1727 = vsel %vm415, %v1578, 0
      %v1730 = vsel %vm415, %v1587, 0
      %v1733 = vsel %vm415, %v1596, 0
      %v1736 = vsel %vm415, %v1605, 0
      %v1739 = vsel %vm415, %v1614, 0
      %v1742 = vsel %vm415, %v1623, 0
      %v1745 = vsel %vm415, %v1632, 0
      %v1748 = vsel %vm415, %v1641, 0
      %v1751 = vsel %vm415, %v1650, 0
      %v1754 = vsel %vm415, %v1659, 0
      %v1757 = vsel %vm415, %v1668, 0
      %v1760 = vsel %vm415, %v1677, 0
      %v1763 = vsel %vm415, %v1686, 0
      %v1766 = vsel %vm415, %v1695, 0
      %v1769 = vsel %vm415, %v1704, 0
      %v1772 = vsel %vm415, %v1713, 0
      %v1775 = vsel %vm415, %v1722, 0
      %v1778 = vsel %vm470, %v1459, 0
      %1780 = vmatprep.subr.bf16.mxu0 0
      %1781 = vmatpush1.bf16.msra.mxu0 %v1778
      %1782 = vmatprep.subr.bf16.mxu0 0
      %1783 = vmatpush1.bf16.msra.mxu0 0
      %1784 = vmatprep.subr.bf16.mxu0 0
      %1785 = vmatpush1.bf16.msra.mxu0 0
      %1786 = vmatprep.subr.bf16.mxu0 0
      %1787 = vmatpush1.bf16.msra.mxu0 0
      %1788 = vmatprep.subr.bf16.mxu0 0
      %1789 = vmatpush1.bf16.msra.mxu0 0
      %1790 = vmatprep.subr.bf16.mxu0 0
      %1791 = vmatpush1.bf16.msra.mxu0 0
      %1792 = vmatprep.subr.bf16.mxu0 0
      %1793 = vmatpush1.bf16.msra.mxu0 0
      %1794 = vmatprep.subr.bf16.mxu0 0
      %1795 = vmatpush1.bf16.msra.mxu0 0
      %1796 = vmatprep.subr.bf16.mxu0 0
      %1797 = vmatpush1.bf16.msra.mxu0 0
      %1798 = vmatprep.subr.bf16.mxu0 0
      %1799 = vmatpush1.bf16.msra.mxu0 0
      %1800 = vmatprep.subr.bf16.mxu0 0
      %1801 = vmatpush1.bf16.msra.mxu0 0
      %1802 = vmatprep.subr.bf16.mxu0 0
      %1803 = vmatpush1.bf16.msra.mxu0 0
      %1804 = vmatprep.subr.bf16.mxu0 0
      %1805 = vmatpush1.bf16.msra.mxu0 0
      %1806 = vmatprep.subr.bf16.mxu0 0
      %1807 = vmatpush1.bf16.msra.mxu0 0
      %1808 = vmatprep.subr.bf16.mxu0 0
      %1809 = vmatpush1.bf16.msra.mxu0 0
      %1810 = vmatprep.subr.bf16.mxu0 0
      %1811 = vmatpush1.bf16.msra.mxu0 0
      %1812 = vmatprep.mubr.bf16.mxu0 0
      %1813 = vmatmul.mubr.bf16.gmra.mrb[0].mxu0 %v1724
      %v1814 = vpop.f32.mrb[0].mxu0
      %v1815 = vadd.f32 0.0, %v1814
      %v1816 = vpop.f32.mrb[0].mxu0
      %v1817 = vpop.f32.mrb[0].mxu0
      %v1818 = vadd.f32 0.0, %v1817
      %v1819 = vpop.f32.mrb[0].mxu0
      %1820 = vmatprep.mubr.bf16.mxu0 0
      %1821 = vmatmul.mubr.bf16.gmra.mrb[0].mxu0 %v1727
      %v1822 = vpop.f32.mrb[0].mxu0
      %v1823 = vadd.f32 0.0, %v1822
      %v1824 = vpop.f32.mrb[0].mxu0
      %v1825 = vpop.f32.mrb[0].mxu0
      %v1826 = vadd.f32 0.0, %v1825
      %v1827 = vpop.f32.mrb[0].mxu0
      %1828 = vmatprep.mubr.bf16.mxu0 0
      %1829 = vmatmul.mubr.bf16.gmra.mrb[0].mxu0 %v1730
      %v1830 = vpop.f32.mrb[0].mxu0
      %v1831 = vadd.f32 0.0, %v1830
      %v1832 = vpop.f32.mrb[0].mxu0
      %v1833 = vpop.f32.mrb[0].mxu0
      %v1834 = vadd.f32 0.0, %v1833
      %v1835 = vpop.f32.mrb[0].mxu0
      %1836 = vmatprep.mubr.bf16.mxu0 0
      %1837 = vmatmul.mubr.bf16.gmra.mrb[0].mxu0 %v1733
      %v1838 = vpop.f32.mrb[0].mxu0
      %v1839 = vadd.f32 0.0, %v1838
      %v1840 = vpop.f32.mrb[0].mxu0
      %v1841 = vpop.f32.mrb[0].mxu0
      %v1842 = vadd.f32 0.0, %v1841
      %v1843 = vpop.f32.mrb[0].mxu0
      %1844 = vmatprep.mubr.bf16.mxu0 0
      %1845 = vmatmul.mubr.bf16.gmra.mrb[0].mxu0 %v1736
      %v1846 = vpop.f32.mrb[0].mxu0
      %v1847 = vadd.f32 0.0, %v1846
      %v1848 = vpop.f32.mrb[0].mxu0
      %v1849 = vpop.f32.mrb[0].mxu0
      %v1850 = vadd.f32 0.0, %v1849
      %v1851 = vpop.f32.mrb[0].mxu0
      %1852 = vmatprep.mubr.bf16.mxu0 0
      %1853 = vmatmul.mubr.bf16.gmra.mrb[0].mxu0 %v1739
      %v1854 = vpop.f32.mrb[0].mxu0
      %v1855 = vadd.f32 0.0, %v1854
      %v1856 = vpop.f32.mrb[0].mxu0
      %v1857 = vpop.f32.mrb[0].mxu0
      %v1858 = vadd.f32 0.0, %v1857
      %v1859 = vpop.f32.mrb[0].mxu0
      %1860 = vmatprep.mubr.bf16.mxu0 0
      %1861 = vmatmul.mubr.bf16.gmra.mrb[0].mxu0 %v1742
      %v1862 = vpop.f32.mrb[0].mxu0
      %v1863 = vadd.f32 0.0, %v1862
      %v1864 = vpop.f32.mrb[0].mxu0
      %v1865 = vpop.f32.mrb[0].mxu0
      %v1866 = vadd.f32 0.0, %v1865
      %v1867 = vpop.f32.mrb[0].mxu0
      %1868 = vmatprep.mubr.bf16.mxu0 0
      %1869 = vmatmul.mubr.bf16.gmra.mrb[0].mxu0 %v1745
      %v1870 = vpop.f32.mrb[0].mxu0
      %v1871 = vadd.f32 0.0, %v1870
      %v1872 = vpop.f32.mrb[0].mxu0
      %v1873 = vpop.f32.mrb[0].mxu0
      %v1874 = vadd.f32 0.0, %v1873
      %v1875 = vpop.f32.mrb[0].mxu0
      %1876 = vmatprep.mubr.bf16.mxu0 0
      %1877 = vmatmul.mubr.bf16.gmra.mrb[0].mxu0 %v1748
      %v1878 = vpop.f32.mrb[0].mxu0
      %v1879 = vadd.f32 0.0, %v1878
      %v1880 = vpop.f32.mrb[0].mxu0
      %v1881 = vpop.f32.mrb[0].mxu0
      %v1882 = vadd.f32 0.0, %v1881
      %v1883 = vpop.f32.mrb[0].mxu0
      %1884 = vmatprep.mubr.bf16.mxu0 0
      %1885 = vmatmul.mubr.bf16.gmra.mrb[0].mxu0 %v1751
      %v1886 = vpop.f32.mrb[0].mxu0
      %v1887 = vadd.f32 0.0, %v1886
      %v1888 = vpop.f32.mrb[0].mxu0
      %v1889 = vpop.f32.mrb[0].mxu0
      %v1890 = vadd.f32 0.0, %v1889
      %v1891 = vpop.f32.mrb[0].mxu0
      %1892 = vmatprep.mubr.bf16.mxu0 0
      %1893 = vmatmul.mubr.bf16.gmra.mrb[0].mxu0 %v1754
      %v1894 = vpop.f32.mrb[0].mxu0
      %v1895 = vadd.f32 0.0, %v1894
      %v1896 = vpop.f32.mrb[0].mxu0
      %v1897 = vpop.f32.mrb[0].mxu0
      %v1898 = vadd.f32 0.0, %v1897
      %v1899 = vpop.f32.mrb[0].mxu0
      %1900 = vmatprep.mubr.bf16.mxu0 0
      %1901 = vmatmul.mubr.bf16.gmra.mrb[0].mxu0 %v1757
      %v1902 = vpop.f32.mrb[0].mxu0
      %v1903 = vadd.f32 0.0, %v1902
      %v1904 = vpop.f32.mrb[0].mxu0
      %v1905 = vpop.f32.mrb[0].mxu0
      %v1906 = vadd.f32 0.0, %v1905
      %v1907 = vpop.f32.mrb[0].mxu0
      %1908 = vmatprep.mubr.bf16.mxu0 0
      %1909 = vmatmul.mubr.bf16.gmra.mrb[0].mxu0 %v1760
      %v1910 = vpop.f32.mrb[0].mxu0
      %v1911 = vadd.f32 0.0, %v1910
      %v1912 = vpop.f32.mrb[0].mxu0
      %v1913 = vpop.f32.mrb[0].mxu0
      %v1914 = vadd.f32 0.0, %v1913
      %v1915 = vpop.f32.mrb[0].mxu0
      %1916 = vmatprep.mubr.bf16.mxu0 0
      %1917 = vmatmul.mubr.bf16.gmra.mrb[0].mxu0 %v1763
      %v1918 = vpop.f32.mrb[0].mxu0
      %v1919 = vadd.f32 0.0, %v1918
      %v1920 = vpop.f32.mrb[0].mxu0
      %v1921 = vpop.f32.mrb[0].mxu0
      %v1922 = vadd.f32 0.0, %v1921
      %v1923 = vpop.f32.mrb[0].mxu0
      %1924 = vmatprep.mubr.bf16.mxu0 0
      %1925 = vmatmul.mubr.bf16.gmra.mrb[0].mxu0 %v1766
      %v1926 = vpop.f32.mrb[0].mxu0
      %v1927 = vadd.f32 0.0, %v1926
      %v1928 = vpop.f32.mrb[0].mxu0
      %v1929 = vpop.f32.mrb[0].mxu0
      %v1930 = vadd.f32 0.0, %v1929
      %v1931 = vpop.f32.mrb[0].mxu0
      %1932 = vmatprep.mubr.bf16.mxu0 0
      %1933 = vmatmul.mubr.bf16.gmra.mrb[0].mxu0 %v1769
      %v1934 = vpop.f32.mrb[0].mxu0
      %v1935 = vadd.f32 0.0, %v1934
      %v1936 = vpop.f32.mrb[0].mxu0
      %v1937 = vpop.f32.mrb[0].mxu0
      %v1938 = vadd.f32 0.0, %v1937
      %v1939 = vpop.f32.mrb[0].mxu0
      %1940 = vmatprep.mubr.bf16.mxu0 0
      %1941 = vmatmul.mubr.bf16.gmra.mrb[0].mxu0 %v1772
      %v1942 = vpop.f32.mrb[0].mxu0
      %v1943 = vadd.f32 0.0, %v1942
      %v1944 = vpop.f32.mrb[0].mxu0
      %v1945 = vpop.f32.mrb[0].mxu0
      %v1946 = vadd.f32 0.0, %v1945
      %v1947 = vpop.f32.mrb[0].mxu0
      %1948 = vmatprep.mubr.bf16.mxu0 0
      %1949 = vmatmul.mubr.bf16.gmra.mrb[0].mxu0 %v1775
      %v1950 = vpop.f32.mrb[0].mxu0
      %v1951 = vadd.f32 0.0, %v1950
      %v1952 = vpop.f32.mrb[0].mxu0
      %v1953 = vpop.f32.mrb[0].mxu0
      %v1954 = vadd.f32 0.0, %v1953
      %v1955 = vpop.f32.mrb[0].mxu0
      %1956 = vdwg.mxu0
      %v1957 = vadd.f32 %v1385, %v1815
      %v1958 = vadd.f32 %v1386, %v1818
      %v1959 = vadd.f32 %v1387, %v1823
      %v1960 = vadd.f32 %v1388, %v1826
      %v1961 = vadd.f32 %v1389, %v1831
      %v1962 = vadd.f32 %v1390, %v1834
      %v1963 = vadd.f32 %v1391, %v1839
      %v1964 = vadd.f32 %v1392, %v1842
      %v1965 = vadd.f32 %v1393, %v1847
      %v1966 = vadd.f32 %v1394, %v1850
      %v1967 = vadd.f32 %v1395, %v1855
      %v1968 = vadd.f32 %v1396, %v1858
      %v1969 = vadd.f32 %v1397, %v1863
      %v1970 = vadd.f32 %v1398, %v1866
      %v1971 = vadd.f32 %v1399, %v1871
      %v1972 = vadd.f32 %v1400, %v1874
      %v1973 = vadd.f32 %v1401, %v1879
      %v1974 = vadd.f32 %v1402, %v1882
      %v1975 = vadd.f32 %v1403, %v1887
      %v1976 = vadd.f32 %v1404, %v1890
      %v1977 = vadd.f32 %v1405, %v1895
      %v1978 = vadd.f32 %v1406, %v1898
      %v1979 = vadd.f32 %v1407, %v1903
      %v1980 = vadd.f32 %v1408, %v1906
      %v1981 = vadd.f32 %v1409, %v1911
      %v1982 = vadd.f32 %v1410, %v1914
      %v1983 = vadd.f32 %v1411, %v1919
      %v1984 = vadd.f32 %v1412, %v1922
      %v1985 = vadd.f32 %v1413, %v1927
      %v1986 = vadd.f32 %v1414, %v1930
      %v1987 = vadd.f32 %v1415, %v1935
      %v1988 = vadd.f32 %v1416, %v1938
      %v1989 = vadd.f32 %v1417, %v1943
      %v1990 = vadd.f32 %v1418, %v1946
      %v1991 = vadd.f32 %v1419, %v1951
      %v1992 = vadd.f32 %v1420, %v1954
      %s1993 = scalar_lea.vmem %s1, 8
      %v1994 = vld [vmem:[%s1993] sm:$0x3]
      %v1995 = vpack.c.b16 %v1499, %v1498
      %v1996 = vpack.c.b16 %v1501, %v1500
      %v1997 = vpack.c.b16 %v1503, %v1502
      %v1998 = vpack.c.b16 %v1505, %v1504
      %v1999 = vpack.c.b16 %v1507, %v1506
      %v2000 = vpack.c.b16 %v1509, %v1508
      %v2001 = vpack.c.b16 %v1511, %v1510
      %v2002 = vpack.c.b16 %v1513, %v1512
      %v2003 = vpack.c.b16 %v1515, %v1514
      %v2004 = vpack.c.b16 %v1517, %v1516
      %v2005 = vpack.c.b16 %v1519, %v1518
      %v2006 = vpack.c.b16 %v1521, %v1520
      %v2007 = vpack.c.b16 %v1523, %v1522
      %v2008 = vpack.c.b16 %v1525, %v1524
      %v2009 = vpack.c.b16 %v1527, %v1526
      %v2010 = vpack.c.b16 %v1529, %v1528
      %v2011 = vpack.c.b16 %v1531, %v1530
      %v2012 = vpack.c.b16 %v1533, %v1532
      %v2014 = vsel %vm415, %v1995, 0
      %v2017 = vsel %vm415, %v1996, 0
      %v2020 = vsel %vm415, %v1997, 0
      %v2023 = vsel %vm415, %v1998, 0
      %v2026 = vsel %vm415, %v1999, 0
      %v2029 = vsel %vm415, %v2000, 0
      %v2032 = vsel %vm415, %v2001, 0
      %v2035 = vsel %vm415, %v2002, 0
      %v2038 = vsel %vm415, %v2003, 0
      %v2041 = vsel %vm415, %v2004, 0
      %v2044 = vsel %vm415, %v2005, 0
      %v2047 = vsel %vm415, %v2006, 0
      %v2050 = vsel %vm415, %v2007, 0
      %v2053 = vsel %vm415, %v2008, 0
      %v2056 = vsel %vm415, %v2009, 0
      %v2059 = vsel %vm415, %v2010, 0
      %v2062 = vsel %vm415, %v2011, 0
      %v2065 = vsel %vm415, %v2012, 0
      %v2068 = vsel %vm470, %v1994, 0
      %2070 = vmatprep.subr.bf16.mxu0 0
      %2071 = vmatpush1.bf16.msra.mxu0 %v2068
      %2072 = vmatprep.subr.bf16.mxu0 0
      %2073 = vmatpush1.bf16.msra.mxu0 0
      %2074 = vmatprep.subr.bf16.mxu0 0
      %2075 = vmatpush1.bf16.msra.mxu0 0
      %2076 = vmatprep.subr.bf16.mxu0 0
      %2077 = vmatpush1.bf16.msra.mxu0 0
      %2078 = vmatprep.subr.bf16.mxu0 0
      %2079 = vmatpush1.bf16.msra.mxu0 0
      %2080 = vmatprep.subr.bf16.mxu0 0
      %2081 = vmatpush1.bf16.msra.mxu0 0
      %2082 = vmatprep.subr.bf16.mxu0 0
      %2083 = vmatpush1.bf16.msra.mxu0 0
      %2084 = vmatprep.subr.bf16.mxu0 0
      %2085 = vmatpush1.bf16.msra.mxu0 0
      %2086 = vmatprep.subr.bf16.mxu0 0
      %2087 = vmatpush1.bf16.msra.mxu0 0
      %2088 = vmatprep.subr.bf16.mxu0 0
      %2089 = vmatpush1.bf16.msra.mxu0 0
      %2090 = vmatprep.subr.bf16.mxu0 0
      %2091 = vmatpush1.bf16.msra.mxu0 0
      %2092 = vmatprep.subr.bf16.mxu0 0
      %2093 = vmatpush1.bf16.msra.mxu0 0
      %2094 = vmatprep.subr.bf16.mxu0 0
      %2095 = vmatpush1.bf16.msra.mxu0 0
      %2096 = vmatprep.subr.bf16.mxu0 0
      %2097 = vmatpush1.bf16.msra.mxu0 0
      %2098 = vmatprep.subr.bf16.mxu0 0
      %2099 = vmatpush1.bf16.msra.mxu0 0
      %2100 = vmatprep.subr.bf16.mxu0 0
      %2101 = vmatpush1.bf16.msra.mxu0 0
      %2102 = vmatprep.mubr.bf16.mxu0 0
      %2103 = vmatmul.mubr.bf16.gmra.mrb[0].mxu0 %v2014
      %v2104 = vpop.f32.mrb[0].mxu0
      %v2105 = vadd.f32 0.0, %v2104
      %v2106 = vpop.f32.mrb[0].mxu0
      %v2107 = vpop.f32.mrb[0].mxu0
      %v2108 = vadd.f32 0.0, %v2107
      %v2109 = vpop.f32.mrb[0].mxu0
      %2110 = vmatprep.mubr.bf16.mxu0 0
      %2111 = vmatmul.mubr.bf16.gmra.mrb[0].mxu0 %v2017
      %v2112 = vpop.f32.mrb[0].mxu0
      %v2113 = vadd.f32 0.0, %v2112
      %v2114 = vpop.f32.mrb[0].mxu0
      %v2115 = vpop.f32.mrb[0].mxu0
      %v2116 = vadd.f32 0.0, %v2115
      %v2117 = vpop.f32.mrb[0].mxu0
      %2118 = vmatprep.mubr.bf16.mxu0 0
      %2119 = vmatmul.mubr.bf16.gmra.mrb[0].mxu0 %v2020
      %v2120 = vpop.f32.mrb[0].mxu0
      %v2121 = vadd.f32 0.0, %v2120
      %v2122 = vpop.f32.mrb[0].mxu0
      %v2123 = vpop.f32.mrb[0].mxu0
      %v2124 = vadd.f32 0.0, %v2123
      %v2125 = vpop.f32.mrb[0].mxu0
      %2126 = vmatprep.mubr.bf16.mxu0 0
      %2127 = vmatmul.mubr.bf16.gmra.mrb[0].mxu0 %v2023
      %v2128 = vpop.f32.mrb[0].mxu0
      %v2129 = vadd.f32 0.0, %v2128
      %v2130 = vpop.f32.mrb[0].mxu0
      %v2131 = vpop.f32.mrb[0].mxu0
      %v2132 = vadd.f32 0.0, %v2131
      %v2133 = vpop.f32.mrb[0].mxu0
      %2134 = vmatprep.mubr.bf16.mxu0 0
      %2135 = vmatmul.mubr.bf16.gmra.mrb[0].mxu0 %v2026
      %v2136 = vpop.f32.mrb[0].mxu0
      %v2137 = vadd.f32 0.0, %v2136
      %v2138 = vpop.f32.mrb[0].mxu0
      %v2139 = vpop.f32.mrb[0].mxu0
      %v2140 = vadd.f32 0.0, %v2139
      %v2141 = vpop.f32.mrb[0].mxu0
      %2142 = vmatprep.mubr.bf16.mxu0 0
      %2143 = vmatmul.mubr.bf16.gmra.mrb[0].mxu0 %v2029
      %v2144 = vpop.f32.mrb[0].mxu0
      %v2145 = vadd.f32 0.0, %v2144
      %v2146 = vpop.f32.mrb[0].mxu0
      %v2147 = vpop.f32.mrb[0].mxu0
      %v2148 = vadd.f32 0.0, %v2147
      %v2149 = vpop.f32.mrb[0].mxu0
      %2150 = vmatprep.mubr.bf16.mxu0 0
      %2151 = vmatmul.mubr.bf16.gmra.mrb[0].mxu0 %v2032
      %v2152 = vpop.f32.mrb[0].mxu0
      %v2153 = vadd.f32 0.0, %v2152
      %v2154 = vpop.f32.mrb[0].mxu0
      %v2155 = vpop.f32.mrb[0].mxu0
      %v2156 = vadd.f32 0.0, %v2155
      %v2157 = vpop.f32.mrb[0].mxu0
      %2158 = vmatprep.mubr.bf16.mxu0 0
      %2159 = vmatmul.mubr.bf16.gmra.mrb[0].mxu0 %v2035
      %v2160 = vpop.f32.mrb[0].mxu0
      %v2161 = vadd.f32 0.0, %v2160
      %v2162 = vpop.f32.mrb[0].mxu0
      %v2163 = vpop.f32.mrb[0].mxu0
      %v2164 = vadd.f32 0.0, %v2163
      %v2165 = vpop.f32.mrb[0].mxu0
      %2166 = vmatprep.mubr.bf16.mxu0 0
      %2167 = vmatmul.mubr.bf16.gmra.mrb[0].mxu0 %v2038
      %v2168 = vpop.f32.mrb[0].mxu0
      %v2169 = vadd.f32 0.0, %v2168
      %v2170 = vpop.f32.mrb[0].mxu0
      %v2171 = vpop.f32.mrb[0].mxu0
      %v2172 = vadd.f32 0.0, %v2171
      %v2173 = vpop.f32.mrb[0].mxu0
      %2174 = vmatprep.mubr.bf16.mxu0 0
      %2175 = vmatmul.mubr.bf16.gmra.mrb[0].mxu0 %v2041
      %v2176 = vpop.f32.mrb[0].mxu0
      %v2177 = vadd.f32 0.0, %v2176
      %v2178 = vpop.f32.mrb[0].mxu0
      %v2179 = vpop.f32.mrb[0].mxu0
      %v2180 = vadd.f32 0.0, %v2179
      %v2181 = vpop.f32.mrb[0].mxu0
      %2182 = vmatprep.mubr.bf16.mxu0 0
      %2183 = vmatmul.mubr.bf16.gmra.mrb[0].mxu0 %v2044
      %v2184 = vpop.f32.mrb[0].mxu0
      %v2185 = vadd.f32 0.0, %v2184
      %v2186 = vpop.f32.mrb[0].mxu0
      %v2187 = vpop.f32.mrb[0].mxu0
      %v2188 = vadd.f32 0.0, %v2187
      %v2189 = vpop.f32.mrb[0].mxu0
      %2190 = vmatprep.mubr.bf16.mxu0 0
      %2191 = vmatmul.mubr.bf16.gmra.mrb[0].mxu0 %v2047
      %v2192 = vpop.f32.mrb[0].mxu0
      %v2193 = vadd.f32 0.0, %v2192
      %v2194 = vpop.f32.mrb[0].mxu0
      %v2195 = vpop.f32.mrb[0].mxu0
      %v2196 = vadd.f32 0.0, %v2195
      %v2197 = vpop.f32.mrb[0].mxu0
      %2198 = vmatprep.mubr.bf16.mxu0 0
      %2199 = vmatmul.mubr.bf16.gmra.mrb[0].mxu0 %v2050
      %v2200 = vpop.f32.mrb[0].mxu0
      %v2201 = vadd.f32 0.0, %v2200
      %v2202 = vpop.f32.mrb[0].mxu0
      %v2203 = vpop.f32.mrb[0].mxu0
      %v2204 = vadd.f32 0.0, %v2203
      %v2205 = vpop.f32.mrb[0].mxu0
      %2206 = vmatprep.mubr.bf16.mxu0 0
      %2207 = vmatmul.mubr.bf16.gmra.mrb[0].mxu0 %v2053
      %v2208 = vpop.f32.mrb[0].mxu0
      %v2209 = vadd.f32 0.0, %v2208
      %v2210 = vpop.f32.mrb[0].mxu0
      %v2211 = vpop.f32.mrb[0].mxu0
      %v2212 = vadd.f32 0.0, %v2211
      %v2213 = vpop.f32.mrb[0].mxu0
      %2214 = vmatprep.mubr.bf16.mxu0 0
      %2215 = vmatmul.mubr.bf16.gmra.mrb[0].mxu0 %v2056
      %v2216 = vpop.f32.mrb[0].mxu0
      %v2217 = vadd.f32 0.0, %v2216
      %v2218 = vpop.f32.mrb[0].mxu0
      %v2219 = vpop.f32.mrb[0].mxu0
      %v2220 = vadd.f32 0.0, %v2219
      %v2221 = vpop.f32.mrb[0].mxu0
      %2222 = vmatprep.mubr.bf16.mxu0 0
      %2223 = vmatmul.mubr.bf16.gmra.mrb[0].mxu0 %v2059
      %v2224 = vpop.f32.mrb[0].mxu0
      %v2225 = vadd.f32 0.0, %v2224
      %v2226 = vpop.f32.mrb[0].mxu0
      %v2227 = vpop.f32.mrb[0].mxu0
      %v2228 = vadd.f32 0.0, %v2227
      %v2229 = vpop.f32.mrb[0].mxu0
      %2230 = vmatprep.mubr.bf16.mxu0 0
      %2231 = vmatmul.mubr.bf16.gmra.mrb[0].mxu0 %v2062
      %v2232 = vpop.f32.mrb[0].mxu0
      %v2233 = vadd.f32 0.0, %v2232
      %v2234 = vpop.f32.mrb[0].mxu0
      %v2235 = vpop.f32.mrb[0].mxu0
      %v2236 = vadd.f32 0.0, %v2235
      %v2237 = vpop.f32.mrb[0].mxu0
      %2238 = vmatprep.mubr.bf16.mxu0 0
      %2239 = vmatmul.mubr.bf16.gmra.mrb[0].mxu0 %v2065
      %v2240 = vpop.f32.mrb[0].mxu0
      %v2241 = vadd.f32 0.0, %v2240
      %v2242 = vpop.f32.mrb[0].mxu0
      %v2243 = vpop.f32.mrb[0].mxu0
      %v2244 = vadd.f32 0.0, %v2243
      %v2245 = vpop.f32.mrb[0].mxu0
      %2246 = vdwg.mxu0
      %v2247 = vadd.f32 %v1957, %v2105
      %v2248 = vadd.f32 %v1958, %v2108
      %v2249 = vadd.f32 %v1959, %v2113
      %v2250 = vadd.f32 %v1960, %v2116
      %v2251 = vadd.f32 %v1961, %v2121
      %v2252 = vadd.f32 %v1962, %v2124
      %v2253 = vadd.f32 %v1963, %v2129
      %v2254 = vadd.f32 %v1964, %v2132
      %v2255 = vadd.f32 %v1965, %v2137
      %v2256 = vadd.f32 %v1966, %v2140
      %v2257 = vadd.f32 %v1967, %v2145
      %v2258 = vadd.f32 %v1968, %v2148
      %v2259 = vadd.f32 %v1969, %v2153
      %v2260 = vadd.f32 %v1970, %v2156
      %v2261 = vadd.f32 %v1971, %v2161
      %v2262 = vadd.f32 %v1972, %v2164
      %v2263 = vadd.f32 %v1973, %v2169
      %v2264 = vadd.f32 %v1974, %v2172
      %v2265 = vadd.f32 %v1975, %v2177
      %v2266 = vadd.f32 %v1976, %v2180
      %v2267 = vadd.f32 %v1977, %v2185
      %v2268 = vadd.f32 %v1978, %v2188
      %v2269 = vadd.f32 %v1979, %v2193
      %v2270 = vadd.f32 %v1980, %v2196
      %v2271 = vadd.f32 %v1981, %v2201
      %v2272 = vadd.f32 %v1982, %v2204
      %v2273 = vadd.f32 %v1983, %v2209
      %v2274 = vadd.f32 %v1984, %v2212
      %v2275 = vadd.f32 %v1985, %v2217
      %v2276 = vadd.f32 %v1986, %v2220
      %v2277 = vadd.f32 %v1987, %v2225
      %v2278 = vadd.f32 %v1988, %v2228
      %v2279 = vadd.f32 %v1989, %v2233
      %v2280 = vadd.f32 %v1990, %v2236
      %v2281 = vadd.f32 %v1991, %v2241
      %v2282 = vadd.f32 %v1992, %v2244
      %v2283 = vld [vmem:[%s230 + $0x10] sm:$0xf]
      %v2284 = vld [vmem:[%s230 + $0x14] sm:$0xf]
      %v2285 = vld [vmem:[%s230 + $0x18] sm:$0xf]
      %v2286 = vld [vmem:[%s230 + $0x1c] sm:$0xf]
      %v2287 = vld [vmem:[%s230 + $0x20] sm:$0xf]
      %v2288 = vld [vmem:[%s230 + $0x24] sm:$0xf]
      %v2289 = vld [vmem:[%s230 + $0x28] sm:$0xf]
      %v2290 = vld [vmem:[%s230 + $0x2c] sm:$0xf]
      %v2291 = vld [vmem:[%s230 + $0x30] sm:$0xf]
      %v2292 = vld [vmem:[%s230 + $0x34] sm:$0xf]
      %v2293 = vld [vmem:[%s230 + $0x38] sm:$0xf]
      %v2294 = vld [vmem:[%s230 + $0x3c] sm:$0xf]
      %v2295 = vld [vmem:[%s230 + $0x40] sm:$0xf]
      %v2296 = vld [vmem:[%s230 + $0x44] sm:$0xf]
      %v2297 = vld [vmem:[%s230 + $0x48] sm:$0xf]
      %v2298 = vld [vmem:[%s230 + $0x4c] sm:$0xf]
      %v2299 = vld [vmem:[%s230 + $0x50] sm:$0xf]
      %v2300 = vld [vmem:[%s230 + $0x54] sm:$0xf]
      %v2301 = vld [vmem:[%s230 + $0x58] sm:$0xf]
      %v2302 = vld [vmem:[%s230 + $0x5c] sm:$0xf]
      %v2303 = vld [vmem:[%s230 + $0x60] sm:$0xf]
      %v2304 = vld [vmem:[%s230 + $0x64] sm:$0xf]
      %v2305 = vld [vmem:[%s230 + $0x68] sm:$0xf]
      %v2306 = vld [vmem:[%s230 + $0x6c] sm:$0xf]
      %v2307 = vld [vmem:[%s230 + $0x70] sm:$0xf]
      %v2308 = vld [vmem:[%s230 + $0x74] sm:$0xf]
      %v2309 = vld [vmem:[%s230 + $0x78] sm:$0xf]
      %v2310 = vld [vmem:[%s230 + $0x7c] sm:$0xf]
      %v2311 = vld [vmem:[%s230 + $0x80] sm:$0xf]
      %v2312 = vld [vmem:[%s230 + $0x84] sm:$0xf]
      %v2313 = vld [vmem:[%s230 + $0x88] sm:$0xf]
      %v2314 = vld [vmem:[%s230 + $0x8c] sm:$0xf]
      %v2315 = vld [vmem:[%s230 + $0x90] sm:$0xf]
      %v2316 = vld [vmem:[%s230 + $0x94] sm:$0xf]
      %v2317 = vld [vmem:[%s230 + $0x98] sm:$0xf]
      %v2318 = vld [vmem:[%s230 + $0x9c] sm:$0xf]
      %v2319 = vld [vmem:[%s230 + $0xa0] sm:$0x1]
      %s2320 = scalar_lea.vmem %s1, 10
      %v2321 = vld [vmem:[%s2320] sm:$0x3]
      %v2359 = vunpack.c.l.b16 %v2283
      %v2360 = vunpack.c.l.b16 %v2284
      %v2361 = vunpack.c.l.b16 %v2285
      %v2362 = vunpack.c.l.b16 %v2286
      %v2363 = vunpack.c.l.b16 %v2287
      %v2364 = vunpack.c.l.b16 %v2288
      %v2365 = vunpack.c.l.b16 %v2289
      %v2366 = vunpack.c.l.b16 %v2290
      %v2367 = vunpack.c.l.b16 %v2291
      %v2368 = vunpack.c.l.b16 %v2292
      %v2369 = vunpack.c.l.b16 %v2293
      %v2370 = vunpack.c.l.b16 %v2294
      %v2371 = vunpack.c.l.b16 %v2295
      %v2372 = vunpack.c.l.b16 %v2296
      %v2373 = vunpack.c.l.b16 %v2297
      %v2374 = vunpack.c.l.b16 %v2298
      %v2375 = vunpack.c.l.b16 %v2299
      %v2376 = vunpack.c.l.b16 %v2300
      %v2377 = vunpack.c.l.b16 %v2301
      %v2378 = vunpack.c.l.b16 %v2302
      %v2379 = vunpack.c.l.b16 %v2303
      %v2380 = vunpack.c.l.b16 %v2304
      %v2381 = vunpack.c.l.b16 %v2305
      %v2382 = vunpack.c.l.b16 %v2306
      %v2383 = vunpack.c.l.b16 %v2307
      %v2384 = vunpack.c.l.b16 %v2308
      %v2385 = vunpack.c.l.b16 %v2309
      %v2386 = vunpack.c.l.b16 %v2310
      %v2387 = vunpack.c.l.b16 %v2311
      %v2388 = vunpack.c.l.b16 %v2312
      %v2389 = vunpack.c.l.b16 %v2313
      %v2390 = vunpack.c.l.b16 %v2314
      %v2391 = vunpack.c.l.b16 %v2315
      %v2392 = vunpack.c.l.b16 %v2316
      %v2393 = vunpack.c.l.b16 %v2317
      %v2394 = vunpack.c.l.b16 %v2318
      %v2395 = vunpack.c.l.b16 %v2319
      %v2396 = vpack.c.b16 %v2360, %v2359
      %v2397 = vpack.c.b16 %v2362, %v2361
      %v2398 = vpack.c.b16 %v2364, %v2363
      %v2399 = vpack.c.b16 %v2366, %v2365
      %v2400 = vpack.c.b16 %v2368, %v2367
      %v2401 = vpack.c.b16 %v2370, %v2369
      %v2402 = vpack.c.b16 %v2372, %v2371
      %v2403 = vpack.c.b16 %v2374, %v2373
      %v2404 = vpack.c.b16 %v2376, %v2375
      %v2405 = vpack.c.b16 %v2378, %v2377
      %v2406 = vpack.c.b16 %v2380, %v2379
      %v2407 = vpack.c.b16 %v2382, %v2381
      %v2408 = vpack.c.b16 %v2384, %v2383
      %v2409 = vpack.c.b16 %v2386, %v2385
      %v2410 = vpack.c.b16 %v2388, %v2387
      %v2411 = vpack.c.b16 %v2390, %v2389
      %v2412 = vpack.c.b16 %v2392, %v2391
      %v2413 = vpack.c.b16 %v2394, %v2393
      %v2414 = vpack.c.b16 %v2395, %v2395
      %vm2415 = vsmask.f32 7424
      %v2417 = vshrl.u32 %v2396, 16
      %v2419 = vshll.u32 %v2396, 16
      %v2421 = vrot.slane %v2419, 1
      %v2422 = vor.u32 %v2417, %v2421
      %v2424 = vshll.u32 %v2397, 16
      %v2426 = vrot.slane %v2424, 1
      %v2427 = vsel %vm2415, %v2422, %v2426
      %v2428 = vshrl.u32 %v2397, 16
      %v2430 = vor.u32 %v2428, %v2426
      %v2432 = vshll.u32 %v2398, 16
      %v2434 = vrot.slane %v2432, 1
      %v2435 = vsel %vm2415, %v2430, %v2434
      %v2436 = vshrl.u32 %v2398, 16
      %v2438 = vor.u32 %v2436, %v2434
      %v2440 = vshll.u32 %v2399, 16
      %v2442 = vrot.slane %v2440, 1
      %v2443 = vsel %vm2415, %v2438, %v2442
      %v2444 = vshrl.u32 %v2399, 16
      %v2446 = vor.u32 %v2444, %v2442
      %v2448 = vshll.u32 %v2400, 16
      %v2450 = vrot.slane %v2448, 1
      %v2451 = vsel %vm2415, %v2446, %v2450
      %v2452 = vshrl.u32 %v2400, 16
      %v2454 = vor.u32 %v2452, %v2450
      %v2456 = vshll.u32 %v2401, 16
      %v2458 = vrot.slane %v2456, 1
      %v2459 = vsel %vm2415, %v2454, %v2458
      %v2460 = vshrl.u32 %v2401, 16
      %v2462 = vor.u32 %v2460, %v2458
      %v2464 = vshll.u32 %v2402, 16
      %v2466 = vrot.slane %v2464, 1
      %v2467 = vsel %vm2415, %v2462, %v2466
      %v2468 = vshrl.u32 %v2402, 16
      %v2470 = vor.u32 %v2468, %v2466
      %v2472 = vshll.u32 %v2403, 16
      %v2474 = vrot.slane %v2472, 1
      %v2475 = vsel %vm2415, %v2470, %v2474
      %v2476 = vshrl.u32 %v2403, 16
      %v2478 = vor.u32 %v2476, %v2474
      %v2480 = vshll.u32 %v2404, 16
      %v2482 = vrot.slane %v2480, 1
      %v2483 = vsel %vm2415, %v2478, %v2482
      %v2484 = vshrl.u32 %v2404, 16
      %v2486 = vor.u32 %v2484, %v2482
      %v2488 = vshll.u32 %v2405, 16
      %v2490 = vrot.slane %v2488, 1
      %v2491 = vsel %vm2415, %v2486, %v2490
      %v2492 = vshrl.u32 %v2405, 16
      %v2494 = vor.u32 %v2492, %v2490
      %v2496 = vshll.u32 %v2406, 16
      %v2498 = vrot.slane %v2496, 1
      %v2499 = vsel %vm2415, %v2494, %v2498
      %v2500 = vshrl.u32 %v2406, 16
      %v2502 = vor.u32 %v2500, %v2498
      %v2504 = vshll.u32 %v2407, 16
      %v2506 = vrot.slane %v2504, 1
      %v2507 = vsel %vm2415, %v2502, %v2506
      %v2508 = vshrl.u32 %v2407, 16
      %v2510 = vor.u32 %v2508, %v2506
      %v2512 = vshll.u32 %v2408, 16
      %v2514 = vrot.slane %v2512, 1
      %v2515 = vsel %vm2415, %v2510, %v2514
      %v2516 = vshrl.u32 %v2408, 16
      %v2518 = vor.u32 %v2516, %v2514
      %v2520 = vshll.u32 %v2409, 16
      %v2522 = vrot.slane %v2520, 1
      %v2523 = vsel %vm2415, %v2518, %v2522
      %v2524 = vshrl.u32 %v2409, 16
      %v2526 = vor.u32 %v2524, %v2522
      %v2528 = vshll.u32 %v2410, 16
      %v2530 = vrot.slane %v2528, 1
      %v2531 = vsel %vm2415, %v2526, %v2530
      %v2532 = vshrl.u32 %v2410, 16
      %v2534 = vor.u32 %v2532, %v2530
      %v2536 = vshll.u32 %v2411, 16
      %v2538 = vrot.slane %v2536, 1
      %v2539 = vsel %vm2415, %v2534, %v2538
      %v2540 = vshrl.u32 %v2411, 16
      %v2542 = vor.u32 %v2540, %v2538
      %v2544 = vshll.u32 %v2412, 16
      %v2546 = vrot.slane %v2544, 1
      %v2547 = vsel %vm2415, %v2542, %v2546
      %v2548 = vshrl.u32 %v2412, 16
      %v2550 = vor.u32 %v2548, %v2546
      %v2552 = vshll.u32 %v2413, 16
      %v2554 = vrot.slane %v2552, 1
      %v2555 = vsel %vm2415, %v2550, %v2554
      %v2556 = vshrl.u32 %v2413, 16
      %v2558 = vor.u32 %v2556, %v2554
      %v2560 = vshll.u32 %v2414, 16
      %v2562 = vrot.slane %v2560, 1
      %v2563 = vsel %vm2415, %v2558, %v2562
      %v2565 = vsel %vm415, %v2427, 0
      %v2568 = vsel %vm415, %v2435, 0
      %v2571 = vsel %vm415, %v2443, 0
      %v2574 = vsel %vm415, %v2451, 0
      %v2577 = vsel %vm415, %v2459, 0
      %v2580 = vsel %vm415, %v2467, 0
      %v2583 = vsel %vm415, %v2475, 0
      %v2586 = vsel %vm415, %v2483, 0
      %v2589 = vsel %vm415, %v2491, 0
      %v2592 = vsel %vm415, %v2499, 0
      %v2595 = vsel %vm415, %v2507, 0
      %v2598 = vsel %vm415, %v2515, 0
      %v2601 = vsel %vm415, %v2523, 0
      %v2604 = vsel %vm415, %v2531, 0
      %v2607 = vsel %vm415, %v2539, 0
      %v2610 = vsel %vm415, %v2547, 0
      %v2613 = vsel %vm415, %v2555, 0
      %v2616 = vsel %vm415, %v2563, 0
      %v2619 = vsel %vm470, %v2321, 0
      %2621 = vmatprep.subr.bf16.mxu0 0
      %2622 = vmatpush1.bf16.msra.mxu0 %v2619
      %2623 = vmatprep.subr.bf16.mxu0 0
      %2624 = vmatpush1.bf16.msra.mxu0 0
      %2625 = vmatprep.subr.bf16.mxu0 0
      %2626 = vmatpush1.bf16.msra.mxu0 0
      %2627 = vmatprep.subr.bf16.mxu0 0
      %2628 = vmatpush1.bf16.msra.mxu0 0
      %2629 = vmatprep.subr.bf16.mxu0 0
      %2630 = vmatpush1.bf16.msra.mxu0 0
      %2631 = vmatprep.subr.bf16.mxu0 0
      %2632 = vmatpush1.bf16.msra.mxu0 0
      %2633 = vmatprep.subr.bf16.mxu0 0
      %2634 = vmatpush1.bf16.msra.mxu0 0
      %2635 = vmatprep.subr.bf16.mxu0 0
      %2636 = vmatpush1.bf16.msra.mxu0 0
      %2637 = vmatprep.subr.bf16.mxu0 0
      %2638 = vmatpush1.bf16.msra.mxu0 0
      %2639 = vmatprep.subr.bf16.mxu0 0
      %2640 = vmatpush1.bf16.msra.mxu0 0
      %2641 = vmatprep.subr.bf16.mxu0 0
      %2642 = vmatpush1.bf16.msra.mxu0 0
      %2643 = vmatprep.subr.bf16.mxu0 0
      %2644 = vmatpush1.bf16.msra.mxu0 0
      %2645 = vmatprep.subr.bf16.mxu0 0
      %2646 = vmatpush1.bf16.msra.mxu0 0
      %2647 = vmatprep.subr.bf16.mxu0 0
      %2648 = vmatpush1.bf16.msra.mxu0 0
      %2649 = vmatprep.subr.bf16.mxu0 0
      %2650 = vmatpush1.bf16.msra.mxu0 0
      %2651 = vmatprep.subr.bf16.mxu0 0
      %2652 = vmatpush1.bf16.msra.mxu0 0
      %2653 = vmatprep.mubr.bf16.mxu0 0
      %2654 = vmatmul.mubr.bf16.gmra.mrb[0].mxu0 %v2565
      %v2655 = vpop.f32.mrb[0].mxu0
      %v2656 = vadd.f32 0.0, %v2655
      %v2657 = vpop.f32.mrb[0].mxu0
      %v2658 = vpop.f32.mrb[0].mxu0
      %v2659 = vadd.f32 0.0, %v2658
      %v2660 = vpop.f32.mrb[0].mxu0
      %2661 = vmatprep.mubr.bf16.mxu0 0
      %2662 = vmatmul.mubr.bf16.gmra.mrb[0].mxu0 %v2568
      %v2663 = vpop.f32.mrb[0].mxu0
      %v2664 = vadd.f32 0.0, %v2663
      %v2665 = vpop.f32.mrb[0].mxu0
      %v2666 = vpop.f32.mrb[0].mxu0
      %v2667 = vadd.f32 0.0, %v2666
      %v2668 = vpop.f32.mrb[0].mxu0
      %2669 = vmatprep.mubr.bf16.mxu0 0
      %2670 = vmatmul.mubr.bf16.gmra.mrb[0].mxu0 %v2571
      %v2671 = vpop.f32.mrb[0].mxu0
      %v2672 = vadd.f32 0.0, %v2671
      %v2673 = vpop.f32.mrb[0].mxu0
      %v2674 = vpop.f32.mrb[0].mxu0
      %v2675 = vadd.f32 0.0, %v2674
      %v2676 = vpop.f32.mrb[0].mxu0
      %2677 = vmatprep.mubr.bf16.mxu0 0
      %2678 = vmatmul.mubr.bf16.gmra.mrb[0].mxu0 %v2574
      %v2679 = vpop.f32.mrb[0].mxu0
      %v2680 = vadd.f32 0.0, %v2679
      %v2681 = vpop.f32.mrb[0].mxu0
      %v2682 = vpop.f32.mrb[0].mxu0
      %v2683 = vadd.f32 0.0, %v2682
      %v2684 = vpop.f32.mrb[0].mxu0
      %2685 = vmatprep.mubr.bf16.mxu0 0
      %2686 = vmatmul.mubr.bf16.gmra.mrb[0].mxu0 %v2577
      %v2687 = vpop.f32.mrb[0].mxu0
      %v2688 = vadd.f32 0.0, %v2687
      %v2689 = vpop.f32.mrb[0].mxu0
      %v2690 = vpop.f32.mrb[0].mxu0
      %v2691 = vadd.f32 0.0, %v2690
      %v2692 = vpop.f32.mrb[0].mxu0
      %2693 = vmatprep.mubr.bf16.mxu0 0
      %2694 = vmatmul.mubr.bf16.gmra.mrb[0].mxu0 %v2580
      %v2695 = vpop.f32.mrb[0].mxu0
      %v2696 = vadd.f32 0.0, %v2695
      %v2697 = vpop.f32.mrb[0].mxu0
      %v2698 = vpop.f32.mrb[0].mxu0
      %v2699 = vadd.f32 0.0, %v2698
      %v2700 = vpop.f32.mrb[0].mxu0
      %2701 = vmatprep.mubr.bf16.mxu0 0
      %2702 = vmatmul.mubr.bf16.gmra.mrb[0].mxu0 %v2583
      %v2703 = vpop.f32.mrb[0].mxu0
      %v2704 = vadd.f32 0.0, %v2703
      %v2705 = vpop.f32.mrb[0].mxu0
      %v2706 = vpop.f32.mrb[0].mxu0
      %v2707 = vadd.f32 0.0, %v2706
      %v2708 = vpop.f32.mrb[0].mxu0
      %2709 = vmatprep.mubr.bf16.mxu0 0
      %2710 = vmatmul.mubr.bf16.gmra.mrb[0].mxu0 %v2586
      %v2711 = vpop.f32.mrb[0].mxu0
      %v2712 = vadd.f32 0.0, %v2711
      %v2713 = vpop.f32.mrb[0].mxu0
      %v2714 = vpop.f32.mrb[0].mxu0
      %v2715 = vadd.f32 0.0, %v2714
      %v2716 = vpop.f32.mrb[0].mxu0
      %2717 = vmatprep.mubr.bf16.mxu0 0
      %2718 = vmatmul.mubr.bf16.gmra.mrb[0].mxu0 %v2589
      %v2719 = vpop.f32.mrb[0].mxu0
      %v2720 = vadd.f32 0.0, %v2719
      %v2721 = vpop.f32.mrb[0].mxu0
      %v2722 = vpop.f32.mrb[0].mxu0
      %v2723 = vadd.f32 0.0, %v2722
      %v2724 = vpop.f32.mrb[0].mxu0
      %2725 = vmatprep.mubr.bf16.mxu0 0
      %2726 = vmatmul.mubr.bf16.gmra.mrb[0].mxu0 %v2592
      %v2727 = vpop.f32.mrb[0].mxu0
      %v2728 = vadd.f32 0.0, %v2727
      %v2729 = vpop.f32.mrb[0].mxu0
      %v2730 = vpop.f32.mrb[0].mxu0
      %v2731 = vadd.f32 0.0, %v2730
      %v2732 = vpop.f32.mrb[0].mxu0
      %2733 = vmatprep.mubr.bf16.mxu0 0
      %2734 = vmatmul.mubr.bf16.gmra.mrb[0].mxu0 %v2595
      %v2735 = vpop.f32.mrb[0].mxu0
      %v2736 = vadd.f32 0.0, %v2735
      %v2737 = vpop.f32.mrb[0].mxu0
      %v2738 = vpop.f32.mrb[0].mxu0
      %v2739 = vadd.f32 0.0, %v2738
      %v2740 = vpop.f32.mrb[0].mxu0
      %2741 = vmatprep.mubr.bf16.mxu0 0
      %2742 = vmatmul.mubr.bf16.gmra.mrb[0].mxu0 %v2598
      %v2743 = vpop.f32.mrb[0].mxu0
      %v2744 = vadd.f32 0.0, %v2743
      %v2745 = vpop.f32.mrb[0].mxu0
      %v2746 = vpop.f32.mrb[0].mxu0
      %v2747 = vadd.f32 0.0, %v2746
      %v2748 = vpop.f32.mrb[0].mxu0
      %2749 = vmatprep.mubr.bf16.mxu0 0
      %2750 = vmatmul.mubr.bf16.gmra.mrb[0].mxu0 %v2601
      %v2751 = vpop.f32.mrb[0].mxu0
      %v2752 = vadd.f32 0.0, %v2751
      %v2753 = vpop.f32.mrb[0].mxu0
      %v2754 = vpop.f32.mrb[0].mxu0
      %v2755 = vadd.f32 0.0, %v2754
      %v2756 = vpop.f32.mrb[0].mxu0
      %2757 = vmatprep.mubr.bf16.mxu0 0
      %2758 = vmatmul.mubr.bf16.gmra.mrb[0].mxu0 %v2604
      %v2759 = vpop.f32.mrb[0].mxu0
      %v2760 = vadd.f32 0.0, %v2759
      %v2761 = vpop.f32.mrb[0].mxu0
      %v2762 = vpop.f32.mrb[0].mxu0
      %v2763 = vadd.f32 0.0, %v2762
      %v2764 = vpop.f32.mrb[0].mxu0
      %2765 = vmatprep.mubr.bf16.mxu0 0
      %2766 = vmatmul.mubr.bf16.gmra.mrb[0].mxu0 %v2607
      %v2767 = vpop.f32.mrb[0].mxu0
      %v2768 = vadd.f32 0.0, %v2767
      %v2769 = vpop.f32.mrb[0].mxu0
      %v2770 = vpop.f32.mrb[0].mxu0
      %v2771 = vadd.f32 0.0, %v2770
      %v2772 = vpop.f32.mrb[0].mxu0
      %2773 = vmatprep.mubr.bf16.mxu0 0
      %2774 = vmatmul.mubr.bf16.gmra.mrb[0].mxu0 %v2610
      %v2775 = vpop.f32.mrb[0].mxu0
      %v2776 = vadd.f32 0.0, %v2775
      %v2777 = vpop.f32.mrb[0].mxu0
      %v2778 = vpop.f32.mrb[0].mxu0
      %v2779 = vadd.f32 0.0, %v2778
      %v2780 = vpop.f32.mrb[0].mxu0
      %2781 = vmatprep.mubr.bf16.mxu0 0
      %2782 = vmatmul.mubr.bf16.gmra.mrb[0].mxu0 %v2613
      %v2783 = vpop.f32.mrb[0].mxu0
      %v2784 = vadd.f32 0.0, %v2783
      %v2785 = vpop.f32.mrb[0].mxu0
      %v2786 = vpop.f32.mrb[0].mxu0
      %v2787 = vadd.f32 0.0, %v2786
      %v2788 = vpop.f32.mrb[0].mxu0
      %2789 = vmatprep.mubr.bf16.mxu0 0
      %2790 = vmatmul.mubr.bf16.gmra.mrb[0].mxu0 %v2616
      %v2791 = vpop.f32.mrb[0].mxu0
      %v2792 = vadd.f32 0.0, %v2791
      %v2793 = vpop.f32.mrb[0].mxu0
      %v2794 = vpop.f32.mrb[0].mxu0
      %v2795 = vadd.f32 0.0, %v2794
      %v2796 = vpop.f32.mrb[0].mxu0
      %2797 = vdwg.mxu0
      %v2798 = vadd.f32 %v2247, %v2656
      %v2799 = vadd.f32 %v2248, %v2659
      %v2800 = vadd.f32 %v2249, %v2664
      %v2801 = vadd.f32 %v2250, %v2667
      %v2802 = vadd.f32 %v2251, %v2672
      %v2803 = vadd.f32 %v2252, %v2675
      %v2804 = vadd.f32 %v2253, %v2680
      %v2805 = vadd.f32 %v2254, %v2683
      %v2806 = vadd.f32 %v2255, %v2688
      %v2807 = vadd.f32 %v2256, %v2691
      %v2808 = vadd.f32 %v2257, %v2696
      %v2809 = vadd.f32 %v2258, %v2699
      %v2810 = vadd.f32 %v2259, %v2704
      %v2811 = vadd.f32 %v2260, %v2707
      %v2812 = vadd.f32 %v2261, %v2712
      %v2813 = vadd.f32 %v2262, %v2715
      %v2814 = vadd.f32 %v2263, %v2720
      %v2815 = vadd.f32 %v2264, %v2723
      %v2816 = vadd.f32 %v2265, %v2728
      %v2817 = vadd.f32 %v2266, %v2731
      %v2818 = vadd.f32 %v2267, %v2736
      %v2819 = vadd.f32 %v2268, %v2739
      %v2820 = vadd.f32 %v2269, %v2744
      %v2821 = vadd.f32 %v2270, %v2747
      %v2822 = vadd.f32 %v2271, %v2752
      %v2823 = vadd.f32 %v2272, %v2755
      %v2824 = vadd.f32 %v2273, %v2760
      %v2825 = vadd.f32 %v2274, %v2763
      %v2826 = vadd.f32 %v2275, %v2768
      %v2827 = vadd.f32 %v2276, %v2771
      %v2828 = vadd.f32 %v2277, %v2776
      %v2829 = vadd.f32 %v2278, %v2779
      %v2830 = vadd.f32 %v2279, %v2784
      %v2831 = vadd.f32 %v2280, %v2787
      %v2832 = vadd.f32 %v2281, %v2792
      %v2833 = vadd.f32 %v2282, %v2795
      %v2834 = vld [vmem:[%s230 + $0x18] sm:$0xf]
      %v2835 = vld [vmem:[%s230 + $0x1c] sm:$0xf]
      %v2836 = vld [vmem:[%s230 + $0x20] sm:$0xf]
      %v2837 = vld [vmem:[%s230 + $0x24] sm:$0xf]
      %v2838 = vld [vmem:[%s230 + $0x28] sm:$0xf]
      %v2839 = vld [vmem:[%s230 + $0x2c] sm:$0xf]
      %v2840 = vld [vmem:[%s230 + $0x30] sm:$0xf]
      %v2841 = vld [vmem:[%s230 + $0x34] sm:$0xf]
      %v2842 = vld [vmem:[%s230 + $0x38] sm:$0xf]
      %v2843 = vld [vmem:[%s230 + $0x3c] sm:$0xf]
      %v2844 = vld [vmem:[%s230 + $0x40] sm:$0xf]
      %v2845 = vld [vmem:[%s230 + $0x44] sm:$0xf]
      %v2846 = vld [vmem:[%s230 + $0x48] sm:$0xf]
      %v2847 = vld [vmem:[%s230 + $0x4c] sm:$0xf]
      %v2848 = vld [vmem:[%s230 + $0x50] sm:$0xf]
      %v2849 = vld [vmem:[%s230 + $0x54] sm:$0xf]
      %v2850 = vld [vmem:[%s230 + $0x58] sm:$0xf]
      %v2851 = vld [vmem:[%s230 + $0x5c] sm:$0xf]
      %v2852 = vld [vmem:[%s230 + $0x60] sm:$0xf]
      %v2853 = vld [vmem:[%s230 + $0x64] sm:$0xf]
      %v2854 = vld [vmem:[%s230 + $0x68] sm:$0xf]
      %v2855 = vld [vmem:[%s230 + $0x6c] sm:$0xf]
      %v2856 = vld [vmem:[%s230 + $0x70] sm:$0xf]
      %v2857 = vld [vmem:[%s230 + $0x74] sm:$0xf]
      %v2858 = vld [vmem:[%s230 + $0x78] sm:$0xf]
      %v2859 = vld [vmem:[%s230 + $0x7c] sm:$0xf]
      %v2860 = vld [vmem:[%s230 + $0x80] sm:$0xf]
      %v2861 = vld [vmem:[%s230 + $0x84] sm:$0xf]
      %v2862 = vld [vmem:[%s230 + $0x88] sm:$0xf]
      %v2863 = vld [vmem:[%s230 + $0x8c] sm:$0xf]
      %v2864 = vld [vmem:[%s230 + $0x90] sm:$0xf]
      %v2865 = vld [vmem:[%s230 + $0x94] sm:$0xf]
      %v2866 = vld [vmem:[%s230 + $0x98] sm:$0xf]
      %v2867 = vld [vmem:[%s230 + $0x9c] sm:$0xf]
      %v2868 = vld [vmem:[%s230 + $0xa0] sm:$0xf]
      %v2869 = vld [vmem:[%s230 + $0xa4] sm:$0xf]
      %v2870 = vld [vmem:[%s230 + $0xa8] sm:$0x1]
      %s2871 = scalar_lea.vmem %s1, 12
      %v2872 = vld [vmem:[%s2871] sm:$0x3]
      %v2910 = vunpack.c.l.b16 %v2834
      %v2911 = vunpack.c.l.b16 %v2835
      %v2912 = vunpack.c.l.b16 %v2836
      %v2913 = vunpack.c.l.b16 %v2837
      %v2914 = vunpack.c.l.b16 %v2838
      %v2915 = vunpack.c.l.b16 %v2839
      %v2916 = vunpack.c.l.b16 %v2840
      %v2917 = vunpack.c.l.b16 %v2841
      %v2918 = vunpack.c.l.b16 %v2842
      %v2919 = vunpack.c.l.b16 %v2843
      %v2920 = vunpack.c.l.b16 %v2844
      %v2921 = vunpack.c.l.b16 %v2845
      %v2922 = vunpack.c.l.b16 %v2846
      %v2923 = vunpack.c.l.b16 %v2847
      %v2924 = vunpack.c.l.b16 %v2848
      %v2925 = vunpack.c.l.b16 %v2849
      %v2926 = vunpack.c.l.b16 %v2850
      %v2927 = vunpack.c.l.b16 %v2851
      %v2928 = vunpack.c.l.b16 %v2852
      %v2929 = vunpack.c.l.b16 %v2853
      %v2930 = vunpack.c.l.b16 %v2854
      %v2931 = vunpack.c.l.b16 %v2855
      %v2932 = vunpack.c.l.b16 %v2856
      %v2933 = vunpack.c.l.b16 %v2857
      %v2934 = vunpack.c.l.b16 %v2858
      %v2935 = vunpack.c.l.b16 %v2859
      %v2936 = vunpack.c.l.b16 %v2860
      %v2937 = vunpack.c.l.b16 %v2861
      %v2938 = vunpack.c.l.b16 %v2862
      %v2939 = vunpack.c.l.b16 %v2863
      %v2940 = vunpack.c.l.b16 %v2864
      %v2941 = vunpack.c.l.b16 %v2865
      %v2942 = vunpack.c.l.b16 %v2866
      %v2943 = vunpack.c.l.b16 %v2867
      %v2944 = vunpack.c.l.b16 %v2868
      %v2945 = vunpack.c.l.b16 %v2869
      %v2946 = vunpack.c.l.b16 %v2870
      %v2947 = vpack.c.b16 %v2911, %v2910
      %v2948 = vpack.c.b16 %v2913, %v2912
      %v2949 = vpack.c.b16 %v2915, %v2914
      %v2950 = vpack.c.b16 %v2917, %v2916
      %v2951 = vpack.c.b16 %v2919, %v2918
      %v2952 = vpack.c.b16 %v2921, %v2920
      %v2953 = vpack.c.b16 %v2923, %v2922
      %v2954 = vpack.c.b16 %v2925, %v2924
      %v2955 = vpack.c.b16 %v2927, %v2926
      %v2956 = vpack.c.b16 %v2929, %v2928
      %v2957 = vpack.c.b16 %v2931, %v2930
      %v2958 = vpack.c.b16 %v2933, %v2932
      %v2959 = vpack.c.b16 %v2935, %v2934
      %v2960 = vpack.c.b16 %v2937, %v2936
      %v2961 = vpack.c.b16 %v2939, %v2938
      %v2962 = vpack.c.b16 %v2941, %v2940
      %v2963 = vpack.c.b16 %v2943, %v2942
      %v2964 = vpack.c.b16 %v2945, %v2944
      %v2965 = vpack.c.b16 %v2946, %v2946
      %v2967 = vshrl.u32 %v2947, 16
      %v2969 = vshll.u32 %v2947, 16
      %v2971 = vrot.slane %v2969, 1
      %v2972 = vor.u32 %v2967, %v2971
      %v2974 = vshll.u32 %v2948, 16
      %v2976 = vrot.slane %v2974, 1
      %v2977 = vsel %vm2415, %v2972, %v2976
      %v2978 = vshrl.u32 %v2948, 16
      %v2980 = vor.u32 %v2978, %v2976
      %v2982 = vshll.u32 %v2949, 16
      %v2984 = vrot.slane %v2982, 1
      %v2985 = vsel %vm2415, %v2980, %v2984
      %v2986 = vshrl.u32 %v2949, 16
      %v2988 = vor.u32 %v2986, %v2984
      %v2990 = vshll.u32 %v2950, 16
      %v2992 = vrot.slane %v2990, 1
      %v2993 = vsel %vm2415, %v2988, %v2992
      %v2994 = vshrl.u32 %v2950, 16
      %v2996 = vor.u32 %v2994, %v2992
      %v2998 = vshll.u32 %v2951, 16
      %v3000 = vrot.slane %v2998, 1
      %v3001 = vsel %vm2415, %v2996, %v3000
      %v3002 = vshrl.u32 %v2951, 16
      %v3004 = vor.u32 %v3002, %v3000
      %v3006 = vshll.u32 %v2952, 16
      %v3008 = vrot.slane %v3006, 1
      %v3009 = vsel %vm2415, %v3004, %v3008
      %v3010 = vshrl.u32 %v2952, 16
      %v3012 = vor.u32 %v3010, %v3008
      %v3014 = vshll.u32 %v2953, 16
      %v3016 = vrot.slane %v3014, 1
      %v3017 = vsel %vm2415, %v3012, %v3016
      %v3018 = vshrl.u32 %v2953, 16
      %v3020 = vor.u32 %v3018, %v3016
      %v3022 = vshll.u32 %v2954, 16
      %v3024 = vrot.slane %v3022, 1
      %v3025 = vsel %vm2415, %v3020, %v3024
      %v3026 = vshrl.u32 %v2954, 16
      %v3028 = vor.u32 %v3026, %v3024
      %v3030 = vshll.u32 %v2955, 16
      %v3032 = vrot.slane %v3030, 1
      %v3033 = vsel %vm2415, %v3028, %v3032
      %v3034 = vshrl.u32 %v2955, 16
      %v3036 = vor.u32 %v3034, %v3032
      %v3038 = vshll.u32 %v2956, 16
      %v3040 = vrot.slane %v3038, 1
      %v3041 = vsel %vm2415, %v3036, %v3040
      %v3042 = vshrl.u32 %v2956, 16
      %v3044 = vor.u32 %v3042, %v3040
      %v3046 = vshll.u32 %v2957, 16
      %v3048 = vrot.slane %v3046, 1
      %v3049 = vsel %vm2415, %v3044, %v3048
      %v3050 = vshrl.u32 %v2957, 16
      %v3052 = vor.u32 %v3050, %v3048
      %v3054 = vshll.u32 %v2958, 16
      %v3056 = vrot.slane %v3054, 1
      %v3057 = vsel %vm2415, %v3052, %v3056
      %v3058 = vshrl.u32 %v2958, 16
      %v3060 = vor.u32 %v3058, %v3056
      %v3062 = vshll.u32 %v2959, 16
      %v3064 = vrot.slane %v3062, 1
      %v3065 = vsel %vm2415, %v3060, %v3064
      %v3066 = vshrl.u32 %v2959, 16
      %v3068 = vor.u32 %v3066, %v3064
      %v3070 = vshll.u32 %v2960, 16
      %v3072 = vrot.slane %v3070, 1
      %v3073 = vsel %vm2415, %v3068, %v3072
      %v3074 = vshrl.u32 %v2960, 16
      %v3076 = vor.u32 %v3074, %v3072
      %v3078 = vshll.u32 %v2961, 16
      %v3080 = vrot.slane %v3078, 1
      %v3081 = vsel %vm2415, %v3076, %v3080
      %v3082 = vshrl.u32 %v2961, 16
      %v3084 = vor.u32 %v3082, %v3080
      %v3086 = vshll.u32 %v2962, 16
      %v3088 = vrot.slane %v3086, 1
      %v3089 = vsel %vm2415, %v3084, %v3088
      %v3090 = vshrl.u32 %v2962, 16
      %v3092 = vor.u32 %v3090, %v3088
      %v3094 = vshll.u32 %v2963, 16
      %v3096 = vrot.slane %v3094, 1
      %v3097 = vsel %vm2415, %v3092, %v3096
      %v3098 = vshrl.u32 %v2963, 16
      %v3100 = vor.u32 %v3098, %v3096
      %v3102 = vshll.u32 %v2964, 16
      %v3104 = vrot.slane %v3102, 1
      %v3105 = vsel %vm2415, %v3100, %v3104
      %v3106 = vshrl.u32 %v2964, 16
      %v3108 = vor.u32 %v3106, %v3104
      %v3110 = vshll.u32 %v2965, 16
      %v3112 = vrot.slane %v3110, 1
      %v3113 = vsel %vm2415, %v3108, %v3112
      %v3115 = vsel %vm415, %v2977, 0
      %v3118 = vsel %vm415, %v2985, 0
      %v3121 = vsel %vm415, %v2993, 0
      %v3124 = vsel %vm415, %v3001, 0
      %v3127 = vsel %vm415, %v3009, 0
      %v3130 = vsel %vm415, %v3017, 0
      %v3133 = vsel %vm415, %v3025, 0
      %v3136 = vsel %vm415, %v3033, 0
      %v3139 = vsel %vm415, %v3041, 0
      %v3142 = vsel %vm415, %v3049, 0
      %v3145 = vsel %vm415, %v3057, 0
      %v3148 = vsel %vm415, %v3065, 0
      %v3151 = vsel %vm415, %v3073, 0
      %v3154 = vsel %vm415, %v3081, 0
      %v3157 = vsel %vm415, %v3089, 0
      %v3160 = vsel %vm415, %v3097, 0
      %v3163 = vsel %vm415, %v3105, 0
      %v3166 = vsel %vm415, %v3113, 0
      %v3169 = vsel %vm470, %v2872, 0
      %3171 = vmatprep.subr.bf16.mxu0 0
      %3172 = vmatpush1.bf16.msra.mxu0 %v3169
      %3173 = vmatprep.subr.bf16.mxu0 0
      %3174 = vmatpush1.bf16.msra.mxu0 0
      %3175 = vmatprep.subr.bf16.mxu0 0
      %3176 = vmatpush1.bf16.msra.mxu0 0
      %3177 = vmatprep.subr.bf16.mxu0 0
      %3178 = vmatpush1.bf16.msra.mxu0 0
      %3179 = vmatprep.subr.bf16.mxu0 0
      %3180 = vmatpush1.bf16.msra.mxu0 0
      %3181 = vmatprep.subr.bf16.mxu0 0
      %3182 = vmatpush1.bf16.msra.mxu0 0
      %3183 = vmatprep.subr.bf16.mxu0 0
      %3184 = vmatpush1.bf16.msra.mxu0 0
      %3185 = vmatprep.subr.bf16.mxu0 0
      %3186 = vmatpush1.bf16.msra.mxu0 0
      %3187 = vmatprep.subr.bf16.mxu0 0
      %3188 = vmatpush1.bf16.msra.mxu0 0
      %3189 = vmatprep.subr.bf16.mxu0 0
      %3190 = vmatpush1.bf16.msra.mxu0 0
      %3191 = vmatprep.subr.bf16.mxu0 0
      %3192 = vmatpush1.bf16.msra.mxu0 0
      %3193 = vmatprep.subr.bf16.mxu0 0
      %3194 = vmatpush1.bf16.msra.mxu0 0
      %3195 = vmatprep.subr.bf16.mxu0 0
      %3196 = vmatpush1.bf16.msra.mxu0 0
      %3197 = vmatprep.subr.bf16.mxu0 0
      %3198 = vmatpush1.bf16.msra.mxu0 0
      %3199 = vmatprep.subr.bf16.mxu0 0
      %3200 = vmatpush1.bf16.msra.mxu0 0
      %3201 = vmatprep.subr.bf16.mxu0 0
      %3202 = vmatpush1.bf16.msra.mxu0 0
      %3203 = vmatprep.mubr.bf16.mxu0 0
      %3204 = vmatmul.mubr.bf16.gmra.mrb[0].mxu0 %v3115
      %v3205 = vpop.f32.mrb[0].mxu0
      %v3206 = vadd.f32 0.0, %v3205
      %v3207 = vpop.f32.mrb[0].mxu0
      %v3208 = vpop.f32.mrb[0].mxu0
      %v3209 = vadd.f32 0.0, %v3208
      %v3210 = vpop.f32.mrb[0].mxu0
      %3211 = vmatprep.mubr.bf16.mxu0 0
      %3212 = vmatmul.mubr.bf16.gmra.mrb[0].mxu0 %v3118
      %v3213 = vpop.f32.mrb[0].mxu0
      %v3214 = vadd.f32 0.0, %v3213
      %v3215 = vpop.f32.mrb[0].mxu0
      %v3216 = vpop.f32.mrb[0].mxu0
      %v3217 = vadd.f32 0.0, %v3216
      %v3218 = vpop.f32.mrb[0].mxu0
      %3219 = vmatprep.mubr.bf16.mxu0 0
      %3220 = vmatmul.mubr.bf16.gmra.mrb[0].mxu0 %v3121
      %v3221 = vpop.f32.mrb[0].mxu0
      %v3222 = vadd.f32 0.0, %v3221
      %v3223 = vpop.f32.mrb[0].mxu0
      %v3224 = vpop.f32.mrb[0].mxu0
      %v3225 = vadd.f32 0.0, %v3224
      %v3226 = vpop.f32.mrb[0].mxu0
      %3227 = vmatprep.mubr.bf16.mxu0 0
      %3228 = vmatmul.mubr.bf16.gmra.mrb[0].mxu0 %v3124
      %v3229 = vpop.f32.mrb[0].mxu0
      %v3230 = vadd.f32 0.0, %v3229
      %v3231 = vpop.f32.mrb[0].mxu0
      %v3232 = vpop.f32.mrb[0].mxu0
      %v3233 = vadd.f32 0.0, %v3232
      %v3234 = vpop.f32.mrb[0].mxu0
      %3235 = vmatprep.mubr.bf16.mxu0 0
      %3236 = vmatmul.mubr.bf16.gmra.mrb[0].mxu0 %v3127
      %v3237 = vpop.f32.mrb[0].mxu0
      %v3238 = vadd.f32 0.0, %v3237
      %v3239 = vpop.f32.mrb[0].mxu0
      %v3240 = vpop.f32.mrb[0].mxu0
      %v3241 = vadd.f32 0.0, %v3240
      %v3242 = vpop.f32.mrb[0].mxu0
      %3243 = vmatprep.mubr.bf16.mxu0 0
      %3244 = vmatmul.mubr.bf16.gmra.mrb[0].mxu0 %v3130
      %v3245 = vpop.f32.mrb[0].mxu0
      %v3246 = vadd.f32 0.0, %v3245
      %v3247 = vpop.f32.mrb[0].mxu0
      %v3248 = vpop.f32.mrb[0].mxu0
      %v3249 = vadd.f32 0.0, %v3248
      %v3250 = vpop.f32.mrb[0].mxu0
      %3251 = vmatprep.mubr.bf16.mxu0 0
      %3252 = vmatmul.mubr.bf16.gmra.mrb[0].mxu0 %v3133
      %v3253 = vpop.f32.mrb[0].mxu0
      %v3254 = vadd.f32 0.0, %v3253
      %v3255 = vpop.f32.mrb[0].mxu0
      %v3256 = vpop.f32.mrb[0].mxu0
      %v3257 = vadd.f32 0.0, %v3256
      %v3258 = vpop.f32.mrb[0].mxu0
      %3259 = vmatprep.mubr.bf16.mxu0 0
      %3260 = vmatmul.mubr.bf16.gmra.mrb[0].mxu0 %v3136
      %v3261 = vpop.f32.mrb[0].mxu0
      %v3262 = vadd.f32 0.0, %v3261
      %v3263 = vpop.f32.mrb[0].mxu0
      %v3264 = vpop.f32.mrb[0].mxu0
      %v3265 = vadd.f32 0.0, %v3264
      %v3266 = vpop.f32.mrb[0].mxu0
      %3267 = vmatprep.mubr.bf16.mxu0 0
      %3268 = vmatmul.mubr.bf16.gmra.mrb[0].mxu0 %v3139
      %v3269 = vpop.f32.mrb[0].mxu0
      %v3270 = vadd.f32 0.0, %v3269
      %v3271 = vpop.f32.mrb[0].mxu0
      %v3272 = vpop.f32.mrb[0].mxu0
      %v3273 = vadd.f32 0.0, %v3272
      %v3274 = vpop.f32.mrb[0].mxu0
      %3275 = vmatprep.mubr.bf16.mxu0 0
      %3276 = vmatmul.mubr.bf16.gmra.mrb[0].mxu0 %v3142
      %v3277 = vpop.f32.mrb[0].mxu0
      %v3278 = vadd.f32 0.0, %v3277
      %v3279 = vpop.f32.mrb[0].mxu0
      %v3280 = vpop.f32.mrb[0].mxu0
      %v3281 = vadd.f32 0.0, %v3280
      %v3282 = vpop.f32.mrb[0].mxu0
      %3283 = vmatprep.mubr.bf16.mxu0 0
      %3284 = vmatmul.mubr.bf16.gmra.mrb[0].mxu0 %v3145
      %v3285 = vpop.f32.mrb[0].mxu0
      %v3286 = vadd.f32 0.0, %v3285
      %v3287 = vpop.f32.mrb[0].mxu0
      %v3288 = vpop.f32.mrb[0].mxu0
      %v3289 = vadd.f32 0.0, %v3288
      %v3290 = vpop.f32.mrb[0].mxu0
      %3291 = vmatprep.mubr.bf16.mxu0 0
      %3292 = vmatmul.mubr.bf16.gmra.mrb[0].mxu0 %v3148
      %v3293 = vpop.f32.mrb[0].mxu0
      %v3294 = vadd.f32 0.0, %v3293
      %v3295 = vpop.f32.mrb[0].mxu0
      %v3296 = vpop.f32.mrb[0].mxu0
      %v3297 = vadd.f32 0.0, %v3296
      %v3298 = vpop.f32.mrb[0].mxu0
      %3299 = vmatprep.mubr.bf16.mxu0 0
      %3300 = vmatmul.mubr.bf16.gmra.mrb[0].mxu0 %v3151
      %v3301 = vpop.f32.mrb[0].mxu0
      %v3302 = vadd.f32 0.0, %v3301
      %v3303 = vpop.f32.mrb[0].mxu0
      %v3304 = vpop.f32.mrb[0].mxu0
      %v3305 = vadd.f32 0.0, %v3304
      %v3306 = vpop.f32.mrb[0].mxu0
      %3307 = vmatprep.mubr.bf16.mxu0 0
      %3308 = vmatmul.mubr.bf16.gmra.mrb[0].mxu0 %v3154
      %v3309 = vpop.f32.mrb[0].mxu0
      %v3310 = vadd.f32 0.0, %v3309
      %v3311 = vpop.f32.mrb[0].mxu0
      %v3312 = vpop.f32.mrb[0].mxu0
      %v3313 = vadd.f32 0.0, %v3312
      %v3314 = vpop.f32.mrb[0].mxu0
      %3315 = vmatprep.mubr.bf16.mxu0 0
      %3316 = vmatmul.mubr.bf16.gmra.mrb[0].mxu0 %v3157
      %v3317 = vpop.f32.mrb[0].mxu0
      %v3318 = vadd.f32 0.0, %v3317
      %v3319 = vpop.f32.mrb[0].mxu0
      %v3320 = vpop.f32.mrb[0].mxu0
      %v3321 = vadd.f32 0.0, %v3320
      %v3322 = vpop.f32.mrb[0].mxu0
      %3323 = vmatprep.mubr.bf16.mxu0 0
      %3324 = vmatmul.mubr.bf16.gmra.mrb[0].mxu0 %v3160
      %v3325 = vpop.f32.mrb[0].mxu0
      %v3326 = vadd.f32 0.0, %v3325
      %v3327 = vpop.f32.mrb[0].mxu0
      %v3328 = vpop.f32.mrb[0].mxu0
      %v3329 = vadd.f32 0.0, %v3328
      %v3330 = vpop.f32.mrb[0].mxu0
      %3331 = vmatprep.mubr.bf16.mxu0 0
      %3332 = vmatmul.mubr.bf16.gmra.mrb[0].mxu0 %v3163
      %v3333 = vpop.f32.mrb[0].mxu0
      %v3334 = vadd.f32 0.0, %v3333
      %v3335 = vpop.f32.mrb[0].mxu0
      %v3336 = vpop.f32.mrb[0].mxu0
      %v3337 = vadd.f32 0.0, %v3336
      %v3338 = vpop.f32.mrb[0].mxu0
      %3339 = vmatprep.mubr.bf16.mxu0 0
      %3340 = vmatmul.mubr.bf16.gmra.mrb[0].mxu0 %v3166
      %v3341 = vpop.f32.mrb[0].mxu0
      %v3342 = vadd.f32 0.0, %v3341
      %v3343 = vpop.f32.mrb[0].mxu0
      %v3344 = vpop.f32.mrb[0].mxu0
      %v3345 = vadd.f32 0.0, %v3344
      %v3346 = vpop.f32.mrb[0].mxu0
      %3347 = vdwg.mxu0
      %v3348 = vadd.f32 %v2798, %v3206
      %v3349 = vadd.f32 %v2799, %v3209
      %v3350 = vadd.f32 %v2800, %v3214
      %v3351 = vadd.f32 %v2801, %v3217
      %v3352 = vadd.f32 %v2802, %v3222
      %v3353 = vadd.f32 %v2803, %v3225
      %v3354 = vadd.f32 %v2804, %v3230
      %v3355 = vadd.f32 %v2805, %v3233
      %v3356 = vadd.f32 %v2806, %v3238
      %v3357 = vadd.f32 %v2807, %v3241
      %v3358 = vadd.f32 %v2808, %v3246
      %v3359 = vadd.f32 %v2809, %v3249
      %v3360 = vadd.f32 %v2810, %v3254
      %v3361 = vadd.f32 %v2811, %v3257
      %v3362 = vadd.f32 %v2812, %v3262
      %v3363 = vadd.f32 %v2813, %v3265
      %v3364 = vadd.f32 %v2814, %v3270
      %v3365 = vadd.f32 %v2815, %v3273
      %v3366 = vadd.f32 %v2816, %v3278
      %v3367 = vadd.f32 %v2817, %v3281
      %v3368 = vadd.f32 %v2818, %v3286
      %v3369 = vadd.f32 %v2819, %v3289
      %v3370 = vadd.f32 %v2820, %v3294
      %v3371 = vadd.f32 %v2821, %v3297
      %v3372 = vadd.f32 %v2822, %v3302
      %v3373 = vadd.f32 %v2823, %v3305
      %v3374 = vadd.f32 %v2824, %v3310
      %v3375 = vadd.f32 %v2825, %v3313
      %v3376 = vadd.f32 %v2826, %v3318
      %v3377 = vadd.f32 %v2827, %v3321
      %v3378 = vadd.f32 %v2828, %v3326
      %v3379 = vadd.f32 %v2829, %v3329
      %v3380 = vadd.f32 %v2830, %v3334
      %v3381 = vadd.f32 %v2831, %v3337
      %v3382 = vadd.f32 %v2832, %v3342
      %v3383 = vadd.f32 %v2833, %v3345
      %v3384 = vld [vmem:[%s230 + $0x18] sm:$0xe]
      %s3385 = scalar_lea.vmem %s1, 14
      %v3386 = vld [vmem:[%s3385] sm:$0x3]
      %v3388 = vunpack.c.l.b16 %v3384
      %v3389 = vpack.c.b16 %v2911, %v3388
      %vm3390 = vcmask 1046528
      %v3391 = vrot.slane %v3389, 1
      %v3392 = vrot.slane %v2948, 1
      %v3393 = vsel %vm3390, %v3391, %v3392
      %v3394 = vrot.slane %v2949, 1
      %v3395 = vsel %vm3390, %v3392, %v3394
      %v3396 = vrot.slane %v2950, 1
      %v3397 = vsel %vm3390, %v3394, %v3396
      %v3398 = vrot.slane %v2951, 1
      %v3399 = vsel %vm3390, %v3396, %v3398
      %v3400 = vrot.slane %v2952, 1
      %v3401 = vsel %vm3390, %v3398, %v3400
      %v3402 = vrot.slane %v2953, 1
      %v3403 = vsel %vm3390, %v3400, %v3402
      %v3404 = vrot.slane %v2954, 1
      %v3405 = vsel %vm3390, %v3402, %v3404
      %v3406 = vrot.slane %v2955, 1
      %v3407 = vsel %vm3390, %v3404, %v3406
      %v3408 = vrot.slane %v2956, 1
      %v3409 = vsel %vm3390, %v3406, %v3408
      %v3410 = vrot.slane %v2957, 1
      %v3411 = vsel %vm3390, %v3408, %v3410
      %v3412 = vrot.slane %v2958, 1
      %v3413 = vsel %vm3390, %v3410, %v3412
      %v3414 = vrot.slane %v2959, 1
      %v3415 = vsel %vm3390, %v3412, %v3414
      %v3416 = vrot.slane %v2960, 1
      %v3417 = vsel %vm3390, %v3414, %v3416
      %v3418 = vrot.slane %v2961, 1
      %v3419 = vsel %vm3390, %v3416, %v3418
      %v3420 = vrot.slane %v2962, 1
      %v3421 = vsel %vm3390, %v3418, %v3420
      %v3422 = vrot.slane %v2963, 1
      %v3423 = vsel %vm3390, %v3420, %v3422
      %v3424 = vrot.slane %v2964, 1
      %v3425 = vsel %vm3390, %v3422, %v3424
      %v3426 = vrot.slane %v2965, 1
      %v3427 = vsel %vm3390, %v3424, %v3426
      %v3429 = vsel %vm415, %v3393, 0
      %v3432 = vsel %vm415, %v3395, 0
      %v3435 = vsel %vm415, %v3397, 0
      %v3438 = vsel %vm415, %v3399, 0
      %v3441 = vsel %vm415, %v3401, 0
      %v3444 = vsel %vm415, %v3403, 0
      %v3447 = vsel %vm415, %v3405, 0
      %v3450 = vsel %vm415, %v3407, 0
      %v3453 = vsel %vm415, %v3409, 0
      %v3456 = vsel %vm415, %v3411, 0
      %v3459 = vsel %vm415, %v3413, 0
      %v3462 = vsel %vm415, %v3415, 0
      %v3465 = vsel %vm415, %v3417, 0
      %v3468 = vsel %vm415, %v3419, 0
      %v3471 = vsel %vm415, %v3421, 0
      %v3474 = vsel %vm415, %v3423, 0
      %v3477 = vsel %vm415, %v3425, 0
      %v3480 = vsel %vm415, %v3427, 0
      %v3483 = vsel %vm470, %v3386, 0
      %3485 = vmatprep.subr.bf16.mxu0 0
      %3486 = vmatpush1.bf16.msra.mxu0 %v3483
      %3487 = vmatprep.subr.bf16.mxu0 0
      %3488 = vmatpush1.bf16.msra.mxu0 0
      %3489 = vmatprep.subr.bf16.mxu0 0
      %3490 = vmatpush1.bf16.msra.mxu0 0
      %3491 = vmatprep.subr.bf16.mxu0 0
      %3492 = vmatpush1.bf16.msra.mxu0 0
      %3493 = vmatprep.subr.bf16.mxu0 0
      %3494 = vmatpush1.bf16.msra.mxu0 0
      %3495 = vmatprep.subr.bf16.mxu0 0
      %3496 = vmatpush1.bf16.msra.mxu0 0
      %3497 = vmatprep.subr.bf16.mxu0 0
      %3498 = vmatpush1.bf16.msra.mxu0 0
      %3499 = vmatprep.subr.bf16.mxu0 0
      %3500 = vmatpush1.bf16.msra.mxu0 0
      %3501 = vmatprep.subr.bf16.mxu0 0
      %3502 = vmatpush1.bf16.msra.mxu0 0
      %3503 = vmatprep.subr.bf16.mxu0 0
      %3504 = vmatpush1.bf16.msra.mxu0 0
      %3505 = vmatprep.subr.bf16.mxu0 0
      %3506 = vmatpush1.bf16.msra.mxu0 0
      %3507 = vmatprep.subr.bf16.mxu0 0
      %3508 = vmatpush1.bf16.msra.mxu0 0
      %3509 = vmatprep.subr.bf16.mxu0 0
      %3510 = vmatpush1.bf16.msra.mxu0 0
      %3511 = vmatprep.subr.bf16.mxu0 0
      %3512 = vmatpush1.bf16.msra.mxu0 0
      %3513 = vmatprep.subr.bf16.mxu0 0
      %3514 = vmatpush1.bf16.msra.mxu0 0
      %3515 = vmatprep.subr.bf16.mxu0 0
      %3516 = vmatpush1.bf16.msra.mxu0 0
      %3517 = vmatprep.mubr.bf16.mxu0 0
      %3518 = vmatmul.mubr.bf16.gmra.mrb[0].mxu0 %v3429
      %v3519 = vpop.f32.mrb[0].mxu0
      %v3520 = vadd.f32 0.0, %v3519
      %v3521 = vpop.f32.mrb[0].mxu0
      %v3522 = vpop.f32.mrb[0].mxu0
      %v3523 = vadd.f32 0.0, %v3522
      %v3524 = vpop.f32.mrb[0].mxu0
      %3525 = vmatprep.mubr.bf16.mxu0 0
      %3526 = vmatmul.mubr.bf16.gmra.mrb[0].mxu0 %v3432
      %v3527 = vpop.f32.mrb[0].mxu0
      %v3528 = vadd.f32 0.0, %v3527
      %v3529 = vpop.f32.mrb[0].mxu0
      %v3530 = vpop.f32.mrb[0].mxu0
      %v3531 = vadd.f32 0.0, %v3530
      %v3532 = vpop.f32.mrb[0].mxu0
      %3533 = vmatprep.mubr.bf16.mxu0 0
      %3534 = vmatmul.mubr.bf16.gmra.mrb[0].mxu0 %v3435
      %v3535 = vpop.f32.mrb[0].mxu0
      %v3536 = vadd.f32 0.0, %v3535
      %v3537 = vpop.f32.mrb[0].mxu0
      %v3538 = vpop.f32.mrb[0].mxu0
      %v3539 = vadd.f32 0.0, %v3538
      %v3540 = vpop.f32.mrb[0].mxu0
      %3541 = vmatprep.mubr.bf16.mxu0 0
      %3542 = vmatmul.mubr.bf16.gmra.mrb[0].mxu0 %v3438
      %v3543 = vpop.f32.mrb[0].mxu0
      %v3544 = vadd.f32 0.0, %v3543
      %v3545 = vpop.f32.mrb[0].mxu0
      %v3546 = vpop.f32.mrb[0].mxu0
      %v3547 = vadd.f32 0.0, %v3546
      %v3548 = vpop.f32.mrb[0].mxu0
      %3549 = vmatprep.mubr.bf16.mxu0 0
      %3550 = vmatmul.mubr.bf16.gmra.mrb[0].mxu0 %v3441
      %v3551 = vpop.f32.mrb[0].mxu0
      %v3552 = vadd.f32 0.0, %v3551
      %v3553 = vpop.f32.mrb[0].mxu0
      %v3554 = vpop.f32.mrb[0].mxu0
      %v3555 = vadd.f32 0.0, %v3554
      %v3556 = vpop.f32.mrb[0].mxu0
      %3557 = vmatprep.mubr.bf16.mxu0 0
      %3558 = vmatmul.mubr.bf16.gmra.mrb[0].mxu0 %v3444
      %v3559 = vpop.f32.mrb[0].mxu0
      %v3560 = vadd.f32 0.0, %v3559
      %v3561 = vpop.f32.mrb[0].mxu0
      %v3562 = vpop.f32.mrb[0].mxu0
      %v3563 = vadd.f32 0.0, %v3562
      %v3564 = vpop.f32.mrb[0].mxu0
      %3565 = vmatprep.mubr.bf16.mxu0 0
      %3566 = vmatmul.mubr.bf16.gmra.mrb[0].mxu0 %v3447
      %v3567 = vpop.f32.mrb[0].mxu0
      %v3568 = vadd.f32 0.0, %v3567
      %v3569 = vpop.f32.mrb[0].mxu0
      %v3570 = vpop.f32.mrb[0].mxu0
      %v3571 = vadd.f32 0.0, %v3570
      %v3572 = vpop.f32.mrb[0].mxu0
      %3573 = vmatprep.mubr.bf16.mxu0 0
      %3574 = vmatmul.mubr.bf16.gmra.mrb[0].mxu0 %v3450
      %v3575 = vpop.f32.mrb[0].mxu0
      %v3576 = vadd.f32 0.0, %v3575
      %v3577 = vpop.f32.mrb[0].mxu0
      %v3578 = vpop.f32.mrb[0].mxu0
      %v3579 = vadd.f32 0.0, %v3578
      %v3580 = vpop.f32.mrb[0].mxu0
      %3581 = vmatprep.mubr.bf16.mxu0 0
      %3582 = vmatmul.mubr.bf16.gmra.mrb[0].mxu0 %v3453
      %v3583 = vpop.f32.mrb[0].mxu0
      %v3584 = vadd.f32 0.0, %v3583
      %v3585 = vpop.f32.mrb[0].mxu0
      %v3586 = vpop.f32.mrb[0].mxu0
      %v3587 = vadd.f32 0.0, %v3586
      %v3588 = vpop.f32.mrb[0].mxu0
      %3589 = vmatprep.mubr.bf16.mxu0 0
      %3590 = vmatmul.mubr.bf16.gmra.mrb[0].mxu0 %v3456
      %v3591 = vpop.f32.mrb[0].mxu0
      %v3592 = vadd.f32 0.0, %v3591
      %v3593 = vpop.f32.mrb[0].mxu0
      %v3594 = vpop.f32.mrb[0].mxu0
      %v3595 = vadd.f32 0.0, %v3594
      %v3596 = vpop.f32.mrb[0].mxu0
      %3597 = vmatprep.mubr.bf16.mxu0 0
      %3598 = vmatmul.mubr.bf16.gmra.mrb[0].mxu0 %v3459
      %v3599 = vpop.f32.mrb[0].mxu0
      %v3600 = vadd.f32 0.0, %v3599
      %v3601 = vpop.f32.mrb[0].mxu0
      %v3602 = vpop.f32.mrb[0].mxu0
      %v3603 = vadd.f32 0.0, %v3602
      %v3604 = vpop.f32.mrb[0].mxu0
      %3605 = vmatprep.mubr.bf16.mxu0 0
      %3606 = vmatmul.mubr.bf16.gmra.mrb[0].mxu0 %v3462
      %v3607 = vpop.f32.mrb[0].mxu0
      %v3608 = vadd.f32 0.0, %v3607
      %v3609 = vpop.f32.mrb[0].mxu0
      %v3610 = vpop.f32.mrb[0].mxu0
      %v3611 = vadd.f32 0.0, %v3610
      %v3612 = vpop.f32.mrb[0].mxu0
      %3613 = vmatprep.mubr.bf16.mxu0 0
      %3614 = vmatmul.mubr.bf16.gmra.mrb[0].mxu0 %v3465
      %v3615 = vpop.f32.mrb[0].mxu0
      %v3616 = vadd.f32 0.0, %v3615
      %v3617 = vpop.f32.mrb[0].mxu0
      %v3618 = vpop.f32.mrb[0].mxu0
      %v3619 = vadd.f32 0.0, %v3618
      %v3620 = vpop.f32.mrb[0].mxu0
      %3621 = vmatprep.mubr.bf16.mxu0 0
      %3622 = vmatmul.mubr.bf16.gmra.mrb[0].mxu0 %v3468
      %v3623 = vpop.f32.mrb[0].mxu0
      %v3624 = vadd.f32 0.0, %v3623
      %v3625 = vpop.f32.mrb[0].mxu0
      %v3626 = vpop.f32.mrb[0].mxu0
      %v3627 = vadd.f32 0.0, %v3626
      %v3628 = vpop.f32.mrb[0].mxu0
      %3629 = vmatprep.mubr.bf16.mxu0 0
      %3630 = vmatmul.mubr.bf16.gmra.mrb[0].mxu0 %v3471
      %v3631 = vpop.f32.mrb[0].mxu0
      %v3632 = vadd.f32 0.0, %v3631
      %v3633 = vpop.f32.mrb[0].mxu0
      %v3634 = vpop.f32.mrb[0].mxu0
      %v3635 = vadd.f32 0.0, %v3634
      %v3636 = vpop.f32.mrb[0].mxu0
      %3637 = vmatprep.mubr.bf16.mxu0 0
      %3638 = vmatmul.mubr.bf16.gmra.mrb[0].mxu0 %v3474
      %v3639 = vpop.f32.mrb[0].mxu0
      %v3640 = vadd.f32 0.0, %v3639
      %v3641 = vpop.f32.mrb[0].mxu0
      %v3642 = vpop.f32.mrb[0].mxu0
      %v3643 = vadd.f32 0.0, %v3642
      %v3644 = vpop.f32.mrb[0].mxu0
      %3645 = vmatprep.mubr.bf16.mxu0 0
      %3646 = vmatmul.mubr.bf16.gmra.mrb[0].mxu0 %v3477
      %v3647 = vpop.f32.mrb[0].mxu0
      %v3648 = vadd.f32 0.0, %v3647
      %v3649 = vpop.f32.mrb[0].mxu0
      %v3650 = vpop.f32.mrb[0].mxu0
      %v3651 = vadd.f32 0.0, %v3650
      %v3652 = vpop.f32.mrb[0].mxu0
      %3653 = vmatprep.mubr.bf16.mxu0 0
      %3654 = vmatmul.mubr.bf16.gmra.mrb[0].mxu0 %v3480
      %v3655 = vpop.f32.mrb[0].mxu0
      %v3656 = vadd.f32 0.0, %v3655
      %v3657 = vpop.f32.mrb[0].mxu0
      %v3658 = vpop.f32.mrb[0].mxu0
      %v3659 = vadd.f32 0.0, %v3658
      %v3660 = vpop.f32.mrb[0].mxu0
      %3661 = vdwg.mxu0
      %v3662 = vadd.f32 %v3348, %v3520
      %v3663 = vadd.f32 %v3349, %v3523
      %v3664 = vadd.f32 %v3350, %v3528
      %v3665 = vadd.f32 %v3351, %v3531
      %v3666 = vadd.f32 %v3352, %v3536
      %v3667 = vadd.f32 %v3353, %v3539
      %v3668 = vadd.f32 %v3354, %v3544
      %v3669 = vadd.f32 %v3355, %v3547
      %v3670 = vadd.f32 %v3356, %v3552
      %v3671 = vadd.f32 %v3357, %v3555
      %v3672 = vadd.f32 %v3358, %v3560
      %v3673 = vadd.f32 %v3359, %v3563
      %v3674 = vadd.f32 %v3360, %v3568
      %v3675 = vadd.f32 %v3361, %v3571
      %v3676 = vadd.f32 %v3362, %v3576
      %v3677 = vadd.f32 %v3363, %v3579
      %v3678 = vadd.f32 %v3364, %v3584
      %v3679 = vadd.f32 %v3365, %v3587
      %v3680 = vadd.f32 %v3366, %v3592
      %v3681 = vadd.f32 %v3367, %v3595
      %v3682 = vadd.f32 %v3368, %v3600
      %v3683 = vadd.f32 %v3369, %v3603
      %v3684 = vadd.f32 %v3370, %v3608
      %v3685 = vadd.f32 %v3371, %v3611
      %v3686 = vadd.f32 %v3372, %v3616
      %v3687 = vadd.f32 %v3373, %v3619
      %v3688 = vadd.f32 %v3374, %v3624
      %v3689 = vadd.f32 %v3375, %v3627
      %v3690 = vadd.f32 %v3376, %v3632
      %v3691 = vadd.f32 %v3377, %v3635
      %v3692 = vadd.f32 %v3378, %v3640
      %v3693 = vadd.f32 %v3379, %v3643
      %v3694 = vadd.f32 %v3380, %v3648
      %v3695 = vadd.f32 %v3381, %v3651
      %v3696 = vadd.f32 %v3382, %v3656
      %v3697 = vadd.f32 %v3383, %v3659
      %v3698 = vld [vmem:[%s230 + $0xa8] sm:$0x3]
      %s3699 = scalar_lea.vmem %s1, 16
      %v3700 = vld [vmem:[%s3699] sm:$0x3]
      %v3702 = vunpack.c.l.b16 %v3698
      %v3703 = vpack.c.b16 %v3702, %v3702
      %vm3704 = vsmask.f32 6400
      %v3706 = vshrl.u32 %v3389, 16
      %v3708 = vrot.slane %v3706, 1
      %v3709 = vshll.u32 %v3389, 16
      %v3711 = vrot.slane %v3709, 2
      %v3712 = vor.u32 %v3708, %v3711
      %v3713 = vrot.slane %v2978, 1
      %v3714 = vrot.slane %v2974, 2
      %v3715 = vor.u32 %v3713, %v3714
      %v3716 = vsel %vm3704, %v3712, %v3715
      %v3717 = vrot.slane %v2986, 1
      %v3718 = vrot.slane %v2982, 2
      %v3719 = vor.u32 %v3717, %v3718
      %v3720 = vsel %vm3704, %v3715, %v3719
      %v3721 = vrot.slane %v2994, 1
      %v3722 = vrot.slane %v2990, 2
      %v3723 = vor.u32 %v3721, %v3722
      %v3724 = vsel %vm3704, %v3719, %v3723
      %v3725 = vrot.slane %v3002, 1
      %v3726 = vrot.slane %v2998, 2
      %v3727 = vor.u32 %v3725, %v3726
      %v3728 = vsel %vm3704, %v3723, %v3727
      %v3729 = vrot.slane %v3010, 1
      %v3730 = vrot.slane %v3006, 2
      %v3731 = vor.u32 %v3729, %v3730
      %v3732 = vsel %vm3704, %v3727, %v3731
      %v3733 = vrot.slane %v3018, 1
      %v3734 = vrot.slane %v3014, 2
      %v3735 = vor.u32 %v3733, %v3734
      %v3736 = vsel %vm3704, %v3731, %v3735
      %v3737 = vrot.slane %v3026, 1
      %v3738 = vrot.slane %v3022, 2
      %v3739 = vor.u32 %v3737, %v3738
      %v3740 = vsel %vm3704, %v3735, %v3739
      %v3741 = vrot.slane %v3034, 1
      %v3742 = vrot.slane %v3030, 2
      %v3743 = vor.u32 %v3741, %v3742
      %v3744 = vsel %vm3704, %v3739, %v3743
      %v3745 = vrot.slane %v3042, 1
      %v3746 = vrot.slane %v3038, 2
      %v3747 = vor.u32 %v3745, %v3746
      %v3748 = vsel %vm3704, %v3743, %v3747
      %v3749 = vrot.slane %v3050, 1
      %v3750 = vrot.slane %v3046, 2
      %v3751 = vor.u32 %v3749, %v3750
      %v3752 = vsel %vm3704, %v3747, %v3751
      %v3753 = vrot.slane %v3058, 1
      %v3754 = vrot.slane %v3054, 2
      %v3755 = vor.u32 %v3753, %v3754
      %v3756 = vsel %vm3704, %v3751, %v3755
      %v3757 = vrot.slane %v3066, 1
      %v3758 = vrot.slane %v3062, 2
      %v3759 = vor.u32 %v3757, %v3758
      %v3760 = vsel %vm3704, %v3755, %v3759
      %v3761 = vrot.slane %v3074, 1
      %v3762 = vrot.slane %v3070, 2
      %v3763 = vor.u32 %v3761, %v3762
      %v3764 = vsel %vm3704, %v3759, %v3763
      %v3765 = vrot.slane %v3082, 1
      %v3766 = vrot.slane %v3078, 2
      %v3767 = vor.u32 %v3765, %v3766
      %v3768 = vsel %vm3704, %v3763, %v3767
      %v3769 = vrot.slane %v3090, 1
      %v3770 = vrot.slane %v3086, 2
      %v3771 = vor.u32 %v3769, %v3770
      %v3772 = vsel %vm3704, %v3767, %v3771
      %v3773 = vrot.slane %v3098, 1
      %v3774 = vrot.slane %v3094, 2
      %v3775 = vor.u32 %v3773, %v3774
      %v3776 = vsel %vm3704, %v3771, %v3775
      %v3777 = vrot.slane %v3106, 1
      %v3778 = vrot.slane %v3102, 2
      %v3779 = vor.u32 %v3777, %v3778
      %v3780 = vsel %vm3704, %v3775, %v3779
      %v3782 = vshrl.u32 %v3703, 16
      %v3784 = vrot.slane %v3782, 1
      %v3785 = vshll.u32 %v3703, 16
      %v3787 = vrot.slane %v3785, 2
      %v3788 = vor.u32 %v3784, %v3787
      %v3789 = vsel %vm3704, %v3779, %v3788
      %v3791 = vsel %vm415, %v3716, 0
      %v3794 = vsel %vm415, %v3720, 0
      %v3797 = vsel %vm415, %v3724, 0
      %v3800 = vsel %vm415, %v3728, 0
      %v3803 = vsel %vm415, %v3732, 0
      %v3806 = vsel %vm415, %v3736, 0
      %v3809 = vsel %vm415, %v3740, 0
      %v3812 = vsel %vm415, %v3744, 0
      %v3815 = vsel %vm415, %v3748, 0
      %v3818 = vsel %vm415, %v3752, 0
      %v3821 = vsel %vm415, %v3756, 0
      %v3824 = vsel %vm415, %v3760, 0
      %v3827 = vsel %vm415, %v3764, 0
      %v3830 = vsel %vm415, %v3768, 0
      %v3833 = vsel %vm415, %v3772, 0
      %v3836 = vsel %vm415, %v3776, 0
      %v3839 = vsel %vm415, %v3780, 0
      %v3842 = vsel %vm415, %v3789, 0
      %v3845 = vsel %vm470, %v3700, 0
      %3847 = vmatprep.subr.bf16.mxu0 0
      %3848 = vmatpush1.bf16.msra.mxu0 %v3845
      %3849 = vmatprep.subr.bf16.mxu0 0
      %3850 = vmatpush1.bf16.msra.mxu0 0
      %3851 = vmatprep.subr.bf16.mxu0 0
      %3852 = vmatpush1.bf16.msra.mxu0 0
      %3853 = vmatprep.subr.bf16.mxu0 0
      %3854 = vmatpush1.bf16.msra.mxu0 0
      %3855 = vmatprep.subr.bf16.mxu0 0
      %3856 = vmatpush1.bf16.msra.mxu0 0
      %3857 = vmatprep.subr.bf16.mxu0 0
      %3858 = vmatpush1.bf16.msra.mxu0 0
      %3859 = vmatprep.subr.bf16.mxu0 0
      %3860 = vmatpush1.bf16.msra.mxu0 0
      %3861 = vmatprep.subr.bf16.mxu0 0
      %3862 = vmatpush1.bf16.msra.mxu0 0
      %3863 = vmatprep.subr.bf16.mxu0 0
      %3864 = vmatpush1.bf16.msra.mxu0 0
      %3865 = vmatprep.subr.bf16.mxu0 0
      %3866 = vmatpush1.bf16.msra.mxu0 0
      %3867 = vmatprep.subr.bf16.mxu0 0
      %3868 = vmatpush1.bf16.msra.mxu0 0
      %3869 = vmatprep.subr.bf16.mxu0 0
      %3870 = vmatpush1.bf16.msra.mxu0 0
      %3871 = vmatprep.subr.bf16.mxu0 0
      %3872 = vmatpush1.bf16.msra.mxu0 0
      %3873 = vmatprep.subr.bf16.mxu0 0
      %3874 = vmatpush1.bf16.msra.mxu0 0
      %3875 = vmatprep.subr.bf16.mxu0 0
      %3876 = vmatpush1.bf16.msra.mxu0 0
      %3877 = vmatprep.subr.bf16.mxu0 0
      %3878 = vmatpush1.bf16.msra.mxu0 0
      %3879 = vmatprep.mubr.bf16.mxu0 0
      %3880 = vmatmul.mubr.bf16.gmra.mrb[0].mxu0 %v3791
      %v3881 = vpop.f32.mrb[0].mxu0
      %v3882 = vadd.f32 0.0, %v3881
      %v3883 = vpop.f32.mrb[0].mxu0
      %v3884 = vpop.f32.mrb[0].mxu0
      %v3885 = vadd.f32 0.0, %v3884
      %v3886 = vpop.f32.mrb[0].mxu0
      %3887 = vmatprep.mubr.bf16.mxu0 0
      %3888 = vmatmul.mubr.bf16.gmra.mrb[0].mxu0 %v3794
      %v3889 = vpop.f32.mrb[0].mxu0
      %v3890 = vadd.f32 0.0, %v3889
      %v3891 = vpop.f32.mrb[0].mxu0
      %v3892 = vpop.f32.mrb[0].mxu0
      %v3893 = vadd.f32 0.0, %v3892
      %v3894 = vpop.f32.mrb[0].mxu0
      %3895 = vmatprep.mubr.bf16.mxu0 0
      %3896 = vmatmul.mubr.bf16.gmra.mrb[0].mxu0 %v3797
      %v3897 = vpop.f32.mrb[0].mxu0
      %v3898 = vadd.f32 0.0, %v3897
      %v3899 = vpop.f32.mrb[0].mxu0
      %v3900 = vpop.f32.mrb[0].mxu0
      %v3901 = vadd.f32 0.0, %v3900
      %v3902 = vpop.f32.mrb[0].mxu0
      %3903 = vmatprep.mubr.bf16.mxu0 0
      %3904 = vmatmul.mubr.bf16.gmra.mrb[0].mxu0 %v3800
      %v3905 = vpop.f32.mrb[0].mxu0
      %v3906 = vadd.f32 0.0, %v3905
      %v3907 = vpop.f32.mrb[0].mxu0
      %v3908 = vpop.f32.mrb[0].mxu0
      %v3909 = vadd.f32 0.0, %v3908
      %v3910 = vpop.f32.mrb[0].mxu0
      %3911 = vmatprep.mubr.bf16.mxu0 0
      %3912 = vmatmul.mubr.bf16.gmra.mrb[0].mxu0 %v3803
      %v3913 = vpop.f32.mrb[0].mxu0
      %v3914 = vadd.f32 0.0, %v3913
      %v3915 = vpop.f32.mrb[0].mxu0
      %v3916 = vpop.f32.mrb[0].mxu0
      %v3917 = vadd.f32 0.0, %v3916
      %v3918 = vpop.f32.mrb[0].mxu0
      %3919 = vmatprep.mubr.bf16.mxu0 0
      %3920 = vmatmul.mubr.bf16.gmra.mrb[0].mxu0 %v3806
      %v3921 = vpop.f32.mrb[0].mxu0
      %v3922 = vadd.f32 0.0, %v3921
      %v3923 = vpop.f32.mrb[0].mxu0
      %v3924 = vpop.f32.mrb[0].mxu0
      %v3925 = vadd.f32 0.0, %v3924
      %v3926 = vpop.f32.mrb[0].mxu0
      %3927 = vmatprep.mubr.bf16.mxu0 0
      %3928 = vmatmul.mubr.bf16.gmra.mrb[0].mxu0 %v3809
      %v3929 = vpop.f32.mrb[0].mxu0
      %v3930 = vadd.f32 0.0, %v3929
      %v3931 = vpop.f32.mrb[0].mxu0
      %v3932 = vpop.f32.mrb[0].mxu0
      %v3933 = vadd.f32 0.0, %v3932
      %v3934 = vpop.f32.mrb[0].mxu0
      %3935 = vmatprep.mubr.bf16.mxu0 0
      %3936 = vmatmul.mubr.bf16.gmra.mrb[0].mxu0 %v3812
      %v3937 = vpop.f32.mrb[0].mxu0
      %v3938 = vadd.f32 0.0, %v3937
      %v3939 = vpop.f32.mrb[0].mxu0
      %v3940 = vpop.f32.mrb[0].mxu0
      %v3941 = vadd.f32 0.0, %v3940
      %v3942 = vpop.f32.mrb[0].mxu0
      %3943 = vmatprep.mubr.bf16.mxu0 0
      %3944 = vmatmul.mubr.bf16.gmra.mrb[0].mxu0 %v3815
      %v3945 = vpop.f32.mrb[0].mxu0
      %v3946 = vadd.f32 0.0, %v3945
      %v3947 = vpop.f32.mrb[0].mxu0
      %v3948 = vpop.f32.mrb[0].mxu0
      %v3949 = vadd.f32 0.0, %v3948
      %v3950 = vpop.f32.mrb[0].mxu0
      %3951 = vmatprep.mubr.bf16.mxu0 0
      %3952 = vmatmul.mubr.bf16.gmra.mrb[0].mxu0 %v3818
      %v3953 = vpop.f32.mrb[0].mxu0
      %v3954 = vadd.f32 0.0, %v3953
      %v3955 = vpop.f32.mrb[0].mxu0
      %v3956 = vpop.f32.mrb[0].mxu0
      %v3957 = vadd.f32 0.0, %v3956
      %v3958 = vpop.f32.mrb[0].mxu0
      %3959 = vmatprep.mubr.bf16.mxu0 0
      %3960 = vmatmul.mubr.bf16.gmra.mrb[0].mxu0 %v3821
      %v3961 = vpop.f32.mrb[0].mxu0
      %v3962 = vadd.f32 0.0, %v3961
      %v3963 = vpop.f32.mrb[0].mxu0
      %v3964 = vpop.f32.mrb[0].mxu0
      %v3965 = vadd.f32 0.0, %v3964
      %v3966 = vpop.f32.mrb[0].mxu0
      %3967 = vmatprep.mubr.bf16.mxu0 0
      %3968 = vmatmul.mubr.bf16.gmra.mrb[0].mxu0 %v3824
      %v3969 = vpop.f32.mrb[0].mxu0
      %v3970 = vadd.f32 0.0, %v3969
      %v3971 = vpop.f32.mrb[0].mxu0
      %v3972 = vpop.f32.mrb[0].mxu0
      %v3973 = vadd.f32 0.0, %v3972
      %v3974 = vpop.f32.mrb[0].mxu0
      %3975 = vmatprep.mubr.bf16.mxu0 0
      %3976 = vmatmul.mubr.bf16.gmra.mrb[0].mxu0 %v3827
      %v3977 = vpop.f32.mrb[0].mxu0
      %v3978 = vadd.f32 0.0, %v3977
      %v3979 = vpop.f32.mrb[0].mxu0
      %v3980 = vpop.f32.mrb[0].mxu0
      %v3981 = vadd.f32 0.0, %v3980
      %v3982 = vpop.f32.mrb[0].mxu0
      %3983 = vmatprep.mubr.bf16.mxu0 0
      %3984 = vmatmul.mubr.bf16.gmra.mrb[0].mxu0 %v3830
      %v3985 = vpop.f32.mrb[0].mxu0
      %v3986 = vadd.f32 0.0, %v3985
      %v3987 = vpop.f32.mrb[0].mxu0
      %v3988 = vpop.f32.mrb[0].mxu0
      %v3989 = vadd.f32 0.0, %v3988
      %v3990 = vpop.f32.mrb[0].mxu0
      %3991 = vmatprep.mubr.bf16.mxu0 0
      %3992 = vmatmul.mubr.bf16.gmra.mrb[0].mxu0 %v3833
      %v3993 = vpop.f32.mrb[0].mxu0
      %v3994 = vadd.f32 0.0, %v3993
      %v3995 = vpop.f32.mrb[0].mxu0
      %v3996 = vpop.f32.mrb[0].mxu0
      %v3997 = vadd.f32 0.0, %v3996
      %v3998 = vpop.f32.mrb[0].mxu0
      %3999 = vmatprep.mubr.bf16.mxu0 0
      %4000 = vmatmul.mubr.bf16.gmra.mrb[0].mxu0 %v3836
      %v4001 = vpop.f32.mrb[0].mxu0
      %v4002 = vadd.f32 0.0, %v4001
      %v4003 = vpop.f32.mrb[0].mxu0
      %v4004 = vpop.f32.mrb[0].mxu0
      %v4005 = vadd.f32 0.0, %v4004
      %v4006 = vpop.f32.mrb[0].mxu0
      %4007 = vmatprep.mubr.bf16.mxu0 0
      %4008 = vmatmul.mubr.bf16.gmra.mrb[0].mxu0 %v3839
      %v4009 = vpop.f32.mrb[0].mxu0
      %v4010 = vadd.f32 0.0, %v4009
      %v4011 = vpop.f32.mrb[0].mxu0
      %v4012 = vpop.f32.mrb[0].mxu0
      %v4013 = vadd.f32 0.0, %v4012
      %v4014 = vpop.f32.mrb[0].mxu0
      %4015 = vmatprep.mubr.bf16.mxu0 0
      %4016 = vmatmul.mubr.bf16.gmra.mrb[0].mxu0 %v3842
      %v4017 = vpop.f32.mrb[0].mxu0
      %v4018 = vadd.f32 0.0, %v4017
      %v4019 = vpop.f32.mrb[0].mxu0
      %v4020 = vpop.f32.mrb[0].mxu0
      %v4021 = vadd.f32 0.0, %v4020
      %v4022 = vpop.f32.mrb[0].mxu0
      %4023 = vdwg.mxu0
      %v4024 = vadd.f32 %v3662, %v3882
      %v4025 = vadd.f32 %v3663, %v3885
      %v4026 = vadd.f32 %v3664, %v3890
      %v4027 = vadd.f32 %v3665, %v3893
      %v4028 = vadd.f32 %v3666, %v3898
      %v4029 = vadd.f32 %v3667, %v3901
      %v4030 = vadd.f32 %v3668, %v3906
      %v4031 = vadd.f32 %v3669, %v3909
      %v4032 = vadd.f32 %v3670, %v3914
      %v4033 = vadd.f32 %v3671, %v3917
      %v4034 = vadd.f32 %v3672, %v3922
      %v4035 = vadd.f32 %v3673, %v3925
      %v4036 = vadd.f32 %v3674, %v3930
      %v4037 = vadd.f32 %v3675, %v3933
      %v4038 = vadd.f32 %v3676, %v3938
      %v4039 = vadd.f32 %v3677, %v3941
      %v4040 = vadd.f32 %v3678, %v3946
      %v4041 = vadd.f32 %v3679, %v3949
      %v4042 = vadd.f32 %v3680, %v3954
      %v4043 = vadd.f32 %v3681, %v3957
      %v4044 = vadd.f32 %v3682, %v3962
      %v4045 = vadd.f32 %v3683, %v3965
      %v4046 = vadd.f32 %v3684, %v3970
      %v4047 = vadd.f32 %v3685, %v3973
      %v4048 = vadd.f32 %v3686, %v3978
      %v4049 = vadd.f32 %v3687, %v3981
      %v4050 = vadd.f32 %v3688, %v3986
      %v4051 = vadd.f32 %v3689, %v3989
      %v4052 = vadd.f32 %v3690, %v3994
      %v4053 = vadd.f32 %v3691, %v3997
      %v4054 = vadd.f32 %v3692, %v4002
      %v4055 = vadd.f32 %v3693, %v4005
      %v4056 = vadd.f32 %v3694, %v4010
      %v4057 = vadd.f32 %v3695, %v4013
      %v4058 = vadd.f32 %v3696, %v4018
      %v4059 = vadd.f32 %v3697, %v4021
      %v4060 = vld [vmem:[%s2] sm:$0xff]
      %v4061 = vld [vmem:[%s2 + $0x8] sm:$0xff]
      %v4062 = vld [vmem:[%s2 + $0x10] sm:$0xff]
      %v4063 = vld [vmem:[%s2 + $0x18] sm:$0xff]
      %v4064 = vld [vmem:[%s2 + $0x20] sm:$0xff]
      %v4065 = vld [vmem:[%s2 + $0x28] sm:$0xff]
      %v4066 = vld [vmem:[%s2 + $0x30] sm:$0xff]
      %v4067 = vld [vmem:[%s2 + $0x38] sm:$0xff]
      %v4068 = vld [vmem:[%s2 + $0x40] sm:$0xff]
      %v4069 = vld [vmem:[%s2 + $0x48] sm:$0xff]
      %v4070 = vld [vmem:[%s2 + $0x50] sm:$0xff]
      %v4071 = vld [vmem:[%s2 + $0x58] sm:$0xff]
      %v4072 = vld [vmem:[%s2 + $0x60] sm:$0xff]
      %v4073 = vld [vmem:[%s2 + $0x68] sm:$0xff]
      %v4074 = vld [vmem:[%s2 + $0x70] sm:$0xff]
      %v4075 = vld [vmem:[%s2 + $0x78] sm:$0xff]
      %v4076 = vld [vmem:[%s2 + $0x80] sm:$0xff]
      %v4077 = vld [vmem:[%s2 + $0x88] sm:$0xff]
      %v4078 = vld [vmem:[%s2 + $0x90] sm:$0xff]
      %v4079 = vld [vmem:[%s2 + $0x98] sm:$0xff]
      %v4080 = vld [vmem:[%s2 + $0xa0] sm:$0xff]
      %v4081 = vld [vmem:[%s2 + $0xa8] sm:$0xff]
      %v4082 = vld [vmem:[%s2 + $0xb0] sm:$0xff]
      %v4083 = vld [vmem:[%s2 + $0xb8] sm:$0xff]
      %v4084 = vld [vmem:[%s2 + $0xc0] sm:$0xff]
      %v4085 = vld [vmem:[%s2 + $0xc8] sm:$0xff]
      %v4086 = vld [vmem:[%s2 + $0xd0] sm:$0xff]
      %v4087 = vld [vmem:[%s2 + $0xd8] sm:$0xff]
      %v4088 = vld [vmem:[%s2 + $0xe0] sm:$0xff]
      %v4089 = vld [vmem:[%s2 + $0xe8] sm:$0xff]
      %v4090 = vld [vmem:[%s2 + $0xf0] sm:$0xff]
      %v4091 = vld [vmem:[%s2 + $0xf8] sm:$0xff]
      %v4092 = vld [vmem:[%s2 + $0x100] sm:$0xff]
      %v4093 = vld [vmem:[%s2 + $0x108] sm:$0xff]
      %v4094 = vld [vmem:[%s2 + $0x110] sm:$0xff]
      %v4095 = vld [vmem:[%s2 + $0x118] sm:$0xff]
      %4097 = vset.pattern.permute.xlu0 0
      %4098 = vperm.xlu0 %4097, %v4060
      %v4099 = vpop.permute.xlu0 %4098
      %4102 = vset.pattern.permute.xlu0 0
      %4103 = vperm.xlu0 %4102, %v4061
      %v4104 = vpop.permute.xlu0 %4103
      %4107 = vset.pattern.permute.xlu0 0
      %4108 = vperm.xlu0 %4107, %v4062
      %v4109 = vpop.permute.xlu0 %4108
      %4112 = vset.pattern.permute.xlu0 0
      %4113 = vperm.xlu0 %4112, %v4063
      %v4114 = vpop.permute.xlu0 %4113
      %4117 = vset.pattern.permute.xlu0 0
      %4118 = vperm.xlu0 %4117, %v4064
      %v4119 = vpop.permute.xlu0 %4118
      %4122 = vset.pattern.permute.xlu0 0
      %4123 = vperm.xlu0 %4122, %v4065
      %v4124 = vpop.permute.xlu0 %4123
      %4127 = vset.pattern.permute.xlu0 0
      %4128 = vperm.xlu0 %4127, %v4066
      %v4129 = vpop.permute.xlu0 %4128
      %4132 = vset.pattern.permute.xlu0 0
      %4133 = vperm.xlu0 %4132, %v4067
      %v4134 = vpop.permute.xlu0 %4133
      %4137 = vset.pattern.permute.xlu0 0
      %4138 = vperm.xlu0 %4137, %v4068
      %v4139 = vpop.permute.xlu0 %4138
      %4142 = vset.pattern.permute.xlu0 0
      %4143 = vperm.xlu0 %4142, %v4069
      %v4144 = vpop.permute.xlu0 %4143
      %4147 = vset.pattern.permute.xlu0 0
      %4148 = vperm.xlu0 %4147, %v4070
      %v4149 = vpop.permute.xlu0 %4148
      %4152 = vset.pattern.permute.xlu0 0
      %4153 = vperm.xlu0 %4152, %v4071
      %v4154 = vpop.permute.xlu0 %4153
      %4157 = vset.pattern.permute.xlu0 0
      %4158 = vperm.xlu0 %4157, %v4072
      %v4159 = vpop.permute.xlu0 %4158
      %4162 = vset.pattern.permute.xlu0 0
      %4163 = vperm.xlu0 %4162, %v4073
      %v4164 = vpop.permute.xlu0 %4163
      %4167 = vset.pattern.permute.xlu0 0
      %4168 = vperm.xlu0 %4167, %v4074
      %v4169 = vpop.permute.xlu0 %4168
      %4172 = vset.pattern.permute.xlu0 0
      %4173 = vperm.xlu0 %4172, %v4075
      %v4174 = vpop.permute.xlu0 %4173
      %4177 = vset.pattern.permute.xlu0 0
      %4178 = vperm.xlu0 %4177, %v4076
      %v4179 = vpop.permute.xlu0 %4178
      %4182 = vset.pattern.permute.xlu0 0
      %4183 = vperm.xlu0 %4182, %v4077
      %v4184 = vpop.permute.xlu0 %4183
      %4187 = vset.pattern.permute.xlu0 0
      %4188 = vperm.xlu0 %4187, %v4078
      %v4189 = vpop.permute.xlu0 %4188
      %4192 = vset.pattern.permute.xlu0 0
      %4193 = vperm.xlu0 %4192, %v4079
      %v4194 = vpop.permute.xlu0 %4193
      %4197 = vset.pattern.permute.xlu0 0
      %4198 = vperm.xlu0 %4197, %v4080
      %v4199 = vpop.permute.xlu0 %4198
      %4202 = vset.pattern.permute.xlu0 0
      %4203 = vperm.xlu0 %4202, %v4081
      %v4204 = vpop.permute.xlu0 %4203
      %4207 = vset.pattern.permute.xlu0 0
      %4208 = vperm.xlu0 %4207, %v4082
      %v4209 = vpop.permute.xlu0 %4208
      %4212 = vset.pattern.permute.xlu0 0
      %4213 = vperm.xlu0 %4212, %v4083
      %v4214 = vpop.permute.xlu0 %4213
      %4217 = vset.pattern.permute.xlu0 0
      %4218 = vperm.xlu0 %4217, %v4084
      %v4219 = vpop.permute.xlu0 %4218
      %4222 = vset.pattern.permute.xlu0 0
      %4223 = vperm.xlu0 %4222, %v4085
      %v4224 = vpop.permute.xlu0 %4223
      %4227 = vset.pattern.permute.xlu0 0
      %4228 = vperm.xlu0 %4227, %v4086
      %v4229 = vpop.permute.xlu0 %4228
      %4232 = vset.pattern.permute.xlu0 0
      %4233 = vperm.xlu0 %4232, %v4087
      %v4234 = vpop.permute.xlu0 %4233
      %4237 = vset.pattern.permute.xlu0 0
      %4238 = vperm.xlu0 %4237, %v4088
      %v4239 = vpop.permute.xlu0 %4238
      %4242 = vset.pattern.permute.xlu0 0
      %4243 = vperm.xlu0 %4242, %v4089
      %v4244 = vpop.permute.xlu0 %4243
      %4247 = vset.pattern.permute.xlu0 0
      %4248 = vperm.xlu0 %4247, %v4090
      %v4249 = vpop.permute.xlu0 %4248
      %4252 = vset.pattern.permute.xlu0 0
      %4253 = vperm.xlu0 %4252, %v4091
      %v4254 = vpop.permute.xlu0 %4253
      %4257 = vset.pattern.permute.xlu0 0
      %4258 = vperm.xlu0 %4257, %v4092
      %v4259 = vpop.permute.xlu0 %4258
      %4262 = vset.pattern.permute.xlu0 0
      %4263 = vperm.xlu0 %4262, %v4093
      %v4264 = vpop.permute.xlu0 %4263
      %4267 = vset.pattern.permute.xlu0 0
      %4268 = vperm.xlu0 %4267, %v4094
      %v4269 = vpop.permute.xlu0 %4268
      %4272 = vset.pattern.permute.xlu0 0
      %4273 = vperm.xlu0 %4272, %v4095
      %v4274 = vpop.permute.xlu0 %4273
      %v4276 = vmul.f32 %v4024, %v4099
      %v4277 = vmul.f32 %v4025, %v4104
      %v4278 = vmul.f32 %v4026, %v4109
      %v4279 = vmul.f32 %v4027, %v4114
      %v4280 = vmul.f32 %v4028, %v4119
      %v4281 = vmul.f32 %v4029, %v4124
      %v4282 = vmul.f32 %v4030, %v4129
      %v4283 = vmul.f32 %v4031, %v4134
      %v4284 = vmul.f32 %v4032, %v4139
      %v4285 = vmul.f32 %v4033, %v4144
      %v4286 = vmul.f32 %v4034, %v4149
      %v4287 = vmul.f32 %v4035, %v4154
      %v4288 = vmul.f32 %v4036, %v4159
      %v4289 = vmul.f32 %v4037, %v4164
      %v4290 = vmul.f32 %v4038, %v4169
      %v4291 = vmul.f32 %v4039, %v4174
      %v4292 = vmul.f32 %v4040, %v4179
      %v4293 = vmul.f32 %v4041, %v4184
      %v4294 = vmul.f32 %v4042, %v4189
      %v4295 = vmul.f32 %v4043, %v4194
      %v4296 = vmul.f32 %v4044, %v4199
      %v4297 = vmul.f32 %v4045, %v4204
      %v4298 = vmul.f32 %v4046, %v4209
      %v4299 = vmul.f32 %v4047, %v4214
      %v4300 = vmul.f32 %v4048, %v4219
      %v4301 = vmul.f32 %v4049, %v4224
      %v4302 = vmul.f32 %v4050, %v4229
      %v4303 = vmul.f32 %v4051, %v4234
      %v4304 = vmul.f32 %v4052, %v4239
      %v4305 = vmul.f32 %v4053, %v4244
      %v4306 = vmul.f32 %v4054, %v4249
      %v4307 = vmul.f32 %v4055, %v4254
      %v4308 = vmul.f32 %v4056, %v4259
      %v4309 = vmul.f32 %v4057, %v4264
      %v4310 = vmul.f32 %v4058, %v4269
      %v4311 = vmul.f32 %v4059, %v4274
      %v4312 = vadd.f32 %v4276, %v4277
      %v4313 = vadd.f32 %v4312, %v4278
      %v4314 = vadd.f32 %v4313, %v4279
      %v4315 = vadd.f32 %v4314, %v4280
      %v4316 = vadd.f32 %v4315, %v4281
      %v4317 = vadd.f32 %v4316, %v4282
      %v4318 = vadd.f32 %v4317, %v4283
      %v4319 = vadd.f32 %v4318, %v4284
      %v4320 = vadd.f32 %v4319, %v4285
      %v4321 = vadd.f32 %v4320, %v4286
      %v4322 = vadd.f32 %v4321, %v4287
      %v4323 = vadd.f32 %v4322, %v4288
      %v4324 = vadd.f32 %v4323, %v4289
      %v4325 = vadd.f32 %v4324, %v4290
      %v4326 = vadd.f32 %v4325, %v4291
      %v4327 = vadd.f32 %v4326, %v4292
      %v4328 = vadd.f32 %v4327, %v4293
      %v4329 = vadd.f32 %v4328, %v4294
      %v4330 = vadd.f32 %v4329, %v4295
      %v4331 = vadd.f32 %v4330, %v4296
      %v4332 = vadd.f32 %v4331, %v4297
      %v4333 = vadd.f32 %v4332, %v4298
      %v4334 = vadd.f32 %v4333, %v4299
      %v4335 = vadd.f32 %v4334, %v4300
      %v4336 = vadd.f32 %v4335, %v4301
      %v4337 = vadd.f32 %v4336, %v4302
      %v4338 = vadd.f32 %v4337, %v4303
      %v4339 = vadd.f32 %v4338, %v4304
      %v4340 = vadd.f32 %v4339, %v4305
      %v4341 = vadd.f32 %v4340, %v4306
      %v4342 = vadd.f32 %v4341, %v4307
      %v4343 = vadd.f32 %v4342, %v4308
      %v4344 = vadd.f32 %v4343, %v4309
      %v4345 = vadd.f32 %v4344, %v4310
      %v4346 = vadd.f32 %v4345, %v4311
      %v4347 = vrot.slane %v4346, 4
      %v4348 = vadd.f32 %v4346, %v4347
      %v4349 = vrot.slane %v4348, 2
      %v4350 = vadd.f32 %v4348, %v4349
      %v4351 = vrot.slane %v4350, 1
      %v4352 = vadd.f32 %v4350, %v4351
      %4353 = vst [vmem:[%s238] sm:$0x1] %v4352
      %v4354 = vmul.f32 %v4276, %v4024
      %v4355 = vmul.f32 %v4277, %v4025
      %v4356 = vmul.f32 %v4278, %v4026
      %v4357 = vmul.f32 %v4279, %v4027
      %v4358 = vmul.f32 %v4280, %v4028
      %v4359 = vmul.f32 %v4281, %v4029
      %v4360 = vmul.f32 %v4282, %v4030
      %v4361 = vmul.f32 %v4283, %v4031
      %v4362 = vmul.f32 %v4284, %v4032
      %v4363 = vmul.f32 %v4285, %v4033
      %v4364 = vmul.f32 %v4286, %v4034
      %v4365 = vmul.f32 %v4287, %v4035
      %v4366 = vmul.f32 %v4288, %v4036
      %v4367 = vmul.f32 %v4289, %v4037
      %v4368 = vmul.f32 %v4290, %v4038
      %v4369 = vmul.f32 %v4291, %v4039
      %v4370 = vmul.f32 %v4292, %v4040
      %v4371 = vmul.f32 %v4293, %v4041
      %v4372 = vmul.f32 %v4294, %v4042
      %v4373 = vmul.f32 %v4295, %v4043
      %v4374 = vmul.f32 %v4296, %v4044
      %v4375 = vmul.f32 %v4297, %v4045
      %v4376 = vmul.f32 %v4298, %v4046
      %v4377 = vmul.f32 %v4299, %v4047
      %v4378 = vmul.f32 %v4300, %v4048
      %v4379 = vmul.f32 %v4301, %v4049
      %v4380 = vmul.f32 %v4302, %v4050
      %v4381 = vmul.f32 %v4303, %v4051
      %v4382 = vmul.f32 %v4304, %v4052
      %v4383 = vmul.f32 %v4305, %v4053
      %v4384 = vmul.f32 %v4306, %v4054
      %v4385 = vmul.f32 %v4307, %v4055
      %v4386 = vmul.f32 %v4308, %v4056
      %v4387 = vmul.f32 %v4309, %v4057
      %v4388 = vmul.f32 %v4310, %v4058
      %v4389 = vmul.f32 %v4311, %v4059
      %v4390 = vadd.f32 %v4354, %v4355
      %v4391 = vadd.f32 %v4390, %v4356
      %v4392 = vadd.f32 %v4391, %v4357
      %v4393 = vadd.f32 %v4392, %v4358
      %v4394 = vadd.f32 %v4393, %v4359
      %v4395 = vadd.f32 %v4394, %v4360
      %v4396 = vadd.f32 %v4395, %v4361
      %v4397 = vadd.f32 %v4396, %v4362
      %v4398 = vadd.f32 %v4397, %v4363
      %v4399 = vadd.f32 %v4398, %v4364
      %v4400 = vadd.f32 %v4399, %v4365
      %v4401 = vadd.f32 %v4400, %v4366
      %v4402 = vadd.f32 %v4401, %v4367
      %v4403 = vadd.f32 %v4402, %v4368
      %v4404 = vadd.f32 %v4403, %v4369
      %v4405 = vadd.f32 %v4404, %v4370
      %v4406 = vadd.f32 %v4405, %v4371
      %v4407 = vadd.f32 %v4406, %v4372
      %v4408 = vadd.f32 %v4407, %v4373
      %v4409 = vadd.f32 %v4408, %v4374
      %v4410 = vadd.f32 %v4409, %v4375
      %v4411 = vadd.f32 %v4410, %v4376
      %v4412 = vadd.f32 %v4411, %v4377
      %v4413 = vadd.f32 %v4412, %v4378
      %v4414 = vadd.f32 %v4413, %v4379
      %v4415 = vadd.f32 %v4414, %v4380
      %v4416 = vadd.f32 %v4415, %v4381
      %v4417 = vadd.f32 %v4416, %v4382
      %v4418 = vadd.f32 %v4417, %v4383
      %v4419 = vadd.f32 %v4418, %v4384
      %v4420 = vadd.f32 %v4419, %v4385
      %v4421 = vadd.f32 %v4420, %v4386
      %v4422 = vadd.f32 %v4421, %v4387
      %v4423 = vadd.f32 %v4422, %v4388
      %v4424 = vadd.f32 %v4423, %v4389
      %v4425 = vrot.slane %v4424, 4
      %v4426 = vadd.f32 %v4424, %v4425
      %v4427 = vrot.slane %v4426, 2
      %v4428 = vadd.f32 %v4426, %v4427
      %v4429 = vrot.slane %v4428, 1
      %v4430 = vadd.f32 %v4428, %v4429
      %4431 = vst [vmem:[%s241] sm:$0x1] %v4430
      %v4432 = vpack.c.bf16 %v4025, %v4024
      %v4433 = vpack.c.bf16 %v4027, %v4026
      %v4434 = vpack.c.bf16 %v4029, %v4028
      %v4435 = vpack.c.bf16 %v4031, %v4030
      %v4436 = vpack.c.bf16 %v4033, %v4032
      %v4437 = vpack.c.bf16 %v4035, %v4034
      %v4438 = vpack.c.bf16 %v4037, %v4036
      %v4439 = vpack.c.bf16 %v4039, %v4038
      %v4440 = vpack.c.bf16 %v4041, %v4040
      %v4441 = vpack.c.bf16 %v4043, %v4042
      %v4442 = vpack.c.bf16 %v4045, %v4044
      %v4443 = vpack.c.bf16 %v4047, %v4046
      %v4444 = vpack.c.bf16 %v4049, %v4048
      %v4445 = vpack.c.bf16 %v4051, %v4050
      %v4446 = vpack.c.bf16 %v4053, %v4052
      %v4447 = vpack.c.bf16 %v4055, %v4054
      %v4448 = vpack.c.bf16 %v4057, %v4056
      %v4449 = vpack.c.bf16 %v4059, %v4058
      %v4468 = vunpack.c.l.b16 %v4432
      %v4469 = vunpack.c.h.b16 %v4432
      %v4470 = vunpack.c.l.b16 %v4433
      %v4471 = vunpack.c.h.b16 %v4433
      %v4472 = vunpack.c.l.b16 %v4434
      %v4473 = vunpack.c.h.b16 %v4434
      %v4474 = vunpack.c.l.b16 %v4435
      %v4475 = vunpack.c.h.b16 %v4435
      %v4476 = vunpack.c.l.b16 %v4436
      %v4477 = vunpack.c.h.b16 %v4436
      %v4478 = vunpack.c.l.b16 %v4437
      %v4479 = vunpack.c.h.b16 %v4437
      %v4480 = vunpack.c.l.b16 %v4438
      %v4481 = vunpack.c.h.b16 %v4438
      %v4482 = vunpack.c.l.b16 %v4439
      %v4483 = vunpack.c.h.b16 %v4439
      %v4484 = vunpack.c.l.b16 %v4440
      %v4485 = vunpack.c.h.b16 %v4440
      %v4486 = vunpack.c.l.b16 %v4441
      %v4487 = vunpack.c.h.b16 %v4441
      %v4488 = vunpack.c.l.b16 %v4442
      %v4489 = vunpack.c.h.b16 %v4442
      %v4490 = vunpack.c.l.b16 %v4443
      %v4491 = vunpack.c.h.b16 %v4443
      %v4492 = vunpack.c.l.b16 %v4444
      %v4493 = vunpack.c.h.b16 %v4444
      %v4494 = vunpack.c.l.b16 %v4445
      %v4495 = vunpack.c.h.b16 %v4445
      %v4496 = vunpack.c.l.b16 %v4446
      %v4497 = vunpack.c.h.b16 %v4446
      %v4498 = vunpack.c.l.b16 %v4447
      %v4499 = vunpack.c.h.b16 %v4447
      %v4500 = vunpack.c.l.b16 %v4448
      %v4501 = vunpack.c.h.b16 %v4448
      %v4502 = vunpack.c.l.b16 %v4449
      %v4503 = vunpack.c.h.b16 %v4449
      %v4504 = vpack.c.b16 %v4468, %v4468
      %v4505 = vpack.c.b16 %v4469, %v4469
      %v4506 = vpack.c.b16 %v4470, %v4470
      %v4507 = vpack.c.b16 %v4471, %v4471
      %v4508 = vpack.c.b16 %v4472, %v4472
      %v4509 = vpack.c.b16 %v4473, %v4473
      %v4510 = vpack.c.b16 %v4474, %v4474
      %v4511 = vpack.c.b16 %v4475, %v4475
      %v4512 = vpack.c.b16 %v4476, %v4476
      %v4513 = vpack.c.b16 %v4477, %v4477
      %v4514 = vpack.c.b16 %v4478, %v4478
      %v4515 = vpack.c.b16 %v4479, %v4479
      %v4516 = vpack.c.b16 %v4480, %v4480
      %v4517 = vpack.c.b16 %v4481, %v4481
      %v4518 = vpack.c.b16 %v4482, %v4482
      %v4519 = vpack.c.b16 %v4483, %v4483
      %v4520 = vpack.c.b16 %v4484, %v4484
      %v4521 = vpack.c.b16 %v4485, %v4485
      %v4522 = vpack.c.b16 %v4486, %v4486
      %v4523 = vpack.c.b16 %v4487, %v4487
      %v4524 = vpack.c.b16 %v4488, %v4488
      %v4525 = vpack.c.b16 %v4489, %v4489
      %v4526 = vpack.c.b16 %v4490, %v4490
      %v4527 = vpack.c.b16 %v4491, %v4491
      %v4528 = vpack.c.b16 %v4492, %v4492
      %v4529 = vpack.c.b16 %v4493, %v4493
      %v4530 = vpack.c.b16 %v4494, %v4494
      %v4531 = vpack.c.b16 %v4495, %v4495
      %v4532 = vpack.c.b16 %v4496, %v4496
      %v4533 = vpack.c.b16 %v4497, %v4497
      %v4534 = vpack.c.b16 %v4498, %v4498
      %v4535 = vpack.c.b16 %v4499, %v4499
      %v4536 = vpack.c.b16 %v4500, %v4500
      %v4537 = vpack.c.b16 %v4501, %v4501
      %v4538 = vpack.c.b16 %v4502, %v4502
      %v4539 = vpack.c.b16 %v4503, %v4503
      %4576 = vst [vmem:[%s235] sm:$0xf] %v4504
      %4577 = vst [vmem:[%s235 + $0x4] sm:$0xf] %v4505
      %4578 = vst [vmem:[%s235 + $0x8] sm:$0xf] %v4506
      %4579 = vst [vmem:[%s235 + $0xc] sm:$0xf] %v4507
      %4580 = vst [vmem:[%s235 + $0x10] sm:$0xf] %v4508
      %4581 = vst [vmem:[%s235 + $0x14] sm:$0xf] %v4509
      %4582 = vst [vmem:[%s235 + $0x18] sm:$0xf] %v4510
      %4583 = vst [vmem:[%s235 + $0x1c] sm:$0xf] %v4511
      %4584 = vst [vmem:[%s235 + $0x20] sm:$0xf] %v4512
      %4585 = vst [vmem:[%s235 + $0x24] sm:$0xf] %v4513
      %4586 = vst [vmem:[%s235 + $0x28] sm:$0xf] %v4514
      %4587 = vst [vmem:[%s235 + $0x2c] sm:$0xf] %v4515
      %4588 = vst [vmem:[%s235 + $0x30] sm:$0xf] %v4516
      %4589 = vst [vmem:[%s235 + $0x34] sm:$0xf] %v4517
      %4590 = vst [vmem:[%s235 + $0x38] sm:$0xf] %v4518
      %4591 = vst [vmem:[%s235 + $0x3c] sm:$0xf] %v4519
      %4592 = vst [vmem:[%s235 + $0x40] sm:$0xf] %v4520
      %4593 = vst [vmem:[%s235 + $0x44] sm:$0xf] %v4521
      %4594 = vst [vmem:[%s235 + $0x48] sm:$0xf] %v4522
      %4595 = vst [vmem:[%s235 + $0x4c] sm:$0xf] %v4523
      %4596 = vst [vmem:[%s235 + $0x50] sm:$0xf] %v4524
      %4597 = vst [vmem:[%s235 + $0x54] sm:$0xf] %v4525
      %4598 = vst [vmem:[%s235 + $0x58] sm:$0xf] %v4526
      %4599 = vst [vmem:[%s235 + $0x5c] sm:$0xf] %v4527
      %4600 = vst [vmem:[%s235 + $0x60] sm:$0xf] %v4528
      %4601 = vst [vmem:[%s235 + $0x64] sm:$0xf] %v4529
      %4602 = vst [vmem:[%s235 + $0x68] sm:$0xf] %v4530
      %4603 = vst [vmem:[%s235 + $0x6c] sm:$0xf] %v4531
      %4604 = vst [vmem:[%s235 + $0x70] sm:$0xf] %v4532
      %4605 = vst [vmem:[%s235 + $0x74] sm:$0xf] %v4533
      %4606 = vst [vmem:[%s235 + $0x78] sm:$0xf] %v4534
      %4607 = vst [vmem:[%s235 + $0x7c] sm:$0xf] %v4535
      %4608 = vst [vmem:[%s235 + $0x80] sm:$0xf] %v4536
      %4609 = vst [vmem:[%s235 + $0x84] sm:$0xf] %v4537
      %4610 = vst [vmem:[%s235 + $0x88] sm:$0xf] %v4538
      %4611 = vst [vmem:[%s235 + $0x8c] sm:$0xf] %v4539
      %p4612 = scmp.lt.s32.totalorder %s17, 1
      %s4613 = scalar_select %p4612, %s17, 1
      %s4614 = smul.addr %s4613, 36
      %s4615 = smul.addr %s4614, 4
      %s4616 = scalar_lea.vmem %s3, %s4615
      %p4617 = scmp.lt.s32.totalorder %s17, 1
      %s4618 = scalar_select %p4617, %s17, 1
      %s4619 = scalar_lea.vmem %s4, %s4618
      %p4620 = scmp.lt.s32.totalorder %s17, 1
      %s4621 = scalar_select %p4620, %s17, 1
      %s4622 = scalar_lea.vmem %s5, %s4621
      // Predicated region
      $region33: #{unet_conv2_forward.4} parent=31 // pred_check
        %p4623 = pneg %p103
      $region34: #{unet_conv2_forward.4} parent=31 // pred_check_branch
        %4625 = sbr.rel (%p4623) target = $region36
      $region35: #{unet_conv2_forward.4} parent=31 // pred_region
        _
      $region36: #{unet_conv2_forward.4} parent=31 // pred_fallthru
        _
      // Predicated region
      $region37: #{unet_conv2_forward.4} parent=31 // pred_check
        %p4626 = pneg %p129
      $region38: #{unet_conv2_forward.4} parent=31 // pred_check_branch
        %4628 = sbr.rel (%p4626) target = $region40
      $region39: #{unet_conv2_forward.4} parent=31 // pred_region
        _
      $region40: #{unet_conv2_forward.4} parent=31 // pred_fallthru
        _
      // Predicated region
      $region41: #{unet_conv2_forward.4} parent=31 // pred_check
        %p4629 = pneg %p155
      $region42: #{unet_conv2_forward.4} parent=31 // pred_check_branch
        %4631 = sbr.rel (%p4629) target = $region44
      $region43: #{unet_conv2_forward.4} parent=31 // pred_region
        _
      $region44: #{unet_conv2_forward.4} parent=31 // pred_fallthru
        _
    $region32: #{unet_conv2_forward.4} parent=5 // pred_fallthru
      _
    %p4632 = scmp.le.s32.totalorder 2, %s12
    // Predicated region
    $region45: #{unet_conv2_forward.4} parent=5 // pred_check
      %p4633 = pneg %p4632
    $region46: #{unet_conv2_forward.4} parent=5 // pred_check_branch
      %4635 = sbr.rel (%p4633) target = $region48
    $region47: #{unet_conv2_forward.4} parent=5 // pred_region
      %s4636 = ssub.s32 %s12, 2
      // Predicated region
      $region49: #{unet_conv2_forward.4} parent=47 // pred_check
        %p4637 = pneg %p109
      $region50: #{unet_conv2_forward.4} parent=47 // pred_check_branch
        %4639 = sbr.rel (%p4637) target = $region52
      $region51: #{unet_conv2_forward.4} parent=47 // pred_region
        %p4640 = scmp.lt.s32.totalorder %s18, 1
        %s4641 = scalar_select %p4640, %s18, 1
        %s4642 = smul.addr %s4641, 36
        %s4643 = smul.addr %s4642, 4
        %s4644 = scalar_lea.vmem %s3, %s4643
      $region52: #{unet_conv2_forward.4} parent=47 // pred_fallthru
        _
      // Predicated region
      $region53: #{unet_conv2_forward.4} parent=47 // pred_check
        %p4645 = pneg %p135
      $region54: #{unet_conv2_forward.4} parent=47 // pred_check_branch
        %4647 = sbr.rel (%p4645) target = $region56
      $region55: #{unet_conv2_forward.4} parent=47 // pred_region
        %p4648 = scmp.lt.s32.totalorder %s18, 1
        %s4649 = scalar_select %p4648, %s18, 1
        %s4650 = scalar_lea.vmem %s4, %s4649
      $region56: #{unet_conv2_forward.4} parent=47 // pred_fallthru
        _
      // Predicated region
      $region57: #{unet_conv2_forward.4} parent=47 // pred_check
        %p4651 = pneg %p161
      $region58: #{unet_conv2_forward.4} parent=47 // pred_check_branch
        %4653 = sbr.rel (%p4651) target = $region60
      $region59: #{unet_conv2_forward.4} parent=47 // pred_region
        %p4654 = scmp.lt.s32.totalorder %s18, 1
        %s4655 = scalar_select %p4654, %s18, 1
        %s4656 = scalar_lea.vmem %s5, %s4655
      $region60: #{unet_conv2_forward.4} parent=47 // pred_fallthru
        _
    $region48: #{unet_conv2_forward.4} parent=5 // pred_fallthru
      _
  $region6: #{unet_conv2_forward.4} parent=0 // loop_footer
    %s16 = sadd.s32 1, %s12
  $region7: #{unet_conv2_forward.4} parent=0 // loop_footer_branch
    %11 = sbr.rel target = $region3
  $region8: #{unet_conv2_forward.4} parent=0 // loop_exit
    _

// kernel: unet_conv2_forward.6
$region0: #{unet_conv2_forward.6}
  #allocation0 [shape = 'u32[]', space=smem, size = 0x4, offset = 0x4, fixed_abs, tag = 'smem constant byte address 0x4 - core index']
  #allocation1 [shape = 'u32[144,128]{1,0:T(1,128)}', space=vmem, size = 0x12000, scoped, tag = 'internal scratch']
  %s0 = inlined_call_operand.vmem [shape: bf16[2,352,128], index: 0, kind: input, shape index: {}]
  %s1 = inlined_call_operand.vmem [shape: bf16[9,128,128], index: 1, kind: input, shape index: {}]
  %s2 = inlined_call_operand.vmem [shape: f32[288,1], index: 2, kind: input, shape index: {}]
  %s3 = inlined_call_operand.vmem [shape: bf16[2,288,128], index: 3, kind: output, shape index: {0}]
  %s4 = inlined_call_operand.vmem [shape: f32[2,1,128], index: 4, kind: output, shape index: {1}]
  %s5 = inlined_call_operand.vmem [shape: f32[2,1,128], index: 5, kind: output, shape index: {2}]
  %6 = xla_tuple %s3, %s4, %s5
  %s7 = sld [smem:[#allocation0]]
  $region61: #{unet_conv2_forward.6} parent=0
    _
  %s9 = ssub.s32 1, %s7
  %s10 = scalar_select 0, %s9, %s7
  loop: start=0, step=1, limit=4
  $region2: #{unet_conv2_forward.6} parent=0 // loop_pre_header
    _
  $region3: #{unet_conv2_forward.6} parent=0 // loop_header
    %s12 = sphi 0, %s16
    %p13 = scmp.ge.s32.totalorder %s12, 4
    %s22 = sphi 0, %s24
    %s25 = sphi 0, %s22
    %s26 = sphi 0, %s25
    %s42 = sphi 0, %s26
    %s46 = sphi 0, %s46
    %s48 = sphi 0, %s46
    %s49 = sphi 0, %s48
    %s63 = sphi 0, %s49
    %s67 = sphi 0, %s67
    %s69 = sphi 0, %s67
    %s70 = sphi 0, %s69
    %s84 = sphi 0, %s70
    %s90 = sphi 0, %s92
    %s93 = sphi 0, %s90
    %s94 = sphi 0, %s93
    %s110 = sphi 0, %s94
    %s116 = sphi 0, %s118
    %s119 = sphi 0, %s116
    %s120 = sphi 0, %s119
    %s136 = sphi 0, %s120
    %s142 = sphi 0, %s144
    %s145 = sphi 0, %s142
    %s146 = sphi 0, %s145
    %s162 = sphi 0, %s146
  $region4: #{unet_conv2_forward.6} parent=0 // loop_header_branch
    %15 = sbr.rel (%p13) target = $region8
  $region5: #{unet_conv2_forward.6} parent=0 // loop_body
    %s17 = ssub.s32 %s12, 1
    %s18 = ssub.s32 %s12, 2
    %s19 = sadd.s32 %s12, 1
    %s20 = ssub.s32 %s12, %s19
    %p21 = scmp.eq.s32.totalorder %s20, 0
    %s23 = sadd.s32 %s22, 1
    %s24 = scalar_select %p21, %s22, %s23
    %p27 = pneg %p21
    %p28 = scmp.eq.s32.totalorder %s12, 1
    %p29 = por %p27, %p28
    %p30 = scmp.ne.s32.totalorder %s22, %s25
    %p31 = scmp.eq.s32.totalorder %s12, 0
    %p32 = por %p30, %p31
    %p33 = scmp.ne.s32.totalorder %s22, %s25
    %p34 = scmp.eq.s32.totalorder %s17, 1
    %p35 = por %p33, %p34
    %p36 = scmp.ne.s32.totalorder %s25, %s26
    %p37 = scmp.eq.s32.totalorder %s17, 0
    %p38 = por %p36, %p37
    %p39 = scmp.ne.s32.totalorder %s25, %s26
    %p40 = scmp.eq.s32.totalorder %s18, 1
    %p41 = por %p39, %p40
    %p43 = scmp.ne.s32.totalorder %s26, %s42
    %p44 = scmp.eq.s32.totalorder %s18, 0
    %p45 = por %p43, %p44
    %s47 = sadd.s32 %s46, 1
    %p50 = scmp.eq.s32.totalorder %s12, 1
    %p51 = scmp.ne.s32.totalorder %s46, %s48
    %p52 = scmp.eq.s32.totalorder %s12, 0
    %p53 = por %p51, %p52
    %p54 = scmp.ne.s32.totalorder %s46, %s48
    %p55 = scmp.eq.s32.totalorder %s17, 1
    %p56 = por %p54, %p55
    %p57 = scmp.ne.s32.totalorder %s48, %s49
    %p58 = scmp.eq.s32.totalorder %s17, 0
    %p59 = por %p57, %p58
    %p60 = scmp.ne.s32.totalorder %s48, %s49
    %p61 = scmp.eq.s32.totalorder %s18, 1
    %p62 = por %p60, %p61
    %p64 = scmp.ne.s32.totalorder %s49, %s63
    %p65 = scmp.eq.s32.totalorder %s18, 0
    %p66 = por %p64, %p65
    %s68 = sadd.s32 %s67, 1
    %p71 = scmp.eq.s32.totalorder %s12, 1
    %p72 = scmp.ne.s32.totalorder %s67, %s69
    %p73 = scmp.eq.s32.totalorder %s12, 0
    %p74 = por %p72, %p73
    %p75 = scmp.ne.s32.totalorder %s67, %s69
    %p76 = scmp.eq.s32.totalorder %s17, 1
    %p77 = por %p75, %p76
    %p78 = scmp.ne.s32.totalorder %s69, %s70
    %p79 = scmp.eq.s32.totalorder %s17, 0
    %p80 = por %p78, %p79
    %p81 = scmp.ne.s32.totalorder %s69, %s70
    %p82 = scmp.eq.s32.totalorder %s18, 1
    %p83 = por %p81, %p82
    %p85 = scmp.ne.s32.totalorder %s70, %s84
    %p86 = scmp.eq.s32.totalorder %s18, 0
    %p87 = por %p85, %p86
    %s88 = ssub.s32 %s12, %s19
    %p89 = scmp.eq.s32.totalorder %s88, 0
    %s91 = sadd.s32 %s90, 1
    %s92 = scalar_select %p89, %s90, %s91
    %p95 = pneg %p89
    %p96 = scmp.eq.s32.totalorder %s12, 1
    %p97 = por %p95, %p96
    %p98 = scmp.ne.s32.totalorder %s90, %s93
    %p99 = scmp.eq.s32.totalorder %s12, 0
    %p100 = por %p98, %p99
    %p101 = scmp.ne.s32.totalorder %s90, %s93
    %p102 = scmp.eq.s32.totalorder %s17, 1
    %p103 = por %p101, %p102
    %p104 = scmp.ne.s32.totalorder %s93, %s94
    %p105 = scmp.eq.s32.totalorder %s17, 0
    %p106 = por %p104, %p105
    %p107 = scmp.ne.s32.totalorder %s93, %s94
    %p108 = scmp.eq.s32.totalorder %s18, 1
    %p109 = por %p107, %p108
    %p111 = scmp.ne.s32.totalorder %s94, %s110
    %p112 = scmp.eq.s32.totalorder %s18, 0
    %p113 = por %p111, %p112
    %s114 = ssub.s32 %s12, %s19
    %p115 = scmp.eq.s32.totalorder %s114, 0
    %s117 = sadd.s32 %s116, 1
    %s118 = scalar_select %p115, %s116, %s117
    %p121 = pneg %p115
    %p122 = scmp.eq.s32.totalorder %s12, 1
    %p123 = por %p121, %p122
    %p124 = scmp.ne.s32.totalorder %s116, %s119
    %p125 = scmp.eq.s32.totalorder %s12, 0
    %p126 = por %p124, %p125
    %p127 = scmp.ne.s32.totalorder %s116, %s119
    %p128 = scmp.eq.s32.totalorder %s17, 1
    %p129 = por %p127, %p128
    %p130 = scmp.ne.s32.totalorder %s119, %s120
    %p131 = scmp.eq.s32.totalorder %s17, 0
    %p132 = por %p130, %p131
    %p133 = scmp.ne.s32.totalorder %s119, %s120
    %p134 = scmp.eq.s32.totalorder %s18, 1
    %p135 = por %p133, %p134
    %p137 = scmp.ne.s32.totalorder %s120, %s136
    %p138 = scmp.eq.s32.totalorder %s18, 0
    %p139 = por %p137, %p138
    %s140 = ssub.s32 %s12, %s19
    %p141 = scmp.eq.s32.totalorder %s140, 0
    %s143 = sadd.s32 %s142, 1
    %s144 = scalar_select %p141, %s142, %s143
    %p147 = pneg %p141
    %p148 = scmp.eq.s32.totalorder %s12, 1
    %p149 = por %p147, %p148
    %p150 = scmp.ne.s32.totalorder %s142, %s145
    %p151 = scmp.eq.s32.totalorder %s12, 0
    %p152 = por %p150, %p151
    %p153 = scmp.ne.s32.totalorder %s142, %s145
    %p154 = scmp.eq.s32.totalorder %s17, 1
    %p155 = por %p153, %p154
    %p156 = scmp.ne.s32.totalorder %s145, %s146
    %p157 = scmp.eq.s32.totalorder %s17, 0
    %p158 = por %p156, %p157
    %p159 = scmp.ne.s32.totalorder %s145, %s146
    %p160 = scmp.eq.s32.totalorder %s18, 1
    %p161 = por %p159, %p160
    %p163 = scmp.ne.s32.totalorder %s146, %s162
    %p164 = scmp.eq.s32.totalorder %s18, 0
    %p165 = por %p163, %p164
    %p166 = scmp.le.s32.totalorder 1, %s12
    %p167 = scmp.lt.s32.totalorder %s12, 3
    %p168 = pnand %p166, %p167
    %p169 = pneg %p168
    // Predicated region
    $region9: #{unet_conv2_forward.6} parent=5 // pred_check
      _
    $region10: #{unet_conv2_forward.6} parent=5 // pred_check_branch
      %171 = sbr.rel (%p168) target = $region12
    $region11: #{unet_conv2_forward.6} parent=5 // pred_region
      %s172 = ssub.s32 %s12, 1
      // Predicated region
      $region13: #{unet_conv2_forward.6} parent=11 // pred_check
        %p173 = pneg %p59
      $region14: #{unet_conv2_forward.6} parent=11 // pred_check_branch
        %175 = sbr.rel (%p173) target = $region16
      $region15: #{unet_conv2_forward.6} parent=11 // pred_region
        _
      $region16: #{unet_conv2_forward.6} parent=11 // pred_fallthru
        _
      // Predicated region
      $region17: #{unet_conv2_forward.6} parent=11 // pred_check
        %p176 = pneg %p80
      $region18: #{unet_conv2_forward.6} parent=11 // pred_check_branch
        %178 = sbr.rel (%p176) target = $region20
      $region19: #{unet_conv2_forward.6} parent=11 // pred_region
        _
      $region20: #{unet_conv2_forward.6} parent=11 // pred_fallthru
        _
    $region12: #{unet_conv2_forward.6} parent=5 // pred_fallthru
      _
    %p179 = scmp.lt.s32.totalorder %s12, 2
    // Predicated region
    $region21: #{unet_conv2_forward.6} parent=5 // pred_check
      %p180 = pneg %p179
    $region22: #{unet_conv2_forward.6} parent=5 // pred_check_branch
      %182 = sbr.rel (%p180) target = $region24
    $region23: #{unet_conv2_forward.6} parent=5 // pred_region
      // Predicated region
      $region25: #{unet_conv2_forward.6} parent=23 // pred_check
        %p183 = pneg %p32
      $region26: #{unet_conv2_forward.6} parent=23 // pred_check_branch
        %185 = sbr.rel (%p183) target = $region28
      $region27: #{unet_conv2_forward.6} parent=23 // pred_region
        %p186 = scmp.lt.s32.totalorder %s12, 1
        %s187 = scalar_select %p186, %s12, 1
        %s188 = smul.addr %s187, 44
        %s189 = smul.addr %s188, 4
        %s190 = scalar_lea.vmem %s0, %s189
      $region28: #{unet_conv2_forward.6} parent=23 // pred_fallthru
        _
    $region24: #{unet_conv2_forward.6} parent=5 // pred_fallthru
      _
    %p191 = scmp.le.s32.totalorder 1, %s12
    %p192 = scmp.lt.s32.totalorder %s12, 3
    %p193 = pnand %p191, %p192
    %p194 = pneg %p193
    // Predicated region
    $region29: #{unet_conv2_forward.6} parent=5 // pred_check
      _
    $region30: #{unet_conv2_forward.6} parent=5 // pred_check_branch
      %196 = sbr.rel (%p193) target = $region32
    $region31: #{unet_conv2_forward.6} parent=5 // pred_region
      %s197 = ssub.s32 %s12, 1
      %p198 = scmp.lt.s32.totalorder %s17, 1
      %s199 = scalar_select %p198, %s17, 1
      %s200 = smul.addr %s199, 44
      %s201 = smul.addr %s200, 4
      %s202 = scalar_lea.vmem %s0, %s201
      %p203 = pneg %p38
      %p204 = pneg %p35
      %p205 = pneg %p59
      %p206 = pneg %p56
      %p207 = pneg %p80
      %p208 = pneg %p77
      %p209 = pneg %p106
      %p210 = pneg %p103
      %p211 = scmp.lt.s32.totalorder %s17, 1
      %s212 = scalar_select %p211, %s17, 1
      %s213 = smul.addr %s212, 36
      %s214 = smul.addr %s213, 4
      %s215 = scalar_lea.vmem %s3, %s214
      %p216 = pneg %p132
      %p217 = pneg %p129
      %p218 = scmp.lt.s32.totalorder %s17, 1
      %s219 = scalar_select %p218, %s17, 1
      %s220 = scalar_lea.vmem %s4, %s219
      %p221 = pneg %p158
      %p222 = pneg %p155
      %p223 = scmp.lt.s32.totalorder %s17, 1
      %s224 = scalar_select %p223, %s17, 1
      %s225 = scalar_lea.vmem %s5, %s224
      %p226 = scmp.lt.s32.totalorder %s17, 1
      %s227 = scalar_select %p226, %s17, 1
      %s228 = smul.addr %s227, 44
      %s229 = smul.addr %s228, 4
      %s230 = scalar_lea.vmem %s0, %s229
      %p231 = scmp.lt.s32.totalorder %s17, 1
      %s232 = scalar_select %p231, %s17, 1
      %s233 = smul.addr %s232, 36
      %s234 = smul.addr %s233, 4
      %s235 = scalar_lea.vmem %s3, %s234
      %p236 = scmp.lt.s32.totalorder %s17, 1
      %s237 = scalar_select %p236, %s17, 1
      %s238 = scalar_lea.vmem %s4, %s237
      %p239 = scmp.lt.s32.totalorder %s17, 1
      %s240 = scalar_select %p239, %s17, 1
      %s241 = scalar_lea.vmem %s5, %s240
      %v243 = vld [vmem:[%s230 + $0x4] sm:$0xc]
      %v244 = vld [vmem:[%s230 + $0x8] sm:$0xf]
      %v245 = vld [vmem:[%s230 + $0xc] sm:$0xf]
      %v246 = vld [vmem:[%s230 + $0x10] sm:$0xf]
      %v247 = vld [vmem:[%s230 + $0x14] sm:$0xf]
      %v248 = vld [vmem:[%s230 + $0x18] sm:$0xf]
      %v249 = vld [vmem:[%s230 + $0x1c] sm:$0xf]
      %v250 = vld [vmem:[%s230 + $0x20] sm:$0xf]
      %v251 = vld [vmem:[%s230 + $0x24] sm:$0xf]
      %v252 = vld [vmem:[%s230 + $0x28] sm:$0xf]
      %v253 = vld [vmem:[%s230 + $0x2c] sm:$0xf]
      %v254 = vld [vmem:[%s230 + $0x30] sm:$0xf]
      %v255 = vld [vmem:[%s230 + $0x34] sm:$0xf]
      %v256 = vld [vmem:[%s230 + $0x38] sm:$0xf]
      %v257 = vld [vmem:[%s230 + $0x3c] sm:$0xf]
      %v258 = vld [vmem:[%s230 + $0x40] sm:$0xf]
      %v259 = vld [vmem:[%s230 + $0x44] sm:$0xf]
      %v260 = vld [vmem:[%s230 + $0x48] sm:$0xf]
      %v261 = vld [vmem:[%s230 + $0x4c] sm:$0xf]
      %v262 = vld [vmem:[%s230 + $0x50] sm:$0xf]
      %v263 = vld [vmem:[%s230 + $0x54] sm:$0xf]
      %v264 = vld [vmem:[%s230 + $0x58] sm:$0xf]
      %v265 = vld [vmem:[%s230 + $0x5c] sm:$0xf]
      %v266 = vld [vmem:[%s230 + $0x60] sm:$0xf]
      %v267 = vld [vmem:[%s230 + $0x64] sm:$0xf]
      %v268 = vld [vmem:[%s230 + $0x68] sm:$0xf]
      %v269 = vld [vmem:[%s230 + $0x6c] sm:$0xf]
      %v270 = vld [vmem:[%s230 + $0x70] sm:$0xf]
      %v271 = vld [vmem:[%s230 + $0x74] sm:$0xf]
      %v272 = vld [vmem:[%s230 + $0x78] sm:$0xf]
      %v273 = vld [vmem:[%s230 + $0x7c] sm:$0xf]
      %v274 = vld [vmem:[%s230 + $0x80] sm:$0xf]
      %v275 = vld [vmem:[%s230 + $0x84] sm:$0xf]
      %v276 = vld [vmem:[%s230 + $0x88] sm:$0xf]
      %v277 = vld [vmem:[%s230 + $0x8c] sm:$0xf]
      %v278 = vld [vmem:[%s230 + $0x90] sm:$0xf]
      %v279 = vld [vmem:[%s230 + $0x94] sm:$0x7]
      %v280 = vld [vmem:[%s1] sm:$0xf]
      %v281 = vld [vmem:[%s1 + $0x4] sm:$0xf]
      %v282 = vld [vmem:[%s1 + $0x8] sm:$0xf]
      %v283 = vld [vmem:[%s1 + $0xc] sm:$0xf]
      %v284 = vld [vmem:[%s1 + $0x10] sm:$0xf]
      %v285 = vld [vmem:[%s1 + $0x14] sm:$0xf]
      %v286 = vld [vmem:[%s1 + $0x18] sm:$0xf]
      %v287 = vld [vmem:[%s1 + $0x1c] sm:$0xf]
      %v288 = vld [vmem:[%s1 + $0x20] sm:$0xf]
      %v289 = vld [vmem:[%s1 + $0x24] sm:$0xf]
      %v290 = vld [vmem:[%s1 + $0x28] sm:$0xf]
      %v291 = vld [vmem:[%s1 + $0x2c] sm:$0xf]
      %v292 = vld [vmem:[%s1 + $0x30] sm:$0xf]
      %v293 = vld [vmem:[%s1 + $0x34] sm:$0xf]
      %v294 = vld [vmem:[%s1 + $0x38] sm:$0xf]
      %v295 = vld [vmem:[%s1 + $0x3c] sm:$0xf]
      %v296 = vld [vmem:[%s230 + $0x4] sm:$0x8]
      %s297 = scalar_lea.vmem %s1, 64
      %v298 = vld [vmem:[%s297] sm:$0xf]
      %v299 = vld [vmem:[%s297 + $0x4] sm:$0xf]
      %v300 = vld [vmem:[%s297 + $0x8] sm:$0xf]
      %v301 = vld [vmem:[%s297 + $0xc] sm:$0xf]
      %v302 = vld [vmem:[%s297 + $0x10] sm:$0xf]
      %v303 = vld [vmem:[%s297 + $0x14] sm:$0xf]
      %v304 = vld [vmem:[%s297 + $0x18] sm:$0xf]
      %v305 = vld [vmem:[%s297 + $0x1c] sm:$0xf]
      %v306 = vld [vmem:[%s297 + $0x20] sm:$0xf]
      %v307 = vld [vmem:[%s297 + $0x24] sm:$0xf]
      %v308 = vld [vmem:[%s297 + $0x28] sm:$0xf]
      %v309 = vld [vmem:[%s297 + $0x2c] sm:$0xf]
      %v310 = vld [vmem:[%s297 + $0x30] sm:$0xf]
      %v311 = vld [vmem:[%s297 + $0x34] sm:$0xf]
      %v312 = vld [vmem:[%s297 + $0x38] sm:$0xf]
      %v313 = vld [vmem:[%s297 + $0x3c] sm:$0xf]
      %v351 = vunpack.c.l.b16 %v296
      %v352 = vunpack.c.l.b16 %v244
      %v353 = vunpack.c.l.b16 %v245
      %v354 = vunpack.c.l.b16 %v246
      %v355 = vunpack.c.l.b16 %v247
      %v356 = vunpack.c.l.b16 %v248
      %v357 = vunpack.c.l.b16 %v249
      %v358 = vunpack.c.l.b16 %v250
      %v359 = vunpack.c.l.b16 %v251
      %v360 = vunpack.c.l.b16 %v252
      %v361 = vunpack.c.l.b16 %v253
      %v362 = vunpack.c.l.b16 %v254
      %v363 = vunpack.c.l.b16 %v255
      %v364 = vunpack.c.l.b16 %v256
      %v365 = vunpack.c.l.b16 %v257
      %v366 = vunpack.c.l.b16 %v258
      %v367 = vunpack.c.l.b16 %v259
      %v368 = vunpack.c.l.b16 %v260
      %v369 = vunpack.c.l.b16 %v261
      %v370 = vunpack.c.l.b16 %v262
      %v371 = vunpack.c.l.b16 %v263
      %v372 = vunpack.c.l.b16 %v264
      %v373 = vunpack.c.l.b16 %v265
      %v374 = vunpack.c.l.b16 %v266
      %v375 = vunpack.c.l.b16 %v267
      %v376 = vunpack.c.l.b16 %v268
      %v377 = vunpack.c.l.b16 %v269
      %v378 = vunpack.c.l.b16 %v270
      %v379 = vunpack.c.l.b16 %v271
      %v380 = vunpack.c.l.b16 %v272
      %v381 = vunpack.c.l.b16 %v273
      %v382 = vunpack.c.l.b16 %v274
      %v383 = vunpack.c.l.b16 %v275
      %v384 = vunpack.c.l.b16 %v276
      %v385 = vunpack.c.l.b16 %v277
      %v386 = vunpack.c.l.b16 %v278
      %v387 = vunpack.c.l.b16 %v279
      %v388 = vpack.c.b16 %v352, %v351
      %v389 = vpack.c.b16 %v354, %v353
      %v390 = vpack.c.b16 %v356, %v355
      %v391 = vpack.c.b16 %v358, %v357
      %v392 = vpack.c.b16 %v360, %v359
      %v393 = vpack.c.b16 %v362, %v361
      %v394 = vpack.c.b16 %v364, %v363
      %v395 = vpack.c.b16 %v366, %v365
      %v396 = vpack.c.b16 %v368, %v367
      %v397 = vpack.c.b16 %v370, %v369
      %v398 = vpack.c.b16 %v372, %v371
      %v399 = vpack.c.b16 %v374, %v373
      %v400 = vpack.c.b16 %v376, %v375
      %v401 = vpack.c.b16 %v378, %v377
      %v402 = vpack.c.b16 %v380, %v379
      %v403 = vpack.c.b16 %v382, %v381
      %v404 = vpack.c.b16 %v384, %v383
      %v405 = vpack.c.b16 %v386, %v385
      %v406 = vpack.c.b16 %v387, %v387
      %vm407 = vcmask 1044480
      %v408 = vrot.slane %v388, 3
      %v409 = vrot.slane %v389, 3
      %v410 = vsel %vm407, %v408, %v409
      %v411 = vrot.slane %v390, 3
      %v412 = vsel %vm407, %v409, %v411
      %v413 = vrot.slane %v391, 3
      %v414 = vsel %vm407, %v411, %v413
      %v415 = vrot.slane %v392, 3
      %v416 = vsel %vm407, %v413, %v415
      %v417 = vrot.slane %v393, 3
      %v418 = vsel %vm407, %v415, %v417
      %v419 = vrot.slane %v394, 3
      %v420 = vsel %vm407, %v417, %v419
      %v421 = vrot.slane %v395, 3
      %v422 = vsel %vm407, %v419, %v421
      %v423 = vrot.slane %v396, 3
      %v424 = vsel %vm407, %v421, %v423
      %v425 = vrot.slane %v397, 3
      %v426 = vsel %vm407, %v423, %v425
      %v427 = vrot.slane %v398, 3
      %v428 = vsel %vm407, %v425, %v427
      %v429 = vrot.slane %v399, 3
      %v430 = vsel %vm407, %v427, %v429
      %v431 = vrot.slane %v400, 3
      %v432 = vsel %vm407, %v429, %v431
      %v433 = vrot.slane %v401, 3
      %v434 = vsel %vm407, %v431, %v433
      %v435 = vrot.slane %v402, 3
      %v436 = vsel %vm407, %v433, %v435
      %v437 = vrot.slane %v403, 3
      %v438 = vsel %vm407, %v435, %v437
      %v439 = vrot.slane %v404, 3
      %v440 = vsel %vm407, %v437, %v439
      %v441 = vrot.slane %v405, 3
      %v442 = vsel %vm407, %v439, %v441
      %v443 = vrot.slane %v406, 3
      %v444 = vsel %vm407, %v441, %v443
      %v479 = vunpack.c.l.b16 %v298
      %v480 = vunpack.c.l.b16 %v299
      %v481 = vunpack.c.l.b16 %v300
      %v482 = vunpack.c.l.b16 %v301
      %v483 = vunpack.c.l.b16 %v302
      %v484 = vunpack.c.l.b16 %v303
      %v485 = vunpack.c.l.b16 %v304
      %v486 = vunpack.c.l.b16 %v305
      %v487 = vunpack.c.l.b16 %v306
      %v488 = vunpack.c.l.b16 %v307
      %v489 = vunpack.c.l.b16 %v308
      %v490 = vunpack.c.l.b16 %v309
      %v491 = vunpack.c.l.b16 %v310
      %v492 = vunpack.c.l.b16 %v311
      %v493 = vunpack.c.l.b16 %v312
      %v494 = vunpack.c.l.b16 %v313
      %v495 = vpack.c.b16 %v480, %v479
      %v496 = vpack.c.b16 %v482, %v481
      %v497 = vpack.c.b16 %v484, %v483
      %v498 = vpack.c.b16 %v486, %v485
      %v499 = vpack.c.b16 %v488, %v487
      %v500 = vpack.c.b16 %v490, %v489
      %v501 = vpack.c.b16 %v492, %v491
      %v502 = vpack.c.b16 %v494, %v493
      %511 = vmatprep.subr.bf16.mxu0 0
      %512 = vmatpush1.bf16.msra.mxu0 %v495
      %513 = vmatprep.subr.bf16.mxu0 0
      %514 = vmatpush1.bf16.msra.mxu0 %v496
      %515 = vmatprep.subr.bf16.mxu0 0
      %516 = vmatpush1.bf16.msra.mxu0 %v497
      %517 = vmatprep.subr.bf16.mxu0 0
      %518 = vmatpush1.bf16.msra.mxu0 %v498
      %519 = vmatprep.subr.bf16.mxu0 0
      %520 = vmatpush1.bf16.msra.mxu0 %v499
      %521 = vmatprep.subr.bf16.mxu0 0
      %522 = vmatpush1.bf16.msra.mxu0 %v500
      %523 = vmatprep.subr.bf16.mxu0 0
      %524 = vmatpush1.bf16.msra.mxu0 %v501
      %525 = vmatprep.subr.bf16.mxu0 0
      %526 = vmatpush1.bf16.msra.mxu0 %v502
      %527 = vmatprep.subr.bf16.mxu0 0
      %528 = vmatpush1.bf16.msra.mxu0 0
      %529 = vmatprep.subr.bf16.mxu0 0
      %530 = vmatpush1.bf16.msra.mxu0 0
      %531 = vmatprep.subr.bf16.mxu0 0
      %532 = vmatpush1.bf16.msra.mxu0 0
      %533 = vmatprep.subr.bf16.mxu0 0
      %534 = vmatpush1.bf16.msra.mxu0 0
      %535 = vmatprep.subr.bf16.mxu0 0
      %536 = vmatpush1.bf16.msra.mxu0 0
      %537 = vmatprep.subr.bf16.mxu0 0
      %538 = vmatpush1.bf16.msra.mxu0 0
      %539 = vmatprep.subr.bf16.mxu0 0
      %540 = vmatpush1.bf16.msra.mxu0 0
      %541 = vmatprep.subr.bf16.mxu0 0
      %542 = vmatpush1.bf16.msra.mxu0 0
      %543 = vmatprep.mubr.bf16.mxu0 0
      %544 = vmatmul.mubr.bf16.gmra.mrb[0].mxu0 %v410
      %v545 = vpop.f32.mrb[0].mxu0
      %v546 = vadd.f32 0.0, %v545
      %v547 = vpop.f32.mrb[0].mxu0
      %v548 = vpop.f32.mrb[0].mxu0
      %v549 = vadd.f32 0.0, %v548
      %v550 = vpop.f32.mrb[0].mxu0
      %551 = vmatprep.mubr.bf16.mxu0 0
      %552 = vmatmul.mubr.bf16.gmra.mrb[0].mxu0 %v412
      %v553 = vpop.f32.mrb[0].mxu0
      %v554 = vadd.f32 0.0, %v553
      %v555 = vpop.f32.mrb[0].mxu0
      %v556 = vpop.f32.mrb[0].mxu0
      %v557 = vadd.f32 0.0, %v556
      %v558 = vpop.f32.mrb[0].mxu0
      %559 = vmatprep.mubr.bf16.mxu0 0
      %560 = vmatmul.mubr.bf16.gmra.mrb[0].mxu0 %v414
      %v561 = vpop.f32.mrb[0].mxu0
      %v562 = vadd.f32 0.0, %v561
      %v563 = vpop.f32.mrb[0].mxu0
      %v564 = vpop.f32.mrb[0].mxu0
      %v565 = vadd.f32 0.0, %v564
      %v566 = vpop.f32.mrb[0].mxu0
      %567 = vmatprep.mubr.bf16.mxu0 0
      %568 = vmatmul.mubr.bf16.gmra.mrb[0].mxu0 %v416
      %v569 = vpop.f32.mrb[0].mxu0
      %v570 = vadd.f32 0.0, %v569
      %v571 = vpop.f32.mrb[0].mxu0
      %v572 = vpop.f32.mrb[0].mxu0
      %v573 = vadd.f32 0.0, %v572
      %v574 = vpop.f32.mrb[0].mxu0
      %575 = vmatprep.mubr.bf16.mxu0 0
      %576 = vmatmul.mubr.bf16.gmra.mrb[0].mxu0 %v418
      %v577 = vpop.f32.mrb[0].mxu0
      %v578 = vadd.f32 0.0, %v577
      %v579 = vpop.f32.mrb[0].mxu0
      %v580 = vpop.f32.mrb[0].mxu0
      %v581 = vadd.f32 0.0, %v580
      %v582 = vpop.f32.mrb[0].mxu0
      %583 = vmatprep.mubr.bf16.mxu0 0
      %584 = vmatmul.mubr.bf16.gmra.mrb[0].mxu0 %v420
      %v585 = vpop.f32.mrb[0].mxu0
      %v586 = vadd.f32 0.0, %v585
      %v587 = vpop.f32.mrb[0].mxu0
      %v588 = vpop.f32.mrb[0].mxu0
      %v589 = vadd.f32 0.0, %v588
      %v590 = vpop.f32.mrb[0].mxu0
      %591 = vmatprep.mubr.bf16.mxu0 0
      %592 = vmatmul.mubr.bf16.gmra.mrb[0].mxu0 %v422
      %v593 = vpop.f32.mrb[0].mxu0
      %v594 = vadd.f32 0.0, %v593
      %v595 = vpop.f32.mrb[0].mxu0
      %v596 = vpop.f32.mrb[0].mxu0
      %v597 = vadd.f32 0.0, %v596
      %v598 = vpop.f32.mrb[0].mxu0
      %599 = vmatprep.mubr.bf16.mxu0 0
      %600 = vmatmul.mubr.bf16.gmra.mrb[0].mxu0 %v424
      %v601 = vpop.f32.mrb[0].mxu0
      %v602 = vadd.f32 0.0, %v601
      %v603 = vpop.f32.mrb[0].mxu0
      %v604 = vpop.f32.mrb[0].mxu0
      %v605 = vadd.f32 0.0, %v604
      %v606 = vpop.f32.mrb[0].mxu0
      %607 = vmatprep.mubr.bf16.mxu0 0
      %608 = vmatmul.mubr.bf16.gmra.mrb[0].mxu0 %v426
      %v609 = vpop.f32.mrb[0].mxu0
      %v610 = vadd.f32 0.0, %v609
      %v611 = vpop.f32.mrb[0].mxu0
      %v612 = vpop.f32.mrb[0].mxu0
      %v613 = vadd.f32 0.0, %v612
      %v614 = vpop.f32.mrb[0].mxu0
      %615 = vmatprep.mubr.bf16.mxu0 0
      %616 = vmatmul.mubr.bf16.gmra.mrb[0].mxu0 %v428
      %v617 = vpop.f32.mrb[0].mxu0
      %v618 = vadd.f32 0.0, %v617
      %v619 = vpop.f32.mrb[0].mxu0
      %v620 = vpop.f32.mrb[0].mxu0
      %v621 = vadd.f32 0.0, %v620
      %v622 = vpop.f32.mrb[0].mxu0
      %623 = vmatprep.mubr.bf16.mxu0 0
      %624 = vmatmul.mubr.bf16.gmra.mrb[0].mxu0 %v430
      %v625 = vpop.f32.mrb[0].mxu0
      %v626 = vadd.f32 0.0, %v625
      %v627 = vpop.f32.mrb[0].mxu0
      %v628 = vpop.f32.mrb[0].mxu0
      %v629 = vadd.f32 0.0, %v628
      %v630 = vpop.f32.mrb[0].mxu0
      %631 = vmatprep.mubr.bf16.mxu0 0
      %632 = vmatmul.mubr.bf16.gmra.mrb[0].mxu0 %v432
      %v633 = vpop.f32.mrb[0].mxu0
      %v634 = vadd.f32 0.0, %v633
      %v635 = vpop.f32.mrb[0].mxu0
      %v636 = vpop.f32.mrb[0].mxu0
      %v637 = vadd.f32 0.0, %v636
      %v638 = vpop.f32.mrb[0].mxu0
      %639 = vmatprep.mubr.bf16.mxu0 0
      %640 = vmatmul.mubr.bf16.gmra.mrb[0].mxu0 %v434
      %v641 = vpop.f32.mrb[0].mxu0
      %v642 = vadd.f32 0.0, %v641
      %v643 = vpop.f32.mrb[0].mxu0
      %v644 = vpop.f32.mrb[0].mxu0
      %v645 = vadd.f32 0.0, %v644
      %v646 = vpop.f32.mrb[0].mxu0
      %647 = vmatprep.mubr.bf16.mxu0 0
      %648 = vmatmul.mubr.bf16.gmra.mrb[0].mxu0 %v436
      %v649 = vpop.f32.mrb[0].mxu0
      %v650 = vadd.f32 0.0, %v649
      %v651 = vpop.f32.mrb[0].mxu0
      %v652 = vpop.f32.mrb[0].mxu0
      %v653 = vadd.f32 0.0, %v652
      %v654 = vpop.f32.mrb[0].mxu0
      %655 = vmatprep.mubr.bf16.mxu0 0
      %656 = vmatmul.mubr.bf16.gmra.mrb[0].mxu0 %v438
      %v657 = vpop.f32.mrb[0].mxu0
      %v658 = vadd.f32 0.0, %v657
      %v659 = vpop.f32.mrb[0].mxu0
      %v660 = vpop.f32.mrb[0].mxu0
      %v661 = vadd.f32 0.0, %v660
      %v662 = vpop.f32.mrb[0].mxu0
      %663 = vmatprep.mubr.bf16.mxu0 0
      %664 = vmatmul.mubr.bf16.gmra.mrb[0].mxu0 %v440
      %v665 = vpop.f32.mrb[0].mxu0
      %v666 = vadd.f32 0.0, %v665
      %v667 = vpop.f32.mrb[0].mxu0
      %v668 = vpop.f32.mrb[0].mxu0
      %v669 = vadd.f32 0.0, %v668
      %v670 = vpop.f32.mrb[0].mxu0
      %671 = vmatprep.mubr.bf16.mxu0 0
      %672 = vmatmul.mubr.bf16.gmra.mrb[0].mxu0 %v442
      %v673 = vpop.f32.mrb[0].mxu0
      %v674 = vadd.f32 0.0, %v673
      %v675 = vpop.f32.mrb[0].mxu0
      %v676 = vpop.f32.mrb[0].mxu0
      %v677 = vadd.f32 0.0, %v676
      %v678 = vpop.f32.mrb[0].mxu0
      %679 = vmatprep.mubr.bf16.mxu0 0
      %680 = vmatmul.mubr.bf16.gmra.mrb[0].mxu0 %v444
      %v681 = vpop.f32.mrb[0].mxu0
      %v682 = vadd.f32 0.0, %v681
      %v683 = vpop.f32.mrb[0].mxu0
      %v684 = vpop.f32.mrb[0].mxu0
      %v685 = vadd.f32 0.0, %v684
      %v686 = vpop.f32.mrb[0].mxu0
      %687 = vdwg.mxu0
      %v689 = vunpack.c.l.b16 %v243
      %v690 = vpack.c.b16 %v352, %v689
      %vm691 = vsmask.f32 5376
      %v693 = vshrl.u32 %v690, 16
      %v695 = vrot.slane %v693, 2
      %v696 = vshll.u32 %v690, 16
      %v698 = vrot.slane %v696, 3
      %v699 = vor.u32 %v695, %v698
      %v701 = vshrl.u32 %v389, 16
      %v703 = vrot.slane %v701, 2
      %v704 = vshll.u32 %v389, 16
      %v706 = vrot.slane %v704, 3
      %v707 = vor.u32 %v703, %v706
      %v708 = vsel %vm691, %v699, %v707
      %v710 = vshrl.u32 %v390, 16
      %v712 = vrot.slane %v710, 2
      %v713 = vshll.u32 %v390, 16
      %v715 = vrot.slane %v713, 3
      %v716 = vor.u32 %v712, %v715
      %v717 = vsel %vm691, %v707, %v716
      %v719 = vshrl.u32 %v391, 16
      %v721 = vrot.slane %v719, 2
      %v722 = vshll.u32 %v391, 16
      %v724 = vrot.slane %v722, 3
      %v725 = vor.u32 %v721, %v724
      %v726 = vsel %vm691, %v716, %v725
      %v728 = vshrl.u32 %v392, 16
      %v730 = vrot.slane %v728, 2
      %v731 = vshll.u32 %v392, 16
      %v733 = vrot.slane %v731, 3
      %v734 = vor.u32 %v730, %v733
      %v735 = vsel %vm691, %v725, %v734
      %v737 = vshrl.u32 %v393, 16
      %v739 = vrot.slane %v737, 2
      %v740 = vshll.u32 %v393, 16
      %v742 = vrot.slane %v740, 3
      %v743 = vor.u32 %v739, %v742
      %v744 = vsel %vm691, %v734, %v743
      %v746 = vshrl.u32 %v394, 16
      %v748 = vrot.slane %v746, 2
      %v749 = vshll.u32 %v394, 16
      %v751 = vrot.slane %v749, 3
      %v752 = vor.u32 %v748, %v751
      %v753 = vsel %vm691, %v743, %v752
      %v755 = vshrl.u32 %v395, 16
      %v757 = vrot.slane %v755, 2
      %v758 = vshll.u32 %v395, 16
      %v760 = vrot.slane %v758, 3
      %v761 = vor.u32 %v757, %v760
      %v762 = vsel %vm691, %v752, %v761
      %v764 = vshrl.u32 %v396, 16
      %v766 = vrot.slane %v764, 2
      %v767 = vshll.u32 %v396, 16
      %v769 = vrot.slane %v767, 3
      %v770 = vor.u32 %v766, %v769
      %v771 = vsel %vm691, %v761, %v770
      %v773 = vshrl.u32 %v397, 16
      %v775 = vrot.slane %v773, 2
      %v776 = vshll.u32 %v397, 16
      %v778 = vrot.slane %v776, 3
      %v779 = vor.u32 %v775, %v778
      %v780 = vsel %vm691, %v770, %v779
      %v782 = vshrl.u32 %v398, 16
      %v784 = vrot.slane %v782, 2
      %v785 = vshll.u32 %v398, 16
      %v787 = vrot.slane %v785, 3
      %v788 = vor.u32 %v784, %v787
      %v789 = vsel %vm691, %v779, %v788
      %v791 = vshrl.u32 %v399, 16
      %v793 = vrot.slane %v791, 2
      %v794 = vshll.u32 %v399, 16
      %v796 = vrot.slane %v794, 3
      %v797 = vor.u32 %v793, %v796
      %v798 = vsel %vm691, %v788, %v797
      %v800 = vshrl.u32 %v400, 16
      %v802 = vrot.slane %v800, 2
      %v803 = vshll.u32 %v400, 16
      %v805 = vrot.slane %v803, 3
      %v806 = vor.u32 %v802, %v805
      %v807 = vsel %vm691, %v797, %v806
      %v809 = vshrl.u32 %v401, 16
      %v811 = vrot.slane %v809, 2
      %v812 = vshll.u32 %v401, 16
      %v814 = vrot.slane %v812, 3
      %v815 = vor.u32 %v811, %v814
      %v816 = vsel %vm691, %v806, %v815
      %v818 = vshrl.u32 %v402, 16
      %v820 = vrot.slane %v818, 2
      %v821 = vshll.u32 %v402, 16
      %v823 = vrot.slane %v821, 3
      %v824 = vor.u32 %v820, %v823
      %v825 = vsel %vm691, %v815, %v824
      %v827 = vshrl.u32 %v403, 16
      %v829 = vrot.slane %v827, 2
      %v830 = vshll.u32 %v403, 16
      %v832 = vrot.slane %v830, 3
      %v833 = vor.u32 %v829, %v832
      %v834 = vsel %vm691, %v824, %v833
      %v836 = vshrl.u32 %v404, 16
      %v838 = vrot.slane %v836, 2
      %v839 = vshll.u32 %v404, 16
      %v841 = vrot.slane %v839, 3
      %v842 = vor.u32 %v838, %v841
      %v843 = vsel %vm691, %v833, %v842
      %v845 = vshrl.u32 %v405, 16
      %v847 = vrot.slane %v845, 2
      %v848 = vshll.u32 %v405, 16
      %v850 = vrot.slane %v848, 3
      %v851 = vor.u32 %v847, %v850
      %v852 = vsel %vm691, %v842, %v851
      %v854 = vshrl.u32 %v406, 16
      %v856 = vrot.slane %v854, 2
      %v857 = vshll.u32 %v406, 16
      %v859 = vrot.slane %v857, 3
      %v860 = vor.u32 %v856, %v859
      %v861 = vsel %vm691, %v851, %v860
      %v896 = vunpack.c.l.b16 %v280
      %v897 = vunpack.c.l.b16 %v281
      %v898 = vunpack.c.l.b16 %v282
      %v899 = vunpack.c.l.b16 %v283
      %v900 = vunpack.c.l.b16 %v284
      %v901 = vunpack.c.l.b16 %v285
      %v902 = vunpack.c.l.b16 %v286
      %v903 = vunpack.c.l.b16 %v287
      %v904 = vunpack.c.l.b16 %v288
      %v905 = vunpack.c.l.b16 %v289
      %v906 = vunpack.c.l.b16 %v290
      %v907 = vunpack.c.l.b16 %v291
      %v908 = vunpack.c.l.b16 %v292
      %v909 = vunpack.c.l.b16 %v293
      %v910 = vunpack.c.l.b16 %v294
      %v911 = vunpack.c.l.b16 %v295
      %v912 = vpack.c.b16 %v897, %v896
      %v913 = vpack.c.b16 %v899, %v898
      %v914 = vpack.c.b16 %v901, %v900
      %v915 = vpack.c.b16 %v903, %v902
      %v916 = vpack.c.b16 %v905, %v904
      %v917 = vpack.c.b16 %v907, %v906
      %v918 = vpack.c.b16 %v909, %v908
      %v919 = vpack.c.b16 %v911, %v910
      %928 = vmatprep.subr.bf16.mxu0 0
      %929 = vmatpush1.bf16.msra.mxu0 %v912
      %930 = vmatprep.subr.bf16.mxu0 0
      %931 = vmatpush1.bf16.msra.mxu0 %v913
      %932 = vmatprep.subr.bf16.mxu0 0
      %933 = vmatpush1.bf16.msra.mxu0 %v914
      %934 = vmatprep.subr.bf16.mxu0 0
      %935 = vmatpush1.bf16.msra.mxu0 %v915
      %936 = vmatprep.subr.bf16.mxu0 0
      %937 = vmatpush1.bf16.msra.mxu0 %v916
      %938 = vmatprep.subr.bf16.mxu0 0
      %939 = vmatpush1.bf16.msra.mxu0 %v917
      %940 = vmatprep.subr.bf16.mxu0 0
      %941 = vmatpush1.bf16.msra.mxu0 %v918
      %942 = vmatprep.subr.bf16.mxu0 0
      %943 = vmatpush1.bf16.msra.mxu0 %v919
      %944 = vmatprep.subr.bf16.mxu0 0
      %945 = vmatpush1.bf16.msra.mxu0 0
      %946 = vmatprep.subr.bf16.mxu0 0
      %947 = vmatpush1.bf16.msra.mxu0 0
      %948 = vmatprep.subr.bf16.mxu0 0
      %949 = vmatpush1.bf16.msra.mxu0 0
      %950 = vmatprep.subr.bf16.mxu0 0
      %951 = vmatpush1.bf16.msra.mxu0 0
      %952 = vmatprep.subr.bf16.mxu0 0
      %953 = vmatpush1.bf16.msra.mxu0 0
      %954 = vmatprep.subr.bf16.mxu0 0
      %955 = vmatpush1.bf16.msra.mxu0 0
      %956 = vmatprep.subr.bf16.mxu0 0
      %957 = vmatpush1.bf16.msra.mxu0 0
      %958 = vmatprep.subr.bf16.mxu0 0
      %959 = vmatpush1.bf16.msra.mxu0 0
      %960 = vmatprep.mubr.bf16.mxu0 0
      %961 = vmatmul.mubr.bf16.gmra.mrb[0].mxu0 %v708
      %v962 = vpop.f32.mrb[0].mxu0
      %v963 = vadd.f32 %v546, %v962
      %v964 = vpop.f32.mrb[0].mxu0
      %v965 = vpop.f32.mrb[0].mxu0
      %v966 = vadd.f32 %v549, %v965
      %v967 = vpop.f32.mrb[0].mxu0
      %968 = vmatprep.mubr.bf16.mxu0 0
      %969 = vmatmul.mubr.bf16.gmra.mrb[0].mxu0 %v717
      %v970 = vpop.f32.mrb[0].mxu0
      %v971 = vadd.f32 %v554, %v970
      %v972 = vpop.f32.mrb[0].mxu0
      %v973 = vpop.f32.mrb[0].mxu0
      %v974 = vadd.f32 %v557, %v973
      %v975 = vpop.f32.mrb[0].mxu0
      %976 = vmatprep.mubr.bf16.mxu0 0
      %977 = vmatmul.mubr.bf16.gmra.mrb[0].mxu0 %v726
      %v978 = vpop.f32.mrb[0].mxu0
      %v979 = vadd.f32 %v562, %v978
      %v980 = vpop.f32.mrb[0].mxu0
      %v981 = vpop.f32.mrb[0].mxu0
      %v982 = vadd.f32 %v565, %v981
      %v983 = vpop.f32.mrb[0].mxu0
      %984 = vmatprep.mubr.bf16.mxu0 0
      %985 = vmatmul.mubr.bf16.gmra.mrb[0].mxu0 %v735
      %v986 = vpop.f32.mrb[0].mxu0
      %v987 = vadd.f32 %v570, %v986
      %v988 = vpop.f32.mrb[0].mxu0
      %v989 = vpop.f32.mrb[0].mxu0
      %v990 = vadd.f32 %v573, %v989
      %v991 = vpop.f32.mrb[0].mxu0
      %992 = vmatprep.mubr.bf16.mxu0 0
      %993 = vmatmul.mubr.bf16.gmra.mrb[0].mxu0 %v744
      %v994 = vpop.f32.mrb[0].mxu0
      %v995 = vadd.f32 %v578, %v994
      %v996 = vpop.f32.mrb[0].mxu0
      %v997 = vpop.f32.mrb[0].mxu0
      %v998 = vadd.f32 %v581, %v997
      %v999 = vpop.f32.mrb[0].mxu0
      %1000 = vmatprep.mubr.bf16.mxu0 0
      %1001 = vmatmul.mubr.bf16.gmra.mrb[0].mxu0 %v753
      %v1002 = vpop.f32.mrb[0].mxu0
      %v1003 = vadd.f32 %v586, %v1002
      %v1004 = vpop.f32.mrb[0].mxu0
      %v1005 = vpop.f32.mrb[0].mxu0
      %v1006 = vadd.f32 %v589, %v1005
      %v1007 = vpop.f32.mrb[0].mxu0
      %1008 = vmatprep.mubr.bf16.mxu0 0
      %1009 = vmatmul.mubr.bf16.gmra.mrb[0].mxu0 %v762
      %v1010 = vpop.f32.mrb[0].mxu0
      %v1011 = vadd.f32 %v594, %v1010
      %v1012 = vpop.f32.mrb[0].mxu0
      %v1013 = vpop.f32.mrb[0].mxu0
      %v1014 = vadd.f32 %v597, %v1013
      %v1015 = vpop.f32.mrb[0].mxu0
      %1016 = vmatprep.mubr.bf16.mxu0 0
      %1017 = vmatmul.mubr.bf16.gmra.mrb[0].mxu0 %v771
      %v1018 = vpop.f32.mrb[0].mxu0
      %v1019 = vadd.f32 %v602, %v1018
      %v1020 = vpop.f32.mrb[0].mxu0
      %v1021 = vpop.f32.mrb[0].mxu0
      %v1022 = vadd.f32 %v605, %v1021
      %v1023 = vpop.f32.mrb[0].mxu0
      %1024 = vmatprep.mubr.bf16.mxu0 0
      %1025 = vmatmul.mubr.bf16.gmra.mrb[0].mxu0 %v780
      %v1026 = vpop.f32.mrb[0].mxu0
      %v1027 = vadd.f32 %v610, %v1026
      %v1028 = vpop.f32.mrb[0].mxu0
      %v1029 = vpop.f32.mrb[0].mxu0
      %v1030 = vadd.f32 %v613, %v1029
      %v1031 = vpop.f32.mrb[0].mxu0
      %1032 = vmatprep.mubr.bf16.mxu0 0
      %1033 = vmatmul.mubr.bf16.gmra.mrb[0].mxu0 %v789
      %v1034 = vpop.f32.mrb[0].mxu0
      %v1035 = vadd.f32 %v618, %v1034
      %v1036 = vpop.f32.mrb[0].mxu0
      %v1037 = vpop.f32.mrb[0].mxu0
      %v1038 = vadd.f32 %v621, %v1037
      %v1039 = vpop.f32.mrb[0].mxu0
      %1040 = vmatprep.mubr.bf16.mxu0 0
      %1041 = vmatmul.mubr.bf16.gmra.mrb[0].mxu0 %v798
      %v1042 = vpop.f32.mrb[0].mxu0
      %v1043 = vadd.f32 %v626, %v1042
      %v1044 = vpop.f32.mrb[0].mxu0
      %v1045 = vpop.f32.mrb[0].mxu0
      %v1046 = vadd.f32 %v629, %v1045
      %v1047 = vpop.f32.mrb[0].mxu0
      %1048 = vmatprep.mubr.bf16.mxu0 0
      %1049 = vmatmul.mubr.bf16.gmra.mrb[0].mxu0 %v807
      %v1050 = vpop.f32.mrb[0].mxu0
      %v1051 = vadd.f32 %v634, %v1050
      %v1052 = vpop.f32.mrb[0].mxu0
      %v1053 = vpop.f32.mrb[0].mxu0
      %v1054 = vadd.f32 %v637, %v1053
      %v1055 = vpop.f32.mrb[0].mxu0
      %1056 = vmatprep.mubr.bf16.mxu0 0
      %1057 = vmatmul.mubr.bf16.gmra.mrb[0].mxu0 %v816
      %v1058 = vpop.f32.mrb[0].mxu0
      %v1059 = vadd.f32 %v642, %v1058
      %v1060 = vpop.f32.mrb[0].mxu0
      %v1061 = vpop.f32.mrb[0].mxu0
      %v1062 = vadd.f32 %v645, %v1061
      %v1063 = vpop.f32.mrb[0].mxu0
      %1064 = vmatprep.mubr.bf16.mxu0 0
      %1065 = vmatmul.mubr.bf16.gmra.mrb[0].mxu0 %v825
      %v1066 = vpop.f32.mrb[0].mxu0
      %v1067 = vadd.f32 %v650, %v1066
      %v1068 = vpop.f32.mrb[0].mxu0
      %v1069 = vpop.f32.mrb[0].mxu0
      %v1070 = vadd.f32 %v653, %v1069
      %v1071 = vpop.f32.mrb[0].mxu0
      %1072 = vmatprep.mubr.bf16.mxu0 0
      %1073 = vmatmul.mubr.bf16.gmra.mrb[0].mxu0 %v834
      %v1074 = vpop.f32.mrb[0].mxu0
      %v1075 = vadd.f32 %v658, %v1074
      %v1076 = vpop.f32.mrb[0].mxu0
      %v1077 = vpop.f32.mrb[0].mxu0
      %v1078 = vadd.f32 %v661, %v1077
      %v1079 = vpop.f32.mrb[0].mxu0
      %1080 = vmatprep.mubr.bf16.mxu0 0
      %1081 = vmatmul.mubr.bf16.gmra.mrb[0].mxu0 %v843
      %v1082 = vpop.f32.mrb[0].mxu0
      %v1083 = vadd.f32 %v666, %v1082
      %v1084 = vpop.f32.mrb[0].mxu0
      %v1085 = vpop.f32.mrb[0].mxu0
      %v1086 = vadd.f32 %v669, %v1085
      %v1087 = vpop.f32.mrb[0].mxu0
      %1088 = vmatprep.mubr.bf16.mxu0 0
      %1089 = vmatmul.mubr.bf16.gmra.mrb[0].mxu0 %v852
      %v1090 = vpop.f32.mrb[0].mxu0
      %v1091 = vadd.f32 %v674, %v1090
      %v1092 = vpop.f32.mrb[0].mxu0
      %v1093 = vpop.f32.mrb[0].mxu0
      %v1094 = vadd.f32 %v677, %v1093
      %v1095 = vpop.f32.mrb[0].mxu0
      %1096 = vmatprep.mubr.bf16.mxu0 0
      %1097 = vmatmul.mubr.bf16.gmra.mrb[0].mxu0 %v861
      %v1098 = vpop.f32.mrb[0].mxu0
      %v1099 = vadd.f32 %v682, %v1098
      %v1100 = vpop.f32.mrb[0].mxu0
      %v1101 = vpop.f32.mrb[0].mxu0
      %v1102 = vadd.f32 %v685, %v1101
      %v1103 = vpop.f32.mrb[0].mxu0
      %1104 = vdwg.mxu0
      %v1105 = vld [vmem:[%s230 + $0x94] sm:$0xf]
      %s1106 = scalar_lea.vmem %s1, 128
      %v1107 = vld [vmem:[%s1106] sm:$0xf]
      %v1108 = vld [vmem:[%s1106 + $0x4] sm:$0xf]
      %v1109 = vld [vmem:[%s1106 + $0x8] sm:$0xf]
      %v1110 = vld [vmem:[%s1106 + $0xc] sm:$0xf]
      %v1111 = vld [vmem:[%s1106 + $0x10] sm:$0xf]
      %v1112 = vld [vmem:[%s1106 + $0x14] sm:$0xf]
      %v1113 = vld [vmem:[%s1106 + $0x18] sm:$0xf]
      %v1114 = vld [vmem:[%s1106 + $0x1c] sm:$0xf]
      %v1115 = vld [vmem:[%s1106 + $0x20] sm:$0xf]
      %v1116 = vld [vmem:[%s1106 + $0x24] sm:$0xf]
      %v1117 = vld [vmem:[%s1106 + $0x28] sm:$0xf]
      %v1118 = vld [vmem:[%s1106 + $0x2c] sm:$0xf]
      %v1119 = vld [vmem:[%s1106 + $0x30] sm:$0xf]
      %v1120 = vld [vmem:[%s1106 + $0x34] sm:$0xf]
      %v1121 = vld [vmem:[%s1106 + $0x38] sm:$0xf]
      %v1122 = vld [vmem:[%s1106 + $0x3c] sm:$0xf]
      %v1124 = vunpack.c.l.b16 %v1105
      %v1125 = vpack.c.b16 %v1124, %v1124
      %vm1126 = vsmask.f32 4352
      %v1128 = vshrl.u32 %v388, 16
      %v1130 = vrot.slane %v1128, 3
      %v1131 = vshll.u32 %v388, 16
      %v1133 = vrot.slane %v1131, 4
      %v1134 = vor.u32 %v1130, %v1133
      %v1135 = vrot.slane %v701, 3
      %v1136 = vrot.slane %v704, 4
      %v1137 = vor.u32 %v1135, %v1136
      %v1138 = vsel %vm1126, %v1134, %v1137
      %v1139 = vrot.slane %v710, 3
      %v1140 = vrot.slane %v713, 4
      %v1141 = vor.u32 %v1139, %v1140
      %v1142 = vsel %vm1126, %v1137, %v1141
      %v1143 = vrot.slane %v719, 3
      %v1144 = vrot.slane %v722, 4
      %v1145 = vor.u32 %v1143, %v1144
      %v1146 = vsel %vm1126, %v1141, %v1145
      %v1147 = vrot.slane %v728, 3
      %v1148 = vrot.slane %v731, 4
      %v1149 = vor.u32 %v1147, %v1148
      %v1150 = vsel %vm1126, %v1145, %v1149
      %v1151 = vrot.slane %v737, 3
      %v1152 = vrot.slane %v740, 4
      %v1153 = vor.u32 %v1151, %v1152
      %v1154 = vsel %vm1126, %v1149, %v1153
      %v1155 = vrot.slane %v746, 3
      %v1156 = vrot.slane %v749, 4
      %v1157 = vor.u32 %v1155, %v1156
      %v1158 = vsel %vm1126, %v1153, %v1157
      %v1159 = vrot.slane %v755, 3
      %v1160 = vrot.slane %v758, 4
      %v1161 = vor.u32 %v1159, %v1160
      %v1162 = vsel %vm1126, %v1157, %v1161
      %v1163 = vrot.slane %v764, 3
      %v1164 = vrot.slane %v767, 4
      %v1165 = vor.u32 %v1163, %v1164
      %v1166 = vsel %vm1126, %v1161, %v1165
      %v1167 = vrot.slane %v773, 3
      %v1168 = vrot.slane %v776, 4
      %v1169 = vor.u32 %v1167, %v1168
      %v1170 = vsel %vm1126, %v1165, %v1169
      %v1171 = vrot.slane %v782, 3
      %v1172 = vrot.slane %v785, 4
      %v1173 = vor.u32 %v1171, %v1172
      %v1174 = vsel %vm1126, %v1169, %v1173
      %v1175 = vrot.slane %v791, 3
      %v1176 = vrot.slane %v794, 4
      %v1177 = vor.u32 %v1175, %v1176
      %v1178 = vsel %vm1126, %v1173, %v1177
      %v1179 = vrot.slane %v800, 3
      %v1180 = vrot.slane %v803, 4
      %v1181 = vor.u32 %v1179, %v1180
      %v1182 = vsel %vm1126, %v1177, %v1181
      %v1183 = vrot.slane %v809, 3
      %v1184 = vrot.slane %v812, 4
      %v1185 = vor.u32 %v1183, %v1184
      %v1186 = vsel %vm1126, %v1181, %v1185
      %v1187 = vrot.slane %v818, 3
      %v1188 = vrot.slane %v821, 4
      %v1189 = vor.u32 %v1187, %v1188
      %v1190 = vsel %vm1126, %v1185, %v1189
      %v1191 = vrot.slane %v827, 3
      %v1192 = vrot.slane %v830, 4
      %v1193 = vor.u32 %v1191, %v1192
      %v1194 = vsel %vm1126, %v1189, %v1193
      %v1195 = vrot.slane %v836, 3
      %v1196 = vrot.slane %v839, 4
      %v1197 = vor.u32 %v1195, %v1196
      %v1198 = vsel %vm1126, %v1193, %v1197
      %v1199 = vrot.slane %v845, 3
      %v1200 = vrot.slane %v848, 4
      %v1201 = vor.u32 %v1199, %v1200
      %v1202 = vsel %vm1126, %v1197, %v1201
      %v1204 = vshrl.u32 %v1125, 16
      %v1206 = vrot.slane %v1204, 3
      %v1207 = vshll.u32 %v1125, 16
      %v1209 = vrot.slane %v1207, 4
      %v1210 = vor.u32 %v1206, %v1209
      %v1211 = vsel %vm1126, %v1201, %v1210
      %v1246 = vunpack.c.l.b16 %v1107
      %v1247 = vunpack.c.l.b16 %v1108
      %v1248 = vunpack.c.l.b16 %v1109
      %v1249 = vunpack.c.l.b16 %v1110
      %v1250 = vunpack.c.l.b16 %v1111
      %v1251 = vunpack.c.l.b16 %v1112
      %v1252 = vunpack.c.l.b16 %v1113
      %v1253 = vunpack.c.l.b16 %v1114
      %v1254 = vunpack.c.l.b16 %v1115
      %v1255 = vunpack.c.l.b16 %v1116
      %v1256 = vunpack.c.l.b16 %v1117
      %v1257 = vunpack.c.l.b16 %v1118
      %v1258 = vunpack.c.l.b16 %v1119
      %v1259 = vunpack.c.l.b16 %v1120
      %v1260 = vunpack.c.l.b16 %v1121
      %v1261 = vunpack.c.l.b16 %v1122
      %v1262 = vpack.c.b16 %v1247, %v1246
      %v1263 = vpack.c.b16 %v1249, %v1248
      %v1264 = vpack.c.b16 %v1251, %v1250
      %v1265 = vpack.c.b16 %v1253, %v1252
      %v1266 = vpack.c.b16 %v1255, %v1254
      %v1267 = vpack.c.b16 %v1257, %v1256
      %v1268 = vpack.c.b16 %v1259, %v1258
      %v1269 = vpack.c.b16 %v1261, %v1260
      %1278 = vmatprep.subr.bf16.mxu0 0
      %1279 = vmatpush1.bf16.msra.mxu0 %v1262
      %1280 = vmatprep.subr.bf16.mxu0 0
      %1281 = vmatpush1.bf16.msra.mxu0 %v1263
      %1282 = vmatprep.subr.bf16.mxu0 0
      %1283 = vmatpush1.bf16.msra.mxu0 %v1264
      %1284 = vmatprep.subr.bf16.mxu0 0
      %1285 = vmatpush1.bf16.msra.mxu0 %v1265
      %1286 = vmatprep.subr.bf16.mxu0 0
      %1287 = vmatpush1.bf16.msra.mxu0 %v1266
      %1288 = vmatprep.subr.bf16.mxu0 0
      %1289 = vmatpush1.bf16.msra.mxu0 %v1267
      %1290 = vmatprep.subr.bf16.mxu0 0
      %1291 = vmatpush1.bf16.msra.mxu0 %v1268
      %1292 = vmatprep.subr.bf16.mxu0 0
      %1293 = vmatpush1.bf16.msra.mxu0 %v1269
      %1294 = vmatprep.subr.bf16.mxu0 0
      %1295 = vmatpush1.bf16.msra.mxu0 0
      %1296 = vmatprep.subr.bf16.mxu0 0
      %1297 = vmatpush1.bf16.msra.mxu0 0
      %1298 = vmatprep.subr.bf16.mxu0 0
      %1299 = vmatpush1.bf16.msra.mxu0 0
      %1300 = vmatprep.subr.bf16.mxu0 0
      %1301 = vmatpush1.bf16.msra.mxu0 0
      %1302 = vmatprep.subr.bf16.mxu0 0
      %1303 = vmatpush1.bf16.msra.mxu0 0
      %1304 = vmatprep.subr.bf16.mxu0 0
      %1305 = vmatpush1.bf16.msra.mxu0 0
      %1306 = vmatprep.subr.bf16.mxu0 0
      %1307 = vmatpush1.bf16.msra.mxu0 0
      %1308 = vmatprep.subr.bf16.mxu0 0
      %1309 = vmatpush1.bf16.msra.mxu0 0
      %1310 = vmatprep.mubr.bf16.mxu0 0
      %1311 = vmatmul.mubr.bf16.gmra.mrb[0].mxu0 %v1138
      %v1312 = vpop.f32.mrb[0].mxu0
      %v1313 = vadd.f32 0.0, %v1312
      %v1314 = vpop.f32.mrb[0].mxu0
      %v1315 = vpop.f32.mrb[0].mxu0
      %v1316 = vadd.f32 0.0, %v1315
      %v1317 = vpop.f32.mrb[0].mxu0
      %1318 = vmatprep.mubr.bf16.mxu0 0
      %1319 = vmatmul.mubr.bf16.gmra.mrb[0].mxu0 %v1142
      %v1320 = vpop.f32.mrb[0].mxu0
      %v1321 = vadd.f32 0.0, %v1320
      %v1322 = vpop.f32.mrb[0].mxu0
      %v1323 = vpop.f32.mrb[0].mxu0
      %v1324 = vadd.f32 0.0, %v1323
      %v1325 = vpop.f32.mrb[0].mxu0
      %1326 = vmatprep.mubr.bf16.mxu0 0
      %1327 = vmatmul.mubr.bf16.gmra.mrb[0].mxu0 %v1146
      %v1328 = vpop.f32.mrb[0].mxu0
      %v1329 = vadd.f32 0.0, %v1328
      %v1330 = vpop.f32.mrb[0].mxu0
      %v1331 = vpop.f32.mrb[0].mxu0
      %v1332 = vadd.f32 0.0, %v1331
      %v1333 = vpop.f32.mrb[0].mxu0
      %1334 = vmatprep.mubr.bf16.mxu0 0
      %1335 = vmatmul.mubr.bf16.gmra.mrb[0].mxu0 %v1150
      %v1336 = vpop.f32.mrb[0].mxu0
      %v1337 = vadd.f32 0.0, %v1336
      %v1338 = vpop.f32.mrb[0].mxu0
      %v1339 = vpop.f32.mrb[0].mxu0
      %v1340 = vadd.f32 0.0, %v1339
      %v1341 = vpop.f32.mrb[0].mxu0
      %1342 = vmatprep.mubr.bf16.mxu0 0
      %1343 = vmatmul.mubr.bf16.gmra.mrb[0].mxu0 %v1154
      %v1344 = vpop.f32.mrb[0].mxu0
      %v1345 = vadd.f32 0.0, %v1344
      %v1346 = vpop.f32.mrb[0].mxu0
      %v1347 = vpop.f32.mrb[0].mxu0
      %v1348 = vadd.f32 0.0, %v1347
      %v1349 = vpop.f32.mrb[0].mxu0
      %1350 = vmatprep.mubr.bf16.mxu0 0
      %1351 = vmatmul.mubr.bf16.gmra.mrb[0].mxu0 %v1158
      %v1352 = vpop.f32.mrb[0].mxu0
      %v1353 = vadd.f32 0.0, %v1352
      %v1354 = vpop.f32.mrb[0].mxu0
      %v1355 = vpop.f32.mrb[0].mxu0
      %v1356 = vadd.f32 0.0, %v1355
      %v1357 = vpop.f32.mrb[0].mxu0
      %1358 = vmatprep.mubr.bf16.mxu0 0
      %1359 = vmatmul.mubr.bf16.gmra.mrb[0].mxu0 %v1162
      %v1360 = vpop.f32.mrb[0].mxu0
      %v1361 = vadd.f32 0.0, %v1360
      %v1362 = vpop.f32.mrb[0].mxu0
      %v1363 = vpop.f32.mrb[0].mxu0
      %v1364 = vadd.f32 0.0, %v1363
      %v1365 = vpop.f32.mrb[0].mxu0
      %1366 = vmatprep.mubr.bf16.mxu0 0
      %1367 = vmatmul.mubr.bf16.gmra.mrb[0].mxu0 %v1166
      %v1368 = vpop.f32.mrb[0].mxu0
      %v1369 = vadd.f32 0.0, %v1368
      %v1370 = vpop.f32.mrb[0].mxu0
      %v1371 = vpop.f32.mrb[0].mxu0
      %v1372 = vadd.f32 0.0, %v1371
      %v1373 = vpop.f32.mrb[0].mxu0
      %1374 = vmatprep.mubr.bf16.mxu0 0
      %1375 = vmatmul.mubr.bf16.gmra.mrb[0].mxu0 %v1170
      %v1376 = vpop.f32.mrb[0].mxu0
      %v1377 = vadd.f32 0.0, %v1376
      %v1378 = vpop.f32.mrb[0].mxu0
      %v1379 = vpop.f32.mrb[0].mxu0
      %v1380 = vadd.f32 0.0, %v1379
      %v1381 = vpop.f32.mrb[0].mxu0
      %1382 = vmatprep.mubr.bf16.mxu0 0
      %1383 = vmatmul.mubr.bf16.gmra.mrb[0].mxu0 %v1174
      %v1384 = vpop.f32.mrb[0].mxu0
      %v1385 = vadd.f32 0.0, %v1384
      %v1386 = vpop.f32.mrb[0].mxu0
      %v1387 = vpop.f32.mrb[0].mxu0
      %v1388 = vadd.f32 0.0, %v1387
      %v1389 = vpop.f32.mrb[0].mxu0
      %1390 = vmatprep.mubr.bf16.mxu0 0
      %1391 = vmatmul.mubr.bf16.gmra.mrb[0].mxu0 %v1178
      %v1392 = vpop.f32.mrb[0].mxu0
      %v1393 = vadd.f32 0.0, %v1392
      %v1394 = vpop.f32.mrb[0].mxu0
      %v1395 = vpop.f32.mrb[0].mxu0
      %v1396 = vadd.f32 0.0, %v1395
      %v1397 = vpop.f32.mrb[0].mxu0
      %1398 = vmatprep.mubr.bf16.mxu0 0
      %1399 = vmatmul.mubr.bf16.gmra.mrb[0].mxu0 %v1182
      %v1400 = vpop.f32.mrb[0].mxu0
      %v1401 = vadd.f32 0.0, %v1400
      %v1402 = vpop.f32.mrb[0].mxu0
      %v1403 = vpop.f32.mrb[0].mxu0
      %v1404 = vadd.f32 0.0, %v1403
      %v1405 = vpop.f32.mrb[0].mxu0
      %1406 = vmatprep.mubr.bf16.mxu0 0
      %1407 = vmatmul.mubr.bf16.gmra.mrb[0].mxu0 %v1186
      %v1408 = vpop.f32.mrb[0].mxu0
      %v1409 = vadd.f32 0.0, %v1408
      %v1410 = vpop.f32.mrb[0].mxu0
      %v1411 = vpop.f32.mrb[0].mxu0
      %v1412 = vadd.f32 0.0, %v1411
      %v1413 = vpop.f32.mrb[0].mxu0
      %1414 = vmatprep.mubr.bf16.mxu0 0
      %1415 = vmatmul.mubr.bf16.gmra.mrb[0].mxu0 %v1190
      %v1416 = vpop.f32.mrb[0].mxu0
      %v1417 = vadd.f32 0.0, %v1416
      %v1418 = vpop.f32.mrb[0].mxu0
      %v1419 = vpop.f32.mrb[0].mxu0
      %v1420 = vadd.f32 0.0, %v1419
      %v1421 = vpop.f32.mrb[0].mxu0
      %1422 = vmatprep.mubr.bf16.mxu0 0
      %1423 = vmatmul.mubr.bf16.gmra.mrb[0].mxu0 %v1194
      %v1424 = vpop.f32.mrb[0].mxu0
      %v1425 = vadd.f32 0.0, %v1424
      %v1426 = vpop.f32.mrb[0].mxu0
      %v1427 = vpop.f32.mrb[0].mxu0
      %v1428 = vadd.f32 0.0, %v1427
      %v1429 = vpop.f32.mrb[0].mxu0
      %1430 = vmatprep.mubr.bf16.mxu0 0
      %1431 = vmatmul.mubr.bf16.gmra.mrb[0].mxu0 %v1198
      %v1432 = vpop.f32.mrb[0].mxu0
      %v1433 = vadd.f32 0.0, %v1432
      %v1434 = vpop.f32.mrb[0].mxu0
      %v1435 = vpop.f32.mrb[0].mxu0
      %v1436 = vadd.f32 0.0, %v1435
      %v1437 = vpop.f32.mrb[0].mxu0
      %1438 = vmatprep.mubr.bf16.mxu0 0
      %1439 = vmatmul.mubr.bf16.gmra.mrb[0].mxu0 %v1202
      %v1440 = vpop.f32.mrb[0].mxu0
      %v1441 = vadd.f32 0.0, %v1440
      %v1442 = vpop.f32.mrb[0].mxu0
      %v1443 = vpop.f32.mrb[0].mxu0
      %v1444 = vadd.f32 0.0, %v1443
      %v1445 = vpop.f32.mrb[0].mxu0
      %1446 = vmatprep.mubr.bf16.mxu0 0
      %1447 = vmatmul.mubr.bf16.gmra.mrb[0].mxu0 %v1211
      %v1448 = vpop.f32.mrb[0].mxu0
      %v1449 = vadd.f32 0.0, %v1448
      %v1450 = vpop.f32.mrb[0].mxu0
      %v1451 = vpop.f32.mrb[0].mxu0
      %v1452 = vadd.f32 0.0, %v1451
      %v1453 = vpop.f32.mrb[0].mxu0
      %1454 = vdwg.mxu0
      %v1455 = vadd.f32 %v963, %v1313
      %v1456 = vadd.f32 %v966, %v1316
      %v1457 = vadd.f32 %v971, %v1321
      %v1458 = vadd.f32 %v974, %v1324
      %v1459 = vadd.f32 %v979, %v1329
      %v1460 = vadd.f32 %v982, %v1332
      %v1461 = vadd.f32 %v987, %v1337
      %v1462 = vadd.f32 %v990, %v1340
      %v1463 = vadd.f32 %v995, %v1345
      %v1464 = vadd.f32 %v998, %v1348
      %v1465 = vadd.f32 %v1003, %v1353
      %v1466 = vadd.f32 %v1006, %v1356
      %v1467 = vadd.f32 %v1011, %v1361
      %v1468 = vadd.f32 %v1014, %v1364
      %v1469 = vadd.f32 %v1019, %v1369
      %v1470 = vadd.f32 %v1022, %v1372
      %v1471 = vadd.f32 %v1027, %v1377
      %v1472 = vadd.f32 %v1030, %v1380
      %v1473 = vadd.f32 %v1035, %v1385
      %v1474 = vadd.f32 %v1038, %v1388
      %v1475 = vadd.f32 %v1043, %v1393
      %v1476 = vadd.f32 %v1046, %v1396
      %v1477 = vadd.f32 %v1051, %v1401
      %v1478 = vadd.f32 %v1054, %v1404
      %v1479 = vadd.f32 %v1059, %v1409
      %v1480 = vadd.f32 %v1062, %v1412
      %v1481 = vadd.f32 %v1067, %v1417
      %v1482 = vadd.f32 %v1070, %v1420
      %v1483 = vadd.f32 %v1075, %v1425
      %v1484 = vadd.f32 %v1078, %v1428
      %v1485 = vadd.f32 %v1083, %v1433
      %v1486 = vadd.f32 %v1086, %v1436
      %v1487 = vadd.f32 %v1091, %v1441
      %v1488 = vadd.f32 %v1094, %v1444
      %v1489 = vadd.f32 %v1099, %v1449
      %v1490 = vadd.f32 %v1102, %v1452
      %v1491 = vld [vmem:[%s230 + $0xc] sm:$0x8]
      %v1492 = vld [vmem:[%s230 + $0x10] sm:$0xf]
      %v1493 = vld [vmem:[%s230 + $0x14] sm:$0xf]
      %v1494 = vld [vmem:[%s230 + $0x18] sm:$0xf]
      %v1495 = vld [vmem:[%s230 + $0x1c] sm:$0xf]
      %v1496 = vld [vmem:[%s230 + $0x20] sm:$0xf]
      %v1497 = vld [vmem:[%s230 + $0x24] sm:$0xf]
      %v1498 = vld [vmem:[%s230 + $0x28] sm:$0xf]
      %v1499 = vld [vmem:[%s230 + $0x2c] sm:$0xf]
      %v1500 = vld [vmem:[%s230 + $0x30] sm:$0xf]
      %v1501 = vld [vmem:[%s230 + $0x34] sm:$0xf]
      %v1502 = vld [vmem:[%s230 + $0x38] sm:$0xf]
      %v1503 = vld [vmem:[%s230 + $0x3c] sm:$0xf]
      %v1504 = vld [vmem:[%s230 + $0x40] sm:$0xf]
      %v1505 = vld [vmem:[%s230 + $0x44] sm:$0xf]
      %v1506 = vld [vmem:[%s230 + $0x48] sm:$0xf]
      %v1507 = vld [vmem:[%s230 + $0x4c] sm:$0xf]
      %v1508 = vld [vmem:[%s230 + $0x50] sm:$0xf]
      %v1509 = vld [vmem:[%s230 + $0x54] sm:$0xf]
      %v1510 = vld [vmem:[%s230 + $0x58] sm:$0xf]
      %v1511 = vld [vmem:[%s230 + $0x5c] sm:$0xf]
      %v1512 = vld [vmem:[%s230 + $0x60] sm:$0xf]
      %v1513 = vld [vmem:[%s230 + $0x64] sm:$0xf]
      %v1514 = vld [vmem:[%s230 + $0x68] sm:$0xf]
      %v1515 = vld [vmem:[%s230 + $0x6c] sm:$0xf]
      %v1516 = vld [vmem:[%s230 + $0x70] sm:$0xf]
      %v1517 = vld [vmem:[%s230 + $0x74] sm:$0xf]
      %v1518 = vld [vmem:[%s230 + $0x78] sm:$0xf]
      %v1519 = vld [vmem:[%s230 + $0x7c] sm:$0xf]
      %v1520 = vld [vmem:[%s230 + $0x80] sm:$0xf]
      %v1521 = vld [vmem:[%s230 + $0x84] sm:$0xf]
      %v1522 = vld [vmem:[%s230 + $0x88] sm:$0xf]
      %v1523 = vld [vmem:[%s230 + $0x8c] sm:$0xf]
      %v1524 = vld [vmem:[%s230 + $0x90] sm:$0xf]
      %v1525 = vld [vmem:[%s230 + $0x94] sm:$0xf]
      %v1526 = vld [vmem:[%s230 + $0x98] sm:$0xf]
      %v1527 = vld [vmem:[%s230 + $0x9c] sm:$0xf]
      %s1528 = scalar_lea.vmem %s1, 192
      %v1529 = vld [vmem:[%s1528] sm:$0xf]
      %v1530 = vld [vmem:[%s1528 + $0x4] sm:$0xf]
      %v1531 = vld [vmem:[%s1528 + $0x8] sm:$0xf]
      %v1532 = vld [vmem:[%s1528 + $0xc] sm:$0xf]
      %v1533 = vld [vmem:[%s1528 + $0x10] sm:$0xf]
      %v1534 = vld [vmem:[%s1528 + $0x14] sm:$0xf]
      %v1535 = vld [vmem:[%s1528 + $0x18] sm:$0xf]
      %v1536 = vld [vmem:[%s1528 + $0x1c] sm:$0xf]
      %v1537 = vld [vmem:[%s1528 + $0x20] sm:$0xf]
      %v1538 = vld [vmem:[%s1528 + $0x24] sm:$0xf]
      %v1539 = vld [vmem:[%s1528 + $0x28] sm:$0xf]
      %v1540 = vld [vmem:[%s1528 + $0x2c] sm:$0xf]
      %v1541 = vld [vmem:[%s1528 + $0x30] sm:$0xf]
      %v1542 = vld [vmem:[%s1528 + $0x34] sm:$0xf]
      %v1543 = vld [vmem:[%s1528 + $0x38] sm:$0xf]
      %v1544 = vld [vmem:[%s1528 + $0x3c] sm:$0xf]
      %v1582 = vunpack.c.l.b16 %v1491
      %v1583 = vunpack.c.l.b16 %v1492
      %v1584 = vunpack.c.l.b16 %v1493
      %v1585 = vunpack.c.l.b16 %v1494
      %v1586 = vunpack.c.l.b16 %v1495
      %v1587 = vunpack.c.l.b16 %v1496
      %v1588 = vunpack.c.l.b16 %v1497
      %v1589 = vunpack.c.l.b16 %v1498
      %v1590 = vunpack.c.l.b16 %v1499
      %v1591 = vunpack.c.l.b16 %v1500
      %v1592 = vunpack.c.l.b16 %v1501
      %v1593 = vunpack.c.l.b16 %v1502
      %v1594 = vunpack.c.l.b16 %v1503
      %v1595 = vunpack.c.l.b16 %v1504
      %v1596 = vunpack.c.l.b16 %v1505
      %v1597 = vunpack.c.l.b16 %v1506
      %v1598 = vunpack.c.l.b16 %v1507
      %v1599 = vunpack.c.l.b16 %v1508
      %v1600 = vunpack.c.l.b16 %v1509
      %v1601 = vunpack.c.l.b16 %v1510
      %v1602 = vunpack.c.l.b16 %v1511
      %v1603 = vunpack.c.l.b16 %v1512
      %v1604 = vunpack.c.l.b16 %v1513
      %v1605 = vunpack.c.l.b16 %v1514
      %v1606 = vunpack.c.l.b16 %v1515
      %v1607 = vunpack.c.l.b16 %v1516
      %v1608 = vunpack.c.l.b16 %v1517
      %v1609 = vunpack.c.l.b16 %v1518
      %v1610 = vunpack.c.l.b16 %v1519
      %v1611 = vunpack.c.l.b16 %v1520
      %v1612 = vunpack.c.l.b16 %v1521
      %v1613 = vunpack.c.l.b16 %v1522
      %v1614 = vunpack.c.l.b16 %v1523
      %v1615 = vunpack.c.l.b16 %v1524
      %v1616 = vunpack.c.l.b16 %v1525
      %v1617 = vunpack.c.l.b16 %v1526
      %v1618 = vunpack.c.l.b16 %v1527
      %v1619 = vpack.c.b16 %v1583, %v1582
      %v1620 = vpack.c.b16 %v1585, %v1584
      %v1621 = vpack.c.b16 %v1587, %v1586
      %v1622 = vpack.c.b16 %v1589, %v1588
      %v1623 = vpack.c.b16 %v1591, %v1590
      %v1624 = vpack.c.b16 %v1593, %v1592
      %v1625 = vpack.c.b16 %v1595, %v1594
      %v1626 = vpack.c.b16 %v1597, %v1596
      %v1627 = vpack.c.b16 %v1599, %v1598
      %v1628 = vpack.c.b16 %v1601, %v1600
      %v1629 = vpack.c.b16 %v1603, %v1602
      %v1630 = vpack.c.b16 %v1605, %v1604
      %v1631 = vpack.c.b16 %v1607, %v1606
      %v1632 = vpack.c.b16 %v1609, %v1608
      %v1633 = vpack.c.b16 %v1611, %v1610
      %v1634 = vpack.c.b16 %v1613, %v1612
      %v1635 = vpack.c.b16 %v1615, %v1614
      %v1636 = vpack.c.b16 %v1617, %v1616
      %v1637 = vpack.c.b16 %v1618, %v1618
      %v1639 = vshrl.u32 %v1619, 16
      %v1641 = vrot.slane %v1639, 3
      %v1642 = vshll.u32 %v1619, 16
      %v1644 = vrot.slane %v1642, 4
      %v1645 = vor.u32 %v1641, %v1644
      %v1647 = vshrl.u32 %v1620, 16
      %v1649 = vrot.slane %v1647, 3
      %v1650 = vshll.u32 %v1620, 16
      %v1652 = vrot.slane %v1650, 4
      %v1653 = vor.u32 %v1649, %v1652
      %v1654 = vsel %vm1126, %v1645, %v1653
      %v1656 = vshrl.u32 %v1621, 16
      %v1658 = vrot.slane %v1656, 3
      %v1659 = vshll.u32 %v1621, 16
      %v1661 = vrot.slane %v1659, 4
      %v1662 = vor.u32 %v1658, %v1661
      %v1663 = vsel %vm1126, %v1653, %v1662
      %v1665 = vshrl.u32 %v1622, 16
      %v1667 = vrot.slane %v1665, 3
      %v1668 = vshll.u32 %v1622, 16
      %v1670 = vrot.slane %v1668, 4
      %v1671 = vor.u32 %v1667, %v1670
      %v1672 = vsel %vm1126, %v1662, %v1671
      %v1674 = vshrl.u32 %v1623, 16
      %v1676 = vrot.slane %v1674, 3
      %v1677 = vshll.u32 %v1623, 16
      %v1679 = vrot.slane %v1677, 4
      %v1680 = vor.u32 %v1676, %v1679
      %v1681 = vsel %vm1126, %v1671, %v1680
      %v1683 = vshrl.u32 %v1624, 16
      %v1685 = vrot.slane %v1683, 3
      %v1686 = vshll.u32 %v1624, 16
      %v1688 = vrot.slane %v1686, 4
      %v1689 = vor.u32 %v1685, %v1688
      %v1690 = vsel %vm1126, %v1680, %v1689
      %v1692 = vshrl.u32 %v1625, 16
      %v1694 = vrot.slane %v1692, 3
      %v1695 = vshll.u32 %v1625, 16
      %v1697 = vrot.slane %v1695, 4
      %v1698 = vor.u32 %v1694, %v1697
      %v1699 = vsel %vm1126, %v1689, %v1698
      %v1701 = vshrl.u32 %v1626, 16
      %v1703 = vrot.slane %v1701, 3
      %v1704 = vshll.u32 %v1626, 16
      %v1706 = vrot.slane %v1704, 4
      %v1707 = vor.u32 %v1703, %v1706
      %v1708 = vsel %vm1126, %v1698, %v1707
      %v1710 = vshrl.u32 %v1627, 16
      %v1712 = vrot.slane %v1710, 3
      %v1713 = vshll.u32 %v1627, 16
      %v1715 = vrot.slane %v1713, 4
      %v1716 = vor.u32 %v1712, %v1715
      %v1717 = vsel %vm1126, %v1707, %v1716
      %v1719 = vshrl.u32 %v1628, 16
      %v1721 = vrot.slane %v1719, 3
      %v1722 = vshll.u32 %v1628, 16
      %v1724 = vrot.slane %v1722, 4
      %v1725 = vor.u32 %v1721, %v1724
      %v1726 = vsel %vm1126, %v1716, %v1725
      %v1728 = vshrl.u32 %v1629, 16
      %v1730 = vrot.slane %v1728, 3
      %v1731 = vshll.u32 %v1629, 16
      %v1733 = vrot.slane %v1731, 4
      %v1734 = vor.u32 %v1730, %v1733
      %v1735 = vsel %vm1126, %v1725, %v1734
      %v1737 = vshrl.u32 %v1630, 16
      %v1739 = vrot.slane %v1737, 3
      %v1740 = vshll.u32 %v1630, 16
      %v1742 = vrot.slane %v1740, 4
      %v1743 = vor.u32 %v1739, %v1742
      %v1744 = vsel %vm1126, %v1734, %v1743
      %v1746 = vshrl.u32 %v1631, 16
      %v1748 = vrot.slane %v1746, 3
      %v1749 = vshll.u32 %v1631, 16
      %v1751 = vrot.slane %v1749, 4
      %v1752 = vor.u32 %v1748, %v1751
      %v1753 = vsel %vm1126, %v1743, %v1752
      %v1755 = vshrl.u32 %v1632, 16
      %v1757 = vrot.slane %v1755, 3
      %v1758 = vshll.u32 %v1632, 16
      %v1760 = vrot.slane %v1758, 4
      %v1761 = vor.u32 %v1757, %v1760
      %v1762 = vsel %vm1126, %v1752, %v1761
      %v1764 = vshrl.u32 %v1633, 16
      %v1766 = vrot.slane %v1764, 3
      %v1767 = vshll.u32 %v1633, 16
      %v1769 = vrot.slane %v1767, 4
      %v1770 = vor.u32 %v1766, %v1769
      %v1771 = vsel %vm1126, %v1761, %v1770
      %v1773 = vshrl.u32 %v1634, 16
      %v1775 = vrot.slane %v1773, 3
      %v1776 = vshll.u32 %v1634, 16
      %v1778 = vrot.slane %v1776, 4
      %v1779 = vor.u32 %v1775, %v1778
      %v1780 = vsel %vm1126, %v1770, %v1779
      %v1782 = vshrl.u32 %v1635, 16
      %v1784 = vrot.slane %v1782, 3
      %v1785 = vshll.u32 %v1635, 16
      %v1787 = vrot.slane %v1785, 4
      %v1788 = vor.u32 %v1784, %v1787
      %v1789 = vsel %vm1126, %v1779, %v1788
      %v1791 = vshrl.u32 %v1636, 16
      %v1793 = vrot.slane %v1791, 3
      %v1794 = vshll.u32 %v1636, 16
      %v1796 = vrot.slane %v1794, 4
      %v1797 = vor.u32 %v1793, %v1796
      %v1798 = vsel %vm1126, %v1788, %v1797
      %v1800 = vshrl.u32 %v1637, 16
      %v1802 = vrot.slane %v1800, 3
      %v1803 = vshll.u32 %v1637, 16
      %v1805 = vrot.slane %v1803, 4
      %v1806 = vor.u32 %v1802, %v1805
      %v1807 = vsel %vm1126, %v1797, %v1806
      %v1842 = vunpack.c.l.b16 %v1529
      %v1843 = vunpack.c.l.b16 %v1530
      %v1844 = vunpack.c.l.b16 %v1531
      %v1845 = vunpack.c.l.b16 %v1532
      %v1846 = vunpack.c.l.b16 %v1533
      %v1847 = vunpack.c.l.b16 %v1534
      %v1848 = vunpack.c.l.b16 %v1535
      %v1849 = vunpack.c.l.b16 %v1536
      %v1850 = vunpack.c.l.b16 %v1537
      %v1851 = vunpack.c.l.b16 %v1538
      %v1852 = vunpack.c.l.b16 %v1539
      %v1853 = vunpack.c.l.b16 %v1540
      %v1854 = vunpack.c.l.b16 %v1541
      %v1855 = vunpack.c.l.b16 %v1542
      %v1856 = vunpack.c.l.b16 %v1543
      %v1857 = vunpack.c.l.b16 %v1544
      %v1858 = vpack.c.b16 %v1843, %v1842
      %v1859 = vpack.c.b16 %v1845, %v1844
      %v1860 = vpack.c.b16 %v1847, %v1846
      %v1861 = vpack.c.b16 %v1849, %v1848
      %v1862 = vpack.c.b16 %v1851, %v1850
      %v1863 = vpack.c.b16 %v1853, %v1852
      %v1864 = vpack.c.b16 %v1855, %v1854
      %v1865 = vpack.c.b16 %v1857, %v1856
      %1874 = vmatprep.subr.bf16.mxu0 0
      %1875 = vmatpush1.bf16.msra.mxu0 %v1858
      %1876 = vmatprep.subr.bf16.mxu0 0
      %1877 = vmatpush1.bf16.msra.mxu0 %v1859
      %1878 = vmatprep.subr.bf16.mxu0 0
      %1879 = vmatpush1.bf16.msra.mxu0 %v1860
      %1880 = vmatprep.subr.bf16.mxu0 0
      %1881 = vmatpush1.bf16.msra.mxu0 %v1861
      %1882 = vmatprep.subr.bf16.mxu0 0
      %1883 = vmatpush1.bf16.msra.mxu0 %v1862
      %1884 = vmatprep.subr.bf16.mxu0 0
      %1885 = vmatpush1.bf16.msra.mxu0 %v1863
      %1886 = vmatprep.subr.bf16.mxu0 0
      %1887 = vmatpush1.bf16.msra.mxu0 %v1864
      %1888 = vmatprep.subr.bf16.mxu0 0
      %1889 = vmatpush1.bf16.msra.mxu0 %v1865
      %1890 = vmatprep.subr.bf16.mxu0 0
      %1891 = vmatpush1.bf16.msra.mxu0 0
      %1892 = vmatprep.subr.bf16.mxu0 0
      %1893 = vmatpush1.bf16.msra.mxu0 0
      %1894 = vmatprep.subr.bf16.mxu0 0
      %1895 = vmatpush1.bf16.msra.mxu0 0
      %1896 = vmatprep.subr.bf16.mxu0 0
      %1897 = vmatpush1.bf16.msra.mxu0 0
      %1898 = vmatprep.subr.bf16.mxu0 0
      %1899 = vmatpush1.bf16.msra.mxu0 0
      %1900 = vmatprep.subr.bf16.mxu0 0
      %1901 = vmatpush1.bf16.msra.mxu0 0
      %1902 = vmatprep.subr.bf16.mxu0 0
      %1903 = vmatpush1.bf16.msra.mxu0 0
      %1904 = vmatprep.subr.bf16.mxu0 0
      %1905 = vmatpush1.bf16.msra.mxu0 0
      %1906 = vmatprep.mubr.bf16.mxu0 0
      %1907 = vmatmul.mubr.bf16.gmra.mrb[0].mxu0 %v1654
      %v1908 = vpop.f32.mrb[0].mxu0
      %v1909 = vadd.f32 0.0, %v1908
      %v1910 = vpop.f32.mrb[0].mxu0
      %v1911 = vpop.f32.mrb[0].mxu0
      %v1912 = vadd.f32 0.0, %v1911
      %v1913 = vpop.f32.mrb[0].mxu0
      %1914 = vmatprep.mubr.bf16.mxu0 0
      %1915 = vmatmul.mubr.bf16.gmra.mrb[0].mxu0 %v1663
      %v1916 = vpop.f32.mrb[0].mxu0
      %v1917 = vadd.f32 0.0, %v1916
      %v1918 = vpop.f32.mrb[0].mxu0
      %v1919 = vpop.f32.mrb[0].mxu0
      %v1920 = vadd.f32 0.0, %v1919
      %v1921 = vpop.f32.mrb[0].mxu0
      %1922 = vmatprep.mubr.bf16.mxu0 0
      %1923 = vmatmul.mubr.bf16.gmra.mrb[0].mxu0 %v1672
      %v1924 = vpop.f32.mrb[0].mxu0
      %v1925 = vadd.f32 0.0, %v1924
      %v1926 = vpop.f32.mrb[0].mxu0
      %v1927 = vpop.f32.mrb[0].mxu0
      %v1928 = vadd.f32 0.0, %v1927
      %v1929 = vpop.f32.mrb[0].mxu0
      %1930 = vmatprep.mubr.bf16.mxu0 0
      %1931 = vmatmul.mubr.bf16.gmra.mrb[0].mxu0 %v1681
      %v1932 = vpop.f32.mrb[0].mxu0
      %v1933 = vadd.f32 0.0, %v1932
      %v1934 = vpop.f32.mrb[0].mxu0
      %v1935 = vpop.f32.mrb[0].mxu0
      %v1936 = vadd.f32 0.0, %v1935
      %v1937 = vpop.f32.mrb[0].mxu0
      %1938 = vmatprep.mubr.bf16.mxu0 0
      %1939 = vmatmul.mubr.bf16.gmra.mrb[0].mxu0 %v1690
      %v1940 = vpop.f32.mrb[0].mxu0
      %v1941 = vadd.f32 0.0, %v1940
      %v1942 = vpop.f32.mrb[0].mxu0
      %v1943 = vpop.f32.mrb[0].mxu0
      %v1944 = vadd.f32 0.0, %v1943
      %v1945 = vpop.f32.mrb[0].mxu0
      %1946 = vmatprep.mubr.bf16.mxu0 0
      %1947 = vmatmul.mubr.bf16.gmra.mrb[0].mxu0 %v1699
      %v1948 = vpop.f32.mrb[0].mxu0
      %v1949 = vadd.f32 0.0, %v1948
      %v1950 = vpop.f32.mrb[0].mxu0
      %v1951 = vpop.f32.mrb[0].mxu0
      %v1952 = vadd.f32 0.0, %v1951
      %v1953 = vpop.f32.mrb[0].mxu0
      %1954 = vmatprep.mubr.bf16.mxu0 0
      %1955 = vmatmul.mubr.bf16.gmra.mrb[0].mxu0 %v1708
      %v1956 = vpop.f32.mrb[0].mxu0
      %v1957 = vadd.f32 0.0, %v1956
      %v1958 = vpop.f32.mrb[0].mxu0
      %v1959 = vpop.f32.mrb[0].mxu0
      %v1960 = vadd.f32 0.0, %v1959
      %v1961 = vpop.f32.mrb[0].mxu0
      %1962 = vmatprep.mubr.bf16.mxu0 0
      %1963 = vmatmul.mubr.bf16.gmra.mrb[0].mxu0 %v1717
      %v1964 = vpop.f32.mrb[0].mxu0
      %v1965 = vadd.f32 0.0, %v1964
      %v1966 = vpop.f32.mrb[0].mxu0
      %v1967 = vpop.f32.mrb[0].mxu0
      %v1968 = vadd.f32 0.0, %v1967
      %v1969 = vpop.f32.mrb[0].mxu0
      %1970 = vmatprep.mubr.bf16.mxu0 0
      %1971 = vmatmul.mubr.bf16.gmra.mrb[0].mxu0 %v1726
      %v1972 = vpop.f32.mrb[0].mxu0
      %v1973 = vadd.f32 0.0, %v1972
      %v1974 = vpop.f32.mrb[0].mxu0
      %v1975 = vpop.f32.mrb[0].mxu0
      %v1976 = vadd.f32 0.0, %v1975
      %v1977 = vpop.f32.mrb[0].mxu0
      %1978 = vmatprep.mubr.bf16.mxu0 0
      %1979 = vmatmul.mubr.bf16.gmra.mrb[0].mxu0 %v1735
      %v1980 = vpop.f32.mrb[0].mxu0
      %v1981 = vadd.f32 0.0, %v1980
      %v1982 = vpop.f32.mrb[0].mxu0
      %v1983 = vpop.f32.mrb[0].mxu0
      %v1984 = vadd.f32 0.0, %v1983
      %v1985 = vpop.f32.mrb[0].mxu0
      %1986 = vmatprep.mubr.bf16.mxu0 0
      %1987 = vmatmul.mubr.bf16.gmra.mrb[0].mxu0 %v1744
      %v1988 = vpop.f32.mrb[0].mxu0
      %v1989 = vadd.f32 0.0, %v1988
      %v1990 = vpop.f32.mrb[0].mxu0
      %v1991 = vpop.f32.mrb[0].mxu0
      %v1992 = vadd.f32 0.0, %v1991
      %v1993 = vpop.f32.mrb[0].mxu0
      %1994 = vmatprep.mubr.bf16.mxu0 0
      %1995 = vmatmul.mubr.bf16.gmra.mrb[0].mxu0 %v1753
      %v1996 = vpop.f32.mrb[0].mxu0
      %v1997 = vadd.f32 0.0, %v1996
      %v1998 = vpop.f32.mrb[0].mxu0
      %v1999 = vpop.f32.mrb[0].mxu0
      %v2000 = vadd.f32 0.0, %v1999
      %v2001 = vpop.f32.mrb[0].mxu0
      %2002 = vmatprep.mubr.bf16.mxu0 0
      %2003 = vmatmul.mubr.bf16.gmra.mrb[0].mxu0 %v1762
      %v2004 = vpop.f32.mrb[0].mxu0
      %v2005 = vadd.f32 0.0, %v2004
      %v2006 = vpop.f32.mrb[0].mxu0
      %v2007 = vpop.f32.mrb[0].mxu0
      %v2008 = vadd.f32 0.0, %v2007
      %v2009 = vpop.f32.mrb[0].mxu0
      %2010 = vmatprep.mubr.bf16.mxu0 0
      %2011 = vmatmul.mubr.bf16.gmra.mrb[0].mxu0 %v1771
      %v2012 = vpop.f32.mrb[0].mxu0
      %v2013 = vadd.f32 0.0, %v2012
      %v2014 = vpop.f32.mrb[0].mxu0
      %v2015 = vpop.f32.mrb[0].mxu0
      %v2016 = vadd.f32 0.0, %v2015
      %v2017 = vpop.f32.mrb[0].mxu0
      %2018 = vmatprep.mubr.bf16.mxu0 0
      %2019 = vmatmul.mubr.bf16.gmra.mrb[0].mxu0 %v1780
      %v2020 = vpop.f32.mrb[0].mxu0
      %v2021 = vadd.f32 0.0, %v2020
      %v2022 = vpop.f32.mrb[0].mxu0
      %v2023 = vpop.f32.mrb[0].mxu0
      %v2024 = vadd.f32 0.0, %v2023
      %v2025 = vpop.f32.mrb[0].mxu0
      %2026 = vmatprep.mubr.bf16.mxu0 0
      %2027 = vmatmul.mubr.bf16.gmra.mrb[0].mxu0 %v1789
      %v2028 = vpop.f32.mrb[0].mxu0
      %v2029 = vadd.f32 0.0, %v2028
      %v2030 = vpop.f32.mrb[0].mxu0
      %v2031 = vpop.f32.mrb[0].mxu0
      %v2032 = vadd.f32 0.0, %v2031
      %v2033 = vpop.f32.mrb[0].mxu0
      %2034 = vmatprep.mubr.bf16.mxu0 0
      %2035 = vmatmul.mubr.bf16.gmra.mrb[0].mxu0 %v1798
      %v2036 = vpop.f32.mrb[0].mxu0
      %v2037 = vadd.f32 0.0, %v2036
      %v2038 = vpop.f32.mrb[0].mxu0
      %v2039 = vpop.f32.mrb[0].mxu0
      %v2040 = vadd.f32 0.0, %v2039
      %v2041 = vpop.f32.mrb[0].mxu0
      %2042 = vmatprep.mubr.bf16.mxu0 0
      %2043 = vmatmul.mubr.bf16.gmra.mrb[0].mxu0 %v1807
      %v2044 = vpop.f32.mrb[0].mxu0
      %v2045 = vadd.f32 0.0, %v2044
      %v2046 = vpop.f32.mrb[0].mxu0
      %v2047 = vpop.f32.mrb[0].mxu0
      %v2048 = vadd.f32 0.0, %v2047
      %v2049 = vpop.f32.mrb[0].mxu0
      %2050 = vdwg.mxu0
      %v2051 = vadd.f32 %v1455, %v1909
      %v2052 = vadd.f32 %v1456, %v1912
      %v2053 = vadd.f32 %v1457, %v1917
      %v2054 = vadd.f32 %v1458, %v1920
      %v2055 = vadd.f32 %v1459, %v1925
      %v2056 = vadd.f32 %v1460, %v1928
      %v2057 = vadd.f32 %v1461, %v1933
      %v2058 = vadd.f32 %v1462, %v1936
      %v2059 = vadd.f32 %v1463, %v1941
      %v2060 = vadd.f32 %v1464, %v1944
      %v2061 = vadd.f32 %v1465, %v1949
      %v2062 = vadd.f32 %v1466, %v1952
      %v2063 = vadd.f32 %v1467, %v1957
      %v2064 = vadd.f32 %v1468, %v1960
      %v2065 = vadd.f32 %v1469, %v1965
      %v2066 = vadd.f32 %v1470, %v1968
      %v2067 = vadd.f32 %v1471, %v1973
      %v2068 = vadd.f32 %v1472, %v1976
      %v2069 = vadd.f32 %v1473, %v1981
      %v2070 = vadd.f32 %v1474, %v1984
      %v2071 = vadd.f32 %v1475, %v1989
      %v2072 = vadd.f32 %v1476, %v1992
      %v2073 = vadd.f32 %v1477, %v1997
      %v2074 = vadd.f32 %v1478, %v2000
      %v2075 = vadd.f32 %v1479, %v2005
      %v2076 = vadd.f32 %v1480, %v2008
      %v2077 = vadd.f32 %v1481, %v2013
      %v2078 = vadd.f32 %v1482, %v2016
      %v2079 = vadd.f32 %v1483, %v2021
      %v2080 = vadd.f32 %v1484, %v2024
      %v2081 = vadd.f32 %v1485, %v2029
      %v2082 = vadd.f32 %v1486, %v2032
      %v2083 = vadd.f32 %v1487, %v2037
      %v2084 = vadd.f32 %v1488, %v2040
      %v2085 = vadd.f32 %v1489, %v2045
      %v2086 = vadd.f32 %v1490, %v2048
      %s2087 = scalar_lea.vmem %s1, 256
      %v2088 = vld [vmem:[%s2087] sm:$0xf]
      %v2089 = vld [vmem:[%s2087 + $0x4] sm:$0xf]
      %v2090 = vld [vmem:[%s2087 + $0x8] sm:$0xf]
      %v2091 = vld [vmem:[%s2087 + $0xc] sm:$0xf]
      %v2092 = vld [vmem:[%s2087 + $0x10] sm:$0xf]
      %v2093 = vld [vmem:[%s2087 + $0x14] sm:$0xf]
      %v2094 = vld [vmem:[%s2087 + $0x18] sm:$0xf]
      %v2095 = vld [vmem:[%s2087 + $0x1c] sm:$0xf]
      %v2096 = vld [vmem:[%s2087 + $0x20] sm:$0xf]
      %v2097 = vld [vmem:[%s2087 + $0x24] sm:$0xf]
      %v2098 = vld [vmem:[%s2087 + $0x28] sm:$0xf]
      %v2099 = vld [vmem:[%s2087 + $0x2c] sm:$0xf]
      %v2100 = vld [vmem:[%s2087 + $0x30] sm:$0xf]
      %v2101 = vld [vmem:[%s2087 + $0x34] sm:$0xf]
      %v2102 = vld [vmem:[%s2087 + $0x38] sm:$0xf]
      %v2103 = vld [vmem:[%s2087 + $0x3c] sm:$0xf]
      %v2104 = vpack.c.b16 %v1584, %v1583
      %v2105 = vpack.c.b16 %v1586, %v1585
      %v2106 = vpack.c.b16 %v1588, %v1587
      %v2107 = vpack.c.b16 %v1590, %v1589
      %v2108 = vpack.c.b16 %v1592, %v1591
      %v2109 = vpack.c.b16 %v1594, %v1593
      %v2110 = vpack.c.b16 %v1596, %v1595
      %v2111 = vpack.c.b16 %v1598, %v1597
      %v2112 = vpack.c.b16 %v1600, %v1599
      %v2113 = vpack.c.b16 %v1602, %v1601
      %v2114 = vpack.c.b16 %v1604, %v1603
      %v2115 = vpack.c.b16 %v1606, %v1605
      %v2116 = vpack.c.b16 %v1608, %v1607
      %v2117 = vpack.c.b16 %v1610, %v1609
      %v2118 = vpack.c.b16 %v1612, %v1611
      %v2119 = vpack.c.b16 %v1614, %v1613
      %v2120 = vpack.c.b16 %v1616, %v1615
      %v2121 = vpack.c.b16 %v1618, %v1617
      %v2156 = vunpack.c.l.b16 %v2088
      %v2157 = vunpack.c.l.b16 %v2089
      %v2158 = vunpack.c.l.b16 %v2090
      %v2159 = vunpack.c.l.b16 %v2091
      %v2160 = vunpack.c.l.b16 %v2092
      %v2161 = vunpack.c.l.b16 %v2093
      %v2162 = vunpack.c.l.b16 %v2094
      %v2163 = vunpack.c.l.b16 %v2095
      %v2164 = vunpack.c.l.b16 %v2096
      %v2165 = vunpack.c.l.b16 %v2097
      %v2166 = vunpack.c.l.b16 %v2098
      %v2167 = vunpack.c.l.b16 %v2099
      %v2168 = vunpack.c.l.b16 %v2100
      %v2169 = vunpack.c.l.b16 %v2101
      %v2170 = vunpack.c.l.b16 %v2102
      %v2171 = vunpack.c.l.b16 %v2103
      %v2172 = vpack.c.b16 %v2157, %v2156
      %v2173 = vpack.c.b16 %v2159, %v2158
      %v2174 = vpack.c.b16 %v2161, %v2160
      %v2175 = vpack.c.b16 %v2163, %v2162
      %v2176 = vpack.c.b16 %v2165, %v2164
      %v2177 = vpack.c.b16 %v2167, %v2166
      %v2178 = vpack.c.b16 %v2169, %v2168
      %v2179 = vpack.c.b16 %v2171, %v2170
      %2188 = vmatprep.subr.bf16.mxu0 0
      %2189 = vmatpush1.bf16.msra.mxu0 %v2172
      %2190 = vmatprep.subr.bf16.mxu0 0
      %2191 = vmatpush1.bf16.msra.mxu0 %v2173
      %2192 = vmatprep.subr.bf16.mxu0 0
      %2193 = vmatpush1.bf16.msra.mxu0 %v2174
      %2194 = vmatprep.subr.bf16.mxu0 0
      %2195 = vmatpush1.bf16.msra.mxu0 %v2175
      %2196 = vmatprep.subr.bf16.mxu0 0
      %2197 = vmatpush1.bf16.msra.mxu0 %v2176
      %2198 = vmatprep.subr.bf16.mxu0 0
      %2199 = vmatpush1.bf16.msra.mxu0 %v2177
      %2200 = vmatprep.subr.bf16.mxu0 0
      %2201 = vmatpush1.bf16.msra.mxu0 %v2178
      %2202 = vmatprep.subr.bf16.mxu0 0
      %2203 = vmatpush1.bf16.msra.mxu0 %v2179
      %2204 = vmatprep.subr.bf16.mxu0 0
      %2205 = vmatpush1.bf16.msra.mxu0 0
      %2206 = vmatprep.subr.bf16.mxu0 0
      %2207 = vmatpush1.bf16.msra.mxu0 0
      %2208 = vmatprep.subr.bf16.mxu0 0
      %2209 = vmatpush1.bf16.msra.mxu0 0
      %2210 = vmatprep.subr.bf16.mxu0 0
      %2211 = vmatpush1.bf16.msra.mxu0 0
      %2212 = vmatprep.subr.bf16.mxu0 0
      %2213 = vmatpush1.bf16.msra.mxu0 0
      %2214 = vmatprep.subr.bf16.mxu0 0
      %2215 = vmatpush1.bf16.msra.mxu0 0
      %2216 = vmatprep.subr.bf16.mxu0 0
      %2217 = vmatpush1.bf16.msra.mxu0 0
      %2218 = vmatprep.subr.bf16.mxu0 0
      %2219 = vmatpush1.bf16.msra.mxu0 0
      %2220 = vmatprep.mubr.bf16.mxu0 0
      %2221 = vmatmul.mubr.bf16.gmra.mrb[0].mxu0 %v2104
      %v2222 = vpop.f32.mrb[0].mxu0
      %v2223 = vadd.f32 0.0, %v2222
      %v2224 = vpop.f32.mrb[0].mxu0
      %v2225 = vpop.f32.mrb[0].mxu0
      %v2226 = vadd.f32 0.0, %v2225
      %v2227 = vpop.f32.mrb[0].mxu0
      %2228 = vmatprep.mubr.bf16.mxu0 0
      %2229 = vmatmul.mubr.bf16.gmra.mrb[0].mxu0 %v2105
      %v2230 = vpop.f32.mrb[0].mxu0
      %v2231 = vadd.f32 0.0, %v2230
      %v2232 = vpop.f32.mrb[0].mxu0
      %v2233 = vpop.f32.mrb[0].mxu0
      %v2234 = vadd.f32 0.0, %v2233
      %v2235 = vpop.f32.mrb[0].mxu0
      %2236 = vmatprep.mubr.bf16.mxu0 0
      %2237 = vmatmul.mubr.bf16.gmra.mrb[0].mxu0 %v2106
      %v2238 = vpop.f32.mrb[0].mxu0
      %v2239 = vadd.f32 0.0, %v2238
      %v2240 = vpop.f32.mrb[0].mxu0
      %v2241 = vpop.f32.mrb[0].mxu0
      %v2242 = vadd.f32 0.0, %v2241
      %v2243 = vpop.f32.mrb[0].mxu0
      %2244 = vmatprep.mubr.bf16.mxu0 0
      %2245 = vmatmul.mubr.bf16.gmra.mrb[0].mxu0 %v2107
      %v2246 = vpop.f32.mrb[0].mxu0
      %v2247 = vadd.f32 0.0, %v2246
      %v2248 = vpop.f32.mrb[0].mxu0
      %v2249 = vpop.f32.mrb[0].mxu0
      %v2250 = vadd.f32 0.0, %v2249
      %v2251 = vpop.f32.mrb[0].mxu0
      %2252 = vmatprep.mubr.bf16.mxu0 0
      %2253 = vmatmul.mubr.bf16.gmra.mrb[0].mxu0 %v2108
      %v2254 = vpop.f32.mrb[0].mxu0
      %v2255 = vadd.f32 0.0, %v2254
      %v2256 = vpop.f32.mrb[0].mxu0
      %v2257 = vpop.f32.mrb[0].mxu0
      %v2258 = vadd.f32 0.0, %v2257
      %v2259 = vpop.f32.mrb[0].mxu0
      %2260 = vmatprep.mubr.bf16.mxu0 0
      %2261 = vmatmul.mubr.bf16.gmra.mrb[0].mxu0 %v2109
      %v2262 = vpop.f32.mrb[0].mxu0
      %v2263 = vadd.f32 0.0, %v2262
      %v2264 = vpop.f32.mrb[0].mxu0
      %v2265 = vpop.f32.mrb[0].mxu0
      %v2266 = vadd.f32 0.0, %v2265
      %v2267 = vpop.f32.mrb[0].mxu0
      %2268 = vmatprep.mubr.bf16.mxu0 0
      %2269 = vmatmul.mubr.bf16.gmra.mrb[0].mxu0 %v2110
      %v2270 = vpop.f32.mrb[0].mxu0
      %v2271 = vadd.f32 0.0, %v2270
      %v2272 = vpop.f32.mrb[0].mxu0
      %v2273 = vpop.f32.mrb[0].mxu0
      %v2274 = vadd.f32 0.0, %v2273
      %v2275 = vpop.f32.mrb[0].mxu0
      %2276 = vmatprep.mubr.bf16.mxu0 0
      %2277 = vmatmul.mubr.bf16.gmra.mrb[0].mxu0 %v2111
      %v2278 = vpop.f32.mrb[0].mxu0
      %v2279 = vadd.f32 0.0, %v2278
      %v2280 = vpop.f32.mrb[0].mxu0
      %v2281 = vpop.f32.mrb[0].mxu0
      %v2282 = vadd.f32 0.0, %v2281
      %v2283 = vpop.f32.mrb[0].mxu0
      %2284 = vmatprep.mubr.bf16.mxu0 0
      %2285 = vmatmul.mubr.bf16.gmra.mrb[0].mxu0 %v2112
      %v2286 = vpop.f32.mrb[0].mxu0
      %v2287 = vadd.f32 0.0, %v2286
      %v2288 = vpop.f32.mrb[0].mxu0
      %v2289 = vpop.f32.mrb[0].mxu0
      %v2290 = vadd.f32 0.0, %v2289
      %v2291 = vpop.f32.mrb[0].mxu0
      %2292 = vmatprep.mubr.bf16.mxu0 0
      %2293 = vmatmul.mubr.bf16.gmra.mrb[0].mxu0 %v2113
      %v2294 = vpop.f32.mrb[0].mxu0
      %v2295 = vadd.f32 0.0, %v2294
      %v2296 = vpop.f32.mrb[0].mxu0
      %v2297 = vpop.f32.mrb[0].mxu0
      %v2298 = vadd.f32 0.0, %v2297
      %v2299 = vpop.f32.mrb[0].mxu0
      %2300 = vmatprep.mubr.bf16.mxu0 0
      %2301 = vmatmul.mubr.bf16.gmra.mrb[0].mxu0 %v2114
      %v2302 = vpop.f32.mrb[0].mxu0
      %v2303 = vadd.f32 0.0, %v2302
      %v2304 = vpop.f32.mrb[0].mxu0
      %v2305 = vpop.f32.mrb[0].mxu0
      %v2306 = vadd.f32 0.0, %v2305
      %v2307 = vpop.f32.mrb[0].mxu0
      %2308 = vmatprep.mubr.bf16.mxu0 0
      %2309 = vmatmul.mubr.bf16.gmra.mrb[0].mxu0 %v2115
      %v2310 = vpop.f32.mrb[0].mxu0
      %v2311 = vadd.f32 0.0, %v2310
      %v2312 = vpop.f32.mrb[0].mxu0
      %v2313 = vpop.f32.mrb[0].mxu0
      %v2314 = vadd.f32 0.0, %v2313
      %v2315 = vpop.f32.mrb[0].mxu0
      %2316 = vmatprep.mubr.bf16.mxu0 0
      %2317 = vmatmul.mubr.bf16.gmra.mrb[0].mxu0 %v2116
      %v2318 = vpop.f32.mrb[0].mxu0
      %v2319 = vadd.f32 0.0, %v2318
      %v2320 = vpop.f32.mrb[0].mxu0
      %v2321 = vpop.f32.mrb[0].mxu0
      %v2322 = vadd.f32 0.0, %v2321
      %v2323 = vpop.f32.mrb[0].mxu0
      %2324 = vmatprep.mubr.bf16.mxu0 0
      %2325 = vmatmul.mubr.bf16.gmra.mrb[0].mxu0 %v2117
      %v2326 = vpop.f32.mrb[0].mxu0
      %v2327 = vadd.f32 0.0, %v2326
      %v2328 = vpop.f32.mrb[0].mxu0
      %v2329 = vpop.f32.mrb[0].mxu0
      %v2330 = vadd.f32 0.0, %v2329
      %v2331 = vpop.f32.mrb[0].mxu0
      %2332 = vmatprep.mubr.bf16.mxu0 0
      %2333 = vmatmul.mubr.bf16.gmra.mrb[0].mxu0 %v2118
      %v2334 = vpop.f32.mrb[0].mxu0
      %v2335 = vadd.f32 0.0, %v2334
      %v2336 = vpop.f32.mrb[0].mxu0
      %v2337 = vpop.f32.mrb[0].mxu0
      %v2338 = vadd.f32 0.0, %v2337
      %v2339 = vpop.f32.mrb[0].mxu0
      %2340 = vmatprep.mubr.bf16.mxu0 0
      %2341 = vmatmul.mubr.bf16.gmra.mrb[0].mxu0 %v2119
      %v2342 = vpop.f32.mrb[0].mxu0
      %v2343 = vadd.f32 0.0, %v2342
      %v2344 = vpop.f32.mrb[0].mxu0
      %v2345 = vpop.f32.mrb[0].mxu0
      %v2346 = vadd.f32 0.0, %v2345
      %v2347 = vpop.f32.mrb[0].mxu0
      %2348 = vmatprep.mubr.bf16.mxu0 0
      %2349 = vmatmul.mubr.bf16.gmra.mrb[0].mxu0 %v2120
      %v2350 = vpop.f32.mrb[0].mxu0
      %v2351 = vadd.f32 0.0, %v2350
      %v2352 = vpop.f32.mrb[0].mxu0
      %v2353 = vpop.f32.mrb[0].mxu0
      %v2354 = vadd.f32 0.0, %v2353
      %v2355 = vpop.f32.mrb[0].mxu0
      %2356 = vmatprep.mubr.bf16.mxu0 0
      %2357 = vmatmul.mubr.bf16.gmra.mrb[0].mxu0 %v2121
      %v2358 = vpop.f32.mrb[0].mxu0
      %v2359 = vadd.f32 0.0, %v2358
      %v2360 = vpop.f32.mrb[0].mxu0
      %v2361 = vpop.f32.mrb[0].mxu0
      %v2362 = vadd.f32 0.0, %v2361
      %v2363 = vpop.f32.mrb[0].mxu0
      %2364 = vdwg.mxu0
      %v2365 = vadd.f32 %v2051, %v2223
      %v2366 = vadd.f32 %v2052, %v2226
      %v2367 = vadd.f32 %v2053, %v2231
      %v2368 = vadd.f32 %v2054, %v2234
      %v2369 = vadd.f32 %v2055, %v2239
      %v2370 = vadd.f32 %v2056, %v2242
      %v2371 = vadd.f32 %v2057, %v2247
      %v2372 = vadd.f32 %v2058, %v2250
      %v2373 = vadd.f32 %v2059, %v2255
      %v2374 = vadd.f32 %v2060, %v2258
      %v2375 = vadd.f32 %v2061, %v2263
      %v2376 = vadd.f32 %v2062, %v2266
      %v2377 = vadd.f32 %v2063, %v2271
      %v2378 = vadd.f32 %v2064, %v2274
      %v2379 = vadd.f32 %v2065, %v2279
      %v2380 = vadd.f32 %v2066, %v2282
      %v2381 = vadd.f32 %v2067, %v2287
      %v2382 = vadd.f32 %v2068, %v2290
      %v2383 = vadd.f32 %v2069, %v2295
      %v2384 = vadd.f32 %v2070, %v2298
      %v2385 = vadd.f32 %v2071, %v2303
      %v2386 = vadd.f32 %v2072, %v2306
      %v2387 = vadd.f32 %v2073, %v2311
      %v2388 = vadd.f32 %v2074, %v2314
      %v2389 = vadd.f32 %v2075, %v2319
      %v2390 = vadd.f32 %v2076, %v2322
      %v2391 = vadd.f32 %v2077, %v2327
      %v2392 = vadd.f32 %v2078, %v2330
      %v2393 = vadd.f32 %v2079, %v2335
      %v2394 = vadd.f32 %v2080, %v2338
      %v2395 = vadd.f32 %v2081, %v2343
      %v2396 = vadd.f32 %v2082, %v2346
      %v2397 = vadd.f32 %v2083, %v2351
      %v2398 = vadd.f32 %v2084, %v2354
      %v2399 = vadd.f32 %v2085, %v2359
      %v2400 = vadd.f32 %v2086, %v2362
      %v2401 = vld [vmem:[%s230 + $0x10] sm:$0xf]
      %v2402 = vld [vmem:[%s230 + $0x14] sm:$0xf]
      %v2403 = vld [vmem:[%s230 + $0x18] sm:$0xf]
      %v2404 = vld [vmem:[%s230 + $0x1c] sm:$0xf]
      %v2405 = vld [vmem:[%s230 + $0x20] sm:$0xf]
      %v2406 = vld [vmem:[%s230 + $0x24] sm:$0xf]
      %v2407 = vld [vmem:[%s230 + $0x28] sm:$0xf]
      %v2408 = vld [vmem:[%s230 + $0x2c] sm:$0xf]
      %v2409 = vld [vmem:[%s230 + $0x30] sm:$0xf]
      %v2410 = vld [vmem:[%s230 + $0x34] sm:$0xf]
      %v2411 = vld [vmem:[%s230 + $0x38] sm:$0xf]
      %v2412 = vld [vmem:[%s230 + $0x3c] sm:$0xf]
      %v2413 = vld [vmem:[%s230 + $0x40] sm:$0xf]
      %v2414 = vld [vmem:[%s230 + $0x44] sm:$0xf]
      %v2415 = vld [vmem:[%s230 + $0x48] sm:$0xf]
      %v2416 = vld [vmem:[%s230 + $0x4c] sm:$0xf]
      %v2417 = vld [vmem:[%s230 + $0x50] sm:$0xf]
      %v2418 = vld [vmem:[%s230 + $0x54] sm:$0xf]
      %v2419 = vld [vmem:[%s230 + $0x58] sm:$0xf]
      %v2420 = vld [vmem:[%s230 + $0x5c] sm:$0xf]
      %v2421 = vld [vmem:[%s230 + $0x60] sm:$0xf]
      %v2422 = vld [vmem:[%s230 + $0x64] sm:$0xf]
      %v2423 = vld [vmem:[%s230 + $0x68] sm:$0xf]
      %v2424 = vld [vmem:[%s230 + $0x6c] sm:$0xf]
      %v2425 = vld [vmem:[%s230 + $0x70] sm:$0xf]
      %v2426 = vld [vmem:[%s230 + $0x74] sm:$0xf]
      %v2427 = vld [vmem:[%s230 + $0x78] sm:$0xf]
      %v2428 = vld [vmem:[%s230 + $0x7c] sm:$0xf]
      %v2429 = vld [vmem:[%s230 + $0x80] sm:$0xf]
      %v2430 = vld [vmem:[%s230 + $0x84] sm:$0xf]
      %v2431 = vld [vmem:[%s230 + $0x88] sm:$0xf]
      %v2432 = vld [vmem:[%s230 + $0x8c] sm:$0xf]
      %v2433 = vld [vmem:[%s230 + $0x90] sm:$0xf]
      %v2434 = vld [vmem:[%s230 + $0x94] sm:$0xf]
      %v2435 = vld [vmem:[%s230 + $0x98] sm:$0xf]
      %v2436 = vld [vmem:[%s230 + $0x9c] sm:$0xf]
      %v2437 = vld [vmem:[%s230 + $0xa0] sm:$0x1]
      %s2438 = scalar_lea.vmem %s1, 320
      %v2439 = vld [vmem:[%s2438] sm:$0xf]
      %v2440 = vld [vmem:[%s2438 + $0x4] sm:$0xf]
      %v2441 = vld [vmem:[%s2438 + $0x8] sm:$0xf]
      %v2442 = vld [vmem:[%s2438 + $0xc] sm:$0xf]
      %v2443 = vld [vmem:[%s2438 + $0x10] sm:$0xf]
      %v2444 = vld [vmem:[%s2438 + $0x14] sm:$0xf]
      %v2445 = vld [vmem:[%s2438 + $0x18] sm:$0xf]
      %v2446 = vld [vmem:[%s2438 + $0x1c] sm:$0xf]
      %v2447 = vld [vmem:[%s2438 + $0x20] sm:$0xf]
      %v2448 = vld [vmem:[%s2438 + $0x24] sm:$0xf]
      %v2449 = vld [vmem:[%s2438 + $0x28] sm:$0xf]
      %v2450 = vld [vmem:[%s2438 + $0x2c] sm:$0xf]
      %v2451 = vld [vmem:[%s2438 + $0x30] sm:$0xf]
      %v2452 = vld [vmem:[%s2438 + $0x34] sm:$0xf]
      %v2453 = vld [vmem:[%s2438 + $0x38] sm:$0xf]
      %v2454 = vld [vmem:[%s2438 + $0x3c] sm:$0xf]
      %v2492 = vunpack.c.l.b16 %v2401
      %v2493 = vunpack.c.l.b16 %v2402
      %v2494 = vunpack.c.l.b16 %v2403
      %v2495 = vunpack.c.l.b16 %v2404
      %v2496 = vunpack.c.l.b16 %v2405
      %v2497 = vunpack.c.l.b16 %v2406
      %v2498 = vunpack.c.l.b16 %v2407
      %v2499 = vunpack.c.l.b16 %v2408
      %v2500 = vunpack.c.l.b16 %v2409
      %v2501 = vunpack.c.l.b16 %v2410
      %v2502 = vunpack.c.l.b16 %v2411
      %v2503 = vunpack.c.l.b16 %v2412
      %v2504 = vunpack.c.l.b16 %v2413
      %v2505 = vunpack.c.l.b16 %v2414
      %v2506 = vunpack.c.l.b16 %v2415
      %v2507 = vunpack.c.l.b16 %v2416
      %v2508 = vunpack.c.l.b16 %v2417
      %v2509 = vunpack.c.l.b16 %v2418
      %v2510 = vunpack.c.l.b16 %v2419
      %v2511 = vunpack.c.l.b16 %v2420
      %v2512 = vunpack.c.l.b16 %v2421
      %v2513 = vunpack.c.l.b16 %v2422
      %v2514 = vunpack.c.l.b16 %v2423
      %v2515 = vunpack.c.l.b16 %v2424
      %v2516 = vunpack.c.l.b16 %v2425
      %v2517 = vunpack.c.l.b16 %v2426
      %v2518 = vunpack.c.l.b16 %v2427
      %v2519 = vunpack.c.l.b16 %v2428
      %v2520 = vunpack.c.l.b16 %v2429
      %v2521 = vunpack.c.l.b16 %v2430
      %v2522 = vunpack.c.l.b16 %v2431
      %v2523 = vunpack.c.l.b16 %v2432
      %v2524 = vunpack.c.l.b16 %v2433
      %v2525 = vunpack.c.l.b16 %v2434
      %v2526 = vunpack.c.l.b16 %v2435
      %v2527 = vunpack.c.l.b16 %v2436
      %v2528 = vunpack.c.l.b16 %v2437
      %v2529 = vpack.c.b16 %v2493, %v2492
      %v2530 = vpack.c.b16 %v2495, %v2494
      %v2531 = vpack.c.b16 %v2497, %v2496
      %v2532 = vpack.c.b16 %v2499, %v2498
      %v2533 = vpack.c.b16 %v2501, %v2500
      %v2534 = vpack.c.b16 %v2503, %v2502
      %v2535 = vpack.c.b16 %v2505, %v2504
      %v2536 = vpack.c.b16 %v2507, %v2506
      %v2537 = vpack.c.b16 %v2509, %v2508
      %v2538 = vpack.c.b16 %v2511, %v2510
      %v2539 = vpack.c.b16 %v2513, %v2512
      %v2540 = vpack.c.b16 %v2515, %v2514
      %v2541 = vpack.c.b16 %v2517, %v2516
      %v2542 = vpack.c.b16 %v2519, %v2518
      %v2543 = vpack.c.b16 %v2521, %v2520
      %v2544 = vpack.c.b16 %v2523, %v2522
      %v2545 = vpack.c.b16 %v2525, %v2524
      %v2546 = vpack.c.b16 %v2527, %v2526
      %v2547 = vpack.c.b16 %v2528, %v2528
      %vm2548 = vsmask.f32 7424
      %v2550 = vshrl.u32 %v2529, 16
      %v2552 = vshll.u32 %v2529, 16
      %v2554 = vrot.slane %v2552, 1
      %v2555 = vor.u32 %v2550, %v2554
      %v2557 = vshll.u32 %v2530, 16
      %v2559 = vrot.slane %v2557, 1
      %v2560 = vsel %vm2548, %v2555, %v2559
      %v2561 = vshrl.u32 %v2530, 16
      %v2563 = vor.u32 %v2561, %v2559
      %v2565 = vshll.u32 %v2531, 16
      %v2567 = vrot.slane %v2565, 1
      %v2568 = vsel %vm2548, %v2563, %v2567
      %v2569 = vshrl.u32 %v2531, 16
      %v2571 = vor.u32 %v2569, %v2567
      %v2573 = vshll.u32 %v2532, 16
      %v2575 = vrot.slane %v2573, 1
      %v2576 = vsel %vm2548, %v2571, %v2575
      %v2577 = vshrl.u32 %v2532, 16
      %v2579 = vor.u32 %v2577, %v2575
      %v2581 = vshll.u32 %v2533, 16
      %v2583 = vrot.slane %v2581, 1
      %v2584 = vsel %vm2548, %v2579, %v2583
      %v2585 = vshrl.u32 %v2533, 16
      %v2587 = vor.u32 %v2585, %v2583
      %v2589 = vshll.u32 %v2534, 16
      %v2591 = vrot.slane %v2589, 1
      %v2592 = vsel %vm2548, %v2587, %v2591
      %v2593 = vshrl.u32 %v2534, 16
      %v2595 = vor.u32 %v2593, %v2591
      %v2597 = vshll.u32 %v2535, 16
      %v2599 = vrot.slane %v2597, 1
      %v2600 = vsel %vm2548, %v2595, %v2599
      %v2601 = vshrl.u32 %v2535, 16
      %v2603 = vor.u32 %v2601, %v2599
      %v2605 = vshll.u32 %v2536, 16
      %v2607 = vrot.slane %v2605, 1
      %v2608 = vsel %vm2548, %v2603, %v2607
      %v2609 = vshrl.u32 %v2536, 16
      %v2611 = vor.u32 %v2609, %v2607
      %v2613 = vshll.u32 %v2537, 16
      %v2615 = vrot.slane %v2613, 1
      %v2616 = vsel %vm2548, %v2611, %v2615
      %v2617 = vshrl.u32 %v2537, 16
      %v2619 = vor.u32 %v2617, %v2615
      %v2621 = vshll.u32 %v2538, 16
      %v2623 = vrot.slane %v2621, 1
      %v2624 = vsel %vm2548, %v2619, %v2623
      %v2625 = vshrl.u32 %v2538, 16
      %v2627 = vor.u32 %v2625, %v2623
      %v2629 = vshll.u32 %v2539, 16
      %v2631 = vrot.slane %v2629, 1
      %v2632 = vsel %vm2548, %v2627, %v2631
      %v2633 = vshrl.u32 %v2539, 16
      %v2635 = vor.u32 %v2633, %v2631
      %v2637 = vshll.u32 %v2540, 16
      %v2639 = vrot.slane %v2637, 1
      %v2640 = vsel %vm2548, %v2635, %v2639
      %v2641 = vshrl.u32 %v2540, 16
      %v2643 = vor.u32 %v2641, %v2639
      %v2645 = vshll.u32 %v2541, 16
      %v2647 = vrot.slane %v2645, 1
      %v2648 = vsel %vm2548, %v2643, %v2647
      %v2649 = vshrl.u32 %v2541, 16
      %v2651 = vor.u32 %v2649, %v2647
      %v2653 = vshll.u32 %v2542, 16
      %v2655 = vrot.slane %v2653, 1
      %v2656 = vsel %vm2548, %v2651, %v2655
      %v2657 = vshrl.u32 %v2542, 16
      %v2659 = vor.u32 %v2657, %v2655
      %v2661 = vshll.u32 %v2543, 16
      %v2663 = vrot.slane %v2661, 1
      %v2664 = vsel %vm2548, %v2659, %v2663
      %v2665 = vshrl.u32 %v2543, 16
      %v2667 = vor.u32 %v2665, %v2663
      %v2669 = vshll.u32 %v2544, 16
      %v2671 = vrot.slane %v2669, 1
      %v2672 = vsel %vm2548, %v2667, %v2671
      %v2673 = vshrl.u32 %v2544, 16
      %v2675 = vor.u32 %v2673, %v2671
      %v2677 = vshll.u32 %v2545, 16
      %v2679 = vrot.slane %v2677, 1
      %v2680 = vsel %vm2548, %v2675, %v2679
      %v2681 = vshrl.u32 %v2545, 16
      %v2683 = vor.u32 %v2681, %v2679
      %v2685 = vshll.u32 %v2546, 16
      %v2687 = vrot.slane %v2685, 1
      %v2688 = vsel %vm2548, %v2683, %v2687
      %v2689 = vshrl.u32 %v2546, 16
      %v2691 = vor.u32 %v2689, %v2687
      %v2693 = vshll.u32 %v2547, 16
      %v2695 = vrot.slane %v2693, 1
      %v2696 = vsel %vm2548, %v2691, %v2695
      %v2731 = vunpack.c.l.b16 %v2439
      %v2732 = vunpack.c.l.b16 %v2440
      %v2733 = vunpack.c.l.b16 %v2441
      %v2734 = vunpack.c.l.b16 %v2442
      %v2735 = vunpack.c.l.b16 %v2443
      %v2736 = vunpack.c.l.b16 %v2444
      %v2737 = vunpack.c.l.b16 %v2445
      %v2738 = vunpack.c.l.b16 %v2446
      %v2739 = vunpack.c.l.b16 %v2447
      %v2740 = vunpack.c.l.b16 %v2448
      %v2741 = vunpack.c.l.b16 %v2449
      %v2742 = vunpack.c.l.b16 %v2450
      %v2743 = vunpack.c.l.b16 %v2451
      %v2744 = vunpack.c.l.b16 %v2452
      %v2745 = vunpack.c.l.b16 %v2453
      %v2746 = vunpack.c.l.b16 %v2454
      %v2747 = vpack.c.b16 %v2732, %v2731
      %v2748 = vpack.c.b16 %v2734, %v2733
      %v2749 = vpack.c.b16 %v2736, %v2735
      %v2750 = vpack.c.b16 %v2738, %v2737
      %v2751 = vpack.c.b16 %v2740, %v2739
      %v2752 = vpack.c.b16 %v2742, %v2741
      %v2753 = vpack.c.b16 %v2744, %v2743
      %v2754 = vpack.c.b16 %v2746, %v2745
      %2763 = vmatprep.subr.bf16.mxu0 0
      %2764 = vmatpush1.bf16.msra.mxu0 %v2747
      %2765 = vmatprep.subr.bf16.mxu0 0
      %2766 = vmatpush1.bf16.msra.mxu0 %v2748
      %2767 = vmatprep.subr.bf16.mxu0 0
      %2768 = vmatpush1.bf16.msra.mxu0 %v2749
      %2769 = vmatprep.subr.bf16.mxu0 0
      %2770 = vmatpush1.bf16.msra.mxu0 %v2750
      %2771 = vmatprep.subr.bf16.mxu0 0
      %2772 = vmatpush1.bf16.msra.mxu0 %v2751
      %2773 = vmatprep.subr.bf16.mxu0 0
      %2774 = vmatpush1.bf16.msra.mxu0 %v2752
      %2775 = vmatprep.subr.bf16.mxu0 0
      %2776 = vmatpush1.bf16.msra.mxu0 %v2753
      %2777 = vmatprep.subr.bf16.mxu0 0
      %2778 = vmatpush1.bf16.msra.mxu0 %v2754
      %2779 = vmatprep.subr.bf16.mxu0 0
      %2780 = vmatpush1.bf16.msra.mxu0 0
      %2781 = vmatprep.subr.bf16.mxu0 0
      %2782 = vmatpush1.bf16.msra.mxu0 0
      %2783 = vmatprep.subr.bf16.mxu0 0
      %2784 = vmatpush1.bf16.msra.mxu0 0
      %2785 = vmatprep.subr.bf16.mxu0 0
      %2786 = vmatpush1.bf16.msra.mxu0 0
      %2787 = vmatprep.subr.bf16.mxu0 0
      %2788 = vmatpush1.bf16.msra.mxu0 0
      %2789 = vmatprep.subr.bf16.mxu0 0
      %2790 = vmatpush1.bf16.msra.mxu0 0
      %2791 = vmatprep.subr.bf16.mxu0 0
      %2792 = vmatpush1.bf16.msra.mxu0 0
      %2793 = vmatprep.subr.bf16.mxu0 0
      %2794 = vmatpush1.bf16.msra.mxu0 0
      %2795 = vmatprep.mubr.bf16.mxu0 0
      %2796 = vmatmul.mubr.bf16.gmra.mrb[0].mxu0 %v2560
      %v2797 = vpop.f32.mrb[0].mxu0
      %v2798 = vadd.f32 0.0, %v2797
      %v2799 = vpop.f32.mrb[0].mxu0
      %v2800 = vpop.f32.mrb[0].mxu0
      %v2801 = vadd.f32 0.0, %v2800
      %v2802 = vpop.f32.mrb[0].mxu0
      %2803 = vmatprep.mubr.bf16.mxu0 0
      %2804 = vmatmul.mubr.bf16.gmra.mrb[0].mxu0 %v2568
      %v2805 = vpop.f32.mrb[0].mxu0
      %v2806 = vadd.f32 0.0, %v2805
      %v2807 = vpop.f32.mrb[0].mxu0
      %v2808 = vpop.f32.mrb[0].mxu0
      %v2809 = vadd.f32 0.0, %v2808
      %v2810 = vpop.f32.mrb[0].mxu0
      %2811 = vmatprep.mubr.bf16.mxu0 0
      %2812 = vmatmul.mubr.bf16.gmra.mrb[0].mxu0 %v2576
      %v2813 = vpop.f32.mrb[0].mxu0
      %v2814 = vadd.f32 0.0, %v2813
      %v2815 = vpop.f32.mrb[0].mxu0
      %v2816 = vpop.f32.mrb[0].mxu0
      %v2817 = vadd.f32 0.0, %v2816
      %v2818 = vpop.f32.mrb[0].mxu0
      %2819 = vmatprep.mubr.bf16.mxu0 0
      %2820 = vmatmul.mubr.bf16.gmra.mrb[0].mxu0 %v2584
      %v2821 = vpop.f32.mrb[0].mxu0
      %v2822 = vadd.f32 0.0, %v2821
      %v2823 = vpop.f32.mrb[0].mxu0
      %v2824 = vpop.f32.mrb[0].mxu0
      %v2825 = vadd.f32 0.0, %v2824
      %v2826 = vpop.f32.mrb[0].mxu0
      %2827 = vmatprep.mubr.bf16.mxu0 0
      %2828 = vmatmul.mubr.bf16.gmra.mrb[0].mxu0 %v2592
      %v2829 = vpop.f32.mrb[0].mxu0
      %v2830 = vadd.f32 0.0, %v2829
      %v2831 = vpop.f32.mrb[0].mxu0
      %v2832 = vpop.f32.mrb[0].mxu0
      %v2833 = vadd.f32 0.0, %v2832
      %v2834 = vpop.f32.mrb[0].mxu0
      %2835 = vmatprep.mubr.bf16.mxu0 0
      %2836 = vmatmul.mubr.bf16.gmra.mrb[0].mxu0 %v2600
      %v2837 = vpop.f32.mrb[0].mxu0
      %v2838 = vadd.f32 0.0, %v2837
      %v2839 = vpop.f32.mrb[0].mxu0
      %v2840 = vpop.f32.mrb[0].mxu0
      %v2841 = vadd.f32 0.0, %v2840
      %v2842 = vpop.f32.mrb[0].mxu0
      %2843 = vmatprep.mubr.bf16.mxu0 0
      %2844 = vmatmul.mubr.bf16.gmra.mrb[0].mxu0 %v2608
      %v2845 = vpop.f32.mrb[0].mxu0
      %v2846 = vadd.f32 0.0, %v2845
      %v2847 = vpop.f32.mrb[0].mxu0
      %v2848 = vpop.f32.mrb[0].mxu0
      %v2849 = vadd.f32 0.0, %v2848
      %v2850 = vpop.f32.mrb[0].mxu0
      %2851 = vmatprep.mubr.bf16.mxu0 0
      %2852 = vmatmul.mubr.bf16.gmra.mrb[0].mxu0 %v2616
      %v2853 = vpop.f32.mrb[0].mxu0
      %v2854 = vadd.f32 0.0, %v2853
      %v2855 = vpop.f32.mrb[0].mxu0
      %v2856 = vpop.f32.mrb[0].mxu0
      %v2857 = vadd.f32 0.0, %v2856
      %v2858 = vpop.f32.mrb[0].mxu0
      %2859 = vmatprep.mubr.bf16.mxu0 0
      %2860 = vmatmul.mubr.bf16.gmra.mrb[0].mxu0 %v2624
      %v2861 = vpop.f32.mrb[0].mxu0
      %v2862 = vadd.f32 0.0, %v2861
      %v2863 = vpop.f32.mrb[0].mxu0
      %v2864 = vpop.f32.mrb[0].mxu0
      %v2865 = vadd.f32 0.0, %v2864
      %v2866 = vpop.f32.mrb[0].mxu0
      %2867 = vmatprep.mubr.bf16.mxu0 0
      %2868 = vmatmul.mubr.bf16.gmra.mrb[0].mxu0 %v2632
      %v2869 = vpop.f32.mrb[0].mxu0
      %v2870 = vadd.f32 0.0, %v2869
      %v2871 = vpop.f32.mrb[0].mxu0
      %v2872 = vpop.f32.mrb[0].mxu0
      %v2873 = vadd.f32 0.0, %v2872
      %v2874 = vpop.f32.mrb[0].mxu0
      %2875 = vmatprep.mubr.bf16.mxu0 0
      %2876 = vmatmul.mubr.bf16.gmra.mrb[0].mxu0 %v2640
      %v2877 = vpop.f32.mrb[0].mxu0
      %v2878 = vadd.f32 0.0, %v2877
      %v2879 = vpop.f32.mrb[0].mxu0
      %v2880 = vpop.f32.mrb[0].mxu0
      %v2881 = vadd.f32 0.0, %v2880
      %v2882 = vpop.f32.mrb[0].mxu0
      %2883 = vmatprep.mubr.bf16.mxu0 0
      %2884 = vmatmul.mubr.bf16.gmra.mrb[0].mxu0 %v2648
      %v2885 = vpop.f32.mrb[0].mxu0
      %v2886 = vadd.f32 0.0, %v2885
      %v2887 = vpop.f32.mrb[0].mxu0
      %v2888 = vpop.f32.mrb[0].mxu0
      %v2889 = vadd.f32 0.0, %v2888
      %v2890 = vpop.f32.mrb[0].mxu0
      %2891 = vmatprep.mubr.bf16.mxu0 0
      %2892 = vmatmul.mubr.bf16.gmra.mrb[0].mxu0 %v2656
      %v2893 = vpop.f32.mrb[0].mxu0
      %v2894 = vadd.f32 0.0, %v2893
      %v2895 = vpop.f32.mrb[0].mxu0
      %v2896 = vpop.f32.mrb[0].mxu0
      %v2897 = vadd.f32 0.0, %v2896
      %v2898 = vpop.f32.mrb[0].mxu0
      %2899 = vmatprep.mubr.bf16.mxu0 0
      %2900 = vmatmul.mubr.bf16.gmra.mrb[0].mxu0 %v2664
      %v2901 = vpop.f32.mrb[0].mxu0
      %v2902 = vadd.f32 0.0, %v2901
      %v2903 = vpop.f32.mrb[0].mxu0
      %v2904 = vpop.f32.mrb[0].mxu0
      %v2905 = vadd.f32 0.0, %v2904
      %v2906 = vpop.f32.mrb[0].mxu0
      %2907 = vmatprep.mubr.bf16.mxu0 0
      %2908 = vmatmul.mubr.bf16.gmra.mrb[0].mxu0 %v2672
      %v2909 = vpop.f32.mrb[0].mxu0
      %v2910 = vadd.f32 0.0, %v2909
      %v2911 = vpop.f32.mrb[0].mxu0
      %v2912 = vpop.f32.mrb[0].mxu0
      %v2913 = vadd.f32 0.0, %v2912
      %v2914 = vpop.f32.mrb[0].mxu0
      %2915 = vmatprep.mubr.bf16.mxu0 0
      %2916 = vmatmul.mubr.bf16.gmra.mrb[0].mxu0 %v2680
      %v2917 = vpop.f32.mrb[0].mxu0
      %v2918 = vadd.f32 0.0, %v2917
      %v2919 = vpop.f32.mrb[0].mxu0
      %v2920 = vpop.f32.mrb[0].mxu0
      %v2921 = vadd.f32 0.0, %v2920
      %v2922 = vpop.f32.mrb[0].mxu0
      %2923 = vmatprep.mubr.bf16.mxu0 0
      %2924 = vmatmul.mubr.bf16.gmra.mrb[0].mxu0 %v2688
      %v2925 = vpop.f32.mrb[0].mxu0
      %v2926 = vadd.f32 0.0, %v2925
      %v2927 = vpop.f32.mrb[0].mxu0
      %v2928 = vpop.f32.mrb[0].mxu0
      %v2929 = vadd.f32 0.0, %v2928
      %v2930 = vpop.f32.mrb[0].mxu0
      %2931 = vmatprep.mubr.bf16.mxu0 0
      %2932 = vmatmul.mubr.bf16.gmra.mrb[0].mxu0 %v2696
      %v2933 = vpop.f32.mrb[0].mxu0
      %v2934 = vadd.f32 0.0, %v2933
      %v2935 = vpop.f32.mrb[0].mxu0
      %v2936 = vpop.f32.mrb[0].mxu0
      %v2937 = vadd.f32 0.0, %v2936
      %v2938 = vpop.f32.mrb[0].mxu0
      %2939 = vdwg.mxu0
      %v2940 = vadd.f32 %v2365, %v2798
      %v2941 = vadd.f32 %v2366, %v2801
      %v2942 = vadd.f32 %v2367, %v2806
      %v2943 = vadd.f32 %v2368, %v2809
      %v2944 = vadd.f32 %v2369, %v2814
      %v2945 = vadd.f32 %v2370, %v2817
      %v2946 = vadd.f32 %v2371, %v2822
      %v2947 = vadd.f32 %v2372, %v2825
      %v2948 = vadd.f32 %v2373, %v2830
      %v2949 = vadd.f32 %v2374, %v2833
      %v2950 = vadd.f32 %v2375, %v2838
      %v2951 = vadd.f32 %v2376, %v2841
      %v2952 = vadd.f32 %v2377, %v2846
      %v2953 = vadd.f32 %v2378, %v2849
      %v2954 = vadd.f32 %v2379, %v2854
      %v2955 = vadd.f32 %v2380, %v2857
      %v2956 = vadd.f32 %v2381, %v2862
      %v2957 = vadd.f32 %v2382, %v2865
      %v2958 = vadd.f32 %v2383, %v2870
      %v2959 = vadd.f32 %v2384, %v2873
      %v2960 = vadd.f32 %v2385, %v2878
      %v2961 = vadd.f32 %v2386, %v2881
      %v2962 = vadd.f32 %v2387, %v2886
      %v2963 = vadd.f32 %v2388, %v2889
      %v2964 = vadd.f32 %v2389, %v2894
      %v2965 = vadd.f32 %v2390, %v2897
      %v2966 = vadd.f32 %v2391, %v2902
      %v2967 = vadd.f32 %v2392, %v2905
      %v2968 = vadd.f32 %v2393, %v2910
      %v2969 = vadd.f32 %v2394, %v2913
      %v2970 = vadd.f32 %v2395, %v2918
      %v2971 = vadd.f32 %v2396, %v2921
      %v2972 = vadd.f32 %v2397, %v2926
      %v2973 = vadd.f32 %v2398, %v2929
      %v2974 = vadd.f32 %v2399, %v2934
      %v2975 = vadd.f32 %v2400, %v2937
      %v2976 = vld [vmem:[%s230 + $0x18] sm:$0xf]
      %v2977 = vld [vmem:[%s230 + $0x1c] sm:$0xf]
      %v2978 = vld [vmem:[%s230 + $0x20] sm:$0xf]
      %v2979 = vld [vmem:[%s230 + $0x24] sm:$0xf]
      %v2980 = vld [vmem:[%s230 + $0x28] sm:$0xf]
      %v2981 = vld [vmem:[%s230 + $0x2c] sm:$0xf]
      %v2982 = vld [vmem:[%s230 + $0x30] sm:$0xf]
      %v2983 = vld [vmem:[%s230 + $0x34] sm:$0xf]
      %v2984 = vld [vmem:[%s230 + $0x38] sm:$0xf]
      %v2985 = vld [vmem:[%s230 + $0x3c] sm:$0xf]
      %v2986 = vld [vmem:[%s230 + $0x40] sm:$0xf]
      %v2987 = vld [vmem:[%s230 + $0x44] sm:$0xf]
      %v2988 = vld [vmem:[%s230 + $0x48] sm:$0xf]
      %v2989 = vld [vmem:[%s230 + $0x4c] sm:$0xf]
      %v2990 = vld [vmem:[%s230 + $0x50] sm:$0xf]
      %v2991 = vld [vmem:[%s230 + $0x54] sm:$0xf]
      %v2992 = vld [vmem:[%s230 + $0x58] sm:$0xf]
      %v2993 = vld [vmem:[%s230 + $0x5c] sm:$0xf]
      %v2994 = vld [vmem:[%s230 + $0x60] sm:$0xf]
      %v2995 = vld [vmem:[%s230 + $0x64] sm:$0xf]
      %v2996 = vld [vmem:[%s230 + $0x68] sm:$0xf]
      %v2997 = vld [vmem:[%s230 + $0x6c] sm:$0xf]
      %v2998 = vld [vmem:[%s230 + $0x70] sm:$0xf]
      %v2999 = vld [vmem:[%s230 + $0x74] sm:$0xf]
      %v3000 = vld [vmem:[%s230 + $0x78] sm:$0xf]
      %v3001 = vld [vmem:[%s230 + $0x7c] sm:$0xf]
      %v3002 = vld [vmem:[%s230 + $0x80] sm:$0xf]
      %v3003 = vld [vmem:[%s230 + $0x84] sm:$0xf]
      %v3004 = vld [vmem:[%s230 + $0x88] sm:$0xf]
      %v3005 = vld [vmem:[%s230 + $0x8c] sm:$0xf]
      %v3006 = vld [vmem:[%s230 + $0x90] sm:$0xf]
      %v3007 = vld [vmem:[%s230 + $0x94] sm:$0xf]
      %v3008 = vld [vmem:[%s230 + $0x98] sm:$0xf]
      %v3009 = vld [vmem:[%s230 + $0x9c] sm:$0xf]
      %v3010 = vld [vmem:[%s230 + $0xa0] sm:$0xf]
      %v3011 = vld [vmem:[%s230 + $0xa4] sm:$0xf]
      %v3012 = vld [vmem:[%s230 + $0xa8] sm:$0x1]
      %s3013 = scalar_lea.vmem %s1, 384
      %v3014 = vld [vmem:[%s3013] sm:$0xf]
      %v3015 = vld [vmem:[%s3013 + $0x4] sm:$0xf]
      %v3016 = vld [vmem:[%s3013 + $0x8] sm:$0xf]
      %v3017 = vld [vmem:[%s3013 + $0xc] sm:$0xf]
      %v3018 = vld [vmem:[%s3013 + $0x10] sm:$0xf]
      %v3019 = vld [vmem:[%s3013 + $0x14] sm:$0xf]
      %v3020 = vld [vmem:[%s3013 + $0x18] sm:$0xf]
      %v3021 = vld [vmem:[%s3013 + $0x1c] sm:$0xf]
      %v3022 = vld [vmem:[%s3013 + $0x20] sm:$0xf]
      %v3023 = vld [vmem:[%s3013 + $0x24] sm:$0xf]
      %v3024 = vld [vmem:[%s3013 + $0x28] sm:$0xf]
      %v3025 = vld [vmem:[%s3013 + $0x2c] sm:$0xf]
      %v3026 = vld [vmem:[%s3013 + $0x30] sm:$0xf]
      %v3027 = vld [vmem:[%s3013 + $0x34] sm:$0xf]
      %v3028 = vld [vmem:[%s3013 + $0x38] sm:$0xf]
      %v3029 = vld [vmem:[%s3013 + $0x3c] sm:$0xf]
      %v3067 = vunpack.c.l.b16 %v2976
      %v3068 = vunpack.c.l.b16 %v2977
      %v3069 = vunpack.c.l.b16 %v2978
      %v3070 = vunpack.c.l.b16 %v2979
      %v3071 = vunpack.c.l.b16 %v2980
      %v3072 = vunpack.c.l.b16 %v2981
      %v3073 = vunpack.c.l.b16 %v2982
      %v3074 = vunpack.c.l.b16 %v2983
      %v3075 = vunpack.c.l.b16 %v2984
      %v3076 = vunpack.c.l.b16 %v2985
      %v3077 = vunpack.c.l.b16 %v2986
      %v3078 = vunpack.c.l.b16 %v2987
      %v3079 = vunpack.c.l.b16 %v2988
      %v3080 = vunpack.c.l.b16 %v2989
      %v3081 = vunpack.c.l.b16 %v2990
      %v3082 = vunpack.c.l.b16 %v2991
      %v3083 = vunpack.c.l.b16 %v2992
      %v3084 = vunpack.c.l.b16 %v2993
      %v3085 = vunpack.c.l.b16 %v2994
      %v3086 = vunpack.c.l.b16 %v2995
      %v3087 = vunpack.c.l.b16 %v2996
      %v3088 = vunpack.c.l.b16 %v2997
      %v3089 = vunpack.c.l.b16 %v2998
      %v3090 = vunpack.c.l.b16 %v2999
      %v3091 = vunpack.c.l.b16 %v3000
      %v3092 = vunpack.c.l.b16 %v3001
      %v3093 = vunpack.c.l.b16 %v3002
      %v3094 = vunpack.c.l.b16 %v3003
      %v3095 = vunpack.c.l.b16 %v3004
      %v3096 = vunpack.c.l.b16 %v3005
      %v3097 = vunpack.c.l.b16 %v3006
      %v3098 = vunpack.c.l.b16 %v3007
      %v3099 = vunpack.c.l.b16 %v3008
      %v3100 = vunpack.c.l.b16 %v3009
      %v3101 = vunpack.c.l.b16 %v3010
      %v3102 = vunpack.c.l.b16 %v3011
      %v3103 = vunpack.c.l.b16 %v3012
      %v3104 = vpack.c.b16 %v3068, %v3067
      %v3105 = vpack.c.b16 %v3070, %v3069
      %v3106 = vpack.c.b16 %v3072, %v3071
      %v3107 = vpack.c.b16 %v3074, %v3073
      %v3108 = vpack.c.b16 %v3076, %v3075
      %v3109 = vpack.c.b16 %v3078, %v3077
      %v3110 = vpack.c.b16 %v3080, %v3079
      %v3111 = vpack.c.b16 %v3082, %v3081
      %v3112 = vpack.c.b16 %v3084, %v3083
      %v3113 = vpack.c.b16 %v3086, %v3085
      %v3114 = vpack.c.b16 %v3088, %v3087
      %v3115 = vpack.c.b16 %v3090, %v3089
      %v3116 = vpack.c.b16 %v3092, %v3091
      %v3117 = vpack.c.b16 %v3094, %v3093
      %v3118 = vpack.c.b16 %v3096, %v3095
      %v3119 = vpack.c.b16 %v3098, %v3097
      %v3120 = vpack.c.b16 %v3100, %v3099
      %v3121 = vpack.c.b16 %v3102, %v3101
      %v3122 = vpack.c.b16 %v3103, %v3103
      %v3124 = vshrl.u32 %v3104, 16
      %v3126 = vshll.u32 %v3104, 16
      %v3128 = vrot.slane %v3126, 1
      %v3129 = vor.u32 %v3124, %v3128
      %v3131 = vshll.u32 %v3105, 16
      %v3133 = vrot.slane %v3131, 1
      %v3134 = vsel %vm2548, %v3129, %v3133
      %v3135 = vshrl.u32 %v3105, 16
      %v3137 = vor.u32 %v3135, %v3133
      %v3139 = vshll.u32 %v3106, 16
      %v3141 = vrot.slane %v3139, 1
      %v3142 = vsel %vm2548, %v3137, %v3141
      %v3143 = vshrl.u32 %v3106, 16
      %v3145 = vor.u32 %v3143, %v3141
      %v3147 = vshll.u32 %v3107, 16
      %v3149 = vrot.slane %v3147, 1
      %v3150 = vsel %vm2548, %v3145, %v3149
      %v3151 = vshrl.u32 %v3107, 16
      %v3153 = vor.u32 %v3151, %v3149
      %v3155 = vshll.u32 %v3108, 16
      %v3157 = vrot.slane %v3155, 1
      %v3158 = vsel %vm2548, %v3153, %v3157
      %v3159 = vshrl.u32 %v3108, 16
      %v3161 = vor.u32 %v3159, %v3157
      %v3163 = vshll.u32 %v3109, 16
      %v3165 = vrot.slane %v3163, 1
      %v3166 = vsel %vm2548, %v3161, %v3165
      %v3167 = vshrl.u32 %v3109, 16
      %v3169 = vor.u32 %v3167, %v3165
      %v3171 = vshll.u32 %v3110, 16
      %v3173 = vrot.slane %v3171, 1
      %v3174 = vsel %vm2548, %v3169, %v3173
      %v3175 = vshrl.u32 %v3110, 16
      %v3177 = vor.u32 %v3175, %v3173
      %v3179 = vshll.u32 %v3111, 16
      %v3181 = vrot.slane %v3179, 1
      %v3182 = vsel %vm2548, %v3177, %v3181
      %v3183 = vshrl.u32 %v3111, 16
      %v3185 = vor.u32 %v3183, %v3181
      %v3187 = vshll.u32 %v3112, 16
      %v3189 = vrot.slane %v3187, 1
      %v3190 = vsel %vm2548, %v3185, %v3189
      %v3191 = vshrl.u32 %v3112, 16
      %v3193 = vor.u32 %v3191, %v3189
      %v3195 = vshll.u32 %v3113, 16
      %v3197 = vrot.slane %v3195, 1
      %v3198 = vsel %vm2548, %v3193, %v3197
      %v3199 = vshrl.u32 %v3113, 16
      %v3201 = vor.u32 %v3199, %v3197
      %v3203 = vshll.u32 %v3114, 16
      %v3205 = vrot.slane %v3203, 1
      %v3206 = vsel %vm2548, %v3201, %v3205
      %v3207 = vshrl.u32 %v3114, 16
      %v3209 = vor.u32 %v3207, %v3205
      %v3211 = vshll.u32 %v3115, 16
      %v3213 = vrot.slane %v3211, 1
      %v3214 = vsel %vm2548, %v3209, %v3213
      %v3215 = vshrl.u32 %v3115, 16
      %v3217 = vor.u32 %v3215, %v3213
      %v3219 = vshll.u32 %v3116, 16
      %v3221 = vrot.slane %v3219, 1
      %v3222 = vsel %vm2548, %v3217, %v3221
      %v3223 = vshrl.u32 %v3116, 16
      %v3225 = vor.u32 %v3223, %v3221
      %v3227 = vshll.u32 %v3117, 16
      %v3229 = vrot.slane %v3227, 1
      %v3230 = vsel %vm2548, %v3225, %v3229
      %v3231 = vshrl.u32 %v3117, 16
      %v3233 = vor.u32 %v3231, %v3229
      %v3235 = vshll.u32 %v3118, 16
      %v3237 = vrot.slane %v3235, 1
      %v3238 = vsel %vm2548, %v3233, %v3237
      %v3239 = vshrl.u32 %v3118, 16
      %v3241 = vor.u32 %v3239, %v3237
      %v3243 = vshll.u32 %v3119, 16
      %v3245 = vrot.slane %v3243, 1
      %v3246 = vsel %vm2548, %v3241, %v3245
      %v3247 = vshrl.u32 %v3119, 16
      %v3249 = vor.u32 %v3247, %v3245
      %v3251 = vshll.u32 %v3120, 16
      %v3253 = vrot.slane %v3251, 1
      %v3254 = vsel %vm2548, %v3249, %v3253
      %v3255 = vshrl.u32 %v3120, 16
      %v3257 = vor.u32 %v3255, %v3253
      %v3259 = vshll.u32 %v3121, 16
      %v3261 = vrot.slane %v3259, 1
      %v3262 = vsel %vm2548, %v3257, %v3261
      %v3263 = vshrl.u32 %v3121, 16
      %v3265 = vor.u32 %v3263, %v3261
      %v3267 = vshll.u32 %v3122, 16
      %v3269 = vrot.slane %v3267, 1
      %v3270 = vsel %vm2548, %v3265, %v3269
      %v3305 = vunpack.c.l.b16 %v3014
      %v3306 = vunpack.c.l.b16 %v3015
      %v3307 = vunpack.c.l.b16 %v3016
      %v3308 = vunpack.c.l.b16 %v3017
      %v3309 = vunpack.c.l.b16 %v3018
      %v3310 = vunpack.c.l.b16 %v3019
      %v3311 = vunpack.c.l.b16 %v3020
      %v3312 = vunpack.c.l.b16 %v3021
      %v3313 = vunpack.c.l.b16 %v3022
      %v3314 = vunpack.c.l.b16 %v3023
      %v3315 = vunpack.c.l.b16 %v3024
      %v3316 = vunpack.c.l.b16 %v3025
      %v3317 = vunpack.c.l.b16 %v3026
      %v3318 = vunpack.c.l.b16 %v3027
      %v3319 = vunpack.c.l.b16 %v3028
      %v3320 = vunpack.c.l.b16 %v3029
      %v3321 = vpack.c.b16 %v3306, %v3305
      %v3322 = vpack.c.b16 %v3308, %v3307
      %v3323 = vpack.c.b16 %v3310, %v3309
      %v3324 = vpack.c.b16 %v3312, %v3311
      %v3325 = vpack.c.b16 %v3314, %v3313
      %v3326 = vpack.c.b16 %v3316, %v3315
      %v3327 = vpack.c.b16 %v3318, %v3317
      %v3328 = vpack.c.b16 %v3320, %v3319
      %3337 = vmatprep.subr.bf16.mxu0 0
      %3338 = vmatpush1.bf16.msra.mxu0 %v3321
      %3339 = vmatprep.subr.bf16.mxu0 0
      %3340 = vmatpush1.bf16.msra.mxu0 %v3322
      %3341 = vmatprep.subr.bf16.mxu0 0
      %3342 = vmatpush1.bf16.msra.mxu0 %v3323
      %3343 = vmatprep.subr.bf16.mxu0 0
      %3344 = vmatpush1.bf16.msra.mxu0 %v3324
      %3345 = vmatprep.subr.bf16.mxu0 0
      %3346 = vmatpush1.bf16.msra.mxu0 %v3325
      %3347 = vmatprep.subr.bf16.mxu0 0
      %3348 = vmatpush1.bf16.msra.mxu0 %v3326
      %3349 = vmatprep.subr.bf16.mxu0 0
      %3350 = vmatpush1.bf16.msra.mxu0 %v3327
      %3351 = vmatprep.subr.bf16.mxu0 0
      %3352 = vmatpush1.bf16.msra.mxu0 %v3328
      %3353 = vmatprep.subr.bf16.mxu0 0
      %3354 = vmatpush1.bf16.msra.mxu0 0
      %3355 = vmatprep.subr.bf16.mxu0 0
      %3356 = vmatpush1.bf16.msra.mxu0 0
      %3357 = vmatprep.subr.bf16.mxu0 0
      %3358 = vmatpush1.bf16.msra.mxu0 0
      %3359 = vmatprep.subr.bf16.mxu0 0
      %3360 = vmatpush1.bf16.msra.mxu0 0
      %3361 = vmatprep.subr.bf16.mxu0 0
      %3362 = vmatpush1.bf16.msra.mxu0 0
      %3363 = vmatprep.subr.bf16.mxu0 0
      %3364 = vmatpush1.bf16.msra.mxu0 0
      %3365 = vmatprep.subr.bf16.mxu0 0
      %3366 = vmatpush1.bf16.msra.mxu0 0
      %3367 = vmatprep.subr.bf16.mxu0 0
      %3368 = vmatpush1.bf16.msra.mxu0 0
      %3369 = vmatprep.mubr.bf16.mxu0 0
      %3370 = vmatmul.mubr.bf16.gmra.mrb[0].mxu0 %v3134
      %v3371 = vpop.f32.mrb[0].mxu0
      %v3372 = vadd.f32 0.0, %v3371
      %v3373 = vpop.f32.mrb[0].mxu0
      %v3374 = vpop.f32.mrb[0].mxu0
      %v3375 = vadd.f32 0.0, %v3374
      %v3376 = vpop.f32.mrb[0].mxu0
      %3377 = vmatprep.mubr.bf16.mxu0 0
      %3378 = vmatmul.mubr.bf16.gmra.mrb[0].mxu0 %v3142
      %v3379 = vpop.f32.mrb[0].mxu0
      %v3380 = vadd.f32 0.0, %v3379
      %v3381 = vpop.f32.mrb[0].mxu0
      %v3382 = vpop.f32.mrb[0].mxu0
      %v3383 = vadd.f32 0.0, %v3382
      %v3384 = vpop.f32.mrb[0].mxu0
      %3385 = vmatprep.mubr.bf16.mxu0 0
      %3386 = vmatmul.mubr.bf16.gmra.mrb[0].mxu0 %v3150
      %v3387 = vpop.f32.mrb[0].mxu0
      %v3388 = vadd.f32 0.0, %v3387
      %v3389 = vpop.f32.mrb[0].mxu0
      %v3390 = vpop.f32.mrb[0].mxu0
      %v3391 = vadd.f32 0.0, %v3390
      %v3392 = vpop.f32.mrb[0].mxu0
      %3393 = vmatprep.mubr.bf16.mxu0 0
      %3394 = vmatmul.mubr.bf16.gmra.mrb[0].mxu0 %v3158
      %v3395 = vpop.f32.mrb[0].mxu0
      %v3396 = vadd.f32 0.0, %v3395
      %v3397 = vpop.f32.mrb[0].mxu0
      %v3398 = vpop.f32.mrb[0].mxu0
      %v3399 = vadd.f32 0.0, %v3398
      %v3400 = vpop.f32.mrb[0].mxu0
      %3401 = vmatprep.mubr.bf16.mxu0 0
      %3402 = vmatmul.mubr.bf16.gmra.mrb[0].mxu0 %v3166
      %v3403 = vpop.f32.mrb[0].mxu0
      %v3404 = vadd.f32 0.0, %v3403
      %v3405 = vpop.f32.mrb[0].mxu0
      %v3406 = vpop.f32.mrb[0].mxu0
      %v3407 = vadd.f32 0.0, %v3406
      %v3408 = vpop.f32.mrb[0].mxu0
      %3409 = vmatprep.mubr.bf16.mxu0 0
      %3410 = vmatmul.mubr.bf16.gmra.mrb[0].mxu0 %v3174
      %v3411 = vpop.f32.mrb[0].mxu0
      %v3412 = vadd.f32 0.0, %v3411
      %v3413 = vpop.f32.mrb[0].mxu0
      %v3414 = vpop.f32.mrb[0].mxu0
      %v3415 = vadd.f32 0.0, %v3414
      %v3416 = vpop.f32.mrb[0].mxu0
      %3417 = vmatprep.mubr.bf16.mxu0 0
      %3418 = vmatmul.mubr.bf16.gmra.mrb[0].mxu0 %v3182
      %v3419 = vpop.f32.mrb[0].mxu0
      %v3420 = vadd.f32 0.0, %v3419
      %v3421 = vpop.f32.mrb[0].mxu0
      %v3422 = vpop.f32.mrb[0].mxu0
      %v3423 = vadd.f32 0.0, %v3422
      %v3424 = vpop.f32.mrb[0].mxu0
      %3425 = vmatprep.mubr.bf16.mxu0 0
      %3426 = vmatmul.mubr.bf16.gmra.mrb[0].mxu0 %v3190
      %v3427 = vpop.f32.mrb[0].mxu0
      %v3428 = vadd.f32 0.0, %v3427
      %v3429 = vpop.f32.mrb[0].mxu0
      %v3430 = vpop.f32.mrb[0].mxu0
      %v3431 = vadd.f32 0.0, %v3430
      %v3432 = vpop.f32.mrb[0].mxu0
      %3433 = vmatprep.mubr.bf16.mxu0 0
      %3434 = vmatmul.mubr.bf16.gmra.mrb[0].mxu0 %v3198
      %v3435 = vpop.f32.mrb[0].mxu0
      %v3436 = vadd.f32 0.0, %v3435
      %v3437 = vpop.f32.mrb[0].mxu0
      %v3438 = vpop.f32.mrb[0].mxu0
      %v3439 = vadd.f32 0.0, %v3438
      %v3440 = vpop.f32.mrb[0].mxu0
      %3441 = vmatprep.mubr.bf16.mxu0 0
      %3442 = vmatmul.mubr.bf16.gmra.mrb[0].mxu0 %v3206
      %v3443 = vpop.f32.mrb[0].mxu0
      %v3444 = vadd.f32 0.0, %v3443
      %v3445 = vpop.f32.mrb[0].mxu0
      %v3446 = vpop.f32.mrb[0].mxu0
      %v3447 = vadd.f32 0.0, %v3446
      %v3448 = vpop.f32.mrb[0].mxu0
      %3449 = vmatprep.mubr.bf16.mxu0 0
      %3450 = vmatmul.mubr.bf16.gmra.mrb[0].mxu0 %v3214
      %v3451 = vpop.f32.mrb[0].mxu0
      %v3452 = vadd.f32 0.0, %v3451
      %v3453 = vpop.f32.mrb[0].mxu0
      %v3454 = vpop.f32.mrb[0].mxu0
      %v3455 = vadd.f32 0.0, %v3454
      %v3456 = vpop.f32.mrb[0].mxu0
      %3457 = vmatprep.mubr.bf16.mxu0 0
      %3458 = vmatmul.mubr.bf16.gmra.mrb[0].mxu0 %v3222
      %v3459 = vpop.f32.mrb[0].mxu0
      %v3460 = vadd.f32 0.0, %v3459
      %v3461 = vpop.f32.mrb[0].mxu0
      %v3462 = vpop.f32.mrb[0].mxu0
      %v3463 = vadd.f32 0.0, %v3462
      %v3464 = vpop.f32.mrb[0].mxu0
      %3465 = vmatprep.mubr.bf16.mxu0 0
      %3466 = vmatmul.mubr.bf16.gmra.mrb[0].mxu0 %v3230
      %v3467 = vpop.f32.mrb[0].mxu0
      %v3468 = vadd.f32 0.0, %v3467
      %v3469 = vpop.f32.mrb[0].mxu0
      %v3470 = vpop.f32.mrb[0].mxu0
      %v3471 = vadd.f32 0.0, %v3470
      %v3472 = vpop.f32.mrb[0].mxu0
      %3473 = vmatprep.mubr.bf16.mxu0 0
      %3474 = vmatmul.mubr.bf16.gmra.mrb[0].mxu0 %v3238
      %v3475 = vpop.f32.mrb[0].mxu0
      %v3476 = vadd.f32 0.0, %v3475
      %v3477 = vpop.f32.mrb[0].mxu0
      %v3478 = vpop.f32.mrb[0].mxu0
      %v3479 = vadd.f32 0.0, %v3478
      %v3480 = vpop.f32.mrb[0].mxu0
      %3481 = vmatprep.mubr.bf16.mxu0 0
      %3482 = vmatmul.mubr.bf16.gmra.mrb[0].mxu0 %v3246
      %v3483 = vpop.f32.mrb[0].mxu0
      %v3484 = vadd.f32 0.0, %v3483
      %v3485 = vpop.f32.mrb[0].mxu0
      %v3486 = vpop.f32.mrb[0].mxu0
      %v3487 = vadd.f32 0.0, %v3486
      %v3488 = vpop.f32.mrb[0].mxu0
      %3489 = vmatprep.mubr.bf16.mxu0 0
      %3490 = vmatmul.mubr.bf16.gmra.mrb[0].mxu0 %v3254
      %v3491 = vpop.f32.mrb[0].mxu0
      %v3492 = vadd.f32 0.0, %v3491
      %v3493 = vpop.f32.mrb[0].mxu0
      %v3494 = vpop.f32.mrb[0].mxu0
      %v3495 = vadd.f32 0.0, %v3494
      %v3496 = vpop.f32.mrb[0].mxu0
      %3497 = vmatprep.mubr.bf16.mxu0 0
      %3498 = vmatmul.mubr.bf16.gmra.mrb[0].mxu0 %v3262
      %v3499 = vpop.f32.mrb[0].mxu0
      %v3500 = vadd.f32 0.0, %v3499
      %v3501 = vpop.f32.mrb[0].mxu0
      %v3502 = vpop.f32.mrb[0].mxu0
      %v3503 = vadd.f32 0.0, %v3502
      %v3504 = vpop.f32.mrb[0].mxu0
      %3505 = vmatprep.mubr.bf16.mxu0 0
      %3506 = vmatmul.mubr.bf16.gmra.mrb[0].mxu0 %v3270
      %v3507 = vpop.f32.mrb[0].mxu0
      %v3508 = vadd.f32 0.0, %v3507
      %v3509 = vpop.f32.mrb[0].mxu0
      %v3510 = vpop.f32.mrb[0].mxu0
      %v3511 = vadd.f32 0.0, %v3510
      %v3512 = vpop.f32.mrb[0].mxu0
      %3513 = vdwg.mxu0
      %v3514 = vadd.f32 %v2940, %v3372
      %v3515 = vadd.f32 %v2941, %v3375
      %v3516 = vadd.f32 %v2942, %v3380
      %v3517 = vadd.f32 %v2943, %v3383
      %v3518 = vadd.f32 %v2944, %v3388
      %v3519 = vadd.f32 %v2945, %v3391
      %v3520 = vadd.f32 %v2946, %v3396
      %v3521 = vadd.f32 %v2947, %v3399
      %v3522 = vadd.f32 %v2948, %v3404
      %v3523 = vadd.f32 %v2949, %v3407
      %v3524 = vadd.f32 %v2950, %v3412
      %v3525 = vadd.f32 %v2951, %v3415
      %v3526 = vadd.f32 %v2952, %v3420
      %v3527 = vadd.f32 %v2953, %v3423
      %v3528 = vadd.f32 %v2954, %v3428
      %v3529 = vadd.f32 %v2955, %v3431
      %v3530 = vadd.f32 %v2956, %v3436
      %v3531 = vadd.f32 %v2957, %v3439
      %v3532 = vadd.f32 %v2958, %v3444
      %v3533 = vadd.f32 %v2959, %v3447
      %v3534 = vadd.f32 %v2960, %v3452
      %v3535 = vadd.f32 %v2961, %v3455
      %v3536 = vadd.f32 %v2962, %v3460
      %v3537 = vadd.f32 %v2963, %v3463
      %v3538 = vadd.f32 %v2964, %v3468
      %v3539 = vadd.f32 %v2965, %v3471
      %v3540 = vadd.f32 %v2966, %v3476
      %v3541 = vadd.f32 %v2967, %v3479
      %v3542 = vadd.f32 %v2968, %v3484
      %v3543 = vadd.f32 %v2969, %v3487
      %v3544 = vadd.f32 %v2970, %v3492
      %v3545 = vadd.f32 %v2971, %v3495
      %v3546 = vadd.f32 %v2972, %v3500
      %v3547 = vadd.f32 %v2973, %v3503
      %v3548 = vadd.f32 %v2974, %v3508
      %v3549 = vadd.f32 %v2975, %v3511
      %v3550 = vld [vmem:[%s230 + $0x18] sm:$0xe]
      %s3551 = scalar_lea.vmem %s1, 448
      %v3552 = vld [vmem:[%s3551] sm:$0xf]
      %v3553 = vld [vmem:[%s3551 + $0x4] sm:$0xf]
      %v3554 = vld [vmem:[%s3551 + $0x8] sm:$0xf]
      %v3555 = vld [vmem:[%s3551 + $0xc] sm:$0xf]
      %v3556 = vld [vmem:[%s3551 + $0x10] sm:$0xf]
      %v3557 = vld [vmem:[%s3551 + $0x14] sm:$0xf]
      %v3558 = vld [vmem:[%s3551 + $0x18] sm:$0xf]
      %v3559 = vld [vmem:[%s3551 + $0x1c] sm:$0xf]
      %v3560 = vld [vmem:[%s3551 + $0x20] sm:$0xf]
      %v3561 = vld [vmem:[%s3551 + $0x24] sm:$0xf]
      %v3562 = vld [vmem:[%s3551 + $0x28] sm:$0xf]
      %v3563 = vld [vmem:[%s3551 + $0x2c] sm:$0xf]
      %v3564 = vld [vmem:[%s3551 + $0x30] sm:$0xf]
      %v3565 = vld [vmem:[%s3551 + $0x34] sm:$0xf]
      %v3566 = vld [vmem:[%s3551 + $0x38] sm:$0xf]
      %v3567 = vld [vmem:[%s3551 + $0x3c] sm:$0xf]
      %v3569 = vunpack.c.l.b16 %v3550
      %v3570 = vpack.c.b16 %v3068, %v3569
      %vm3571 = vcmask 1046528
      %v3572 = vrot.slane %v3570, 1
      %v3573 = vrot.slane %v3105, 1
      %v3574 = vsel %vm3571, %v3572, %v3573
      %v3575 = vrot.slane %v3106, 1
      %v3576 = vsel %vm3571, %v3573, %v3575
      %v3577 = vrot.slane %v3107, 1
      %v3578 = vsel %vm3571, %v3575, %v3577
      %v3579 = vrot.slane %v3108, 1
      %v3580 = vsel %vm3571, %v3577, %v3579
      %v3581 = vrot.slane %v3109, 1
      %v3582 = vsel %vm3571, %v3579, %v3581
      %v3583 = vrot.slane %v3110, 1
      %v3584 = vsel %vm3571, %v3581, %v3583
      %v3585 = vrot.slane %v3111, 1
      %v3586 = vsel %vm3571, %v3583, %v3585
      %v3587 = vrot.slane %v3112, 1
      %v3588 = vsel %vm3571, %v3585, %v3587
      %v3589 = vrot.slane %v3113, 1
      %v3590 = vsel %vm3571, %v3587, %v3589
      %v3591 = vrot.slane %v3114, 1
      %v3592 = vsel %vm3571, %v3589, %v3591
      %v3593 = vrot.slane %v3115, 1
      %v3594 = vsel %vm3571, %v3591, %v3593
      %v3595 = vrot.slane %v3116, 1
      %v3596 = vsel %vm3571, %v3593, %v3595
      %v3597 = vrot.slane %v3117, 1
      %v3598 = vsel %vm3571, %v3595, %v3597
      %v3599 = vrot.slane %v3118, 1
      %v3600 = vsel %vm3571, %v3597, %v3599
      %v3601 = vrot.slane %v3119, 1
      %v3602 = vsel %vm3571, %v3599, %v3601
      %v3603 = vrot.slane %v3120, 1
      %v3604 = vsel %vm3571, %v3601, %v3603
      %v3605 = vrot.slane %v3121, 1
      %v3606 = vsel %vm3571, %v3603, %v3605
      %v3607 = vrot.slane %v3122, 1
      %v3608 = vsel %vm3571, %v3605, %v3607
      %v3643 = vunpack.c.l.b16 %v3552
      %v3644 = vunpack.c.l.b16 %v3553
      %v3645 = vunpack.c.l.b16 %v3554
      %v3646 = vunpack.c.l.b16 %v3555
      %v3647 = vunpack.c.l.b16 %v3556
      %v3648 = vunpack.c.l.b16 %v3557
      %v3649 = vunpack.c.l.b16 %v3558
      %v3650 = vunpack.c.l.b16 %v3559
      %v3651 = vunpack.c.l.b16 %v3560
      %v3652 = vunpack.c.l.b16 %v3561
      %v3653 = vunpack.c.l.b16 %v3562
      %v3654 = vunpack.c.l.b16 %v3563
      %v3655 = vunpack.c.l.b16 %v3564
      %v3656 = vunpack.c.l.b16 %v3565
      %v3657 = vunpack.c.l.b16 %v3566
      %v3658 = vunpack.c.l.b16 %v3567
      %v3659 = vpack.c.b16 %v3644, %v3643
      %v3660 = vpack.c.b16 %v3646, %v3645
      %v3661 = vpack.c.b16 %v3648, %v3647
      %v3662 = vpack.c.b16 %v3650, %v3649
      %v3663 = vpack.c.b16 %v3652, %v3651
      %v3664 = vpack.c.b16 %v3654, %v3653
      %v3665 = vpack.c.b16 %v3656, %v3655
      %v3666 = vpack.c.b16 %v3658, %v3657
      %3675 = vmatprep.subr.bf16.mxu0 0
      %3676 = vmatpush1.bf16.msra.mxu0 %v3659
      %3677 = vmatprep.subr.bf16.mxu0 0
      %3678 = vmatpush1.bf16.msra.mxu0 %v3660
      %3679 = vmatprep.subr.bf16.mxu0 0
      %3680 = vmatpush1.bf16.msra.mxu0 %v3661
      %3681 = vmatprep.subr.bf16.mxu0 0
      %3682 = vmatpush1.bf16.msra.mxu0 %v3662
      %3683 = vmatprep.subr.bf16.mxu0 0
      %3684 = vmatpush1.bf16.msra.mxu0 %v3663
      %3685 = vmatprep.subr.bf16.mxu0 0
      %3686 = vmatpush1.bf16.msra.mxu0 %v3664
      %3687 = vmatprep.subr.bf16.mxu0 0
      %3688 = vmatpush1.bf16.msra.mxu0 %v3665
      %3689 = vmatprep.subr.bf16.mxu0 0
      %3690 = vmatpush1.bf16.msra.mxu0 %v3666
      %3691 = vmatprep.subr.bf16.mxu0 0
      %3692 = vmatpush1.bf16.msra.mxu0 0
      %3693 = vmatprep.subr.bf16.mxu0 0
      %3694 = vmatpush1.bf16.msra.mxu0 0
      %3695 = vmatprep.subr.bf16.mxu0 0
      %3696 = vmatpush1.bf16.msra.mxu0 0
      %3697 = vmatprep.subr.bf16.mxu0 0
      %3698 = vmatpush1.bf16.msra.mxu0 0
      %3699 = vmatprep.subr.bf16.mxu0 0
      %3700 = vmatpush1.bf16.msra.mxu0 0
      %3701 = vmatprep.subr.bf16.mxu0 0
      %3702 = vmatpush1.bf16.msra.mxu0 0
      %3703 = vmatprep.subr.bf16.mxu0 0
      %3704 = vmatpush1.bf16.msra.mxu0 0
      %3705 = vmatprep.subr.bf16.mxu0 0
      %3706 = vmatpush1.bf16.msra.mxu0 0
      %3707 = vmatprep.mubr.bf16.mxu0 0
      %3708 = vmatmul.mubr.bf16.gmra.mrb[0].mxu0 %v3574
      %v3709 = vpop.f32.mrb[0].mxu0
      %v3710 = vadd.f32 0.0, %v3709
      %v3711 = vpop.f32.mrb[0].mxu0
      %v3712 = vpop.f32.mrb[0].mxu0
      %v3713 = vadd.f32 0.0, %v3712
      %v3714 = vpop.f32.mrb[0].mxu0
      %3715 = vmatprep.mubr.bf16.mxu0 0
      %3716 = vmatmul.mubr.bf16.gmra.mrb[0].mxu0 %v3576
      %v3717 = vpop.f32.mrb[0].mxu0
      %v3718 = vadd.f32 0.0, %v3717
      %v3719 = vpop.f32.mrb[0].mxu0
      %v3720 = vpop.f32.mrb[0].mxu0
      %v3721 = vadd.f32 0.0, %v3720
      %v3722 = vpop.f32.mrb[0].mxu0
      %3723 = vmatprep.mubr.bf16.mxu0 0
      %3724 = vmatmul.mubr.bf16.gmra.mrb[0].mxu0 %v3578
      %v3725 = vpop.f32.mrb[0].mxu0
      %v3726 = vadd.f32 0.0, %v3725
      %v3727 = vpop.f32.mrb[0].mxu0
      %v3728 = vpop.f32.mrb[0].mxu0
      %v3729 = vadd.f32 0.0, %v3728
      %v3730 = vpop.f32.mrb[0].mxu0
      %3731 = vmatprep.mubr.bf16.mxu0 0
      %3732 = vmatmul.mubr.bf16.gmra.mrb[0].mxu0 %v3580
      %v3733 = vpop.f32.mrb[0].mxu0
      %v3734 = vadd.f32 0.0, %v3733
      %v3735 = vpop.f32.mrb[0].mxu0
      %v3736 = vpop.f32.mrb[0].mxu0
      %v3737 = vadd.f32 0.0, %v3736
      %v3738 = vpop.f32.mrb[0].mxu0
      %3739 = vmatprep.mubr.bf16.mxu0 0
      %3740 = vmatmul.mubr.bf16.gmra.mrb[0].mxu0 %v3582
      %v3741 = vpop.f32.mrb[0].mxu0
      %v3742 = vadd.f32 0.0, %v3741
      %v3743 = vpop.f32.mrb[0].mxu0
      %v3744 = vpop.f32.mrb[0].mxu0
      %v3745 = vadd.f32 0.0, %v3744
      %v3746 = vpop.f32.mrb[0].mxu0
      %3747 = vmatprep.mubr.bf16.mxu0 0
      %3748 = vmatmul.mubr.bf16.gmra.mrb[0].mxu0 %v3584
      %v3749 = vpop.f32.mrb[0].mxu0
      %v3750 = vadd.f32 0.0, %v3749
      %v3751 = vpop.f32.mrb[0].mxu0
      %v3752 = vpop.f32.mrb[0].mxu0
      %v3753 = vadd.f32 0.0, %v3752
      %v3754 = vpop.f32.mrb[0].mxu0
      %3755 = vmatprep.mubr.bf16.mxu0 0
      %3756 = vmatmul.mubr.bf16.gmra.mrb[0].mxu0 %v3586
      %v3757 = vpop.f32.mrb[0].mxu0
      %v3758 = vadd.f32 0.0, %v3757
      %v3759 = vpop.f32.mrb[0].mxu0
      %v3760 = vpop.f32.mrb[0].mxu0
      %v3761 = vadd.f32 0.0, %v3760
      %v3762 = vpop.f32.mrb[0].mxu0
      %3763 = vmatprep.mubr.bf16.mxu0 0
      %3764 = vmatmul.mubr.bf16.gmra.mrb[0].mxu0 %v3588
      %v3765 = vpop.f32.mrb[0].mxu0
      %v3766 = vadd.f32 0.0, %v3765
      %v3767 = vpop.f32.mrb[0].mxu0
      %v3768 = vpop.f32.mrb[0].mxu0
      %v3769 = vadd.f32 0.0, %v3768
      %v3770 = vpop.f32.mrb[0].mxu0
      %3771 = vmatprep.mubr.bf16.mxu0 0
      %3772 = vmatmul.mubr.bf16.gmra.mrb[0].mxu0 %v3590
      %v3773 = vpop.f32.mrb[0].mxu0
      %v3774 = vadd.f32 0.0, %v3773
      %v3775 = vpop.f32.mrb[0].mxu0
      %v3776 = vpop.f32.mrb[0].mxu0
      %v3777 = vadd.f32 0.0, %v3776
      %v3778 = vpop.f32.mrb[0].mxu0
      %3779 = vmatprep.mubr.bf16.mxu0 0
      %3780 = vmatmul.mubr.bf16.gmra.mrb[0].mxu0 %v3592
      %v3781 = vpop.f32.mrb[0].mxu0
      %v3782 = vadd.f32 0.0, %v3781
      %v3783 = vpop.f32.mrb[0].mxu0
      %v3784 = vpop.f32.mrb[0].mxu0
      %v3785 = vadd.f32 0.0, %v3784
      %v3786 = vpop.f32.mrb[0].mxu0
      %3787 = vmatprep.mubr.bf16.mxu0 0
      %3788 = vmatmul.mubr.bf16.gmra.mrb[0].mxu0 %v3594
      %v3789 = vpop.f32.mrb[0].mxu0
      %v3790 = vadd.f32 0.0, %v3789
      %v3791 = vpop.f32.mrb[0].mxu0
      %v3792 = vpop.f32.mrb[0].mxu0
      %v3793 = vadd.f32 0.0, %v3792
      %v3794 = vpop.f32.mrb[0].mxu0
      %3795 = vmatprep.mubr.bf16.mxu0 0
      %3796 = vmatmul.mubr.bf16.gmra.mrb[0].mxu0 %v3596
      %v3797 = vpop.f32.mrb[0].mxu0
      %v3798 = vadd.f32 0.0, %v3797
      %v3799 = vpop.f32.mrb[0].mxu0
      %v3800 = vpop.f32.mrb[0].mxu0
      %v3801 = vadd.f32 0.0, %v3800
      %v3802 = vpop.f32.mrb[0].mxu0
      %3803 = vmatprep.mubr.bf16.mxu0 0
      %3804 = vmatmul.mubr.bf16.gmra.mrb[0].mxu0 %v3598
      %v3805 = vpop.f32.mrb[0].mxu0
      %v3806 = vadd.f32 0.0, %v3805
      %v3807 = vpop.f32.mrb[0].mxu0
      %v3808 = vpop.f32.mrb[0].mxu0
      %v3809 = vadd.f32 0.0, %v3808
      %v3810 = vpop.f32.mrb[0].mxu0
      %3811 = vmatprep.mubr.bf16.mxu0 0
      %3812 = vmatmul.mubr.bf16.gmra.mrb[0].mxu0 %v3600
      %v3813 = vpop.f32.mrb[0].mxu0
      %v3814 = vadd.f32 0.0, %v3813
      %v3815 = vpop.f32.mrb[0].mxu0
      %v3816 = vpop.f32.mrb[0].mxu0
      %v3817 = vadd.f32 0.0, %v3816
      %v3818 = vpop.f32.mrb[0].mxu0
      %3819 = vmatprep.mubr.bf16.mxu0 0
      %3820 = vmatmul.mubr.bf16.gmra.mrb[0].mxu0 %v3602
      %v3821 = vpop.f32.mrb[0].mxu0
      %v3822 = vadd.f32 0.0, %v3821
      %v3823 = vpop.f32.mrb[0].mxu0
      %v3824 = vpop.f32.mrb[0].mxu0
      %v3825 = vadd.f32 0.0, %v3824
      %v3826 = vpop.f32.mrb[0].mxu0
      %3827 = vmatprep.mubr.bf16.mxu0 0
      %3828 = vmatmul.mubr.bf16.gmra.mrb[0].mxu0 %v3604
      %v3829 = vpop.f32.mrb[0].mxu0
      %v3830 = vadd.f32 0.0, %v3829
      %v3831 = vpop.f32.mrb[0].mxu0
      %v3832 = vpop.f32.mrb[0].mxu0
      %v3833 = vadd.f32 0.0, %v3832
      %v3834 = vpop.f32.mrb[0].mxu0
      %3835 = vmatprep.mubr.bf16.mxu0 0
      %3836 = vmatmul.mubr.bf16.gmra.mrb[0].mxu0 %v3606
      %v3837 = vpop.f32.mrb[0].mxu0
      %v3838 = vadd.f32 0.0, %v3837
      %v3839 = vpop.f32.mrb[0].mxu0
      %v3840 = vpop.f32.mrb[0].mxu0
      %v3841 = vadd.f32 0.0, %v3840
      %v3842 = vpop.f32.mrb[0].mxu0
      %3843 = vmatprep.mubr.bf16.mxu0 0
      %3844 = vmatmul.mubr.bf16.gmra.mrb[0].mxu0 %v3608
      %v3845 = vpop.f32.mrb[0].mxu0
      %v3846 = vadd.f32 0.0, %v3845
      %v3847 = vpop.f32.mrb[0].mxu0
      %v3848 = vpop.f32.mrb[0].mxu0
      %v3849 = vadd.f32 0.0, %v3848
      %v3850 = vpop.f32.mrb[0].mxu0
      %3851 = vdwg.mxu0
      %v3852 = vadd.f32 %v3514, %v3710
      %v3853 = vadd.f32 %v3515, %v3713
      %v3854 = vadd.f32 %v3516, %v3718
      %v3855 = vadd.f32 %v3517, %v3721
      %v3856 = vadd.f32 %v3518, %v3726
      %v3857 = vadd.f32 %v3519, %v3729
      %v3858 = vadd.f32 %v3520, %v3734
      %v3859 = vadd.f32 %v3521, %v3737
      %v3860 = vadd.f32 %v3522, %v3742
      %v3861 = vadd.f32 %v3523, %v3745
      %v3862 = vadd.f32 %v3524, %v3750
      %v3863 = vadd.f32 %v3525, %v3753
      %v3864 = vadd.f32 %v3526, %v3758
      %v3865 = vadd.f32 %v3527, %v3761
      %v3866 = vadd.f32 %v3528, %v3766
      %v3867 = vadd.f32 %v3529, %v3769
      %v3868 = vadd.f32 %v3530, %v3774
      %v3869 = vadd.f32 %v3531, %v3777
      %v3870 = vadd.f32 %v3532, %v3782
      %v3871 = vadd.f32 %v3533, %v3785
      %v3872 = vadd.f32 %v3534, %v3790
      %v3873 = vadd.f32 %v3535, %v3793
      %v3874 = vadd.f32 %v3536, %v3798
      %v3875 = vadd.f32 %v3537, %v3801
      %v3876 = vadd.f32 %v3538, %v3806
      %v3877 = vadd.f32 %v3539, %v3809
      %v3878 = vadd.f32 %v3540, %v3814
      %v3879 = vadd.f32 %v3541, %v3817
      %v3880 = vadd.f32 %v3542, %v3822
      %v3881 = vadd.f32 %v3543, %v3825
      %v3882 = vadd.f32 %v3544, %v3830
      %v3883 = vadd.f32 %v3545, %v3833
      %v3884 = vadd.f32 %v3546, %v3838
      %v3885 = vadd.f32 %v3547, %v3841
      %v3886 = vadd.f32 %v3548, %v3846
      %v3887 = vadd.f32 %v3549, %v3849
      %v3888 = vld [vmem:[%s230 + $0xa8] sm:$0x3]
      %s3889 = scalar_lea.vmem %s1, 512
      %v3890 = vld [vmem:[%s3889] sm:$0xf]
      %v3891 = vld [vmem:[%s3889 + $0x4] sm:$0xf]
      %v3892 = vld [vmem:[%s3889 + $0x8] sm:$0xf]
      %v3893 = vld [vmem:[%s3889 + $0xc] sm:$0xf]
      %v3894 = vld [vmem:[%s3889 + $0x10] sm:$0xf]
      %v3895 = vld [vmem:[%s3889 + $0x14] sm:$0xf]
      %v3896 = vld [vmem:[%s3889 + $0x18] sm:$0xf]
      %v3897 = vld [vmem:[%s3889 + $0x1c] sm:$0xf]
      %v3898 = vld [vmem:[%s3889 + $0x20] sm:$0xf]
      %v3899 = vld [vmem:[%s3889 + $0x24] sm:$0xf]
      %v3900 = vld [vmem:[%s3889 + $0x28] sm:$0xf]
      %v3901 = vld [vmem:[%s3889 + $0x2c] sm:$0xf]
      %v3902 = vld [vmem:[%s3889 + $0x30] sm:$0xf]
      %v3903 = vld [vmem:[%s3889 + $0x34] sm:$0xf]
      %v3904 = vld [vmem:[%s3889 + $0x38] sm:$0xf]
      %v3905 = vld [vmem:[%s3889 + $0x3c] sm:$0xf]
      %v3907 = vunpack.c.l.b16 %v3888
      %v3908 = vpack.c.b16 %v3907, %v3907
      %vm3909 = vsmask.f32 6400
      %v3911 = vshrl.u32 %v3570, 16
      %v3913 = vrot.slane %v3911, 1
      %v3914 = vshll.u32 %v3570, 16
      %v3916 = vrot.slane %v3914, 2
      %v3917 = vor.u32 %v3913, %v3916
      %v3918 = vrot.slane %v3135, 1
      %v3919 = vrot.slane %v3131, 2
      %v3920 = vor.u32 %v3918, %v3919
      %v3921 = vsel %vm3909, %v3917, %v3920
      %v3922 = vrot.slane %v3143, 1
      %v3923 = vrot.slane %v3139, 2
      %v3924 = vor.u32 %v3922, %v3923
      %v3925 = vsel %vm3909, %v3920, %v3924
      %v3926 = vrot.slane %v3151, 1
      %v3927 = vrot.slane %v3147, 2
      %v3928 = vor.u32 %v3926, %v3927
      %v3929 = vsel %vm3909, %v3924, %v3928
      %v3930 = vrot.slane %v3159, 1
      %v3931 = vrot.slane %v3155, 2
      %v3932 = vor.u32 %v3930, %v3931
      %v3933 = vsel %vm3909, %v3928, %v3932
      %v3934 = vrot.slane %v3167, 1
      %v3935 = vrot.slane %v3163, 2
      %v3936 = vor.u32 %v3934, %v3935
      %v3937 = vsel %vm3909, %v3932, %v3936
      %v3938 = vrot.slane %v3175, 1
      %v3939 = vrot.slane %v3171, 2
      %v3940 = vor.u32 %v3938, %v3939
      %v3941 = vsel %vm3909, %v3936, %v3940
      %v3942 = vrot.slane %v3183, 1
      %v3943 = vrot.slane %v3179, 2
      %v3944 = vor.u32 %v3942, %v3943
      %v3945 = vsel %vm3909, %v3940, %v3944
      %v3946 = vrot.slane %v3191, 1
      %v3947 = vrot.slane %v3187, 2
      %v3948 = vor.u32 %v3946, %v3947
      %v3949 = vsel %vm3909, %v3944, %v3948
      %v3950 = vrot.slane %v3199, 1
      %v3951 = vrot.slane %v3195, 2
      %v3952 = vor.u32 %v3950, %v3951
      %v3953 = vsel %vm3909, %v3948, %v3952
      %v3954 = vrot.slane %v3207, 1
      %v3955 = vrot.slane %v3203, 2
      %v3956 = vor.u32 %v3954, %v3955
      %v3957 = vsel %vm3909, %v3952, %v3956
      %v3958 = vrot.slane %v3215, 1
      %v3959 = vrot.slane %v3211, 2
      %v3960 = vor.u32 %v3958, %v3959
      %v3961 = vsel %vm3909, %v3956, %v3960
      %v3962 = vrot.slane %v3223, 1
      %v3963 = vrot.slane %v3219, 2
      %v3964 = vor.u32 %v3962, %v3963
      %v3965 = vsel %vm3909, %v3960, %v3964
      %v3966 = vrot.slane %v3231, 1
      %v3967 = vrot.slane %v3227, 2
      %v3968 = vor.u32 %v3966, %v3967
      %v3969 = vsel %vm3909, %v3964, %v3968
      %v3970 = vrot.slane %v3239, 1
      %v3971 = vrot.slane %v3235, 2
      %v3972 = vor.u32 %v3970, %v3971
      %v3973 = vsel %vm3909, %v3968, %v3972
      %v3974 = vrot.slane %v3247, 1
      %v3975 = vrot.slane %v3243, 2
      %v3976 = vor.u32 %v3974, %v3975
      %v3977 = vsel %vm3909, %v3972, %v3976
      %v3978 = vrot.slane %v3255, 1
      %v3979 = vrot.slane %v3251, 2
      %v3980 = vor.u32 %v3978, %v3979
      %v3981 = vsel %vm3909, %v3976, %v3980
      %v3982 = vrot.slane %v3263, 1
      %v3983 = vrot.slane %v3259, 2
      %v3984 = vor.u32 %v3982, %v3983
      %v3985 = vsel %vm3909, %v3980, %v3984
      %v3987 = vshrl.u32 %v3908, 16
      %v3989 = vrot.slane %v3987, 1
      %v3990 = vshll.u32 %v3908, 16
      %v3992 = vrot.slane %v3990, 2
      %v3993 = vor.u32 %v3989, %v3992
      %v3994 = vsel %vm3909, %v3984, %v3993
      %v4029 = vunpack.c.l.b16 %v3890
      %v4030 = vunpack.c.l.b16 %v3891
      %v4031 = vunpack.c.l.b16 %v3892
      %v4032 = vunpack.c.l.b16 %v3893
      %v4033 = vunpack.c.l.b16 %v3894
      %v4034 = vunpack.c.l.b16 %v3895
      %v4035 = vunpack.c.l.b16 %v3896
      %v4036 = vunpack.c.l.b16 %v3897
      %v4037 = vunpack.c.l.b16 %v3898
      %v4038 = vunpack.c.l.b16 %v3899
      %v4039 = vunpack.c.l.b16 %v3900
      %v4040 = vunpack.c.l.b16 %v3901
      %v4041 = vunpack.c.l.b16 %v3902
      %v4042 = vunpack.c.l.b16 %v3903
      %v4043 = vunpack.c.l.b16 %v3904
      %v4044 = vunpack.c.l.b16 %v3905
      %v4045 = vpack.c.b16 %v4030, %v4029
      %v4046 = vpack.c.b16 %v4032, %v4031
      %v4047 = vpack.c.b16 %v4034, %v4033
      %v4048 = vpack.c.b16 %v4036, %v4035
      %v4049 = vpack.c.b16 %v4038, %v4037
      %v4050 = vpack.c.b16 %v4040, %v4039
      %v4051 = vpack.c.b16 %v4042, %v4041
      %v4052 = vpack.c.b16 %v4044, %v4043
      %4061 = vmatprep.subr.bf16.mxu0 0
      %4062 = vmatpush1.bf16.msra.mxu0 %v4045
      %4063 = vmatprep.subr.bf16.mxu0 0
      %4064 = vmatpush1.bf16.msra.mxu0 %v4046
      %4065 = vmatprep.subr.bf16.mxu0 0
      %4066 = vmatpush1.bf16.msra.mxu0 %v4047
      %4067 = vmatprep.subr.bf16.mxu0 0
      %4068 = vmatpush1.bf16.msra.mxu0 %v4048
      %4069 = vmatprep.subr.bf16.mxu0 0
      %4070 = vmatpush1.bf16.msra.mxu0 %v4049
      %4071 = vmatprep.subr.bf16.mxu0 0
      %4072 = vmatpush1.bf16.msra.mxu0 %v4050
      %4073 = vmatprep.subr.bf16.mxu0 0
      %4074 = vmatpush1.bf16.msra.mxu0 %v4051
      %4075 = vmatprep.subr.bf16.mxu0 0
      %4076 = vmatpush1.bf16.msra.mxu0 %v4052
      %4077 = vmatprep.subr.bf16.mxu0 0
      %4078 = vmatpush1.bf16.msra.mxu0 0
      %4079 = vmatprep.subr.bf16.mxu0 0
      %4080 = vmatpush1.bf16.msra.mxu0 0
      %4081 = vmatprep.subr.bf16.mxu0 0
      %4082 = vmatpush1.bf16.msra.mxu0 0
      %4083 = vmatprep.subr.bf16.mxu0 0
      %4084 = vmatpush1.bf16.msra.mxu0 0
      %4085 = vmatprep.subr.bf16.mxu0 0
      %4086 = vmatpush1.bf16.msra.mxu0 0
      %4087 = vmatprep.subr.bf16.mxu0 0
      %4088 = vmatpush1.bf16.msra.mxu0 0
      %4089 = vmatprep.subr.bf16.mxu0 0
      %4090 = vmatpush1.bf16.msra.mxu0 0
      %4091 = vmatprep.subr.bf16.mxu0 0
      %4092 = vmatpush1.bf16.msra.mxu0 0
      %4093 = vmatprep.mubr.bf16.mxu0 0
      %4094 = vmatmul.mubr.bf16.gmra.mrb[0].mxu0 %v3921
      %v4095 = vpop.f32.mrb[0].mxu0
      %v4096 = vadd.f32 0.0, %v4095
      %v4097 = vpop.f32.mrb[0].mxu0
      %v4098 = vpop.f32.mrb[0].mxu0
      %v4099 = vadd.f32 0.0, %v4098
      %v4100 = vpop.f32.mrb[0].mxu0
      %4101 = vmatprep.mubr.bf16.mxu0 0
      %4102 = vmatmul.mubr.bf16.gmra.mrb[0].mxu0 %v3925
      %v4103 = vpop.f32.mrb[0].mxu0
      %v4104 = vadd.f32 0.0, %v4103
      %v4105 = vpop.f32.mrb[0].mxu0
      %v4106 = vpop.f32.mrb[0].mxu0
      %v4107 = vadd.f32 0.0, %v4106
      %v4108 = vpop.f32.mrb[0].mxu0
      %4109 = vmatprep.mubr.bf16.mxu0 0
      %4110 = vmatmul.mubr.bf16.gmra.mrb[0].mxu0 %v3929
      %v4111 = vpop.f32.mrb[0].mxu0
      %v4112 = vadd.f32 0.0, %v4111
      %v4113 = vpop.f32.mrb[0].mxu0
      %v4114 = vpop.f32.mrb[0].mxu0
      %v4115 = vadd.f32 0.0, %v4114
      %v4116 = vpop.f32.mrb[0].mxu0
      %4117 = vmatprep.mubr.bf16.mxu0 0
      %4118 = vmatmul.mubr.bf16.gmra.mrb[0].mxu0 %v3933
      %v4119 = vpop.f32.mrb[0].mxu0
      %v4120 = vadd.f32 0.0, %v4119
      %v4121 = vpop.f32.mrb[0].mxu0
      %v4122 = vpop.f32.mrb[0].mxu0
      %v4123 = vadd.f32 0.0, %v4122
      %v4124 = vpop.f32.mrb[0].mxu0
      %4125 = vmatprep.mubr.bf16.mxu0 0
      %4126 = vmatmul.mubr.bf16.gmra.mrb[0].mxu0 %v3937
      %v4127 = vpop.f32.mrb[0].mxu0
      %v4128 = vadd.f32 0.0, %v4127
      %v4129 = vpop.f32.mrb[0].mxu0
      %v4130 = vpop.f32.mrb[0].mxu0
      %v4131 = vadd.f32 0.0, %v4130
      %v4132 = vpop.f32.mrb[0].mxu0
      %4133 = vmatprep.mubr.bf16.mxu0 0
      %4134 = vmatmul.mubr.bf16.gmra.mrb[0].mxu0 %v3941
      %v4135 = vpop.f32.mrb[0].mxu0
      %v4136 = vadd.f32 0.0, %v4135
      %v4137 = vpop.f32.mrb[0].mxu0
      %v4138 = vpop.f32.mrb[0].mxu0
      %v4139 = vadd.f32 0.0, %v4138
      %v4140 = vpop.f32.mrb[0].mxu0
      %4141 = vmatprep.mubr.bf16.mxu0 0
      %4142 = vmatmul.mubr.bf16.gmra.mrb[0].mxu0 %v3945
      %v4143 = vpop.f32.mrb[0].mxu0
      %v4144 = vadd.f32 0.0, %v4143
      %v4145 = vpop.f32.mrb[0].mxu0
      %v4146 = vpop.f32.mrb[0].mxu0
      %v4147 = vadd.f32 0.0, %v4146
      %v4148 = vpop.f32.mrb[0].mxu0
      %4149 = vmatprep.mubr.bf16.mxu0 0
      %4150 = vmatmul.mubr.bf16.gmra.mrb[0].mxu0 %v3949
      %v4151 = vpop.f32.mrb[0].mxu0
      %v4152 = vadd.f32 0.0, %v4151
      %v4153 = vpop.f32.mrb[0].mxu0
      %v4154 = vpop.f32.mrb[0].mxu0
      %v4155 = vadd.f32 0.0, %v4154
      %v4156 = vpop.f32.mrb[0].mxu0
      %4157 = vmatprep.mubr.bf16.mxu0 0
      %4158 = vmatmul.mubr.bf16.gmra.mrb[0].mxu0 %v3953
      %v4159 = vpop.f32.mrb[0].mxu0
      %v4160 = vadd.f32 0.0, %v4159
      %v4161 = vpop.f32.mrb[0].mxu0
      %v4162 = vpop.f32.mrb[0].mxu0
      %v4163 = vadd.f32 0.0, %v4162
      %v4164 = vpop.f32.mrb[0].mxu0
      %4165 = vmatprep.mubr.bf16.mxu0 0
      %4166 = vmatmul.mubr.bf16.gmra.mrb[0].mxu0 %v3957
      %v4167 = vpop.f32.mrb[0].mxu0
      %v4168 = vadd.f32 0.0, %v4167
      %v4169 = vpop.f32.mrb[0].mxu0
      %v4170 = vpop.f32.mrb[0].mxu0
      %v4171 = vadd.f32 0.0, %v4170
      %v4172 = vpop.f32.mrb[0].mxu0
      %4173 = vmatprep.mubr.bf16.mxu0 0
      %4174 = vmatmul.mubr.bf16.gmra.mrb[0].mxu0 %v3961
      %v4175 = vpop.f32.mrb[0].mxu0
      %v4176 = vadd.f32 0.0, %v4175
      %v4177 = vpop.f32.mrb[0].mxu0
      %v4178 = vpop.f32.mrb[0].mxu0
      %v4179 = vadd.f32 0.0, %v4178
      %v4180 = vpop.f32.mrb[0].mxu0
      %4181 = vmatprep.mubr.bf16.mxu0 0
      %4182 = vmatmul.mubr.bf16.gmra.mrb[0].mxu0 %v3965
      %v4183 = vpop.f32.mrb[0].mxu0
      %v4184 = vadd.f32 0.0, %v4183
      %v4185 = vpop.f32.mrb[0].mxu0
      %v4186 = vpop.f32.mrb[0].mxu0
      %v4187 = vadd.f32 0.0, %v4186
      %v4188 = vpop.f32.mrb[0].mxu0
      %4189 = vmatprep.mubr.bf16.mxu0 0
      %4190 = vmatmul.mubr.bf16.gmra.mrb[0].mxu0 %v3969
      %v4191 = vpop.f32.mrb[0].mxu0
      %v4192 = vadd.f32 0.0, %v4191
      %v4193 = vpop.f32.mrb[0].mxu0
      %v4194 = vpop.f32.mrb[0].mxu0
      %v4195 = vadd.f32 0.0, %v4194
      %v4196 = vpop.f32.mrb[0].mxu0
      %4197 = vmatprep.mubr.bf16.mxu0 0
      %4198 = vmatmul.mubr.bf16.gmra.mrb[0].mxu0 %v3973
      %v4199 = vpop.f32.mrb[0].mxu0
      %v4200 = vadd.f32 0.0, %v4199
      %v4201 = vpop.f32.mrb[0].mxu0
      %v4202 = vpop.f32.mrb[0].mxu0
      %v4203 = vadd.f32 0.0, %v4202
      %v4204 = vpop.f32.mrb[0].mxu0
      %4205 = vmatprep.mubr.bf16.mxu0 0
      %4206 = vmatmul.mubr.bf16.gmra.mrb[0].mxu0 %v3977
      %v4207 = vpop.f32.mrb[0].mxu0
      %v4208 = vadd.f32 0.0, %v4207
      %v4209 = vpop.f32.mrb[0].mxu0
      %v4210 = vpop.f32.mrb[0].mxu0
      %v4211 = vadd.f32 0.0, %v4210
      %v4212 = vpop.f32.mrb[0].mxu0
      %4213 = vmatprep.mubr.bf16.mxu0 0
      %4214 = vmatmul.mubr.bf16.gmra.mrb[0].mxu0 %v3981
      %v4215 = vpop.f32.mrb[0].mxu0
      %v4216 = vadd.f32 0.0, %v4215
      %v4217 = vpop.f32.mrb[0].mxu0
      %v4218 = vpop.f32.mrb[0].mxu0
      %v4219 = vadd.f32 0.0, %v4218
      %v4220 = vpop.f32.mrb[0].mxu0
      %4221 = vmatprep.mubr.bf16.mxu0 0
      %4222 = vmatmul.mubr.bf16.gmra.mrb[0].mxu0 %v3985
      %v4223 = vpop.f32.mrb[0].mxu0
      %v4224 = vadd.f32 0.0, %v4223
      %v4225 = vpop.f32.mrb[0].mxu0
      %v4226 = vpop.f32.mrb[0].mxu0
      %v4227 = vadd.f32 0.0, %v4226
      %v4228 = vpop.f32.mrb[0].mxu0
      %4229 = vmatprep.mubr.bf16.mxu0 0
      %4230 = vmatmul.mubr.bf16.gmra.mrb[0].mxu0 %v3994
      %v4231 = vpop.f32.mrb[0].mxu0
      %v4232 = vadd.f32 0.0, %v4231
      %v4233 = vpop.f32.mrb[0].mxu0
      %v4234 = vpop.f32.mrb[0].mxu0
      %v4235 = vadd.f32 0.0, %v4234
      %v4236 = vpop.f32.mrb[0].mxu0
      %4237 = vdwg.mxu0
      %v4238 = vadd.f32 %v3852, %v4096
      %v4239 = vadd.f32 %v3853, %v4099
      %v4240 = vadd.f32 %v3854, %v4104
      %v4241 = vadd.f32 %v3855, %v4107
      %v4242 = vadd.f32 %v3856, %v4112
      %v4243 = vadd.f32 %v3857, %v4115
      %v4244 = vadd.f32 %v3858, %v4120
      %v4245 = vadd.f32 %v3859, %v4123
      %v4246 = vadd.f32 %v3860, %v4128
      %v4247 = vadd.f32 %v3861, %v4131
      %v4248 = vadd.f32 %v3862, %v4136
      %v4249 = vadd.f32 %v3863, %v4139
      %v4250 = vadd.f32 %v3864, %v4144
      %v4251 = vadd.f32 %v3865, %v4147
      %v4252 = vadd.f32 %v3866, %v4152
      %v4253 = vadd.f32 %v3867, %v4155
      %v4254 = vadd.f32 %v3868, %v4160
      %v4255 = vadd.f32 %v3869, %v4163
      %v4256 = vadd.f32 %v3870, %v4168
      %v4257 = vadd.f32 %v3871, %v4171
      %v4258 = vadd.f32 %v3872, %v4176
      %v4259 = vadd.f32 %v3873, %v4179
      %v4260 = vadd.f32 %v3874, %v4184
      %v4261 = vadd.f32 %v3875, %v4187
      %v4262 = vadd.f32 %v3876, %v4192
      %v4263 = vadd.f32 %v3877, %v4195
      %v4264 = vadd.f32 %v3878, %v4200
      %v4265 = vadd.f32 %v3879, %v4203
      %v4266 = vadd.f32 %v3880, %v4208
      %v4267 = vadd.f32 %v3881, %v4211
      %v4268 = vadd.f32 %v3882, %v4216
      %v4269 = vadd.f32 %v3883, %v4219
      %v4270 = vadd.f32 %v3884, %v4224
      %v4271 = vadd.f32 %v3885, %v4227
      %v4272 = vadd.f32 %v3886, %v4232
      %v4273 = vadd.f32 %v3887, %v4235
      %v4274 = vld [vmem:[%s2] sm:$0xff]
      %v4275 = vld [vmem:[%s2 + $0x8] sm:$0xff]
      %v4276 = vld [vmem:[%s2 + $0x10] sm:$0xff]
      %v4277 = vld [vmem:[%s2 + $0x18] sm:$0xff]
      %v4278 = vld [vmem:[%s2 + $0x20] sm:$0xff]
      %v4279 = vld [vmem:[%s2 + $0x28] sm:$0xff]
      %v4280 = vld [vmem:[%s2 + $0x30] sm:$0xff]
      %v4281 = vld [vmem:[%s2 + $0x38] sm:$0xff]
      %v4282 = vld [vmem:[%s2 + $0x40] sm:$0xff]
      %v4283 = vld [vmem:[%s2 + $0x48] sm:$0xff]
      %v4284 = vld [vmem:[%s2 + $0x50] sm:$0xff]
      %v4285 = vld [vmem:[%s2 + $0x58] sm:$0xff]
      %v4286 = vld [vmem:[%s2 + $0x60] sm:$0xff]
      %v4287 = vld [vmem:[%s2 + $0x68] sm:$0xff]
      %v4288 = vld [vmem:[%s2 + $0x70] sm:$0xff]
      %v4289 = vld [vmem:[%s2 + $0x78] sm:$0xff]
      %v4290 = vld [vmem:[%s2 + $0x80] sm:$0xff]
      %v4291 = vld [vmem:[%s2 + $0x88] sm:$0xff]
      %v4292 = vld [vmem:[%s2 + $0x90] sm:$0xff]
      %v4293 = vld [vmem:[%s2 + $0x98] sm:$0xff]
      %v4294 = vld [vmem:[%s2 + $0xa0] sm:$0xff]
      %v4295 = vld [vmem:[%s2 + $0xa8] sm:$0xff]
      %v4296 = vld [vmem:[%s2 + $0xb0] sm:$0xff]
      %v4297 = vld [vmem:[%s2 + $0xb8] sm:$0xff]
      %v4298 = vld [vmem:[%s2 + $0xc0] sm:$0xff]
      %v4299 = vld [vmem:[%s2 + $0xc8] sm:$0xff]
      %v4300 = vld [vmem:[%s2 + $0xd0] sm:$0xff]
      %v4301 = vld [vmem:[%s2 + $0xd8] sm:$0xff]
      %v4302 = vld [vmem:[%s2 + $0xe0] sm:$0xff]
      %v4303 = vld [vmem:[%s2 + $0xe8] sm:$0xff]
      %v4304 = vld [vmem:[%s2 + $0xf0] sm:$0xff]
      %v4305 = vld [vmem:[%s2 + $0xf8] sm:$0xff]
      %v4306 = vld [vmem:[%s2 + $0x100] sm:$0xff]
      %v4307 = vld [vmem:[%s2 + $0x108] sm:$0xff]
      %v4308 = vld [vmem:[%s2 + $0x110] sm:$0xff]
      %v4309 = vld [vmem:[%s2 + $0x118] sm:$0xff]
      %4311 = vset.pattern.permute.xlu0 0
      %4312 = vperm.xlu0 %4311, %v4274
      %v4313 = vpop.permute.xlu0 %4312
      %4316 = vset.pattern.permute.xlu0 0
      %4317 = vperm.xlu0 %4316, %v4275
      %v4318 = vpop.permute.xlu0 %4317
      %4321 = vset.pattern.permute.xlu0 0
      %4322 = vperm.xlu0 %4321, %v4276
      %v4323 = vpop.permute.xlu0 %4322
      %4326 = vset.pattern.permute.xlu0 0
      %4327 = vperm.xlu0 %4326, %v4277
      %v4328 = vpop.permute.xlu0 %4327
      %4331 = vset.pattern.permute.xlu0 0
      %4332 = vperm.xlu0 %4331, %v4278
      %v4333 = vpop.permute.xlu0 %4332
      %4336 = vset.pattern.permute.xlu0 0
      %4337 = vperm.xlu0 %4336, %v4279
      %v4338 = vpop.permute.xlu0 %4337
      %4341 = vset.pattern.permute.xlu0 0
      %4342 = vperm.xlu0 %4341, %v4280
      %v4343 = vpop.permute.xlu0 %4342
      %4346 = vset.pattern.permute.xlu0 0
      %4347 = vperm.xlu0 %4346, %v4281
      %v4348 = vpop.permute.xlu0 %4347
      %4351 = vset.pattern.permute.xlu0 0
      %4352 = vperm.xlu0 %4351, %v4282
      %v4353 = vpop.permute.xlu0 %4352
      %4356 = vset.pattern.permute.xlu0 0
      %4357 = vperm.xlu0 %4356, %v4283
      %v4358 = vpop.permute.xlu0 %4357
      %4361 = vset.pattern.permute.xlu0 0
      %4362 = vperm.xlu0 %4361, %v4284
      %v4363 = vpop.permute.xlu0 %4362
      %4366 = vset.pattern.permute.xlu0 0
      %4367 = vperm.xlu0 %4366, %v4285
      %v4368 = vpop.permute.xlu0 %4367
      %4371 = vset.pattern.permute.xlu0 0
      %4372 = vperm.xlu0 %4371, %v4286
      %v4373 = vpop.permute.xlu0 %4372
      %4376 = vset.pattern.permute.xlu0 0
      %4377 = vperm.xlu0 %4376, %v4287
      %v4378 = vpop.permute.xlu0 %4377
      %4381 = vset.pattern.permute.xlu0 0
      %4382 = vperm.xlu0 %4381, %v4288
      %v4383 = vpop.permute.xlu0 %4382
      %4386 = vset.pattern.permute.xlu0 0
      %4387 = vperm.xlu0 %4386, %v4289
      %v4388 = vpop.permute.xlu0 %4387
      %4391 = vset.pattern.permute.xlu0 0
      %4392 = vperm.xlu0 %4391, %v4290
      %v4393 = vpop.permute.xlu0 %4392
      %4396 = vset.pattern.permute.xlu0 0
      %4397 = vperm.xlu0 %4396, %v4291
      %v4398 = vpop.permute.xlu0 %4397
      %4401 = vset.pattern.permute.xlu0 0
      %4402 = vperm.xlu0 %4401, %v4292
      %v4403 = vpop.permute.xlu0 %4402
      %4406 = vset.pattern.permute.xlu0 0
      %4407 = vperm.xlu0 %4406, %v4293
      %v4408 = vpop.permute.xlu0 %4407
      %4411 = vset.pattern.permute.xlu0 0
      %4412 = vperm.xlu0 %4411, %v4294
      %v4413 = vpop.permute.xlu0 %4412
      %4416 = vset.pattern.permute.xlu0 0
      %4417 = vperm.xlu0 %4416, %v4295
      %v4418 = vpop.permute.xlu0 %4417
      %4421 = vset.pattern.permute.xlu0 0
      %4422 = vperm.xlu0 %4421, %v4296
      %v4423 = vpop.permute.xlu0 %4422
      %4426 = vset.pattern.permute.xlu0 0
      %4427 = vperm.xlu0 %4426, %v4297
      %v4428 = vpop.permute.xlu0 %4427
      %4431 = vset.pattern.permute.xlu0 0
      %4432 = vperm.xlu0 %4431, %v4298
      %v4433 = vpop.permute.xlu0 %4432
      %4436 = vset.pattern.permute.xlu0 0
      %4437 = vperm.xlu0 %4436, %v4299
      %v4438 = vpop.permute.xlu0 %4437
      %4441 = vset.pattern.permute.xlu0 0
      %4442 = vperm.xlu0 %4441, %v4300
      %v4443 = vpop.permute.xlu0 %4442
      %4446 = vset.pattern.permute.xlu0 0
      %4447 = vperm.xlu0 %4446, %v4301
      %v4448 = vpop.permute.xlu0 %4447
      %4451 = vset.pattern.permute.xlu0 0
      %4452 = vperm.xlu0 %4451, %v4302
      %v4453 = vpop.permute.xlu0 %4452
      %4456 = vset.pattern.permute.xlu0 0
      %4457 = vperm.xlu0 %4456, %v4303
      %v4458 = vpop.permute.xlu0 %4457
      %4461 = vset.pattern.permute.xlu0 0
      %4462 = vperm.xlu0 %4461, %v4304
      %v4463 = vpop.permute.xlu0 %4462
      %4466 = vset.pattern.permute.xlu0 0
      %4467 = vperm.xlu0 %4466, %v4305
      %v4468 = vpop.permute.xlu0 %4467
      %4471 = vset.pattern.permute.xlu0 0
      %4472 = vperm.xlu0 %4471, %v4306
      %v4473 = vpop.permute.xlu0 %4472
      %4476 = vset.pattern.permute.xlu0 0
      %4477 = vperm.xlu0 %4476, %v4307
      %v4478 = vpop.permute.xlu0 %4477
      %4481 = vset.pattern.permute.xlu0 0
      %4482 = vperm.xlu0 %4481, %v4308
      %v4483 = vpop.permute.xlu0 %4482
      %4486 = vset.pattern.permute.xlu0 0
      %4487 = vperm.xlu0 %4486, %v4309
      %v4488 = vpop.permute.xlu0 %4487
      %v4490 = vmul.f32 %v4238, %v4313
      %v4491 = vmul.f32 %v4239, %v4318
      %v4492 = vmul.f32 %v4240, %v4323
      %v4493 = vmul.f32 %v4241, %v4328
      %v4494 = vmul.f32 %v4242, %v4333
      %v4495 = vmul.f32 %v4243, %v4338
      %v4496 = vmul.f32 %v4244, %v4343
      %v4497 = vmul.f32 %v4245, %v4348
      %v4498 = vmul.f32 %v4246, %v4353
      %v4499 = vmul.f32 %v4247, %v4358
      %v4500 = vmul.f32 %v4248, %v4363
      %v4501 = vmul.f32 %v4249, %v4368
      %v4502 = vmul.f32 %v4250, %v4373
      %v4503 = vmul.f32 %v4251, %v4378
      %v4504 = vmul.f32 %v4252, %v4383
      %v4505 = vmul.f32 %v4253, %v4388
      %v4506 = vmul.f32 %v4254, %v4393
      %v4507 = vmul.f32 %v4255, %v4398
      %v4508 = vmul.f32 %v4256, %v4403
      %v4509 = vmul.f32 %v4257, %v4408
      %v4510 = vmul.f32 %v4258, %v4413
      %v4511 = vmul.f32 %v4259, %v4418
      %v4512 = vmul.f32 %v4260, %v4423
      %v4513 = vmul.f32 %v4261, %v4428
      %v4514 = vmul.f32 %v4262, %v4433
      %v4515 = vmul.f32 %v4263, %v4438
      %v4516 = vmul.f32 %v4264, %v4443
      %v4517 = vmul.f32 %v4265, %v4448
      %v4518 = vmul.f32 %v4266, %v4453
      %v4519 = vmul.f32 %v4267, %v4458
      %v4520 = vmul.f32 %v4268, %v4463
      %v4521 = vmul.f32 %v4269, %v4468
      %v4522 = vmul.f32 %v4270, %v4473
      %v4523 = vmul.f32 %v4271, %v4478
      %v4524 = vmul.f32 %v4272, %v4483
      %v4525 = vmul.f32 %v4273, %v4488
      %v4526 = vadd.f32 %v4490, %v4491
      %v4527 = vadd.f32 %v4526, %v4492
      %v4528 = vadd.f32 %v4527, %v4493
      %v4529 = vadd.f32 %v4528, %v4494
      %v4530 = vadd.f32 %v4529, %v4495
      %v4531 = vadd.f32 %v4530, %v4496
      %v4532 = vadd.f32 %v4531, %v4497
      %v4533 = vadd.f32 %v4532, %v4498
      %v4534 = vadd.f32 %v4533, %v4499
      %v4535 = vadd.f32 %v4534, %v4500
      %v4536 = vadd.f32 %v4535, %v4501
      %v4537 = vadd.f32 %v4536, %v4502
      %v4538 = vadd.f32 %v4537, %v4503
      %v4539 = vadd.f32 %v4538, %v4504
      %v4540 = vadd.f32 %v4539, %v4505
      %v4541 = vadd.f32 %v4540, %v4506
      %v4542 = vadd.f32 %v4541, %v4507
      %v4543 = vadd.f32 %v4542, %v4508
      %v4544 = vadd.f32 %v4543, %v4509
      %v4545 = vadd.f32 %v4544, %v4510
      %v4546 = vadd.f32 %v4545, %v4511
      %v4547 = vadd.f32 %v4546, %v4512
      %v4548 = vadd.f32 %v4547, %v4513
      %v4549 = vadd.f32 %v4548, %v4514
      %v4550 = vadd.f32 %v4549, %v4515
      %v4551 = vadd.f32 %v4550, %v4516
      %v4552 = vadd.f32 %v4551, %v4517
      %v4553 = vadd.f32 %v4552, %v4518
      %v4554 = vadd.f32 %v4553, %v4519
      %v4555 = vadd.f32 %v4554, %v4520
      %v4556 = vadd.f32 %v4555, %v4521
      %v4557 = vadd.f32 %v4556, %v4522
      %v4558 = vadd.f32 %v4557, %v4523
      %v4559 = vadd.f32 %v4558, %v4524
      %v4560 = vadd.f32 %v4559, %v4525
      %v4561 = vrot.slane %v4560, 4
      %v4562 = vadd.f32 %v4560, %v4561
      %v4563 = vrot.slane %v4562, 2
      %v4564 = vadd.f32 %v4562, %v4563
      %v4565 = vrot.slane %v4564, 1
      %v4566 = vadd.f32 %v4564, %v4565
      %4567 = vst [vmem:[%s238] sm:$0x1] %v4566
      %v4568 = vmul.f32 %v4490, %v4238
      %v4569 = vmul.f32 %v4491, %v4239
      %v4570 = vmul.f32 %v4492, %v4240
      %v4571 = vmul.f32 %v4493, %v4241
      %v4572 = vmul.f32 %v4494, %v4242
      %v4573 = vmul.f32 %v4495, %v4243
      %v4574 = vmul.f32 %v4496, %v4244
      %v4575 = vmul.f32 %v4497, %v4245
      %v4576 = vmul.f32 %v4498, %v4246
      %v4577 = vmul.f32 %v4499, %v4247
      %v4578 = vmul.f32 %v4500, %v4248
      %v4579 = vmul.f32 %v4501, %v4249
      %v4580 = vmul.f32 %v4502, %v4250
      %v4581 = vmul.f32 %v4503, %v4251
      %v4582 = vmul.f32 %v4504, %v4252
      %v4583 = vmul.f32 %v4505, %v4253
      %v4584 = vmul.f32 %v4506, %v4254
      %v4585 = vmul.f32 %v4507, %v4255
      %v4586 = vmul.f32 %v4508, %v4256
      %v4587 = vmul.f32 %v4509, %v4257
      %v4588 = vmul.f32 %v4510, %v4258
      %v4589 = vmul.f32 %v4511, %v4259
      %v4590 = vmul.f32 %v4512, %v4260
      %v4591 = vmul.f32 %v4513, %v4261
      %v4592 = vmul.f32 %v4514, %v4262
      %v4593 = vmul.f32 %v4515, %v4263
      %v4594 = vmul.f32 %v4516, %v4264
      %v4595 = vmul.f32 %v4517, %v4265
      %v4596 = vmul.f32 %v4518, %v4266
      %v4597 = vmul.f32 %v4519, %v4267
      %v4598 = vmul.f32 %v4520, %v4268
      %v4599 = vmul.f32 %v4521, %v4269
      %v4600 = vmul.f32 %v4522, %v4270
      %v4601 = vmul.f32 %v4523, %v4271
      %v4602 = vmul.f32 %v4524, %v4272
      %v4603 = vmul.f32 %v4525, %v4273
      %v4604 = vadd.f32 %v4568, %v4569
      %v4605 = vadd.f32 %v4604, %v4570
      %v4606 = vadd.f32 %v4605, %v4571
      %v4607 = vadd.f32 %v4606, %v4572
      %v4608 = vadd.f32 %v4607, %v4573
      %v4609 = vadd.f32 %v4608, %v4574
      %v4610 = vadd.f32 %v4609, %v4575
      %v4611 = vadd.f32 %v4610, %v4576
      %v4612 = vadd.f32 %v4611, %v4577
      %v4613 = vadd.f32 %v4612, %v4578
      %v4614 = vadd.f32 %v4613, %v4579
      %v4615 = vadd.f32 %v4614, %v4580
      %v4616 = vadd.f32 %v4615, %v4581
      %v4617 = vadd.f32 %v4616, %v4582
      %v4618 = vadd.f32 %v4617, %v4583
      %v4619 = vadd.f32 %v4618, %v4584
      %v4620 = vadd.f32 %v4619, %v4585
      %v4621 = vadd.f32 %v4620, %v4586
      %v4622 = vadd.f32 %v4621, %v4587
      %v4623 = vadd.f32 %v4622, %v4588
      %v4624 = vadd.f32 %v4623, %v4589
      %v4625 = vadd.f32 %v4624, %v4590
      %v4626 = vadd.f32 %v4625, %v4591
      %v4627 = vadd.f32 %v4626, %v4592
      %v4628 = vadd.f32 %v4627, %v4593
      %v4629 = vadd.f32 %v4628, %v4594
      %v4630 = vadd.f32 %v4629, %v4595
      %v4631 = vadd.f32 %v4630, %v4596
      %v4632 = vadd.f32 %v4631, %v4597
      %v4633 = vadd.f32 %v4632, %v4598
      %v4634 = vadd.f32 %v4633, %v4599
      %v4635 = vadd.f32 %v4634, %v4600
      %v4636 = vadd.f32 %v4635, %v4601
      %v4637 = vadd.f32 %v4636, %v4602
      %v4638 = vadd.f32 %v4637, %v4603
      %v4639 = vrot.slane %v4638, 4
      %v4640 = vadd.f32 %v4638, %v4639
      %v4641 = vrot.slane %v4640, 2
      %v4642 = vadd.f32 %v4640, %v4641
      %v4643 = vrot.slane %v4642, 1
      %v4644 = vadd.f32 %v4642, %v4643
      %4645 = vst [vmem:[%s241] sm:$0x1] %v4644
      %v4646 = vpack.c.bf16 %v4239, %v4238
      %v4647 = vpack.c.bf16 %v4241, %v4240
      %v4648 = vpack.c.bf16 %v4243, %v4242
      %v4649 = vpack.c.bf16 %v4245, %v4244
      %v4650 = vpack.c.bf16 %v4247, %v4246
      %v4651 = vpack.c.bf16 %v4249, %v4248
      %v4652 = vpack.c.bf16 %v4251, %v4250
      %v4653 = vpack.c.bf16 %v4253, %v4252
      %v4654 = vpack.c.bf16 %v4255, %v4254
      %v4655 = vpack.c.bf16 %v4257, %v4256
      %v4656 = vpack.c.bf16 %v4259, %v4258
      %v4657 = vpack.c.bf16 %v4261, %v4260
      %v4658 = vpack.c.bf16 %v4263, %v4262
      %v4659 = vpack.c.bf16 %v4265, %v4264
      %v4660 = vpack.c.bf16 %v4267, %v4266
      %v4661 = vpack.c.bf16 %v4269, %v4268
      %v4662 = vpack.c.bf16 %v4271, %v4270
      %v4663 = vpack.c.bf16 %v4273, %v4272
      %v4682 = vunpack.c.l.b16 %v4646
      %v4683 = vunpack.c.h.b16 %v4646
      %v4684 = vunpack.c.l.b16 %v4647
      %v4685 = vunpack.c.h.b16 %v4647
      %v4686 = vunpack.c.l.b16 %v4648
      %v4687 = vunpack.c.h.b16 %v4648
      %v4688 = vunpack.c.l.b16 %v4649
      %v4689 = vunpack.c.h.b16 %v4649
      %v4690 = vunpack.c.l.b16 %v4650
      %v4691 = vunpack.c.h.b16 %v4650
      %v4692 = vunpack.c.l.b16 %v4651
      %v4693 = vunpack.c.h.b16 %v4651
      %v4694 = vunpack.c.l.b16 %v4652
      %v4695 = vunpack.c.h.b16 %v4652
      %v4696 = vunpack.c.l.b16 %v4653
      %v4697 = vunpack.c.h.b16 %v4653
      %v4698 = vunpack.c.l.b16 %v4654
      %v4699 = vunpack.c.h.b16 %v4654
      %v4700 = vunpack.c.l.b16 %v4655
      %v4701 = vunpack.c.h.b16 %v4655
      %v4702 = vunpack.c.l.b16 %v4656
      %v4703 = vunpack.c.h.b16 %v4656
      %v4704 = vunpack.c.l.b16 %v4657
      %v4705 = vunpack.c.h.b16 %v4657
      %v4706 = vunpack.c.l.b16 %v4658
      %v4707 = vunpack.c.h.b16 %v4658
      %v4708 = vunpack.c.l.b16 %v4659
      %v4709 = vunpack.c.h.b16 %v4659
      %v4710 = vunpack.c.l.b16 %v4660
      %v4711 = vunpack.c.h.b16 %v4660
      %v4712 = vunpack.c.l.b16 %v4661
      %v4713 = vunpack.c.h.b16 %v4661
      %v4714 = vunpack.c.l.b16 %v4662
      %v4715 = vunpack.c.h.b16 %v4662
      %v4716 = vunpack.c.l.b16 %v4663
      %v4717 = vunpack.c.h.b16 %v4663
      %v4718 = vpack.c.b16 %v4682, %v4682
      %v4719 = vpack.c.b16 %v4683, %v4683
      %v4720 = vpack.c.b16 %v4684, %v4684
      %v4721 = vpack.c.b16 %v4685, %v4685
      %v4722 = vpack.c.b16 %v4686, %v4686
      %v4723 = vpack.c.b16 %v4687, %v4687
      %v4724 = vpack.c.b16 %v4688, %v4688
      %v4725 = vpack.c.b16 %v4689, %v4689
      %v4726 = vpack.c.b16 %v4690, %v4690
      %v4727 = vpack.c.b16 %v4691, %v4691
      %v4728 = vpack.c.b16 %v4692, %v4692
      %v4729 = vpack.c.b16 %v4693, %v4693
      %v4730 = vpack.c.b16 %v4694, %v4694
      %v4731 = vpack.c.b16 %v4695, %v4695
      %v4732 = vpack.c.b16 %v4696, %v4696
      %v4733 = vpack.c.b16 %v4697, %v4697
      %v4734 = vpack.c.b16 %v4698, %v4698
      %v4735 = vpack.c.b16 %v4699, %v4699
      %v4736 = vpack.c.b16 %v4700, %v4700
      %v4737 = vpack.c.b16 %v4701, %v4701
      %v4738 = vpack.c.b16 %v4702, %v4702
      %v4739 = vpack.c.b16 %v4703, %v4703
      %v4740 = vpack.c.b16 %v4704, %v4704
      %v4741 = vpack.c.b16 %v4705, %v4705
      %v4742 = vpack.c.b16 %v4706, %v4706
      %v4743 = vpack.c.b16 %v4707, %v4707
      %v4744 = vpack.c.b16 %v4708, %v4708
      %v4745 = vpack.c.b16 %v4709, %v4709
      %v4746 = vpack.c.b16 %v4710, %v4710
      %v4747 = vpack.c.b16 %v4711, %v4711
      %v4748 = vpack.c.b16 %v4712, %v4712
      %v4749 = vpack.c.b16 %v4713, %v4713
      %v4750 = vpack.c.b16 %v4714, %v4714
      %v4751 = vpack.c.b16 %v4715, %v4715
      %v4752 = vpack.c.b16 %v4716, %v4716
      %v4753 = vpack.c.b16 %v4717, %v4717
      %4790 = vst [vmem:[%s235] sm:$0xf] %v4718
      %4791 = vst [vmem:[%s235 + $0x4] sm:$0xf] %v4719
      %4792 = vst [vmem:[%s235 + $0x8] sm:$0xf] %v4720
      %4793 = vst [vmem:[%s235 + $0xc] sm:$0xf] %v4721
      %4794 = vst [vmem:[%s235 + $0x10] sm:$0xf] %v4722
      %4795 = vst [vmem:[%s235 + $0x14] sm:$0xf] %v4723
      %4796 = vst [vmem:[%s235 + $0x18] sm:$0xf] %v4724
      %4797 = vst [vmem:[%s235 + $0x1c] sm:$0xf] %v4725
      %4798 = vst [vmem:[%s235 + $0x20] sm:$0xf] %v4726
      %4799 = vst [vmem:[%s235 + $0x24] sm:$0xf] %v4727
      %4800 = vst [vmem:[%s235 + $0x28] sm:$0xf] %v4728
      %4801 = vst [vmem:[%s235 + $0x2c] sm:$0xf] %v4729
      %4802 = vst [vmem:[%s235 + $0x30] sm:$0xf] %v4730
      %4803 = vst [vmem:[%s235 + $0x34] sm:$0xf] %v4731
      %4804 = vst [vmem:[%s235 + $0x38] sm:$0xf] %v4732
      %4805 = vst [vmem:[%s235 + $0x3c] sm:$0xf] %v4733
      %4806 = vst [vmem:[%s235 + $0x40] sm:$0xf] %v4734
      %4807 = vst [vmem:[%s235 + $0x44] sm:$0xf] %v4735
      %4808 = vst [vmem:[%s235 + $0x48] sm:$0xf] %v4736
      %4809 = vst [vmem:[%s235 + $0x4c] sm:$0xf] %v4737
      %4810 = vst [vmem:[%s235 + $0x50] sm:$0xf] %v4738
      %4811 = vst [vmem:[%s235 + $0x54] sm:$0xf] %v4739
      %4812 = vst [vmem:[%s235 + $0x58] sm:$0xf] %v4740
      %4813 = vst [vmem:[%s235 + $0x5c] sm:$0xf] %v4741
      %4814 = vst [vmem:[%s235 + $0x60] sm:$0xf] %v4742
      %4815 = vst [vmem:[%s235 + $0x64] sm:$0xf] %v4743
      %4816 = vst [vmem:[%s235 + $0x68] sm:$0xf] %v4744
      %4817 = vst [vmem:[%s235 + $0x6c] sm:$0xf] %v4745
      %4818 = vst [vmem:[%s235 + $0x70] sm:$0xf] %v4746
      %4819 = vst [vmem:[%s235 + $0x74] sm:$0xf] %v4747
      %4820 = vst [vmem:[%s235 + $0x78] sm:$0xf] %v4748
      %4821 = vst [vmem:[%s235 + $0x7c] sm:$0xf] %v4749
      %4822 = vst [vmem:[%s235 + $0x80] sm:$0xf] %v4750
      %4823 = vst [vmem:[%s235 + $0x84] sm:$0xf] %v4751
      %4824 = vst [vmem:[%s235 + $0x88] sm:$0xf] %v4752
      %4825 = vst [vmem:[%s235 + $0x8c] sm:$0xf] %v4753
      %p4826 = scmp.lt.s32.totalorder %s17, 1
      %s4827 = scalar_select %p4826, %s17, 1
      %s4828 = smul.addr %s4827, 36
      %s4829 = smul.addr %s4828, 4
      %s4830 = scalar_lea.vmem %s3, %s4829
      %p4831 = scmp.lt.s32.totalorder %s17, 1
      %s4832 = scalar_select %p4831, %s17, 1
      %s4833 = scalar_lea.vmem %s4, %s4832
      %p4834 = scmp.lt.s32.totalorder %s17, 1
      %s4835 = scalar_select %p4834, %s17, 1
      %s4836 = scalar_lea.vmem %s5, %s4835
      // Predicated region
      $region33: #{unet_conv2_forward.6} parent=31 // pred_check
        %p4837 = pneg %p103
      $region34: #{unet_conv2_forward.6} parent=31 // pred_check_branch
        %4839 = sbr.rel (%p4837) target = $region36
      $region35: #{unet_conv2_forward.6} parent=31 // pred_region
        _
      $region36: #{unet_conv2_forward.6} parent=31 // pred_fallthru
        _
      // Predicated region
      $region37: #{unet_conv2_forward.6} parent=31 // pred_check
        %p4840 = pneg %p129
      $region38: #{unet_conv2_forward.6} parent=31 // pred_check_branch
        %4842 = sbr.rel (%p4840) target = $region40
      $region39: #{unet_conv2_forward.6} parent=31 // pred_region
        _
      $region40: #{unet_conv2_forward.6} parent=31 // pred_fallthru
        _
      // Predicated region
      $region41: #{unet_conv2_forward.6} parent=31 // pred_check
        %p4843 = pneg %p155
      $region42: #{unet_conv2_forward.6} parent=31 // pred_check_branch
        %4845 = sbr.rel (%p4843) target = $region44
      $region43: #{unet_conv2_forward.6} parent=31 // pred_region
        _
      $region44: #{unet_conv2_forward.6} parent=31 // pred_fallthru
        _
    $region32: #{unet_conv2_forward.6} parent=5 // pred_fallthru
      _
    %p4846 = scmp.le.s32.totalorder 2, %s12
    // Predicated region
    $region45: #{unet_conv2_forward.6} parent=5 // pred_check
      %p4847 = pneg %p4846
    $region46: #{unet_conv2_forward.6} parent=5 // pred_check_branch
      %4849 = sbr.rel (%p4847) target = $region48
    $region47: #{unet_conv2_forward.6} parent=5 // pred_region
      %s4850 = ssub.s32 %s12, 2
      // Predicated region
      $region49: #{unet_conv2_forward.6} parent=47 // pred_check
        %p4851 = pneg %p109
      $region50: #{unet_conv2_forward.6} parent=47 // pred_check_branch
        %4853 = sbr.rel (%p4851) target = $region52
      $region51: #{unet_conv2_forward.6} parent=47 // pred_region
        %p4854 = scmp.lt.s32.totalorder %s18, 1
        %s4855 = scalar_select %p4854, %s18, 1
        %s4856 = smul.addr %s4855, 36
        %s4857 = smul.addr %s4856, 4
        %s4858 = scalar_lea.vmem %s3, %s4857
      $region52: #{unet_conv2_forward.6} parent=47 // pred_fallthru
        _
      // Predicated region
      $region53: #{unet_conv2_forward.6} parent=47 // pred_check
        %p4859 = pneg %p135
      $region54: #{unet_conv2_forward.6} parent=47 // pred_check_branch
        %4861 = sbr.rel (%p4859) target = $region56
      $region55: #{unet_conv2_forward.6} parent=47 // pred_region
        %p4862 = scmp.lt.s32.totalorder %s18, 1
        %s4863 = scalar_select %p4862, %s18, 1
        %s4864 = scalar_lea.vmem %s4, %s4863
      $region56: #{unet_conv2_forward.6} parent=47 // pred_fallthru
        _
      // Predicated region
      $region57: #{unet_conv2_forward.6} parent=47 // pred_check
        %p4865 = pneg %p161
      $region58: #{unet_conv2_forward.6} parent=47 // pred_check_branch
        %4867 = sbr.rel (%p4865) target = $region60
      $region59: #{unet_conv2_forward.6} parent=47 // pred_region
        %p4868 = scmp.lt.s32.totalorder %s18, 1
        %s4869 = scalar_select %p4868, %s18, 1
        %s4870 = scalar_lea.vmem %s5, %s4869
      $region60: #{unet_conv2_forward.6} parent=47 // pred_fallthru
        _
    $region48: #{unet_conv2_forward.6} parent=5 // pred_fallthru
      _
  $region6: #{unet_conv2_forward.6} parent=0 // loop_footer
    %s16 = sadd.s32 1, %s12
  $region7: #{unet_conv2_forward.6} parent=0 // loop_footer_branch
    %11 = sbr.rel target = $region3
  $region8: #{unet_conv2_forward.6} parent=0 // loop_exit
    _

</llo_original>
